<compile_context>
chip_gen: v7x
topology: tpu7x:2x2x1
jax: 0.10.0
libtpu: 0.0.40
codegen_flags: <defaults>
</compile_context>

<pallas_src>
import math
import functools

import jax
import jax.numpy as jnp
from jax.experimental import pallas as pl
from jax.experimental.pallas import tpu as pltpu


# ----------------------------- in-kernel helpers -----------------------------

def _layernorm(h, g_ref, b_ref):
    # post-norm LayerNorm over last dim, eps = 1e-5 (PyTorch default)
    mu = jnp.mean(h, axis=-1, keepdims=True)
    c = h - mu
    var = jnp.mean(c * c, axis=-1, keepdims=True)
    return c * jax.lax.rsqrt(var + 1e-5) * g_ref[...] + b_ref[...]


def _mha(q_in, kv_in, wqkv_ref, bqkv_ref, wo_ref, bo_ref):
    """PyTorch nn.MultiheadAttention (no mask), single batch element.

    q_in: [Lq, E], kv_in: [Lk, E]
    wqkv_ref: [3*H, E, Dh]   (rows 0..H-1 = Q heads, H..2H-1 = K, 2H..3H-1 = V)
    bqkv_ref: [3*H, 1, Dh]
    wo_ref:   [H, Dh, E],  bo_ref: [1, E]
    """
    H, Dh, _ = wo_ref.shape
    scale = 1.0 / math.sqrt(Dh)
    out = None
    for h in range(H):                                   # static unrolled head loop
        q = jnp.dot(q_in, wqkv_ref[h], preferred_element_type=jnp.float32) + bqkv_ref[h]
        k = jnp.dot(kv_in, wqkv_ref[H + h], preferred_element_type=jnp.float32) + bqkv_ref[H + h]
        v = jnp.dot(kv_in, wqkv_ref[2 * H + h], preferred_element_type=jnp.float32) + bqkv_ref[2 * H + h]
        s = jax.lax.dot_general(q, k, (((1,), (1,)), ((), ())),
                                preferred_element_type=jnp.float32) * scale   # [Lq, Lk]
        p = jnp.exp(s - jnp.max(s, axis=-1, keepdims=True))
        p = p * pl.reciprocal(jnp.sum(p, axis=-1, keepdims=True), approx=True)
        ctx = jnp.dot(p, v, preferred_element_type=jnp.float32)               # [Lq, Dh]
        part = jnp.dot(ctx, wo_ref[h], preferred_element_type=jnp.float32)    # [Lq, E]
        out = part if out is None else out + part
    return out + bo_ref[...]


# --------------------------------- kernels -----------------------------------

def _encoder_layer_kernel(x_ref, pe_ref,
                          wqkv_ref, bqkv_ref, wo_ref, bo_ref,
                          ln1g_ref, ln1b_ref,
                          w1_ref, b1_ref, w2_ref, b2_ref,
                          ln2g_ref, ln2b_ref,
                          o_ref):
    _, L, E = x_ref.shape
    # pos-encoding add fused here (dropout = identity); embedding already pre-scaled.
    x = (x_ref[...] + pe_ref[...]).reshape(L, E)
    a = _mha(x, x, wqkv_ref, bqkv_ref, wo_ref, bo_ref)
    h1 = _layernorm(x + a, ln1g_ref, ln1b_ref)
    ff = jnp.maximum(
        jnp.dot(h1, w1_ref[...], preferred_element_type=jnp.float32) + b1_ref[...], 0.0)
    ff = jnp.dot(ff, w2_ref[...], preferred_element_type=jnp.float32) + b2_ref[...]
    h2 = _layernorm(h1 + ff, ln2g_ref, ln2b_ref)
    o_ref[...] = h2.reshape(1, L, E)


def _decoder_layer_kernel(x_ref, pe_ref, mem_ref,
                          s_wqkv_ref, s_bqkv_ref, s_wo_ref, s_bo_ref,
                          ln1g_ref, ln1b_ref,
                          c_wqkv_ref, c_bqkv_ref, c_wo_ref, c_bo_ref,
                          ln2g_ref, ln2b_ref,
                          w1_ref, b1_ref, w2_ref, b2_ref,
                          ln3g_ref, ln3b_ref,
                          o_ref):
    _, Lt, E = x_ref.shape
    _, Ls, _ = mem_ref.shape
    x = (x_ref[...] + pe_ref[...]).reshape(Lt, E)
    mem = mem_ref[...].reshape(Ls, E)
    a = _mha(x, x, s_wqkv_ref, s_bqkv_ref, s_wo_ref, s_bo_ref)
    h1 = _layernorm(x + a, ln1g_ref, ln1b_ref)
    c = _mha(h1, mem, c_wqkv_ref, c_bqkv_ref, c_wo_ref, c_bo_ref)
    h2 = _layernorm(h1 + c, ln2g_ref, ln2b_ref)
    ff = jnp.maximum(
        jnp.dot(h2, w1_ref[...], preferred_element_type=jnp.float32) + b1_ref[...], 0.0)
    ff = jnp.dot(ff, w2_ref[...], preferred_element_type=jnp.float32) + b2_ref[...]
    h3 = _layernorm(h2 + ff, ln3g_ref, ln3b_ref)
    o_ref[...] = h3.reshape(1, Lt, E)


def _proj_logsoftmax_kernel(x_ref, w_ref, b_ref, o_ref):
    _, L, E = x_ref.shape
    x = x_ref[...].reshape(L, E)
    logits = jnp.dot(x, w_ref[...], preferred_element_type=jnp.float32) + b_ref[...]
    m = jnp.max(logits, axis=-1, keepdims=True)
    s = logits - m
    lse = jnp.log(jnp.sum(jnp.exp(s), axis=-1, keepdims=True))
    o_ref[...] = (s - lse).reshape(o_ref.shape)


# ------------------------------ kernel wrappers -------------------------------

def _full_spec(a):
    nd = a.ndim
    return pl.BlockSpec(a.shape, lambda b, nd=nd: (0,) * nd)   # whole-array block, fetched once


_PAR = pltpu.CompilerParams(dimension_semantics=("parallel",))   # shard batch across TCs (v7x)


def encoder_layer(x, pe, p):
    B, L, E = x.shape
    weight_args = (p['wqkv'], p['bqkv'], p['wo'], p['bo'],
                   p['ln1g'], p['ln1b'],
                   p['w1'], p['b1'], p['w2'], p['b2'],
                   p['ln2g'], p['ln2b'])
    in_specs = ([pl.BlockSpec((1, L, E), lambda b: (b, 0, 0)), _full_spec(pe)]
                + [_full_spec(a) for a in weight_args])
    return pl.pallas_call(
        _encoder_layer_kernel,
        grid=(B,),
        out_shape=jax.ShapeDtypeStruct((B, L, E), jnp.float32),
        in_specs=in_specs,
        out_specs=pl.BlockSpec((1, L, E), lambda b: (b, 0, 0)),
        compiler_params=_PAR,
    )(x, pe, *weight_args)


def decoder_layer(x, pe, memory, p):
    B, Lt, E = x.shape
    Ls = memory.shape[1]
    weight_args = (p['s_wqkv'], p['s_bqkv'], p['s_wo'], p['s_bo'],
                   p['ln1g'], p['ln1b'],
                   p['c_wqkv'], p['c_bqkv'], p['c_wo'], p['c_bo'],
                   p['ln2g'], p['ln2b'],
                   p['w1'], p['b1'], p['w2'], p['b2'],
                   p['ln3g'], p['ln3b'])
    in_specs = ([pl.BlockSpec((1, Lt, E), lambda b: (b, 0, 0)),
                 _full_spec(pe),
                 pl.BlockSpec((1, Ls, E), lambda b: (b, 0, 0))]
                + [_full_spec(a) for a in weight_args])
    return pl.pallas_call(
        _decoder_layer_kernel,
        grid=(B,),
        out_shape=jax.ShapeDtypeStruct((B, Lt, E), jnp.float32),
        in_specs=in_specs,
        out_specs=pl.BlockSpec((1, Lt, E), lambda b: (b, 0, 0)),
        compiler_params=_PAR,
    )(x, pe, memory, *weight_args)


def proj_log_softmax(x, w, b):
    B, Lt, E = x.shape
    V = w.shape[1]
    return pl.pallas_call(
        _proj_logsoftmax_kernel,
        grid=(B,),
        out_shape=jax.ShapeDtypeStruct((B, Lt, V), jnp.float32),
        in_specs=[pl.BlockSpec((1, Lt, E), lambda i: (i, 0, 0)),
                  _full_spec(w), _full_spec(b)],
        out_specs=pl.BlockSpec((1, Lt, V), lambda i: (i, 0, 0)),
        compiler_params=_PAR,
    )(x, w, b)


# --------------------------------- forward ------------------------------------

def trans_seq2seq_forward(params, src_tok, tgt_tok, tgtlng=None,
                          teacher_forcing_ratio=1.0, *, cfg):
    # src_tok/tgt_tok: int32 [seq_len, batch]; tgtlng unused (matches PyTorch signature)
    del tgtlng, teacher_forcing_ratio, cfg
    Ls, _ = src_tok.shape
    Lt, _ = tgt_tok.shape
    emb_tab = params['embedding']            # already scaled by sqrt(input_dim)
    src = emb_tab[src_tok.T]                 # gather in plain JAX -> [B, Ls, E] (batch-first)
    tgt = emb_tab[tgt_tok.T]                 # [B, Lt, E]
    pe_s = params['pe'][None, :Ls, :]        # [1, Ls, E]
    pe_t = params['pe'][None, :Lt, :]        # [1, Lt, E]
    memory = encoder_layer(src, pe_s, params['enc'])
    out = decoder_layer(tgt, pe_t, memory, params['dec'])
    logp = proj_log_softmax(out, params['proj_w'], params['proj_b'])
    return jnp.transpose(logp, (1, 0, 2))    # -> [Lt, B, nout] (PyTorch seq-major layout)


# ------------------------------- parameters ------------------------------------

def make_positional_encoding(max_len, d_model):
    pos = jnp.arange(max_len, dtype=jnp.float32)[:, None]
    div = jnp.exp(jnp.arange(0, d_model, 2, dtype=jnp.float32)
                  * (-math.log(10000.0) / d_model))
    pe = jnp.zeros((max_len, d_model), jnp.float32)
    pe = pe.at[:, 0::2].set(jnp.sin(pos * div))
    pe = pe.at[:, 1::2].set(jnp.cos(pos * div))
    return pe                                 # [max_len, d_model]


def init_params(key, nout, emb, nhead, ffn, pad_idx, max_len):
    Dh = emb // nhead
    keys = iter(jax.random.split(key, 64))

    def nrm(shape, s=0.05):
        return s * jax.random.normal(next(keys), shape, jnp.float32)

    def mha_p(prefix=''):
        in_w = nrm((3 * emb, emb))            # PyTorch in_proj_weight (out, in)
        in_b = nrm((3 * emb,))
        out_w = nrm((emb, emb))               # PyTorch out_proj.weight (out, in)
        out_b = nrm((emb,))
        # pre-transpose + head-split into kernel-ready layouts (done once, at init):
        return {
            prefix + 'wqkv': in_w.reshape(3 * nhead, Dh, emb).transpose(0, 2, 1),  # [3H, E, Dh]
            prefix + 'bqkv': in_b.reshape(3 * nhead, 1, Dh),                       # [3H, 1, Dh]
            prefix + 'wo':   out_w.T.reshape(nhead, Dh, emb),                      # [H, Dh, E]
            prefix + 'bo':   out_b.reshape(1, emb),
        }

    def ln_p(name):
        return {name + 'g': jnp.ones((1, emb), jnp.float32),
                name + 'b': jnp.zeros((1, emb), jnp.float32)}

    def ffn_p():
        w1 = nrm((ffn, emb)); b1 = nrm((ffn,))    # PyTorch linear1 (out, in)
        w2 = nrm((emb, ffn)); b2 = nrm((emb,))    # PyTorch linear2 (out, in)
        return dict(w1=w1.T, b1=b1.reshape(1, ffn), w2=w2.T, b2=b2.reshape(1, emb))

    embedding = nrm((nout, emb), s=1.0).at[pad_idx].set(0.0)   # padding_idx row zeroed
    embedding = embedding * math.sqrt(nout)                    # fold x * sqrt(input_dim)

    enc = {**mha_p(), **ln_p('ln1'), **ffn_p(), **ln_p('ln2')}
    dec = {**mha_p('s_'), **ln_p('ln1'), **mha_p('c_'), **ln_p('ln2'),
           **ffn_p(), **ln_p('ln3')}

    proj_w = nrm((nout, emb))                                  # PyTorch (out, in)
    proj_b = nrm((nout,))
    return dict(embedding=embedding,
                pe=make_positional_encoding(max_len, emb),
                enc=enc, dec=dec,
                proj_w=proj_w.T, proj_b=proj_b.reshape(1, nout))


# ---------------------------------- main ---------------------------------------

if __name__ == "__main__":
    nout, emb_dim, nhead, ffn, pad_idx = 20, 32, 4, 64, 2
    src_len, tgt_len, batch = 10, 8, 2

    key = jax.random.PRNGKey(0)
    k_param, k_src, k_tgt = jax.random.split(key, 3)

    params = init_params(k_param, nout, emb_dim, nhead, ffn, pad_idx, max_len=64)
    src_tok = jax.random.randint(k_src, (src_len, batch), 0, nout, dtype=jnp.int32)
    tgt_tok = jax.random.randint(k_tgt, (tgt_len, batch), 0, nout, dtype=jnp.int32)

    cfg = dict(emb=emb_dim, nout=nout, nhead=nhead)
    fwd = jax.jit(functools.partial(trans_seq2seq_forward, cfg=cfg))
    out = jax.block_until_ready(fwd(params, src_tok, tgt_tok))

    assert out.shape == (tgt_len, batch, nout), out.shape
    assert out.dtype == jnp.float32
    # log_softmax sanity: probabilities sum to 1 along last dim
    assert bool(jnp.allclose(jnp.sum(jnp.exp(out), axis=-1), 1.0, atol=1e-4))
    assert bool(jnp.all(jnp.isfinite(out)))
    print("KERNEL_OK")
</pallas_src>

<mosaic_0001>
module attributes {stable_mosaic.version = 11 : i64} {
  func.func @_encoder_layer_kernel(%arg0: i32, %arg1: memref<1x10x32xf32, #tpu.memory_space<vmem>>, %arg2: memref<1x10x32xf32, #tpu.memory_space<vmem>>, %arg3: memref<12x32x8xf32, #tpu.memory_space<vmem>>, %arg4: memref<12x1x8xf32, #tpu.memory_space<vmem>>, %arg5: memref<4x8x32xf32, #tpu.memory_space<vmem>>, %arg6: memref<1x32xf32, #tpu.memory_space<vmem>>, %arg7: memref<1x32xf32, #tpu.memory_space<vmem>>, %arg8: memref<1x32xf32, #tpu.memory_space<vmem>>, %arg9: memref<32x64xf32, #tpu.memory_space<vmem>>, %arg10: memref<1x64xf32, #tpu.memory_space<vmem>>, %arg11: memref<64x32xf32, #tpu.memory_space<vmem>>, %arg12: memref<1x32xf32, #tpu.memory_space<vmem>>, %arg13: memref<1x32xf32, #tpu.memory_space<vmem>>, %arg14: memref<1x32xf32, #tpu.memory_space<vmem>>, %arg15: memref<1x10x32xf32, #tpu.memory_space<vmem>>) attributes {dimension_semantics = [#tpu.dimension_semantics<parallel>], iteration_bounds = array<i64: 2>, scalar_prefetch = 0 : i64, scratch_operands = 0 : i64, tpu.core_type = #tpu.core_type<tc>, window_params = [{transform_indices = @transform_0, window_bounds = array<i64: 1, 10, 32>}, {pipeline_mode = #tpu.pipeline_mode<synchronous>, transform_indices = @transform_1, window_bounds = array<i64: 1, 10, 32>}, {pipeline_mode = #tpu.pipeline_mode<synchronous>, transform_indices = @transform_2, window_bounds = array<i64: 12, 32, 8>}, {pipeline_mode = #tpu.pipeline_mode<synchronous>, transform_indices = @transform_3, window_bounds = array<i64: 12, 1, 8>}, {pipeline_mode = #tpu.pipeline_mode<synchronous>, transform_indices = @transform_4, window_bounds = array<i64: 4, 8, 32>}, {pipeline_mode = #tpu.pipeline_mode<synchronous>, transform_indices = @transform_5, window_bounds = array<i64: 1, 32>}, {pipeline_mode = #tpu.pipeline_mode<synchronous>, transform_indices = @transform_6, window_bounds = array<i64: 1, 32>}, {pipeline_mode = #tpu.pipeline_mode<synchronous>, transform_indices = @transform_7, window_bounds = array<i64: 1, 32>}, {pipeline_mode = #tpu.pipeline_mode<synchronous>, transform_indices = @transform_8, window_bounds = array<i64: 32, 64>}, {pipeline_mode = #tpu.pipeline_mode<synchronous>, transform_indices = @transform_9, window_bounds = array<i64: 1, 64>}, {pipeline_mode = #tpu.pipeline_mode<synchronous>, transform_indices = @transform_10, window_bounds = array<i64: 64, 32>}, {pipeline_mode = #tpu.pipeline_mode<synchronous>, transform_indices = @transform_11, window_bounds = array<i64: 1, 32>}, {pipeline_mode = #tpu.pipeline_mode<synchronous>, transform_indices = @transform_12, window_bounds = array<i64: 1, 32>}, {pipeline_mode = #tpu.pipeline_mode<synchronous>, transform_indices = @transform_13, window_bounds = array<i64: 1, 32>}, {transform_indices = @transform_14, window_bounds = array<i64: 1, 10, 32>}]} {
    %c0 = arith.constant 0 : index
    %c0_0 = arith.constant 0 : index
    %c0_1 = arith.constant 0 : index
    %0 = vector.load %arg1[%c0, %c0_0, %c0_1] : memref<1x10x32xf32, #tpu.memory_space<vmem>>, vector<1x10x32xf32>
    %c0_2 = arith.constant 0 : index
    %c0_3 = arith.constant 0 : index
    %c0_4 = arith.constant 0 : index
    %1 = vector.load %arg2[%c0_2, %c0_3, %c0_4] : memref<1x10x32xf32, #tpu.memory_space<vmem>>, vector<1x10x32xf32>
    %2 = arith.addf %0, %1 : vector<1x10x32xf32>
    %3 = vector.shape_cast %2 : vector<1x10x32xf32> to vector<10x32xf32>
    %c0_5 = arith.constant 0 : index
    %c0_6 = arith.constant 0 : index
    %c0_7 = arith.constant 0 : index
    %4 = vector.load %arg3[%c0_5, %c0_6, %c0_7] : memref<12x32x8xf32, #tpu.memory_space<vmem>>, vector<1x32x8xf32>
    %5 = vector.shape_cast %4 : vector<1x32x8xf32> to vector<32x8xf32>
    %cst = arith.constant dense<0.000000e+00> : vector<10x8xf32>
    %6 = tpu.matmul %3, %5, %cst {dimension_numbers = #tpu.dot_dimension_numbers<[1], [0], [0], [1], [0, 0, 1, 1], [], []>} : vector<10x32xf32>, vector<32x8xf32>, vector<10x8xf32> -> vector<10x8xf32>
    %c0_8 = arith.constant 0 : index
    %c0_9 = arith.constant 0 : index
    %c0_10 = arith.constant 0 : index
    %7 = vector.load %arg4[%c0_8, %c0_9, %c0_10] : memref<12x1x8xf32, #tpu.memory_space<vmem>>, vector<1x1x8xf32>
    %8 = vector.shape_cast %7 : vector<1x1x8xf32> to vector<1x8xf32>
    %9 = vector.broadcast %8 : vector<1x8xf32> to vector<10x8xf32>
    %10 = arith.addf %6, %9 : vector<10x8xf32>
    %c4 = arith.constant 4 : index
    %c0_11 = arith.constant 0 : index
    %c0_12 = arith.constant 0 : index
    %11 = vector.load %arg3[%c4, %c0_11, %c0_12] : memref<12x32x8xf32, #tpu.memory_space<vmem>>, vector<1x32x8xf32>
    %12 = vector.shape_cast %11 : vector<1x32x8xf32> to vector<32x8xf32>
    %cst_13 = arith.constant dense<0.000000e+00> : vector<10x8xf32>
    %13 = tpu.matmul %3, %12, %cst_13 {dimension_numbers = #tpu.dot_dimension_numbers<[1], [0], [0], [1], [0, 0, 1, 1], [], []>} : vector<10x32xf32>, vector<32x8xf32>, vector<10x8xf32> -> vector<10x8xf32>
    %c4_14 = arith.constant 4 : index
    %c0_15 = arith.constant 0 : index
    %c0_16 = arith.constant 0 : index
    %14 = vector.load %arg4[%c4_14, %c0_15, %c0_16] : memref<12x1x8xf32, #tpu.memory_space<vmem>>, vector<1x1x8xf32>
    %15 = vector.shape_cast %14 : vector<1x1x8xf32> to vector<1x8xf32>
    %16 = vector.broadcast %15 : vector<1x8xf32> to vector<10x8xf32>
    %17 = arith.addf %13, %16 : vector<10x8xf32>
    %c8 = arith.constant 8 : index
    %c0_17 = arith.constant 0 : index
    %c0_18 = arith.constant 0 : index
    %18 = vector.load %arg3[%c8, %c0_17, %c0_18] : memref<12x32x8xf32, #tpu.memory_space<vmem>>, vector<1x32x8xf32>
    %19 = vector.shape_cast %18 : vector<1x32x8xf32> to vector<32x8xf32>
    %cst_19 = arith.constant dense<0.000000e+00> : vector<10x8xf32>
    %20 = tpu.matmul %3, %19, %cst_19 {dimension_numbers = #tpu.dot_dimension_numbers<[1], [0], [0], [1], [0, 0, 1, 1], [], []>} : vector<10x32xf32>, vector<32x8xf32>, vector<10x8xf32> -> vector<10x8xf32>
    %c8_20 = arith.constant 8 : index
    %c0_21 = arith.constant 0 : index
    %c0_22 = arith.constant 0 : index
    %21 = vector.load %arg4[%c8_20, %c0_21, %c0_22] : memref<12x1x8xf32, #tpu.memory_space<vmem>>, vector<1x1x8xf32>
    %22 = vector.shape_cast %21 : vector<1x1x8xf32> to vector<1x8xf32>
    %23 = vector.broadcast %22 : vector<1x8xf32> to vector<10x8xf32>
    %24 = arith.addf %20, %23 : vector<10x8xf32>
    %cst_23 = arith.constant dense<0.000000e+00> : vector<10x10xf32>
    %25 = tpu.matmul %10, %17, %cst_23 {dimension_numbers = #tpu.dot_dimension_numbers<[1], [1], [0], [0], [0, 0, 1, 0], [], []>} : vector<10x8xf32>, vector<10x8xf32>, vector<10x10xf32> -> vector<10x10xf32>
    %cst_24 = arith.constant 0.353553385 : f32
    %26 = vector.broadcast %cst_24 : f32 to vector<10x10xf32>
    %27 = arith.mulf %25, %26 : vector<10x10xf32>
    %cst_25 = arith.constant dense<0xFF800000> : vector<10xf32>
    %28 = vector.multi_reduction <maximumf>, %27, %cst_25 [1] : vector<10x10xf32> to vector<10xf32>
    %29 = vector.shape_cast %28 : vector<10xf32> to vector<10x1xf32>
    %30 = vector.broadcast %29 : vector<10x1xf32> to vector<10x10xf32>
    %31 = arith.subf %27, %30 : vector<10x10xf32>
    %32 = math.exp %31 : vector<10x10xf32>
    %cst_26 = arith.constant dense<0.000000e+00> : vector<10xf32>
    %33 = vector.multi_reduction <add>, %32, %cst_26 [1] : vector<10x10xf32> to vector<10xf32>
    %34 = vector.shape_cast %33 : vector<10xf32> to vector<10x1xf32>
    %35 = tpu.reciprocal %34 {approx = true} : vector<10x1xf32> -> vector<10x1xf32>
    %36 = vector.broadcast %35 : vector<10x1xf32> to vector<10x10xf32>
    %37 = arith.mulf %32, %36 : vector<10x10xf32>
    %cst_27 = arith.constant dense<0.000000e+00> : vector<10x8xf32>
    %38 = tpu.matmul %37, %24, %cst_27 {dimension_numbers = #tpu.dot_dimension_numbers<[1], [0], [0], [1], [0, 0, 1, 1], [], []>} : vector<10x10xf32>, vector<10x8xf32>, vector<10x8xf32> -> vector<10x8xf32>
    %c0_28 = arith.constant 0 : index
    %c0_29 = arith.constant 0 : index
    %c0_30 = arith.constant 0 : index
    %39 = vector.load %arg5[%c0_28, %c0_29, %c0_30] : memref<4x8x32xf32, #tpu.memory_space<vmem>>, vector<1x8x32xf32>
    %40 = vector.shape_cast %39 : vector<1x8x32xf32> to vector<8x32xf32>
    %cst_31 = arith.constant dense<0.000000e+00> : vector<10x32xf32>
    %41 = tpu.matmul %38, %40, %cst_31 {dimension_numbers = #tpu.dot_dimension_numbers<[1], [0], [0], [1], [0, 0, 1, 1], [], []>} : vector<10x8xf32>, vector<8x32xf32>, vector<10x32xf32> -> vector<10x32xf32>
    %c1 = arith.constant 1 : index
    %c0_32 = arith.constant 0 : index
    %c0_33 = arith.constant 0 : index
    %42 = vector.load %arg3[%c1, %c0_32, %c0_33] : memref<12x32x8xf32, #tpu.memory_space<vmem>>, vector<1x32x8xf32>
    %43 = vector.shape_cast %42 : vector<1x32x8xf32> to vector<32x8xf32>
    %cst_34 = arith.constant dense<0.000000e+00> : vector<10x8xf32>
    %44 = tpu.matmul %3, %43, %cst_34 {dimension_numbers = #tpu.dot_dimension_numbers<[1], [0], [0], [1], [0, 0, 1, 1], [], []>} : vector<10x32xf32>, vector<32x8xf32>, vector<10x8xf32> -> vector<10x8xf32>
    %c1_35 = arith.constant 1 : index
    %c0_36 = arith.constant 0 : index
    %c0_37 = arith.constant 0 : index
    %45 = vector.load %arg4[%c1_35, %c0_36, %c0_37] : memref<12x1x8xf32, #tpu.memory_space<vmem>>, vector<1x1x8xf32>
    %46 = vector.shape_cast %45 : vector<1x1x8xf32> to vector<1x8xf32>
    %47 = vector.broadcast %46 : vector<1x8xf32> to vector<10x8xf32>
    %48 = arith.addf %44, %47 : vector<10x8xf32>
    %c5 = arith.constant 5 : index
    %c0_38 = arith.constant 0 : index
    %c0_39 = arith.constant 0 : index
    %49 = vector.load %arg3[%c5, %c0_38, %c0_39] : memref<12x32x8xf32, #tpu.memory_space<vmem>>, vector<1x32x8xf32>
    %50 = vector.shape_cast %49 : vector<1x32x8xf32> to vector<32x8xf32>
    %cst_40 = arith.constant dense<0.000000e+00> : vector<10x8xf32>
    %51 = tpu.matmul %3, %50, %cst_40 {dimension_numbers = #tpu.dot_dimension_numbers<[1], [0], [0], [1], [0, 0, 1, 1], [], []>} : vector<10x32xf32>, vector<32x8xf32>, vector<10x8xf32> -> vector<10x8xf32>
    %c5_41 = arith.constant 5 : index
    %c0_42 = arith.constant 0 : index
    %c0_43 = arith.constant 0 : index
    %52 = vector.load %arg4[%c5_41, %c0_42, %c0_43] : memref<12x1x8xf32, #tpu.memory_space<vmem>>, vector<1x1x8xf32>
    %53 = vector.shape_cast %52 : vector<1x1x8xf32> to vector<1x8xf32>
    %54 = vector.broadcast %53 : vector<1x8xf32> to vector<10x8xf32>
    %55 = arith.addf %51, %54 : vector<10x8xf32>
    %c9 = arith.constant 9 : index
    %c0_44 = arith.constant 0 : index
    %c0_45 = arith.constant 0 : index
    %56 = vector.load %arg3[%c9, %c0_44, %c0_45] : memref<12x32x8xf32, #tpu.memory_space<vmem>>, vector<1x32x8xf32>
    %57 = vector.shape_cast %56 : vector<1x32x8xf32> to vector<32x8xf32>
    %cst_46 = arith.constant dense<0.000000e+00> : vector<10x8xf32>
    %58 = tpu.matmul %3, %57, %cst_46 {dimension_numbers = #tpu.dot_dimension_numbers<[1], [0], [0], [1], [0, 0, 1, 1], [], []>} : vector<10x32xf32>, vector<32x8xf32>, vector<10x8xf32> -> vector<10x8xf32>
    %c9_47 = arith.constant 9 : index
    %c0_48 = arith.constant 0 : index
    %c0_49 = arith.constant 0 : index
    %59 = vector.load %arg4[%c9_47, %c0_48, %c0_49] : memref<12x1x8xf32, #tpu.memory_space<vmem>>, vector<1x1x8xf32>
    %60 = vector.shape_cast %59 : vector<1x1x8xf32> to vector<1x8xf32>
    %61 = vector.broadcast %60 : vector<1x8xf32> to vector<10x8xf32>
    %62 = arith.addf %58, %61 : vector<10x8xf32>
    %cst_50 = arith.constant dense<0.000000e+00> : vector<10x10xf32>
    %63 = tpu.matmul %48, %55, %cst_50 {dimension_numbers = #tpu.dot_dimension_numbers<[1], [1], [0], [0], [0, 0, 1, 0], [], []>} : vector<10x8xf32>, vector<10x8xf32>, vector<10x10xf32> -> vector<10x10xf32>
    %cst_51 = arith.constant 0.353553385 : f32
    %64 = vector.broadcast %cst_51 : f32 to vector<10x10xf32>
    %65 = arith.mulf %63, %64 : vector<10x10xf32>
    %cst_52 = arith.constant dense<0xFF800000> : vector<10xf32>
    %66 = vector.multi_reduction <maximumf>, %65, %cst_52 [1] : vector<10x10xf32> to vector<10xf32>
    %67 = vector.shape_cast %66 : vector<10xf32> to vector<10x1xf32>
    %68 = vector.broadcast %67 : vector<10x1xf32> to vector<10x10xf32>
    %69 = arith.subf %65, %68 : vector<10x10xf32>
    %70 = math.exp %69 : vector<10x10xf32>
    %cst_53 = arith.constant dense<0.000000e+00> : vector<10xf32>
    %71 = vector.multi_reduction <add>, %70, %cst_53 [1] : vector<10x10xf32> to vector<10xf32>
    %72 = vector.shape_cast %71 : vector<10xf32> to vector<10x1xf32>
    %73 = tpu.reciprocal %72 {approx = true} : vector<10x1xf32> -> vector<10x1xf32>
    %74 = vector.broadcast %73 : vector<10x1xf32> to vector<10x10xf32>
    %75 = arith.mulf %70, %74 : vector<10x10xf32>
    %cst_54 = arith.constant dense<0.000000e+00> : vector<10x8xf32>
    %76 = tpu.matmul %75, %62, %cst_54 {dimension_numbers = #tpu.dot_dimension_numbers<[1], [0], [0], [1], [0, 0, 1, 1], [], []>} : vector<10x10xf32>, vector<10x8xf32>, vector<10x8xf32> -> vector<10x8xf32>
    %c1_55 = arith.constant 1 : index
    %c0_56 = arith.constant 0 : index
    %c0_57 = arith.constant 0 : index
    %77 = vector.load %arg5[%c1_55, %c0_56, %c0_57] : memref<4x8x32xf32, #tpu.memory_space<vmem>>, vector<1x8x32xf32>
    %78 = vector.shape_cast %77 : vector<1x8x32xf32> to vector<8x32xf32>
    %cst_58 = arith.constant dense<0.000000e+00> : vector<10x32xf32>
    %79 = tpu.matmul %76, %78, %cst_58 {dimension_numbers = #tpu.dot_dimension_numbers<[1], [0], [0], [1], [0, 0, 1, 1], [], []>} : vector<10x8xf32>, vector<8x32xf32>, vector<10x32xf32> -> vector<10x32xf32>
    %80 = arith.addf %41, %79 : vector<10x32xf32>
    %c2 = arith.constant 2 : index
    %c0_59 = arith.constant 0 : index
    %c0_60 = arith.constant 0 : index
    %81 = vector.load %arg3[%c2, %c0_59, %c0_60] : memref<12x32x8xf32, #tpu.memory_space<vmem>>, vector<1x32x8xf32>
    %82 = vector.shape_cast %81 : vector<1x32x8xf32> to vector<32x8xf32>
    %cst_61 = arith.constant dense<0.000000e+00> : vector<10x8xf32>
    %83 = tpu.matmul %3, %82, %cst_61 {dimension_numbers = #tpu.dot_dimension_numbers<[1], [0], [0], [1], [0, 0, 1, 1], [], []>} : vector<10x32xf32>, vector<32x8xf32>, vector<10x8xf32> -> vector<10x8xf32>
    %c2_62 = arith.constant 2 : index
    %c0_63 = arith.constant 0 : index
    %c0_64 = arith.constant 0 : index
    %84 = vector.load %arg4[%c2_62, %c0_63, %c0_64] : memref<12x1x8xf32, #tpu.memory_space<vmem>>, vector<1x1x8xf32>
    %85 = vector.shape_cast %84 : vector<1x1x8xf32> to vector<1x8xf32>
    %86 = vector.broadcast %85 : vector<1x8xf32> to vector<10x8xf32>
    %87 = arith.addf %83, %86 : vector<10x8xf32>
    %c6 = arith.constant 6 : index
    %c0_65 = arith.constant 0 : index
    %c0_66 = arith.constant 0 : index
    %88 = vector.load %arg3[%c6, %c0_65, %c0_66] : memref<12x32x8xf32, #tpu.memory_space<vmem>>, vector<1x32x8xf32>
    %89 = vector.shape_cast %88 : vector<1x32x8xf32> to vector<32x8xf32>
    %cst_67 = arith.constant dense<0.000000e+00> : vector<10x8xf32>
    %90 = tpu.matmul %3, %89, %cst_67 {dimension_numbers = #tpu.dot_dimension_numbers<[1], [0], [0], [1], [0, 0, 1, 1], [], []>} : vector<10x32xf32>, vector<32x8xf32>, vector<10x8xf32> -> vector<10x8xf32>
    %c6_68 = arith.constant 6 : index
    %c0_69 = arith.constant 0 : index
    %c0_70 = arith.constant 0 : index
    %91 = vector.load %arg4[%c6_68, %c0_69, %c0_70] : memref<12x1x8xf32, #tpu.memory_space<vmem>>, vector<1x1x8xf32>
    %92 = vector.shape_cast %91 : vector<1x1x8xf32> to vector<1x8xf32>
    %93 = vector.broadcast %92 : vector<1x8xf32> to vector<10x8xf32>
    %94 = arith.addf %90, %93 : vector<10x8xf32>
    %c10 = arith.constant 10 : index
    %c0_71 = arith.constant 0 : index
    %c0_72 = arith.constant 0 : index
    %95 = vector.load %arg3[%c10, %c0_71, %c0_72] : memref<12x32x8xf32, #tpu.memory_space<vmem>>, vector<1x32x8xf32>
    %96 = vector.shape_cast %95 : vector<1x32x8xf32> to vector<32x8xf32>
    %cst_73 = arith.constant dense<0.000000e+00> : vector<10x8xf32>
    %97 = tpu.matmul %3, %96, %cst_73 {dimension_numbers = #tpu.dot_dimension_numbers<[1], [0], [0], [1], [0, 0, 1, 1], [], []>} : vector<10x32xf32>, vector<32x8xf32>, vector<10x8xf32> -> vector<10x8xf32>
    %c10_74 = arith.constant 10 : index
    %c0_75 = arith.constant 0 : index
    %c0_76 = arith.constant 0 : index
    %98 = vector.load %arg4[%c10_74, %c0_75, %c0_76] : memref<12x1x8xf32, #tpu.memory_space<vmem>>, vector<1x1x8xf32>
    %99 = vector.shape_cast %98 : vector<1x1x8xf32> to vector<1x8xf32>
    %100 = vector.broadcast %99 : vector<1x8xf32> to vector<10x8xf32>
    %101 = arith.addf %97, %100 : vector<10x8xf32>
    %cst_77 = arith.constant dense<0.000000e+00> : vector<10x10xf32>
    %102 = tpu.matmul %87, %94, %cst_77 {dimension_numbers = #tpu.dot_dimension_numbers<[1], [1], [0], [0], [0, 0, 1, 0], [], []>} : vector<10x8xf32>, vector<10x8xf32>, vector<10x10xf32> -> vector<10x10xf32>
    %cst_78 = arith.constant 0.353553385 : f32
    %103 = vector.broadcast %cst_78 : f32 to vector<10x10xf32>
    %104 = arith.mulf %102, %103 : vector<10x10xf32>
    %cst_79 = arith.constant dense<0xFF800000> : vector<10xf32>
    %105 = vector.multi_reduction <maximumf>, %104, %cst_79 [1] : vector<10x10xf32> to vector<10xf32>
    %106 = vector.shape_cast %105 : vector<10xf32> to vector<10x1xf32>
    %107 = vector.broadcast %106 : vector<10x1xf32> to vector<10x10xf32>
    %108 = arith.subf %104, %107 : vector<10x10xf32>
    %109 = math.exp %108 : vector<10x10xf32>
    %cst_80 = arith.constant dense<0.000000e+00> : vector<10xf32>
    %110 = vector.multi_reduction <add>, %109, %cst_80 [1] : vector<10x10xf32> to vector<10xf32>
    %111 = vector.shape_cast %110 : vector<10xf32> to vector<10x1xf32>
    %112 = tpu.reciprocal %111 {approx = true} : vector<10x1xf32> -> vector<10x1xf32>
    %113 = vector.broadcast %112 : vector<10x1xf32> to vector<10x10xf32>
    %114 = arith.mulf %109, %113 : vector<10x10xf32>
    %cst_81 = arith.constant dense<0.000000e+00> : vector<10x8xf32>
    %115 = tpu.matmul %114, %101, %cst_81 {dimension_numbers = #tpu.dot_dimension_numbers<[1], [0], [0], [1], [0, 0, 1, 1], [], []>} : vector<10x10xf32>, vector<10x8xf32>, vector<10x8xf32> -> vector<10x8xf32>
    %c2_82 = arith.constant 2 : index
    %c0_83 = arith.constant 0 : index
    %c0_84 = arith.constant 0 : index
    %116 = vector.load %arg5[%c2_82, %c0_83, %c0_84] : memref<4x8x32xf32, #tpu.memory_space<vmem>>, vector<1x8x32xf32>
    %117 = vector.shape_cast %116 : vector<1x8x32xf32> to vector<8x32xf32>
    %cst_85 = arith.constant dense<0.000000e+00> : vector<10x32xf32>
    %118 = tpu.matmul %115, %117, %cst_85 {dimension_numbers = #tpu.dot_dimension_numbers<[1], [0], [0], [1], [0, 0, 1, 1], [], []>} : vector<10x8xf32>, vector<8x32xf32>, vector<10x32xf32> -> vector<10x32xf32>
    %119 = arith.addf %80, %118 : vector<10x32xf32>
    %c3 = arith.constant 3 : index
    %c0_86 = arith.constant 0 : index
    %c0_87 = arith.constant 0 : index
    %120 = vector.load %arg3[%c3, %c0_86, %c0_87] : memref<12x32x8xf32, #tpu.memory_space<vmem>>, vector<1x32x8xf32>
    %121 = vector.shape_cast %120 : vector<1x32x8xf32> to vector<32x8xf32>
    %cst_88 = arith.constant dense<0.000000e+00> : vector<10x8xf32>
    %122 = tpu.matmul %3, %121, %cst_88 {dimension_numbers = #tpu.dot_dimension_numbers<[1], [0], [0], [1], [0, 0, 1, 1], [], []>} : vector<10x32xf32>, vector<32x8xf32>, vector<10x8xf32> -> vector<10x8xf32>
    %c3_89 = arith.constant 3 : index
    %c0_90 = arith.constant 0 : index
    %c0_91 = arith.constant 0 : index
    %123 = vector.load %arg4[%c3_89, %c0_90, %c0_91] : memref<12x1x8xf32, #tpu.memory_space<vmem>>, vector<1x1x8xf32>
    %124 = vector.shape_cast %123 : vector<1x1x8xf32> to vector<1x8xf32>
    %125 = vector.broadcast %124 : vector<1x8xf32> to vector<10x8xf32>
    %126 = arith.addf %122, %125 : vector<10x8xf32>
    %c7 = arith.constant 7 : index
    %c0_92 = arith.constant 0 : index
    %c0_93 = arith.constant 0 : index
    %127 = vector.load %arg3[%c7, %c0_92, %c0_93] : memref<12x32x8xf32, #tpu.memory_space<vmem>>, vector<1x32x8xf32>
    %128 = vector.shape_cast %127 : vector<1x32x8xf32> to vector<32x8xf32>
    %cst_94 = arith.constant dense<0.000000e+00> : vector<10x8xf32>
    %129 = tpu.matmul %3, %128, %cst_94 {dimension_numbers = #tpu.dot_dimension_numbers<[1], [0], [0], [1], [0, 0, 1, 1], [], []>} : vector<10x32xf32>, vector<32x8xf32>, vector<10x8xf32> -> vector<10x8xf32>
    %c7_95 = arith.constant 7 : index
    %c0_96 = arith.constant 0 : index
    %c0_97 = arith.constant 0 : index
    %130 = vector.load %arg4[%c7_95, %c0_96, %c0_97] : memref<12x1x8xf32, #tpu.memory_space<vmem>>, vector<1x1x8xf32>
    %131 = vector.shape_cast %130 : vector<1x1x8xf32> to vector<1x8xf32>
    %132 = vector.broadcast %131 : vector<1x8xf32> to vector<10x8xf32>
    %133 = arith.addf %129, %132 : vector<10x8xf32>
    %c11 = arith.constant 11 : index
    %c0_98 = arith.constant 0 : index
    %c0_99 = arith.constant 0 : index
    %134 = vector.load %arg3[%c11, %c0_98, %c0_99] : memref<12x32x8xf32, #tpu.memory_space<vmem>>, vector<1x32x8xf32>
    %135 = vector.shape_cast %134 : vector<1x32x8xf32> to vector<32x8xf32>
    %cst_100 = arith.constant dense<0.000000e+00> : vector<10x8xf32>
    %136 = tpu.matmul %3, %135, %cst_100 {dimension_numbers = #tpu.dot_dimension_numbers<[1], [0], [0], [1], [0, 0, 1, 1], [], []>} : vector<10x32xf32>, vector<32x8xf32>, vector<10x8xf32> -> vector<10x8xf32>
    %c11_101 = arith.constant 11 : index
    %c0_102 = arith.constant 0 : index
    %c0_103 = arith.constant 0 : index
    %137 = vector.load %arg4[%c11_101, %c0_102, %c0_103] : memref<12x1x8xf32, #tpu.memory_space<vmem>>, vector<1x1x8xf32>
    %138 = vector.shape_cast %137 : vector<1x1x8xf32> to vector<1x8xf32>
    %139 = vector.broadcast %138 : vector<1x8xf32> to vector<10x8xf32>
    %140 = arith.addf %136, %139 : vector<10x8xf32>
    %cst_104 = arith.constant dense<0.000000e+00> : vector<10x10xf32>
    %141 = tpu.matmul %126, %133, %cst_104 {dimension_numbers = #tpu.dot_dimension_numbers<[1], [1], [0], [0], [0, 0, 1, 0], [], []>} : vector<10x8xf32>, vector<10x8xf32>, vector<10x10xf32> -> vector<10x10xf32>
    %cst_105 = arith.constant 0.353553385 : f32
    %142 = vector.broadcast %cst_105 : f32 to vector<10x10xf32>
    %143 = arith.mulf %141, %142 : vector<10x10xf32>
    %cst_106 = arith.constant dense<0xFF800000> : vector<10xf32>
    %144 = vector.multi_reduction <maximumf>, %143, %cst_106 [1] : vector<10x10xf32> to vector<10xf32>
    %145 = vector.shape_cast %144 : vector<10xf32> to vector<10x1xf32>
    %146 = vector.broadcast %145 : vector<10x1xf32> to vector<10x10xf32>
    %147 = arith.subf %143, %146 : vector<10x10xf32>
    %148 = math.exp %147 : vector<10x10xf32>
    %cst_107 = arith.constant dense<0.000000e+00> : vector<10xf32>
    %149 = vector.multi_reduction <add>, %148, %cst_107 [1] : vector<10x10xf32> to vector<10xf32>
    %150 = vector.shape_cast %149 : vector<10xf32> to vector<10x1xf32>
    %151 = tpu.reciprocal %150 {approx = true} : vector<10x1xf32> -> vector<10x1xf32>
    %152 = vector.broadcast %151 : vector<10x1xf32> to vector<10x10xf32>
    %153 = arith.mulf %148, %152 : vector<10x10xf32>
    %cst_108 = arith.constant dense<0.000000e+00> : vector<10x8xf32>
    %154 = tpu.matmul %153, %140, %cst_108 {dimension_numbers = #tpu.dot_dimension_numbers<[1], [0], [0], [1], [0, 0, 1, 1], [], []>} : vector<10x10xf32>, vector<10x8xf32>, vector<10x8xf32> -> vector<10x8xf32>
    %c3_109 = arith.constant 3 : index
    %c0_110 = arith.constant 0 : index
    %c0_111 = arith.constant 0 : index
    %155 = vector.load %arg5[%c3_109, %c0_110, %c0_111] : memref<4x8x32xf32, #tpu.memory_space<vmem>>, vector<1x8x32xf32>
    %156 = vector.shape_cast %155 : vector<1x8x32xf32> to vector<8x32xf32>
    %cst_112 = arith.constant dense<0.000000e+00> : vector<10x32xf32>
    %157 = tpu.matmul %154, %156, %cst_112 {dimension_numbers = #tpu.dot_dimension_numbers<[1], [0], [0], [1], [0, 0, 1, 1], [], []>} : vector<10x8xf32>, vector<8x32xf32>, vector<10x32xf32> -> vector<10x32xf32>
    %158 = arith.addf %119, %157 : vector<10x32xf32>
    %c0_113 = arith.constant 0 : index
    %c0_114 = arith.constant 0 : index
    %159 = vector.load %arg6[%c0_113, %c0_114] : memref<1x32xf32, #tpu.memory_space<vmem>>, vector<1x32xf32>
    %160 = vector.broadcast %159 : vector<1x32xf32> to vector<10x32xf32>
    %161 = arith.addf %158, %160 : vector<10x32xf32>
    %162 = arith.addf %3, %161 : vector<10x32xf32>
    %cst_115 = arith.constant dense<0.000000e+00> : vector<10xf32>
    %163 = vector.multi_reduction <add>, %162, %cst_115 [1] : vector<10x32xf32> to vector<10xf32>
    %164 = vector.shape_cast %163 : vector<10xf32> to vector<10x1xf32>
    %cst_116 = arith.constant 3.200000e+01 : f32
    %165 = vector.broadcast %cst_116 : f32 to vector<10x1xf32>
    %166 = arith.divf %164, %165 : vector<10x1xf32>
    %167 = vector.broadcast %166 : vector<10x1xf32> to vector<10x32xf32>
    %168 = arith.subf %162, %167 : vector<10x32xf32>
    %169 = arith.mulf %168, %168 : vector<10x32xf32>
    %cst_117 = arith.constant dense<0.000000e+00> : vector<10xf32>
    %170 = vector.multi_reduction <add>, %169, %cst_117 [1] : vector<10x32xf32> to vector<10xf32>
    %171 = vector.shape_cast %170 : vector<10xf32> to vector<10x1xf32>
    %cst_118 = arith.constant 3.200000e+01 : f32
    %172 = vector.broadcast %cst_118 : f32 to vector<10x1xf32>
    %173 = arith.divf %171, %172 : vector<10x1xf32>
    %cst_119 = arith.constant 9.99999974E-6 : f32
    %174 = vector.broadcast %cst_119 : f32 to vector<10x1xf32>
    %175 = arith.addf %173, %174 : vector<10x1xf32>
    %176 = math.rsqrt %175 : vector<10x1xf32>
    %177 = vector.broadcast %176 : vector<10x1xf32> to vector<10x32xf32>
    %178 = arith.mulf %168, %177 : vector<10x32xf32>
    %c0_120 = arith.constant 0 : index
    %c0_121 = arith.constant 0 : index
    %179 = vector.load %arg7[%c0_120, %c0_121] : memref<1x32xf32, #tpu.memory_space<vmem>>, vector<1x32xf32>
    %180 = vector.broadcast %179 : vector<1x32xf32> to vector<10x32xf32>
    %181 = arith.mulf %178, %180 : vector<10x32xf32>
    %c0_122 = arith.constant 0 : index
    %c0_123 = arith.constant 0 : index
    %182 = vector.load %arg8[%c0_122, %c0_123] : memref<1x32xf32, #tpu.memory_space<vmem>>, vector<1x32xf32>
    %183 = vector.broadcast %182 : vector<1x32xf32> to vector<10x32xf32>
    %184 = arith.addf %181, %183 : vector<10x32xf32>
    %c0_124 = arith.constant 0 : index
    %c0_125 = arith.constant 0 : index
    %185 = vector.load %arg9[%c0_124, %c0_125] : memref<32x64xf32, #tpu.memory_space<vmem>>, vector<32x64xf32>
    %cst_126 = arith.constant dense<0.000000e+00> : vector<10x64xf32>
    %186 = tpu.matmul %184, %185, %cst_126 {dimension_numbers = #tpu.dot_dimension_numbers<[1], [0], [0], [1], [0, 0, 1, 1], [], []>} : vector<10x32xf32>, vector<32x64xf32>, vector<10x64xf32> -> vector<10x64xf32>
    %c0_127 = arith.constant 0 : index
    %c0_128 = arith.constant 0 : index
    %187 = vector.load %arg10[%c0_127, %c0_128] : memref<1x64xf32, #tpu.memory_space<vmem>>, vector<1x64xf32>
    %188 = vector.broadcast %187 : vector<1x64xf32> to vector<10x64xf32>
    %189 = arith.addf %186, %188 : vector<10x64xf32>
    %cst_129 = arith.constant 0.000000e+00 : f32
    %190 = vector.broadcast %cst_129 : f32 to vector<10x64xf32>
    %191 = arith.maximumf %189, %190 : vector<10x64xf32>
    %c0_130 = arith.constant 0 : index
    %c0_131 = arith.constant 0 : index
    %192 = vector.load %arg11[%c0_130, %c0_131] : memref<64x32xf32, #tpu.memory_space<vmem>>, vector<64x32xf32>
    %cst_132 = arith.constant dense<0.000000e+00> : vector<10x32xf32>
    %193 = tpu.matmul %191, %192, %cst_132 {dimension_numbers = #tpu.dot_dimension_numbers<[1], [0], [0], [1], [0, 0, 1, 1], [], []>} : vector<10x64xf32>, vector<64x32xf32>, vector<10x32xf32> -> vector<10x32xf32>
    %c0_133 = arith.constant 0 : index
    %c0_134 = arith.constant 0 : index
    %194 = vector.load %arg12[%c0_133, %c0_134] : memref<1x32xf32, #tpu.memory_space<vmem>>, vector<1x32xf32>
    %195 = vector.broadcast %194 : vector<1x32xf32> to vector<10x32xf32>
    %196 = arith.addf %193, %195 : vector<10x32xf32>
    %197 = arith.addf %184, %196 : vector<10x32xf32>
    %cst_135 = arith.constant dense<0.000000e+00> : vector<10xf32>
    %198 = vector.multi_reduction <add>, %197, %cst_135 [1] : vector<10x32xf32> to vector<10xf32>
    %199 = vector.shape_cast %198 : vector<10xf32> to vector<10x1xf32>
    %cst_136 = arith.constant 3.200000e+01 : f32
    %200 = vector.broadcast %cst_136 : f32 to vector<10x1xf32>
    %201 = arith.divf %199, %200 : vector<10x1xf32>
    %202 = vector.broadcast %201 : vector<10x1xf32> to vector<10x32xf32>
    %203 = arith.subf %197, %202 : vector<10x32xf32>
    %204 = arith.mulf %203, %203 : vector<10x32xf32>
    %cst_137 = arith.constant dense<0.000000e+00> : vector<10xf32>
    %205 = vector.multi_reduction <add>, %204, %cst_137 [1] : vector<10x32xf32> to vector<10xf32>
    %206 = vector.shape_cast %205 : vector<10xf32> to vector<10x1xf32>
    %cst_138 = arith.constant 3.200000e+01 : f32
    %207 = vector.broadcast %cst_138 : f32 to vector<10x1xf32>
    %208 = arith.divf %206, %207 : vector<10x1xf32>
    %cst_139 = arith.constant 9.99999974E-6 : f32
    %209 = vector.broadcast %cst_139 : f32 to vector<10x1xf32>
    %210 = arith.addf %208, %209 : vector<10x1xf32>
    %211 = math.rsqrt %210 : vector<10x1xf32>
    %212 = vector.broadcast %211 : vector<10x1xf32> to vector<10x32xf32>
    %213 = arith.mulf %203, %212 : vector<10x32xf32>
    %c0_140 = arith.constant 0 : index
    %c0_141 = arith.constant 0 : index
    %214 = vector.load %arg13[%c0_140, %c0_141] : memref<1x32xf32, #tpu.memory_space<vmem>>, vector<1x32xf32>
    %215 = vector.broadcast %214 : vector<1x32xf32> to vector<10x32xf32>
    %216 = arith.mulf %213, %215 : vector<10x32xf32>
    %c0_142 = arith.constant 0 : index
    %c0_143 = arith.constant 0 : index
    %217 = vector.load %arg14[%c0_142, %c0_143] : memref<1x32xf32, #tpu.memory_space<vmem>>, vector<1x32xf32>
    %218 = vector.broadcast %217 : vector<1x32xf32> to vector<10x32xf32>
    %219 = arith.addf %216, %218 : vector<10x32xf32>
    %220 = vector.shape_cast %219 : vector<10x32xf32> to vector<1x10x32xf32>
    %c0_144 = arith.constant 0 : index
    %c0_145 = arith.constant 0 : index
    %c0_146 = arith.constant 0 : index
    %221 = vector.load %arg15[%c0_144, %c0_145, %c0_146] : memref<1x10x32xf32, #tpu.memory_space<vmem>>, vector<1x10x32xf32>
    tpu.vector_store %arg15[%c0_144, %c0_145, %c0_146], %220 {strides = array<i32>} : memref<1x10x32xf32, #tpu.memory_space<vmem>>, vector<1x10x32xf32>,
    return
  }
  func.func @transform_0(%arg0: i32) -> (i32, i32, i32) {
    %c0_i32 = arith.constant 0 : i32
    %c0_i32_0 = arith.constant 0 : i32
    %c0_i32_1 = arith.constant 0 : i32
    return %arg0, %c0_i32, %c0_i32_0 : i32, i32, i32
  }
  func.func @transform_1(%arg0: i32) -> (i32, i32, i32) {
    %c0_i32 = arith.constant 0 : i32
    %c0_i32_0 = arith.constant 0 : i32
    %c0_i32_1 = arith.constant 0 : i32
    %c0_i32_2 = arith.constant 0 : i32
    return %c0_i32, %c0_i32_0, %c0_i32_1 : i32, i32, i32
  }
  func.func @transform_2(%arg0: i32) -> (i32, i32, i32) {
    %c0_i32 = arith.constant 0 : i32
    %c0_i32_0 = arith.constant 0 : i32
    %c0_i32_1 = arith.constant 0 : i32
    %c0_i32_2 = arith.constant 0 : i32
    return %c0_i32, %c0_i32_0, %c0_i32_1 : i32, i32, i32
  }
  func.func @transform_3(%arg0: i32) -> (i32, i32, i32) {
    %c0_i32 = arith.constant 0 : i32
    %c0_i32_0 = arith.constant 0 : i32
    %c0_i32_1 = arith.constant 0 : i32
    %c0_i32_2 = arith.constant 0 : i32
    return %c0_i32, %c0_i32_0, %c0_i32_1 : i32, i32, i32
  }
  func.func @transform_4(%arg0: i32) -> (i32, i32, i32) {
    %c0_i32 = arith.constant 0 : i32
    %c0_i32_0 = arith.constant 0 : i32
    %c0_i32_1 = arith.constant 0 : i32
    %c0_i32_2 = arith.constant 0 : i32
    return %c0_i32, %c0_i32_0, %c0_i32_1 : i32, i32, i32
  }
  func.func @transform_5(%arg0: i32) -> (i32, i32) {
    %c0_i32 = arith.constant 0 : i32
    %c0_i32_0 = arith.constant 0 : i32
    %c0_i32_1 = arith.constant 0 : i32
    return %c0_i32, %c0_i32_0 : i32, i32
  }
  func.func @transform_6(%arg0: i32) -> (i32, i32) {
    %c0_i32 = arith.constant 0 : i32
    %c0_i32_0 = arith.constant 0 : i32
    %c0_i32_1 = arith.constant 0 : i32
    return %c0_i32, %c0_i32_0 : i32, i32
  }
  func.func @transform_7(%arg0: i32) -> (i32, i32) {
    %c0_i32 = arith.constant 0 : i32
    %c0_i32_0 = arith.constant 0 : i32
    %c0_i32_1 = arith.constant 0 : i32
    return %c0_i32, %c0_i32_0 : i32, i32
  }
  func.func @transform_8(%arg0: i32) -> (i32, i32) {
    %c0_i32 = arith.constant 0 : i32
    %c0_i32_0 = arith.constant 0 : i32
    %c0_i32_1 = arith.constant 0 : i32
    return %c0_i32, %c0_i32_0 : i32, i32
  }
  func.func @transform_9(%arg0: i32) -> (i32, i32) {
    %c0_i32 = arith.constant 0 : i32
    %c0_i32_0 = arith.constant 0 : i32
    %c0_i32_1 = arith.constant 0 : i32
    return %c0_i32, %c0_i32_0 : i32, i32
  }
  func.func @transform_10(%arg0: i32) -> (i32, i32) {
    %c0_i32 = arith.constant 0 : i32
    %c0_i32_0 = arith.constant 0 : i32
    %c0_i32_1 = arith.constant 0 : i32
    return %c0_i32, %c0_i32_0 : i32, i32
  }
  func.func @transform_11(%arg0: i32) -> (i32, i32) {
    %c0_i32 = arith.constant 0 : i32
    %c0_i32_0 = arith.constant 0 : i32
    %c0_i32_1 = arith.constant 0 : i32
    return %c0_i32, %c0_i32_0 : i32, i32
  }
  func.func @transform_12(%arg0: i32) -> (i32, i32) {
    %c0_i32 = arith.constant 0 : i32
    %c0_i32_0 = arith.constant 0 : i32
    %c0_i32_1 = arith.constant 0 : i32
    return %c0_i32, %c0_i32_0 : i32, i32
  }
  func.func @transform_13(%arg0: i32) -> (i32, i32) {
    %c0_i32 = arith.constant 0 : i32
    %c0_i32_0 = arith.constant 0 : i32
    %c0_i32_1 = arith.constant 0 : i32
    return %c0_i32, %c0_i32_0 : i32, i32
  }
  func.func @transform_14(%arg0: i32) -> (i32, i32, i32) {
    %c0_i32 = arith.constant 0 : i32
    %c0_i32_0 = arith.constant 0 : i32
    %c0_i32_1 = arith.constant 0 : i32
    return %arg0, %c0_i32, %c0_i32_0 : i32, i32, i32
  }
}

module attributes {stable_mosaic.version = 11 : i64} {
  func.func @_proj_logsoftmax_kernel(%arg0: i32, %arg1: memref<1x8x32xf32, #tpu.memory_space<vmem>>, %arg2: memref<32x20xf32, #tpu.memory_space<vmem>>, %arg3: memref<1x20xf32, #tpu.memory_space<vmem>>, %arg4: memref<1x8x20xf32, #tpu.memory_space<vmem>>) attributes {dimension_semantics = [#tpu.dimension_semantics<parallel>], iteration_bounds = array<i64: 2>, scalar_prefetch = 0 : i64, scratch_operands = 0 : i64, tpu.core_type = #tpu.core_type<tc>, window_params = [{transform_indices = @transform_0, window_bounds = array<i64: 1, 8, 32>}, {pipeline_mode = #tpu.pipeline_mode<synchronous>, transform_indices = @transform_1, window_bounds = array<i64: 32, 20>}, {pipeline_mode = #tpu.pipeline_mode<synchronous>, transform_indices = @transform_2, window_bounds = array<i64: 1, 20>}, {transform_indices = @transform_3, window_bounds = array<i64: 1, 8, 20>}]} {
    %c0 = arith.constant 0 : index
    %c0_0 = arith.constant 0 : index
    %c0_1 = arith.constant 0 : index
    %0 = vector.load %arg1[%c0, %c0_0, %c0_1] : memref<1x8x32xf32, #tpu.memory_space<vmem>>, vector<1x8x32xf32>
    %1 = vector.shape_cast %0 : vector<1x8x32xf32> to vector<8x32xf32>
    %c0_2 = arith.constant 0 : index
    %c0_3 = arith.constant 0 : index
    %2 = vector.load %arg2[%c0_2, %c0_3] : memref<32x20xf32, #tpu.memory_space<vmem>>, vector<32x20xf32>
    %cst = arith.constant dense<0.000000e+00> : vector<8x20xf32>
    %3 = tpu.matmul %1, %2, %cst {dimension_numbers = #tpu.dot_dimension_numbers<[1], [0], [0], [1], [0, 0, 1, 1], [], []>} : vector<8x32xf32>, vector<32x20xf32>, vector<8x20xf32> -> vector<8x20xf32>
    %c0_4 = arith.constant 0 : index
    %c0_5 = arith.constant 0 : index
    %4 = vector.load %arg3[%c0_4, %c0_5] : memref<1x20xf32, #tpu.memory_space<vmem>>, vector<1x20xf32>
    %5 = vector.broadcast %4 : vector<1x20xf32> to vector<8x20xf32>
    %6 = arith.addf %3, %5 : vector<8x20xf32>
    %cst_6 = arith.constant dense<0xFF800000> : vector<8xf32>
    %7 = vector.multi_reduction <maximumf>, %6, %cst_6 [1] : vector<8x20xf32> to vector<8xf32>
    %8 = vector.shape_cast %7 : vector<8xf32> to vector<8x1xf32>
    %9 = vector.broadcast %8 : vector<8x1xf32> to vector<8x20xf32>
    %10 = arith.subf %6, %9 : vector<8x20xf32>
    %11 = math.exp %10 : vector<8x20xf32>
    %cst_7 = arith.constant dense<0.000000e+00> : vector<8xf32>
    %12 = vector.multi_reduction <add>, %11, %cst_7 [1] : vector<8x20xf32> to vector<8xf32>
    %13 = vector.shape_cast %12 : vector<8xf32> to vector<8x1xf32>
    %14 = math.log %13 : vector<8x1xf32>
    %15 = vector.broadcast %14 : vector<8x1xf32> to vector<8x20xf32>
    %16 = arith.subf %10, %15 : vector<8x20xf32>
    %17 = vector.shape_cast %16 : vector<8x20xf32> to vector<1x8x20xf32>
    %c0_8 = arith.constant 0 : index
    %c0_9 = arith.constant 0 : index
    %c0_10 = arith.constant 0 : index
    %18 = vector.load %arg4[%c0_8, %c0_9, %c0_10] : memref<1x8x20xf32, #tpu.memory_space<vmem>>, vector<1x8x20xf32>
    tpu.vector_store %arg4[%c0_8, %c0_9, %c0_10], %17 {strides = array<i32>} : memref<1x8x20xf32, #tpu.memory_space<vmem>>, vector<1x8x20xf32>,
    return
  }
  func.func @transform_0(%arg0: i32) -> (i32, i32, i32) {
    %c0_i32 = arith.constant 0 : i32
    %c0_i32_0 = arith.constant 0 : i32
    %c0_i32_1 = arith.constant 0 : i32
    return %arg0, %c0_i32, %c0_i32_0 : i32, i32, i32
  }
  func.func @transform_1(%arg0: i32) -> (i32, i32) {
    %c0_i32 = arith.constant 0 : i32
    %c0_i32_0 = arith.constant 0 : i32
    %c0_i32_1 = arith.constant 0 : i32
    return %c0_i32, %c0_i32_0 : i32, i32
  }
  func.func @transform_2(%arg0: i32) -> (i32, i32) {
    %c0_i32 = arith.constant 0 : i32
    %c0_i32_0 = arith.constant 0 : i32
    %c0_i32_1 = arith.constant 0 : i32
    return %c0_i32, %c0_i32_0 : i32, i32
  }
  func.func @transform_3(%arg0: i32) -> (i32, i32, i32) {
    %c0_i32 = arith.constant 0 : i32
    %c0_i32_0 = arith.constant 0 : i32
    %c0_i32_1 = arith.constant 0 : i32
    return %arg0, %c0_i32, %c0_i32_0 : i32, i32, i32
  }
}

module attributes {stable_mosaic.version = 11 : i64} {
  func.func @_decoder_layer_kernel(%arg0: i32, %arg1: memref<1x8x32xf32, #tpu.memory_space<vmem>>, %arg2: memref<1x8x32xf32, #tpu.memory_space<vmem>>, %arg3: memref<1x10x32xf32, #tpu.memory_space<vmem>>, %arg4: memref<12x32x8xf32, #tpu.memory_space<vmem>>, %arg5: memref<12x1x8xf32, #tpu.memory_space<vmem>>, %arg6: memref<4x8x32xf32, #tpu.memory_space<vmem>>, %arg7: memref<1x32xf32, #tpu.memory_space<vmem>>, %arg8: memref<1x32xf32, #tpu.memory_space<vmem>>, %arg9: memref<1x32xf32, #tpu.memory_space<vmem>>, %arg10: memref<12x32x8xf32, #tpu.memory_space<vmem>>, %arg11: memref<12x1x8xf32, #tpu.memory_space<vmem>>, %arg12: memref<4x8x32xf32, #tpu.memory_space<vmem>>, %arg13: memref<1x32xf32, #tpu.memory_space<vmem>>, %arg14: memref<1x32xf32, #tpu.memory_space<vmem>>, %arg15: memref<1x32xf32, #tpu.memory_space<vmem>>, %arg16: memref<32x64xf32, #tpu.memory_space<vmem>>, %arg17: memref<1x64xf32, #tpu.memory_space<vmem>>, %arg18: memref<64x32xf32, #tpu.memory_space<vmem>>, %arg19: memref<1x32xf32, #tpu.memory_space<vmem>>, %arg20: memref<1x32xf32, #tpu.memory_space<vmem>>, %arg21: memref<1x32xf32, #tpu.memory_space<vmem>>, %arg22: memref<1x8x32xf32, #tpu.memory_space<vmem>>) attributes {dimension_semantics = [#tpu.dimension_semantics<parallel>], iteration_bounds = array<i64: 2>, scalar_prefetch = 0 : i64, scratch_operands = 0 : i64, tpu.core_type = #tpu.core_type<tc>, window_params = [{transform_indices = @transform_0, window_bounds = array<i64: 1, 8, 32>}, {pipeline_mode = #tpu.pipeline_mode<synchronous>, transform_indices = @transform_1, window_bounds = array<i64: 1, 8, 32>}, {transform_indices = @transform_2, window_bounds = array<i64: 1, 10, 32>}, {pipeline_mode = #tpu.pipeline_mode<synchronous>, transform_indices = @transform_3, window_bounds = array<i64: 12, 32, 8>}, {pipeline_mode = #tpu.pipeline_mode<synchronous>, transform_indices = @transform_4, window_bounds = array<i64: 12, 1, 8>}, {pipeline_mode = #tpu.pipeline_mode<synchronous>, transform_indices = @transform_5, window_bounds = array<i64: 4, 8, 32>}, {pipeline_mode = #tpu.pipeline_mode<synchronous>, transform_indices = @transform_6, window_bounds = array<i64: 1, 32>}, {pipeline_mode = #tpu.pipeline_mode<synchronous>, transform_indices = @transform_7, window_bounds = array<i64: 1, 32>}, {pipeline_mode = #tpu.pipeline_mode<synchronous>, transform_indices = @transform_8, window_bounds = array<i64: 1, 32>}, {pipeline_mode = #tpu.pipeline_mode<synchronous>, transform_indices = @transform_9, window_bounds = array<i64: 12, 32, 8>}, {pipeline_mode = #tpu.pipeline_mode<synchronous>, transform_indices = @transform_10, window_bounds = array<i64: 12, 1, 8>}, {pipeline_mode = #tpu.pipeline_mode<synchronous>, transform_indices = @transform_11, window_bounds = array<i64: 4, 8, 32>}, {pipeline_mode = #tpu.pipeline_mode<synchronous>, transform_indices = @transform_12, window_bounds = array<i64: 1, 32>}, {pipeline_mode = #tpu.pipeline_mode<synchronous>, transform_indices = @transform_13, window_bounds = array<i64: 1, 32>}, {pipeline_mode = #tpu.pipeline_mode<synchronous>, transform_indices = @transform_14, window_bounds = array<i64: 1, 32>}, {pipeline_mode = #tpu.pipeline_mode<synchronous>, transform_indices = @transform_15, window_bounds = array<i64: 32, 64>}, {pipeline_mode = #tpu.pipeline_mode<synchronous>, transform_indices = @transform_16, window_bounds = array<i64: 1, 64>}, {pipeline_mode = #tpu.pipeline_mode<synchronous>, transform_indices = @transform_17, window_bounds = array<i64: 64, 32>}, {pipeline_mode = #tpu.pipeline_mode<synchronous>, transform_indices = @transform_18, window_bounds = array<i64: 1, 32>}, {pipeline_mode = #tpu.pipeline_mode<synchronous>, transform_indices = @transform_19, window_bounds = array<i64: 1, 32>}, {pipeline_mode = #tpu.pipeline_mode<synchronous>, transform_indices = @transform_20, window_bounds = array<i64: 1, 32>}, {transform_indices = @transform_21, window_bounds = array<i64: 1, 8, 32>}]} {
    %c0 = arith.constant 0 : index
    %c0_0 = arith.constant 0 : index
    %c0_1 = arith.constant 0 : index
    %0 = vector.load %arg1[%c0, %c0_0, %c0_1] : memref<1x8x32xf32, #tpu.memory_space<vmem>>, vector<1x8x32xf32>
    %c0_2 = arith.constant 0 : index
    %c0_3 = arith.constant 0 : index
    %c0_4 = arith.constant 0 : index
    %1 = vector.load %arg2[%c0_2, %c0_3, %c0_4] : memref<1x8x32xf32, #tpu.memory_space<vmem>>, vector<1x8x32xf32>
    %2 = arith.addf %0, %1 : vector<1x8x32xf32>
    %3 = vector.shape_cast %2 : vector<1x8x32xf32> to vector<8x32xf32>
    %c0_5 = arith.constant 0 : index
    %c0_6 = arith.constant 0 : index
    %c0_7 = arith.constant 0 : index
    %4 = vector.load %arg3[%c0_5, %c0_6, %c0_7] : memref<1x10x32xf32, #tpu.memory_space<vmem>>, vector<1x10x32xf32>
    %5 = vector.shape_cast %4 : vector<1x10x32xf32> to vector<10x32xf32>
    %c0_8 = arith.constant 0 : index
    %c0_9 = arith.constant 0 : index
    %c0_10 = arith.constant 0 : index
    %6 = vector.load %arg4[%c0_8, %c0_9, %c0_10] : memref<12x32x8xf32, #tpu.memory_space<vmem>>, vector<1x32x8xf32>
    %7 = vector.shape_cast %6 : vector<1x32x8xf32> to vector<32x8xf32>
    %cst = arith.constant dense<0.000000e+00> : vector<8x8xf32>
    %8 = tpu.matmul %3, %7, %cst {dimension_numbers = #tpu.dot_dimension_numbers<[1], [0], [0], [1], [0, 0, 1, 1], [], []>} : vector<8x32xf32>, vector<32x8xf32>, vector<8x8xf32> -> vector<8x8xf32>
    %c0_11 = arith.constant 0 : index
    %c0_12 = arith.constant 0 : index
    %c0_13 = arith.constant 0 : index
    %9 = vector.load %arg5[%c0_11, %c0_12, %c0_13] : memref<12x1x8xf32, #tpu.memory_space<vmem>>, vector<1x1x8xf32>
    %10 = vector.shape_cast %9 : vector<1x1x8xf32> to vector<1x8xf32>
    %11 = vector.broadcast %10 : vector<1x8xf32> to vector<8x8xf32>
    %12 = arith.addf %8, %11 : vector<8x8xf32>
    %c4 = arith.constant 4 : index
    %c0_14 = arith.constant 0 : index
    %c0_15 = arith.constant 0 : index
    %13 = vector.load %arg4[%c4, %c0_14, %c0_15] : memref<12x32x8xf32, #tpu.memory_space<vmem>>, vector<1x32x8xf32>
    %14 = vector.shape_cast %13 : vector<1x32x8xf32> to vector<32x8xf32>
    %cst_16 = arith.constant dense<0.000000e+00> : vector<8x8xf32>
    %15 = tpu.matmul %3, %14, %cst_16 {dimension_numbers = #tpu.dot_dimension_numbers<[1], [0], [0], [1], [0, 0, 1, 1], [], []>} : vector<8x32xf32>, vector<32x8xf32>, vector<8x8xf32> -> vector<8x8xf32>
    %c4_17 = arith.constant 4 : index
    %c0_18 = arith.constant 0 : index
    %c0_19 = arith.constant 0 : index
    %16 = vector.load %arg5[%c4_17, %c0_18, %c0_19] : memref<12x1x8xf32, #tpu.memory_space<vmem>>, vector<1x1x8xf32>
    %17 = vector.shape_cast %16 : vector<1x1x8xf32> to vector<1x8xf32>
    %18 = vector.broadcast %17 : vector<1x8xf32> to vector<8x8xf32>
    %19 = arith.addf %15, %18 : vector<8x8xf32>
    %c8 = arith.constant 8 : index
    %c0_20 = arith.constant 0 : index
    %c0_21 = arith.constant 0 : index
    %20 = vector.load %arg4[%c8, %c0_20, %c0_21] : memref<12x32x8xf32, #tpu.memory_space<vmem>>, vector<1x32x8xf32>
    %21 = vector.shape_cast %20 : vector<1x32x8xf32> to vector<32x8xf32>
    %cst_22 = arith.constant dense<0.000000e+00> : vector<8x8xf32>
    %22 = tpu.matmul %3, %21, %cst_22 {dimension_numbers = #tpu.dot_dimension_numbers<[1], [0], [0], [1], [0, 0, 1, 1], [], []>} : vector<8x32xf32>, vector<32x8xf32>, vector<8x8xf32> -> vector<8x8xf32>
    %c8_23 = arith.constant 8 : index
    %c0_24 = arith.constant 0 : index
    %c0_25 = arith.constant 0 : index
    %23 = vector.load %arg5[%c8_23, %c0_24, %c0_25] : memref<12x1x8xf32, #tpu.memory_space<vmem>>, vector<1x1x8xf32>
    %24 = vector.shape_cast %23 : vector<1x1x8xf32> to vector<1x8xf32>
    %25 = vector.broadcast %24 : vector<1x8xf32> to vector<8x8xf32>
    %26 = arith.addf %22, %25 : vector<8x8xf32>
    %cst_26 = arith.constant dense<0.000000e+00> : vector<8x8xf32>
    %27 = tpu.matmul %12, %19, %cst_26 {dimension_numbers = #tpu.dot_dimension_numbers<[1], [1], [0], [0], [0, 0, 1, 0], [], []>} : vector<8x8xf32>, vector<8x8xf32>, vector<8x8xf32> -> vector<8x8xf32>
    %cst_27 = arith.constant 0.353553385 : f32
    %28 = vector.broadcast %cst_27 : f32 to vector<8x8xf32>
    %29 = arith.mulf %27, %28 : vector<8x8xf32>
    %cst_28 = arith.constant dense<0xFF800000> : vector<8xf32>
    %30 = vector.multi_reduction <maximumf>, %29, %cst_28 [1] : vector<8x8xf32> to vector<8xf32>
    %31 = vector.shape_cast %30 : vector<8xf32> to vector<8x1xf32>
    %32 = vector.broadcast %31 : vector<8x1xf32> to vector<8x8xf32>
    %33 = arith.subf %29, %32 : vector<8x8xf32>
    %34 = math.exp %33 : vector<8x8xf32>
    %cst_29 = arith.constant dense<0.000000e+00> : vector<8xf32>
    %35 = vector.multi_reduction <add>, %34, %cst_29 [1] : vector<8x8xf32> to vector<8xf32>
    %36 = vector.shape_cast %35 : vector<8xf32> to vector<8x1xf32>
    %37 = tpu.reciprocal %36 {approx = true} : vector<8x1xf32> -> vector<8x1xf32>
    %38 = vector.broadcast %37 : vector<8x1xf32> to vector<8x8xf32>
    %39 = arith.mulf %34, %38 : vector<8x8xf32>
    %cst_30 = arith.constant dense<0.000000e+00> : vector<8x8xf32>
    %40 = tpu.matmul %39, %26, %cst_30 {dimension_numbers = #tpu.dot_dimension_numbers<[1], [0], [0], [1], [0, 0, 1, 1], [], []>} : vector<8x8xf32>, vector<8x8xf32>, vector<8x8xf32> -> vector<8x8xf32>
    %c0_31 = arith.constant 0 : index
    %c0_32 = arith.constant 0 : index
    %c0_33 = arith.constant 0 : index
    %41 = vector.load %arg6[%c0_31, %c0_32, %c0_33] : memref<4x8x32xf32, #tpu.memory_space<vmem>>, vector<1x8x32xf32>
    %42 = vector.shape_cast %41 : vector<1x8x32xf32> to vector<8x32xf32>
    %cst_34 = arith.constant dense<0.000000e+00> : vector<8x32xf32>
    %43 = tpu.matmul %40, %42, %cst_34 {dimension_numbers = #tpu.dot_dimension_numbers<[1], [0], [0], [1], [0, 0, 1, 1], [], []>} : vector<8x8xf32>, vector<8x32xf32>, vector<8x32xf32> -> vector<8x32xf32>
    %c1 = arith.constant 1 : index
    %c0_35 = arith.constant 0 : index
    %c0_36 = arith.constant 0 : index
    %44 = vector.load %arg4[%c1, %c0_35, %c0_36] : memref<12x32x8xf32, #tpu.memory_space<vmem>>, vector<1x32x8xf32>
    %45 = vector.shape_cast %44 : vector<1x32x8xf32> to vector<32x8xf32>
    %cst_37 = arith.constant dense<0.000000e+00> : vector<8x8xf32>
    %46 = tpu.matmul %3, %45, %cst_37 {dimension_numbers = #tpu.dot_dimension_numbers<[1], [0], [0], [1], [0, 0, 1, 1], [], []>} : vector<8x32xf32>, vector<32x8xf32>, vector<8x8xf32> -> vector<8x8xf32>
    %c1_38 = arith.constant 1 : index
    %c0_39 = arith.constant 0 : index
    %c0_40 = arith.constant 0 : index
    %47 = vector.load %arg5[%c1_38, %c0_39, %c0_40] : memref<12x1x8xf32, #tpu.memory_space<vmem>>, vector<1x1x8xf32>
    %48 = vector.shape_cast %47 : vector<1x1x8xf32> to vector<1x8xf32>
    %49 = vector.broadcast %48 : vector<1x8xf32> to vector<8x8xf32>
    %50 = arith.addf %46, %49 : vector<8x8xf32>
    %c5 = arith.constant 5 : index
    %c0_41 = arith.constant 0 : index
    %c0_42 = arith.constant 0 : index
    %51 = vector.load %arg4[%c5, %c0_41, %c0_42] : memref<12x32x8xf32, #tpu.memory_space<vmem>>, vector<1x32x8xf32>
    %52 = vector.shape_cast %51 : vector<1x32x8xf32> to vector<32x8xf32>
    %cst_43 = arith.constant dense<0.000000e+00> : vector<8x8xf32>
    %53 = tpu.matmul %3, %52, %cst_43 {dimension_numbers = #tpu.dot_dimension_numbers<[1], [0], [0], [1], [0, 0, 1, 1], [], []>} : vector<8x32xf32>, vector<32x8xf32>, vector<8x8xf32> -> vector<8x8xf32>
    %c5_44 = arith.constant 5 : index
    %c0_45 = arith.constant 0 : index
    %c0_46 = arith.constant 0 : index
    %54 = vector.load %arg5[%c5_44, %c0_45, %c0_46] : memref<12x1x8xf32, #tpu.memory_space<vmem>>, vector<1x1x8xf32>
    %55 = vector.shape_cast %54 : vector<1x1x8xf32> to vector<1x8xf32>
    %56 = vector.broadcast %55 : vector<1x8xf32> to vector<8x8xf32>
    %57 = arith.addf %53, %56 : vector<8x8xf32>
    %c9 = arith.constant 9 : index
    %c0_47 = arith.constant 0 : index
    %c0_48 = arith.constant 0 : index
    %58 = vector.load %arg4[%c9, %c0_47, %c0_48] : memref<12x32x8xf32, #tpu.memory_space<vmem>>, vector<1x32x8xf32>
    %59 = vector.shape_cast %58 : vector<1x32x8xf32> to vector<32x8xf32>
    %cst_49 = arith.constant dense<0.000000e+00> : vector<8x8xf32>
    %60 = tpu.matmul %3, %59, %cst_49 {dimension_numbers = #tpu.dot_dimension_numbers<[1], [0], [0], [1], [0, 0, 1, 1], [], []>} : vector<8x32xf32>, vector<32x8xf32>, vector<8x8xf32> -> vector<8x8xf32>
    %c9_50 = arith.constant 9 : index
    %c0_51 = arith.constant 0 : index
    %c0_52 = arith.constant 0 : index
    %61 = vector.load %arg5[%c9_50, %c0_51, %c0_52] : memref<12x1x8xf32, #tpu.memory_space<vmem>>, vector<1x1x8xf32>
    %62 = vector.shape_cast %61 : vector<1x1x8xf32> to vector<1x8xf32>
    %63 = vector.broadcast %62 : vector<1x8xf32> to vector<8x8xf32>
    %64 = arith.addf %60, %63 : vector<8x8xf32>
    %cst_53 = arith.constant dense<0.000000e+00> : vector<8x8xf32>
    %65 = tpu.matmul %50, %57, %cst_53 {dimension_numbers = #tpu.dot_dimension_numbers<[1], [1], [0], [0], [0, 0, 1, 0], [], []>} : vector<8x8xf32>, vector<8x8xf32>, vector<8x8xf32> -> vector<8x8xf32>
    %cst_54 = arith.constant 0.353553385 : f32
    %66 = vector.broadcast %cst_54 : f32 to vector<8x8xf32>
    %67 = arith.mulf %65, %66 : vector<8x8xf32>
    %cst_55 = arith.constant dense<0xFF800000> : vector<8xf32>
    %68 = vector.multi_reduction <maximumf>, %67, %cst_55 [1] : vector<8x8xf32> to vector<8xf32>
    %69 = vector.shape_cast %68 : vector<8xf32> to vector<8x1xf32>
    %70 = vector.broadcast %69 : vector<8x1xf32> to vector<8x8xf32>
    %71 = arith.subf %67, %70 : vector<8x8xf32>
    %72 = math.exp %71 : vector<8x8xf32>
    %cst_56 = arith.constant dense<0.000000e+00> : vector<8xf32>
    %73 = vector.multi_reduction <add>, %72, %cst_56 [1] : vector<8x8xf32> to vector<8xf32>
    %74 = vector.shape_cast %73 : vector<8xf32> to vector<8x1xf32>
    %75 = tpu.reciprocal %74 {approx = true} : vector<8x1xf32> -> vector<8x1xf32>
    %76 = vector.broadcast %75 : vector<8x1xf32> to vector<8x8xf32>
    %77 = arith.mulf %72, %76 : vector<8x8xf32>
    %cst_57 = arith.constant dense<0.000000e+00> : vector<8x8xf32>
    %78 = tpu.matmul %77, %64, %cst_57 {dimension_numbers = #tpu.dot_dimension_numbers<[1], [0], [0], [1], [0, 0, 1, 1], [], []>} : vector<8x8xf32>, vector<8x8xf32>, vector<8x8xf32> -> vector<8x8xf32>
    %c1_58 = arith.constant 1 : index
    %c0_59 = arith.constant 0 : index
    %c0_60 = arith.constant 0 : index
    %79 = vector.load %arg6[%c1_58, %c0_59, %c0_60] : memref<4x8x32xf32, #tpu.memory_space<vmem>>, vector<1x8x32xf32>
    %80 = vector.shape_cast %79 : vector<1x8x32xf32> to vector<8x32xf32>
    %cst_61 = arith.constant dense<0.000000e+00> : vector<8x32xf32>
    %81 = tpu.matmul %78, %80, %cst_61 {dimension_numbers = #tpu.dot_dimension_numbers<[1], [0], [0], [1], [0, 0, 1, 1], [], []>} : vector<8x8xf32>, vector<8x32xf32>, vector<8x32xf32> -> vector<8x32xf32>
    %82 = arith.addf %43, %81 : vector<8x32xf32>
    %c2 = arith.constant 2 : index
    %c0_62 = arith.constant 0 : index
    %c0_63 = arith.constant 0 : index
    %83 = vector.load %arg4[%c2, %c0_62, %c0_63] : memref<12x32x8xf32, #tpu.memory_space<vmem>>, vector<1x32x8xf32>
    %84 = vector.shape_cast %83 : vector<1x32x8xf32> to vector<32x8xf32>
    %cst_64 = arith.constant dense<0.000000e+00> : vector<8x8xf32>
    %85 = tpu.matmul %3, %84, %cst_64 {dimension_numbers = #tpu.dot_dimension_numbers<[1], [0], [0], [1], [0, 0, 1, 1], [], []>} : vector<8x32xf32>, vector<32x8xf32>, vector<8x8xf32> -> vector<8x8xf32>
    %c2_65 = arith.constant 2 : index
    %c0_66 = arith.constant 0 : index
    %c0_67 = arith.constant 0 : index
    %86 = vector.load %arg5[%c2_65, %c0_66, %c0_67] : memref<12x1x8xf32, #tpu.memory_space<vmem>>, vector<1x1x8xf32>
    %87 = vector.shape_cast %86 : vector<1x1x8xf32> to vector<1x8xf32>
    %88 = vector.broadcast %87 : vector<1x8xf32> to vector<8x8xf32>
    %89 = arith.addf %85, %88 : vector<8x8xf32>
    %c6 = arith.constant 6 : index
    %c0_68 = arith.constant 0 : index
    %c0_69 = arith.constant 0 : index
    %90 = vector.load %arg4[%c6, %c0_68, %c0_69] : memref<12x32x8xf32, #tpu.memory_space<vmem>>, vector<1x32x8xf32>
    %91 = vector.shape_cast %90 : vector<1x32x8xf32> to vector<32x8xf32>
    %cst_70 = arith.constant dense<0.000000e+00> : vector<8x8xf32>
    %92 = tpu.matmul %3, %91, %cst_70 {dimension_numbers = #tpu.dot_dimension_numbers<[1], [0], [0], [1], [0, 0, 1, 1], [], []>} : vector<8x32xf32>, vector<32x8xf32>, vector<8x8xf32> -> vector<8x8xf32>
    %c6_71 = arith.constant 6 : index
    %c0_72 = arith.constant 0 : index
    %c0_73 = arith.constant 0 : index
    %93 = vector.load %arg5[%c6_71, %c0_72, %c0_73] : memref<12x1x8xf32, #tpu.memory_space<vmem>>, vector<1x1x8xf32>
    %94 = vector.shape_cast %93 : vector<1x1x8xf32> to vector<1x8xf32>
    %95 = vector.broadcast %94 : vector<1x8xf32> to vector<8x8xf32>
    %96 = arith.addf %92, %95 : vector<8x8xf32>
    %c10 = arith.constant 10 : index
    %c0_74 = arith.constant 0 : index
    %c0_75 = arith.constant 0 : index
    %97 = vector.load %arg4[%c10, %c0_74, %c0_75] : memref<12x32x8xf32, #tpu.memory_space<vmem>>, vector<1x32x8xf32>
    %98 = vector.shape_cast %97 : vector<1x32x8xf32> to vector<32x8xf32>
    %cst_76 = arith.constant dense<0.000000e+00> : vector<8x8xf32>
    %99 = tpu.matmul %3, %98, %cst_76 {dimension_numbers = #tpu.dot_dimension_numbers<[1], [0], [0], [1], [0, 0, 1, 1], [], []>} : vector<8x32xf32>, vector<32x8xf32>, vector<8x8xf32> -> vector<8x8xf32>
    %c10_77 = arith.constant 10 : index
    %c0_78 = arith.constant 0 : index
    %c0_79 = arith.constant 0 : index
    %100 = vector.load %arg5[%c10_77, %c0_78, %c0_79] : memref<12x1x8xf32, #tpu.memory_space<vmem>>, vector<1x1x8xf32>
    %101 = vector.shape_cast %100 : vector<1x1x8xf32> to vector<1x8xf32>
    %102 = vector.broadcast %101 : vector<1x8xf32> to vector<8x8xf32>
    %103 = arith.addf %99, %102 : vector<8x8xf32>
    %cst_80 = arith.constant dense<0.000000e+00> : vector<8x8xf32>
    %104 = tpu.matmul %89, %96, %cst_80 {dimension_numbers = #tpu.dot_dimension_numbers<[1], [1], [0], [0], [0, 0, 1, 0], [], []>} : vector<8x8xf32>, vector<8x8xf32>, vector<8x8xf32> -> vector<8x8xf32>
    %cst_81 = arith.constant 0.353553385 : f32
    %105 = vector.broadcast %cst_81 : f32 to vector<8x8xf32>
    %106 = arith.mulf %104, %105 : vector<8x8xf32>
    %cst_82 = arith.constant dense<0xFF800000> : vector<8xf32>
    %107 = vector.multi_reduction <maximumf>, %106, %cst_82 [1] : vector<8x8xf32> to vector<8xf32>
    %108 = vector.shape_cast %107 : vector<8xf32> to vector<8x1xf32>
    %109 = vector.broadcast %108 : vector<8x1xf32> to vector<8x8xf32>
    %110 = arith.subf %106, %109 : vector<8x8xf32>
    %111 = math.exp %110 : vector<8x8xf32>
    %cst_83 = arith.constant dense<0.000000e+00> : vector<8xf32>
    %112 = vector.multi_reduction <add>, %111, %cst_83 [1] : vector<8x8xf32> to vector<8xf32>
    %113 = vector.shape_cast %112 : vector<8xf32> to vector<8x1xf32>
    %114 = tpu.reciprocal %113 {approx = true} : vector<8x1xf32> -> vector<8x1xf32>
    %115 = vector.broadcast %114 : vector<8x1xf32> to vector<8x8xf32>
    %116 = arith.mulf %111, %115 : vector<8x8xf32>
    %cst_84 = arith.constant dense<0.000000e+00> : vector<8x8xf32>
    %117 = tpu.matmul %116, %103, %cst_84 {dimension_numbers = #tpu.dot_dimension_numbers<[1], [0], [0], [1], [0, 0, 1, 1], [], []>} : vector<8x8xf32>, vector<8x8xf32>, vector<8x8xf32> -> vector<8x8xf32>
    %c2_85 = arith.constant 2 : index
    %c0_86 = arith.constant 0 : index
    %c0_87 = arith.constant 0 : index
    %118 = vector.load %arg6[%c2_85, %c0_86, %c0_87] : memref<4x8x32xf32, #tpu.memory_space<vmem>>, vector<1x8x32xf32>
    %119 = vector.shape_cast %118 : vector<1x8x32xf32> to vector<8x32xf32>
    %cst_88 = arith.constant dense<0.000000e+00> : vector<8x32xf32>
    %120 = tpu.matmul %117, %119, %cst_88 {dimension_numbers = #tpu.dot_dimension_numbers<[1], [0], [0], [1], [0, 0, 1, 1], [], []>} : vector<8x8xf32>, vector<8x32xf32>, vector<8x32xf32> -> vector<8x32xf32>
    %121 = arith.addf %82, %120 : vector<8x32xf32>
    %c3 = arith.constant 3 : index
    %c0_89 = arith.constant 0 : index
    %c0_90 = arith.constant 0 : index
    %122 = vector.load %arg4[%c3, %c0_89, %c0_90] : memref<12x32x8xf32, #tpu.memory_space<vmem>>, vector<1x32x8xf32>
    %123 = vector.shape_cast %122 : vector<1x32x8xf32> to vector<32x8xf32>
    %cst_91 = arith.constant dense<0.000000e+00> : vector<8x8xf32>
    %124 = tpu.matmul %3, %123, %cst_91 {dimension_numbers = #tpu.dot_dimension_numbers<[1], [0], [0], [1], [0, 0, 1, 1], [], []>} : vector<8x32xf32>, vector<32x8xf32>, vector<8x8xf32> -> vector<8x8xf32>
    %c3_92 = arith.constant 3 : index
    %c0_93 = arith.constant 0 : index
    %c0_94 = arith.constant 0 : index
    %125 = vector.load %arg5[%c3_92, %c0_93, %c0_94] : memref<12x1x8xf32, #tpu.memory_space<vmem>>, vector<1x1x8xf32>
    %126 = vector.shape_cast %125 : vector<1x1x8xf32> to vector<1x8xf32>
    %127 = vector.broadcast %126 : vector<1x8xf32> to vector<8x8xf32>
    %128 = arith.addf %124, %127 : vector<8x8xf32>
    %c7 = arith.constant 7 : index
    %c0_95 = arith.constant 0 : index
    %c0_96 = arith.constant 0 : index
    %129 = vector.load %arg4[%c7, %c0_95, %c0_96] : memref<12x32x8xf32, #tpu.memory_space<vmem>>, vector<1x32x8xf32>
    %130 = vector.shape_cast %129 : vector<1x32x8xf32> to vector<32x8xf32>
    %cst_97 = arith.constant dense<0.000000e+00> : vector<8x8xf32>
    %131 = tpu.matmul %3, %130, %cst_97 {dimension_numbers = #tpu.dot_dimension_numbers<[1], [0], [0], [1], [0, 0, 1, 1], [], []>} : vector<8x32xf32>, vector<32x8xf32>, vector<8x8xf32> -> vector<8x8xf32>
    %c7_98 = arith.constant 7 : index
    %c0_99 = arith.constant 0 : index
    %c0_100 = arith.constant 0 : index
    %132 = vector.load %arg5[%c7_98, %c0_99, %c0_100] : memref<12x1x8xf32, #tpu.memory_space<vmem>>, vector<1x1x8xf32>
    %133 = vector.shape_cast %132 : vector<1x1x8xf32> to vector<1x8xf32>
    %134 = vector.broadcast %133 : vector<1x8xf32> to vector<8x8xf32>
    %135 = arith.addf %131, %134 : vector<8x8xf32>
    %c11 = arith.constant 11 : index
    %c0_101 = arith.constant 0 : index
    %c0_102 = arith.constant 0 : index
    %136 = vector.load %arg4[%c11, %c0_101, %c0_102] : memref<12x32x8xf32, #tpu.memory_space<vmem>>, vector<1x32x8xf32>
    %137 = vector.shape_cast %136 : vector<1x32x8xf32> to vector<32x8xf32>
    %cst_103 = arith.constant dense<0.000000e+00> : vector<8x8xf32>
    %138 = tpu.matmul %3, %137, %cst_103 {dimension_numbers = #tpu.dot_dimension_numbers<[1], [0], [0], [1], [0, 0, 1, 1], [], []>} : vector<8x32xf32>, vector<32x8xf32>, vector<8x8xf32> -> vector<8x8xf32>
    %c11_104 = arith.constant 11 : index
    %c0_105 = arith.constant 0 : index
    %c0_106 = arith.constant 0 : index
    %139 = vector.load %arg5[%c11_104, %c0_105, %c0_106] : memref<12x1x8xf32, #tpu.memory_space<vmem>>, vector<1x1x8xf32>
    %140 = vector.shape_cast %139 : vector<1x1x8xf32> to vector<1x8xf32>
    %141 = vector.broadcast %140 : vector<1x8xf32> to vector<8x8xf32>
    %142 = arith.addf %138, %141 : vector<8x8xf32>
    %cst_107 = arith.constant dense<0.000000e+00> : vector<8x8xf32>
    %143 = tpu.matmul %128, %135, %cst_107 {dimension_numbers = #tpu.dot_dimension_numbers<[1], [1], [0], [0], [0, 0, 1, 0], [], []>} : vector<8x8xf32>, vector<8x8xf32>, vector<8x8xf32> -> vector<8x8xf32>
    %cst_108 = arith.constant 0.353553385 : f32
    %144 = vector.broadcast %cst_108 : f32 to vector<8x8xf32>
    %145 = arith.mulf %143, %144 : vector<8x8xf32>
    %cst_109 = arith.constant dense<0xFF800000> : vector<8xf32>
    %146 = vector.multi_reduction <maximumf>, %145, %cst_109 [1] : vector<8x8xf32> to vector<8xf32>
    %147 = vector.shape_cast %146 : vector<8xf32> to vector<8x1xf32>
    %148 = vector.broadcast %147 : vector<8x1xf32> to vector<8x8xf32>
    %149 = arith.subf %145, %148 : vector<8x8xf32>
    %150 = math.exp %149 : vector<8x8xf32>
    %cst_110 = arith.constant dense<0.000000e+00> : vector<8xf32>
    %151 = vector.multi_reduction <add>, %150, %cst_110 [1] : vector<8x8xf32> to vector<8xf32>
    %152 = vector.shape_cast %151 : vector<8xf32> to vector<8x1xf32>
    %153 = tpu.reciprocal %152 {approx = true} : vector<8x1xf32> -> vector<8x1xf32>
    %154 = vector.broadcast %153 : vector<8x1xf32> to vector<8x8xf32>
    %155 = arith.mulf %150, %154 : vector<8x8xf32>
    %cst_111 = arith.constant dense<0.000000e+00> : vector<8x8xf32>
    %156 = tpu.matmul %155, %142, %cst_111 {dimension_numbers = #tpu.dot_dimension_numbers<[1], [0], [0], [1], [0, 0, 1, 1], [], []>} : vector<8x8xf32>, vector<8x8xf32>, vector<8x8xf32> -> vector<8x8xf32>
    %c3_112 = arith.constant 3 : index
    %c0_113 = arith.constant 0 : index
    %c0_114 = arith.constant 0 : index
    %157 = vector.load %arg6[%c3_112, %c0_113, %c0_114] : memref<4x8x32xf32, #tpu.memory_space<vmem>>, vector<1x8x32xf32>
    %158 = vector.shape_cast %157 : vector<1x8x32xf32> to vector<8x32xf32>
    %cst_115 = arith.constant dense<0.000000e+00> : vector<8x32xf32>
    %159 = tpu.matmul %156, %158, %cst_115 {dimension_numbers = #tpu.dot_dimension_numbers<[1], [0], [0], [1], [0, 0, 1, 1], [], []>} : vector<8x8xf32>, vector<8x32xf32>, vector<8x32xf32> -> vector<8x32xf32>
    %160 = arith.addf %121, %159 : vector<8x32xf32>
    %c0_116 = arith.constant 0 : index
    %c0_117 = arith.constant 0 : index
    %161 = vector.load %arg7[%c0_116, %c0_117] : memref<1x32xf32, #tpu.memory_space<vmem>>, vector<1x32xf32>
    %162 = vector.broadcast %161 : vector<1x32xf32> to vector<8x32xf32>
    %163 = arith.addf %160, %162 : vector<8x32xf32>
    %164 = arith.addf %3, %163 : vector<8x32xf32>
    %cst_118 = arith.constant dense<0.000000e+00> : vector<8xf32>
    %165 = vector.multi_reduction <add>, %164, %cst_118 [1] : vector<8x32xf32> to vector<8xf32>
    %166 = vector.shape_cast %165 : vector<8xf32> to vector<8x1xf32>
    %cst_119 = arith.constant 3.200000e+01 : f32
    %167 = vector.broadcast %cst_119 : f32 to vector<8x1xf32>
    %168 = arith.divf %166, %167 : vector<8x1xf32>
    %169 = vector.broadcast %168 : vector<8x1xf32> to vector<8x32xf32>
    %170 = arith.subf %164, %169 : vector<8x32xf32>
    %171 = arith.mulf %170, %170 : vector<8x32xf32>
    %cst_120 = arith.constant dense<0.000000e+00> : vector<8xf32>
    %172 = vector.multi_reduction <add>, %171, %cst_120 [1] : vector<8x32xf32> to vector<8xf32>
    %173 = vector.shape_cast %172 : vector<8xf32> to vector<8x1xf32>
    %cst_121 = arith.constant 3.200000e+01 : f32
    %174 = vector.broadcast %cst_121 : f32 to vector<8x1xf32>
    %175 = arith.divf %173, %174 : vector<8x1xf32>
    %cst_122 = arith.constant 9.99999974E-6 : f32
    %176 = vector.broadcast %cst_122 : f32 to vector<8x1xf32>
    %177 = arith.addf %175, %176 : vector<8x1xf32>
    %178 = math.rsqrt %177 : vector<8x1xf32>
    %179 = vector.broadcast %178 : vector<8x1xf32> to vector<8x32xf32>
    %180 = arith.mulf %170, %179 : vector<8x32xf32>
    %c0_123 = arith.constant 0 : index
    %c0_124 = arith.constant 0 : index
    %181 = vector.load %arg8[%c0_123, %c0_124] : memref<1x32xf32, #tpu.memory_space<vmem>>, vector<1x32xf32>
    %182 = vector.broadcast %181 : vector<1x32xf32> to vector<8x32xf32>
    %183 = arith.mulf %180, %182 : vector<8x32xf32>
    %c0_125 = arith.constant 0 : index
    %c0_126 = arith.constant 0 : index
    %184 = vector.load %arg9[%c0_125, %c0_126] : memref<1x32xf32, #tpu.memory_space<vmem>>, vector<1x32xf32>
    %185 = vector.broadcast %184 : vector<1x32xf32> to vector<8x32xf32>
    %186 = arith.addf %183, %185 : vector<8x32xf32>
    %c0_127 = arith.constant 0 : index
    %c0_128 = arith.constant 0 : index
    %c0_129 = arith.constant 0 : index
    %187 = vector.load %arg10[%c0_127, %c0_128, %c0_129] : memref<12x32x8xf32, #tpu.memory_space<vmem>>, vector<1x32x8xf32>
    %188 = vector.shape_cast %187 : vector<1x32x8xf32> to vector<32x8xf32>
    %cst_130 = arith.constant dense<0.000000e+00> : vector<8x8xf32>
    %189 = tpu.matmul %186, %188, %cst_130 {dimension_numbers = #tpu.dot_dimension_numbers<[1], [0], [0], [1], [0, 0, 1, 1], [], []>} : vector<8x32xf32>, vector<32x8xf32>, vector<8x8xf32> -> vector<8x8xf32>
    %c0_131 = arith.constant 0 : index
    %c0_132 = arith.constant 0 : index
    %c0_133 = arith.constant 0 : index
    %190 = vector.load %arg11[%c0_131, %c0_132, %c0_133] : memref<12x1x8xf32, #tpu.memory_space<vmem>>, vector<1x1x8xf32>
    %191 = vector.shape_cast %190 : vector<1x1x8xf32> to vector<1x8xf32>
    %192 = vector.broadcast %191 : vector<1x8xf32> to vector<8x8xf32>
    %193 = arith.addf %189, %192 : vector<8x8xf32>
    %c4_134 = arith.constant 4 : index
    %c0_135 = arith.constant 0 : index
    %c0_136 = arith.constant 0 : index
    %194 = vector.load %arg10[%c4_134, %c0_135, %c0_136] : memref<12x32x8xf32, #tpu.memory_space<vmem>>, vector<1x32x8xf32>
    %195 = vector.shape_cast %194 : vector<1x32x8xf32> to vector<32x8xf32>
    %cst_137 = arith.constant dense<0.000000e+00> : vector<10x8xf32>
    %196 = tpu.matmul %5, %195, %cst_137 {dimension_numbers = #tpu.dot_dimension_numbers<[1], [0], [0], [1], [0, 0, 1, 1], [], []>} : vector<10x32xf32>, vector<32x8xf32>, vector<10x8xf32> -> vector<10x8xf32>
    %c4_138 = arith.constant 4 : index
    %c0_139 = arith.constant 0 : index
    %c0_140 = arith.constant 0 : index
    %197 = vector.load %arg11[%c4_138, %c0_139, %c0_140] : memref<12x1x8xf32, #tpu.memory_space<vmem>>, vector<1x1x8xf32>
    %198 = vector.shape_cast %197 : vector<1x1x8xf32> to vector<1x8xf32>
    %199 = vector.broadcast %198 : vector<1x8xf32> to vector<10x8xf32>
    %200 = arith.addf %196, %199 : vector<10x8xf32>
    %c8_141 = arith.constant 8 : index
    %c0_142 = arith.constant 0 : index
    %c0_143 = arith.constant 0 : index
    %201 = vector.load %arg10[%c8_141, %c0_142, %c0_143] : memref<12x32x8xf32, #tpu.memory_space<vmem>>, vector<1x32x8xf32>
    %202 = vector.shape_cast %201 : vector<1x32x8xf32> to vector<32x8xf32>
    %cst_144 = arith.constant dense<0.000000e+00> : vector<10x8xf32>
    %203 = tpu.matmul %5, %202, %cst_144 {dimension_numbers = #tpu.dot_dimension_numbers<[1], [0], [0], [1], [0, 0, 1, 1], [], []>} : vector<10x32xf32>, vector<32x8xf32>, vector<10x8xf32> -> vector<10x8xf32>
    %c8_145 = arith.constant 8 : index
    %c0_146 = arith.constant 0 : index
    %c0_147 = arith.constant 0 : index
    %204 = vector.load %arg11[%c8_145, %c0_146, %c0_147] : memref<12x1x8xf32, #tpu.memory_space<vmem>>, vector<1x1x8xf32>
    %205 = vector.shape_cast %204 : vector<1x1x8xf32> to vector<1x8xf32>
    %206 = vector.broadcast %205 : vector<1x8xf32> to vector<10x8xf32>
    %207 = arith.addf %203, %206 : vector<10x8xf32>
    %cst_148 = arith.constant dense<0.000000e+00> : vector<8x10xf32>
    %208 = tpu.matmul %193, %200, %cst_148 {dimension_numbers = #tpu.dot_dimension_numbers<[1], [1], [0], [0], [0, 0, 1, 0], [], []>} : vector<8x8xf32>, vector<10x8xf32>, vector<8x10xf32> -> vector<8x10xf32>
    %cst_149 = arith.constant 0.353553385 : f32
    %209 = vector.broadcast %cst_149 : f32 to vector<8x10xf32>
    %210 = arith.mulf %208, %209 : vector<8x10xf32>
    %cst_150 = arith.constant dense<0xFF800000> : vector<8xf32>
    %211 = vector.multi_reduction <maximumf>, %210, %cst_150 [1] : vector<8x10xf32> to vector<8xf32>
    %212 = vector.shape_cast %211 : vector<8xf32> to vector<8x1xf32>
    %213 = vector.broadcast %212 : vector<8x1xf32> to vector<8x10xf32>
    %214 = arith.subf %210, %213 : vector<8x10xf32>
    %215 = math.exp %214 : vector<8x10xf32>
    %cst_151 = arith.constant dense<0.000000e+00> : vector<8xf32>
    %216 = vector.multi_reduction <add>, %215, %cst_151 [1] : vector<8x10xf32> to vector<8xf32>
    %217 = vector.shape_cast %216 : vector<8xf32> to vector<8x1xf32>
    %218 = tpu.reciprocal %217 {approx = true} : vector<8x1xf32> -> vector<8x1xf32>
    %219 = vector.broadcast %218 : vector<8x1xf32> to vector<8x10xf32>
    %220 = arith.mulf %215, %219 : vector<8x10xf32>
    %cst_152 = arith.constant dense<0.000000e+00> : vector<8x8xf32>
    %221 = tpu.matmul %220, %207, %cst_152 {dimension_numbers = #tpu.dot_dimension_numbers<[1], [0], [0], [1], [0, 0, 1, 1], [], []>} : vector<8x10xf32>, vector<10x8xf32>, vector<8x8xf32> -> vector<8x8xf32>
    %c0_153 = arith.constant 0 : index
    %c0_154 = arith.constant 0 : index
    %c0_155 = arith.constant 0 : index
    %222 = vector.load %arg12[%c0_153, %c0_154, %c0_155] : memref<4x8x32xf32, #tpu.memory_space<vmem>>, vector<1x8x32xf32>
    %223 = vector.shape_cast %222 : vector<1x8x32xf32> to vector<8x32xf32>
    %cst_156 = arith.constant dense<0.000000e+00> : vector<8x32xf32>
    %224 = tpu.matmul %221, %223, %cst_156 {dimension_numbers = #tpu.dot_dimension_numbers<[1], [0], [0], [1], [0, 0, 1, 1], [], []>} : vector<8x8xf32>, vector<8x32xf32>, vector<8x32xf32> -> vector<8x32xf32>
    %c1_157 = arith.constant 1 : index
    %c0_158 = arith.constant 0 : index
    %c0_159 = arith.constant 0 : index
    %225 = vector.load %arg10[%c1_157, %c0_158, %c0_159] : memref<12x32x8xf32, #tpu.memory_space<vmem>>, vector<1x32x8xf32>
    %226 = vector.shape_cast %225 : vector<1x32x8xf32> to vector<32x8xf32>
    %cst_160 = arith.constant dense<0.000000e+00> : vector<8x8xf32>
    %227 = tpu.matmul %186, %226, %cst_160 {dimension_numbers = #tpu.dot_dimension_numbers<[1], [0], [0], [1], [0, 0, 1, 1], [], []>} : vector<8x32xf32>, vector<32x8xf32>, vector<8x8xf32> -> vector<8x8xf32>
    %c1_161 = arith.constant 1 : index
    %c0_162 = arith.constant 0 : index
    %c0_163 = arith.constant 0 : index
    %228 = vector.load %arg11[%c1_161, %c0_162, %c0_163] : memref<12x1x8xf32, #tpu.memory_space<vmem>>, vector<1x1x8xf32>
    %229 = vector.shape_cast %228 : vector<1x1x8xf32> to vector<1x8xf32>
    %230 = vector.broadcast %229 : vector<1x8xf32> to vector<8x8xf32>
    %231 = arith.addf %227, %230 : vector<8x8xf32>
    %c5_164 = arith.constant 5 : index
    %c0_165 = arith.constant 0 : index
    %c0_166 = arith.constant 0 : index
    %232 = vector.load %arg10[%c5_164, %c0_165, %c0_166] : memref<12x32x8xf32, #tpu.memory_space<vmem>>, vector<1x32x8xf32>
    %233 = vector.shape_cast %232 : vector<1x32x8xf32> to vector<32x8xf32>
    %cst_167 = arith.constant dense<0.000000e+00> : vector<10x8xf32>
    %234 = tpu.matmul %5, %233, %cst_167 {dimension_numbers = #tpu.dot_dimension_numbers<[1], [0], [0], [1], [0, 0, 1, 1], [], []>} : vector<10x32xf32>, vector<32x8xf32>, vector<10x8xf32> -> vector<10x8xf32>
    %c5_168 = arith.constant 5 : index
    %c0_169 = arith.constant 0 : index
    %c0_170 = arith.constant 0 : index
    %235 = vector.load %arg11[%c5_168, %c0_169, %c0_170] : memref<12x1x8xf32, #tpu.memory_space<vmem>>, vector<1x1x8xf32>
    %236 = vector.shape_cast %235 : vector<1x1x8xf32> to vector<1x8xf32>
    %237 = vector.broadcast %236 : vector<1x8xf32> to vector<10x8xf32>
    %238 = arith.addf %234, %237 : vector<10x8xf32>
    %c9_171 = arith.constant 9 : index
    %c0_172 = arith.constant 0 : index
    %c0_173 = arith.constant 0 : index
    %239 = vector.load %arg10[%c9_171, %c0_172, %c0_173] : memref<12x32x8xf32, #tpu.memory_space<vmem>>, vector<1x32x8xf32>
    %240 = vector.shape_cast %239 : vector<1x32x8xf32> to vector<32x8xf32>
    %cst_174 = arith.constant dense<0.000000e+00> : vector<10x8xf32>
    %241 = tpu.matmul %5, %240, %cst_174 {dimension_numbers = #tpu.dot_dimension_numbers<[1], [0], [0], [1], [0, 0, 1, 1], [], []>} : vector<10x32xf32>, vector<32x8xf32>, vector<10x8xf32> -> vector<10x8xf32>
    %c9_175 = arith.constant 9 : index
    %c0_176 = arith.constant 0 : index
    %c0_177 = arith.constant 0 : index
    %242 = vector.load %arg11[%c9_175, %c0_176, %c0_177] : memref<12x1x8xf32, #tpu.memory_space<vmem>>, vector<1x1x8xf32>
    %243 = vector.shape_cast %242 : vector<1x1x8xf32> to vector<1x8xf32>
    %244 = vector.broadcast %243 : vector<1x8xf32> to vector<10x8xf32>
    %245 = arith.addf %241, %244 : vector<10x8xf32>
    %cst_178 = arith.constant dense<0.000000e+00> : vector<8x10xf32>
    %246 = tpu.matmul %231, %238, %cst_178 {dimension_numbers = #tpu.dot_dimension_numbers<[1], [1], [0], [0], [0, 0, 1, 0], [], []>} : vector<8x8xf32>, vector<10x8xf32>, vector<8x10xf32> -> vector<8x10xf32>
    %cst_179 = arith.constant 0.353553385 : f32
    %247 = vector.broadcast %cst_179 : f32 to vector<8x10xf32>
    %248 = arith.mulf %246, %247 : vector<8x10xf32>
    %cst_180 = arith.constant dense<0xFF800000> : vector<8xf32>
    %249 = vector.multi_reduction <maximumf>, %248, %cst_180 [1] : vector<8x10xf32> to vector<8xf32>
    %250 = vector.shape_cast %249 : vector<8xf32> to vector<8x1xf32>
    %251 = vector.broadcast %250 : vector<8x1xf32> to vector<8x10xf32>
    %252 = arith.subf %248, %251 : vector<8x10xf32>
    %253 = math.exp %252 : vector<8x10xf32>
    %cst_181 = arith.constant dense<0.000000e+00> : vector<8xf32>
    %254 = vector.multi_reduction <add>, %253, %cst_181 [1] : vector<8x10xf32> to vector<8xf32>
    %255 = vector.shape_cast %254 : vector<8xf32> to vector<8x1xf32>
    %256 = tpu.reciprocal %255 {approx = true} : vector<8x1xf32> -> vector<8x1xf32>
    %257 = vector.broadcast %256 : vector<8x1xf32> to vector<8x10xf32>
    %258 = arith.mulf %253, %257 : vector<8x10xf32>
    %cst_182 = arith.constant dense<0.000000e+00> : vector<8x8xf32>
    %259 = tpu.matmul %258, %245, %cst_182 {dimension_numbers = #tpu.dot_dimension_numbers<[1], [0], [0], [1], [0, 0, 1, 1], [], []>} : vector<8x10xf32>, vector<10x8xf32>, vector<8x8xf32> -> vector<8x8xf32>
    %c1_183 = arith.constant 1 : index
    %c0_184 = arith.constant 0 : index
    %c0_185 = arith.constant 0 : index
    %260 = vector.load %arg12[%c1_183, %c0_184, %c0_185] : memref<4x8x32xf32, #tpu.memory_space<vmem>>, vector<1x8x32xf32>
    %261 = vector.shape_cast %260 : vector<1x8x32xf32> to vector<8x32xf32>
    %cst_186 = arith.constant dense<0.000000e+00> : vector<8x32xf32>
    %262 = tpu.matmul %259, %261, %cst_186 {dimension_numbers = #tpu.dot_dimension_numbers<[1], [0], [0], [1], [0, 0, 1, 1], [], []>} : vector<8x8xf32>, vector<8x32xf32>, vector<8x32xf32> -> vector<8x32xf32>
    %263 = arith.addf %224, %262 : vector<8x32xf32>
    %c2_187 = arith.constant 2 : index
    %c0_188 = arith.constant 0 : index
    %c0_189 = arith.constant 0 : index
    %264 = vector.load %arg10[%c2_187, %c0_188, %c0_189] : memref<12x32x8xf32, #tpu.memory_space<vmem>>, vector<1x32x8xf32>
    %265 = vector.shape_cast %264 : vector<1x32x8xf32> to vector<32x8xf32>
    %cst_190 = arith.constant dense<0.000000e+00> : vector<8x8xf32>
    %266 = tpu.matmul %186, %265, %cst_190 {dimension_numbers = #tpu.dot_dimension_numbers<[1], [0], [0], [1], [0, 0, 1, 1], [], []>} : vector<8x32xf32>, vector<32x8xf32>, vector<8x8xf32> -> vector<8x8xf32>
    %c2_191 = arith.constant 2 : index
    %c0_192 = arith.constant 0 : index
    %c0_193 = arith.constant 0 : index
    %267 = vector.load %arg11[%c2_191, %c0_192, %c0_193] : memref<12x1x8xf32, #tpu.memory_space<vmem>>, vector<1x1x8xf32>
    %268 = vector.shape_cast %267 : vector<1x1x8xf32> to vector<1x8xf32>
    %269 = vector.broadcast %268 : vector<1x8xf32> to vector<8x8xf32>
    %270 = arith.addf %266, %269 : vector<8x8xf32>
    %c6_194 = arith.constant 6 : index
    %c0_195 = arith.constant 0 : index
    %c0_196 = arith.constant 0 : index
    %271 = vector.load %arg10[%c6_194, %c0_195, %c0_196] : memref<12x32x8xf32, #tpu.memory_space<vmem>>, vector<1x32x8xf32>
    %272 = vector.shape_cast %271 : vector<1x32x8xf32> to vector<32x8xf32>
    %cst_197 = arith.constant dense<0.000000e+00> : vector<10x8xf32>
    %273 = tpu.matmul %5, %272, %cst_197 {dimension_numbers = #tpu.dot_dimension_numbers<[1], [0], [0], [1], [0, 0, 1, 1], [], []>} : vector<10x32xf32>, vector<32x8xf32>, vector<10x8xf32> -> vector<10x8xf32>
    %c6_198 = arith.constant 6 : index
    %c0_199 = arith.constant 0 : index
    %c0_200 = arith.constant 0 : index
    %274 = vector.load %arg11[%c6_198, %c0_199, %c0_200] : memref<12x1x8xf32, #tpu.memory_space<vmem>>, vector<1x1x8xf32>
    %275 = vector.shape_cast %274 : vector<1x1x8xf32> to vector<1x8xf32>
    %276 = vector.broadcast %275 : vector<1x8xf32> to vector<10x8xf32>
    %277 = arith.addf %273, %276 : vector<10x8xf32>
    %c10_201 = arith.constant 10 : index
    %c0_202 = arith.constant 0 : index
    %c0_203 = arith.constant 0 : index
    %278 = vector.load %arg10[%c10_201, %c0_202, %c0_203] : memref<12x32x8xf32, #tpu.memory_space<vmem>>, vector<1x32x8xf32>
    %279 = vector.shape_cast %278 : vector<1x32x8xf32> to vector<32x8xf32>
    %cst_204 = arith.constant dense<0.000000e+00> : vector<10x8xf32>
    %280 = tpu.matmul %5, %279, %cst_204 {dimension_numbers = #tpu.dot_dimension_numbers<[1], [0], [0], [1], [0, 0, 1, 1], [], []>} : vector<10x32xf32>, vector<32x8xf32>, vector<10x8xf32> -> vector<10x8xf32>
    %c10_205 = arith.constant 10 : index
    %c0_206 = arith.constant 0 : index
    %c0_207 = arith.constant 0 : index
    %281 = vector.load %arg11[%c10_205, %c0_206, %c0_207] : memref<12x1x8xf32, #tpu.memory_space<vmem>>, vector<1x1x8xf32>
    %282 = vector.shape_cast %281 : vector<1x1x8xf32> to vector<1x8xf32>
    %283 = vector.broadcast %282 : vector<1x8xf32> to vector<10x8xf32>
    %284 = arith.addf %280, %283 : vector<10x8xf32>
    %cst_208 = arith.constant dense<0.000000e+00> : vector<8x10xf32>
    %285 = tpu.matmul %270, %277, %cst_208 {dimension_numbers = #tpu.dot_dimension_numbers<[1], [1], [0], [0], [0, 0, 1, 0], [], []>} : vector<8x8xf32>, vector<10x8xf32>, vector<8x10xf32> -> vector<8x10xf32>
    %cst_209 = arith.constant 0.353553385 : f32
    %286 = vector.broadcast %cst_209 : f32 to vector<8x10xf32>
    %287 = arith.mulf %285, %286 : vector<8x10xf32>
    %cst_210 = arith.constant dense<0xFF800000> : vector<8xf32>
    %288 = vector.multi_reduction <maximumf>, %287, %cst_210 [1] : vector<8x10xf32> to vector<8xf32>
    %289 = vector.shape_cast %288 : vector<8xf32> to vector<8x1xf32>
    %290 = vector.broadcast %289 : vector<8x1xf32> to vector<8x10xf32>
    %291 = arith.subf %287, %290 : vector<8x10xf32>
    %292 = math.exp %291 : vector<8x10xf32>
    %cst_211 = arith.constant dense<0.000000e+00> : vector<8xf32>
    %293 = vector.multi_reduction <add>, %292, %cst_211 [1] : vector<8x10xf32> to vector<8xf32>
    %294 = vector.shape_cast %293 : vector<8xf32> to vector<8x1xf32>
    %295 = tpu.reciprocal %294 {approx = true} : vector<8x1xf32> -> vector<8x1xf32>
    %296 = vector.broadcast %295 : vector<8x1xf32> to vector<8x10xf32>
    %297 = arith.mulf %292, %296 : vector<8x10xf32>
    %cst_212 = arith.constant dense<0.000000e+00> : vector<8x8xf32>
    %298 = tpu.matmul %297, %284, %cst_212 {dimension_numbers = #tpu.dot_dimension_numbers<[1], [0], [0], [1], [0, 0, 1, 1], [], []>} : vector<8x10xf32>, vector<10x8xf32>, vector<8x8xf32> -> vector<8x8xf32>
    %c2_213 = arith.constant 2 : index
    %c0_214 = arith.constant 0 : index
    %c0_215 = arith.constant 0 : index
    %299 = vector.load %arg12[%c2_213, %c0_214, %c0_215] : memref<4x8x32xf32, #tpu.memory_space<vmem>>, vector<1x8x32xf32>
    %300 = vector.shape_cast %299 : vector<1x8x32xf32> to vector<8x32xf32>
    %cst_216 = arith.constant dense<0.000000e+00> : vector<8x32xf32>
    %301 = tpu.matmul %298, %300, %cst_216 {dimension_numbers = #tpu.dot_dimension_numbers<[1], [0], [0], [1], [0, 0, 1, 1], [], []>} : vector<8x8xf32>, vector<8x32xf32>, vector<8x32xf32> -> vector<8x32xf32>
    %302 = arith.addf %263, %301 : vector<8x32xf32>
    %c3_217 = arith.constant 3 : index
    %c0_218 = arith.constant 0 : index
    %c0_219 = arith.constant 0 : index
    %303 = vector.load %arg10[%c3_217, %c0_218, %c0_219] : memref<12x32x8xf32, #tpu.memory_space<vmem>>, vector<1x32x8xf32>
    %304 = vector.shape_cast %303 : vector<1x32x8xf32> to vector<32x8xf32>
    %cst_220 = arith.constant dense<0.000000e+00> : vector<8x8xf32>
    %305 = tpu.matmul %186, %304, %cst_220 {dimension_numbers = #tpu.dot_dimension_numbers<[1], [0], [0], [1], [0, 0, 1, 1], [], []>} : vector<8x32xf32>, vector<32x8xf32>, vector<8x8xf32> -> vector<8x8xf32>
    %c3_221 = arith.constant 3 : index
    %c0_222 = arith.constant 0 : index
    %c0_223 = arith.constant 0 : index
    %306 = vector.load %arg11[%c3_221, %c0_222, %c0_223] : memref<12x1x8xf32, #tpu.memory_space<vmem>>, vector<1x1x8xf32>
    %307 = vector.shape_cast %306 : vector<1x1x8xf32> to vector<1x8xf32>
    %308 = vector.broadcast %307 : vector<1x8xf32> to vector<8x8xf32>
    %309 = arith.addf %305, %308 : vector<8x8xf32>
    %c7_224 = arith.constant 7 : index
    %c0_225 = arith.constant 0 : index
    %c0_226 = arith.constant 0 : index
    %310 = vector.load %arg10[%c7_224, %c0_225, %c0_226] : memref<12x32x8xf32, #tpu.memory_space<vmem>>, vector<1x32x8xf32>
    %311 = vector.shape_cast %310 : vector<1x32x8xf32> to vector<32x8xf32>
    %cst_227 = arith.constant dense<0.000000e+00> : vector<10x8xf32>
    %312 = tpu.matmul %5, %311, %cst_227 {dimension_numbers = #tpu.dot_dimension_numbers<[1], [0], [0], [1], [0, 0, 1, 1], [], []>} : vector<10x32xf32>, vector<32x8xf32>, vector<10x8xf32> -> vector<10x8xf32>
    %c7_228 = arith.constant 7 : index
    %c0_229 = arith.constant 0 : index
    %c0_230 = arith.constant 0 : index
    %313 = vector.load %arg11[%c7_228, %c0_229, %c0_230] : memref<12x1x8xf32, #tpu.memory_space<vmem>>, vector<1x1x8xf32>
    %314 = vector.shape_cast %313 : vector<1x1x8xf32> to vector<1x8xf32>
    %315 = vector.broadcast %314 : vector<1x8xf32> to vector<10x8xf32>
    %316 = arith.addf %312, %315 : vector<10x8xf32>
    %c11_231 = arith.constant 11 : index
    %c0_232 = arith.constant 0 : index
    %c0_233 = arith.constant 0 : index
    %317 = vector.load %arg10[%c11_231, %c0_232, %c0_233] : memref<12x32x8xf32, #tpu.memory_space<vmem>>, vector<1x32x8xf32>
    %318 = vector.shape_cast %317 : vector<1x32x8xf32> to vector<32x8xf32>
    %cst_234 = arith.constant dense<0.000000e+00> : vector<10x8xf32>
    %319 = tpu.matmul %5, %318, %cst_234 {dimension_numbers = #tpu.dot_dimension_numbers<[1], [0], [0], [1], [0, 0, 1, 1], [], []>} : vector<10x32xf32>, vector<32x8xf32>, vector<10x8xf32> -> vector<10x8xf32>
    %c11_235 = arith.constant 11 : index
    %c0_236 = arith.constant 0 : index
    %c0_237 = arith.constant 0 : index
    %320 = vector.load %arg11[%c11_235, %c0_236, %c0_237] : memref<12x1x8xf32, #tpu.memory_space<vmem>>, vector<1x1x8xf32>
    %321 = vector.shape_cast %320 : vector<1x1x8xf32> to vector<1x8xf32>
    %322 = vector.broadcast %321 : vector<1x8xf32> to vector<10x8xf32>
    %323 = arith.addf %319, %322 : vector<10x8xf32>
    %cst_238 = arith.constant dense<0.000000e+00> : vector<8x10xf32>
    %324 = tpu.matmul %309, %316, %cst_238 {dimension_numbers = #tpu.dot_dimension_numbers<[1], [1], [0], [0], [0, 0, 1, 0], [], []>} : vector<8x8xf32>, vector<10x8xf32>, vector<8x10xf32> -> vector<8x10xf32>
    %cst_239 = arith.constant 0.353553385 : f32
    %325 = vector.broadcast %cst_239 : f32 to vector<8x10xf32>
    %326 = arith.mulf %324, %325 : vector<8x10xf32>
    %cst_240 = arith.constant dense<0xFF800000> : vector<8xf32>
    %327 = vector.multi_reduction <maximumf>, %326, %cst_240 [1] : vector<8x10xf32> to vector<8xf32>
    %328 = vector.shape_cast %327 : vector<8xf32> to vector<8x1xf32>
    %329 = vector.broadcast %328 : vector<8x1xf32> to vector<8x10xf32>
    %330 = arith.subf %326, %329 : vector<8x10xf32>
    %331 = math.exp %330 : vector<8x10xf32>
    %cst_241 = arith.constant dense<0.000000e+00> : vector<8xf32>
    %332 = vector.multi_reduction <add>, %331, %cst_241 [1] : vector<8x10xf32> to vector<8xf32>
    %333 = vector.shape_cast %332 : vector<8xf32> to vector<8x1xf32>
    %334 = tpu.reciprocal %333 {approx = true} : vector<8x1xf32> -> vector<8x1xf32>
    %335 = vector.broadcast %334 : vector<8x1xf32> to vector<8x10xf32>
    %336 = arith.mulf %331, %335 : vector<8x10xf32>
    %cst_242 = arith.constant dense<0.000000e+00> : vector<8x8xf32>
    %337 = tpu.matmul %336, %323, %cst_242 {dimension_numbers = #tpu.dot_dimension_numbers<[1], [0], [0], [1], [0, 0, 1, 1], [], []>} : vector<8x10xf32>, vector<10x8xf32>, vector<8x8xf32> -> vector<8x8xf32>
    %c3_243 = arith.constant 3 : index
    %c0_244 = arith.constant 0 : index
    %c0_245 = arith.constant 0 : index
    %338 = vector.load %arg12[%c3_243, %c0_244, %c0_245] : memref<4x8x32xf32, #tpu.memory_space<vmem>>, vector<1x8x32xf32>
    %339 = vector.shape_cast %338 : vector<1x8x32xf32> to vector<8x32xf32>
    %cst_246 = arith.constant dense<0.000000e+00> : vector<8x32xf32>
    %340 = tpu.matmul %337, %339, %cst_246 {dimension_numbers = #tpu.dot_dimension_numbers<[1], [0], [0], [1], [0, 0, 1, 1], [], []>} : vector<8x8xf32>, vector<8x32xf32>, vector<8x32xf32> -> vector<8x32xf32>
    %341 = arith.addf %302, %340 : vector<8x32xf32>
    %c0_247 = arith.constant 0 : index
    %c0_248 = arith.constant 0 : index
    %342 = vector.load %arg13[%c0_247, %c0_248] : memref<1x32xf32, #tpu.memory_space<vmem>>, vector<1x32xf32>
    %343 = vector.broadcast %342 : vector<1x32xf32> to vector<8x32xf32>
    %344 = arith.addf %341, %343 : vector<8x32xf32>
    %345 = arith.addf %186, %344 : vector<8x32xf32>
    %cst_249 = arith.constant dense<0.000000e+00> : vector<8xf32>
    %346 = vector.multi_reduction <add>, %345, %cst_249 [1] : vector<8x32xf32> to vector<8xf32>
    %347 = vector.shape_cast %346 : vector<8xf32> to vector<8x1xf32>
    %cst_250 = arith.constant 3.200000e+01 : f32
    %348 = vector.broadcast %cst_250 : f32 to vector<8x1xf32>
    %349 = arith.divf %347, %348 : vector<8x1xf32>
    %350 = vector.broadcast %349 : vector<8x1xf32> to vector<8x32xf32>
    %351 = arith.subf %345, %350 : vector<8x32xf32>
    %352 = arith.mulf %351, %351 : vector<8x32xf32>
    %cst_251 = arith.constant dense<0.000000e+00> : vector<8xf32>
    %353 = vector.multi_reduction <add>, %352, %cst_251 [1] : vector<8x32xf32> to vector<8xf32>
    %354 = vector.shape_cast %353 : vector<8xf32> to vector<8x1xf32>
    %cst_252 = arith.constant 3.200000e+01 : f32
    %355 = vector.broadcast %cst_252 : f32 to vector<8x1xf32>
    %356 = arith.divf %354, %355 : vector<8x1xf32>
    %cst_253 = arith.constant 9.99999974E-6 : f32
    %357 = vector.broadcast %cst_253 : f32 to vector<8x1xf32>
    %358 = arith.addf %356, %357 : vector<8x1xf32>
    %359 = math.rsqrt %358 : vector<8x1xf32>
    %360 = vector.broadcast %359 : vector<8x1xf32> to vector<8x32xf32>
    %361 = arith.mulf %351, %360 : vector<8x32xf32>
    %c0_254 = arith.constant 0 : index
    %c0_255 = arith.constant 0 : index
    %362 = vector.load %arg14[%c0_254, %c0_255] : memref<1x32xf32, #tpu.memory_space<vmem>>, vector<1x32xf32>
    %363 = vector.broadcast %362 : vector<1x32xf32> to vector<8x32xf32>
    %364 = arith.mulf %361, %363 : vector<8x32xf32>
    %c0_256 = arith.constant 0 : index
    %c0_257 = arith.constant 0 : index
    %365 = vector.load %arg15[%c0_256, %c0_257] : memref<1x32xf32, #tpu.memory_space<vmem>>, vector<1x32xf32>
    %366 = vector.broadcast %365 : vector<1x32xf32> to vector<8x32xf32>
    %367 = arith.addf %364, %366 : vector<8x32xf32>
    %c0_258 = arith.constant 0 : index
    %c0_259 = arith.constant 0 : index
    %368 = vector.load %arg16[%c0_258, %c0_259] : memref<32x64xf32, #tpu.memory_space<vmem>>, vector<32x64xf32>
    %cst_260 = arith.constant dense<0.000000e+00> : vector<8x64xf32>
    %369 = tpu.matmul %367, %368, %cst_260 {dimension_numbers = #tpu.dot_dimension_numbers<[1], [0], [0], [1], [0, 0, 1, 1], [], []>} : vector<8x32xf32>, vector<32x64xf32>, vector<8x64xf32> -> vector<8x64xf32>
    %c0_261 = arith.constant 0 : index
    %c0_262 = arith.constant 0 : index
    %370 = vector.load %arg17[%c0_261, %c0_262] : memref<1x64xf32, #tpu.memory_space<vmem>>, vector<1x64xf32>
    %371 = vector.broadcast %370 : vector<1x64xf32> to vector<8x64xf32>
    %372 = arith.addf %369, %371 : vector<8x64xf32>
    %cst_263 = arith.constant 0.000000e+00 : f32
    %373 = vector.broadcast %cst_263 : f32 to vector<8x64xf32>
    %374 = arith.maximumf %372, %373 : vector<8x64xf32>
    %c0_264 = arith.constant 0 : index
    %c0_265 = arith.constant 0 : index
    %375 = vector.load %arg18[%c0_264, %c0_265] : memref<64x32xf32, #tpu.memory_space<vmem>>, vector<64x32xf32>
    %cst_266 = arith.constant dense<0.000000e+00> : vector<8x32xf32>
    %376 = tpu.matmul %374, %375, %cst_266 {dimension_numbers = #tpu.dot_dimension_numbers<[1], [0], [0], [1], [0, 0, 1, 1], [], []>} : vector<8x64xf32>, vector<64x32xf32>, vector<8x32xf32> -> vector<8x32xf32>
    %c0_267 = arith.constant 0 : index
    %c0_268 = arith.constant 0 : index
    %377 = vector.load %arg19[%c0_267, %c0_268] : memref<1x32xf32, #tpu.memory_space<vmem>>, vector<1x32xf32>
    %378 = vector.broadcast %377 : vector<1x32xf32> to vector<8x32xf32>
    %379 = arith.addf %376, %378 : vector<8x32xf32>
    %380 = arith.addf %367, %379 : vector<8x32xf32>
    %cst_269 = arith.constant dense<0.000000e+00> : vector<8xf32>
    %381 = vector.multi_reduction <add>, %380, %cst_269 [1] : vector<8x32xf32> to vector<8xf32>
    %382 = vector.shape_cast %381 : vector<8xf32> to vector<8x1xf32>
    %cst_270 = arith.constant 3.200000e+01 : f32
    %383 = vector.broadcast %cst_270 : f32 to vector<8x1xf32>
    %384 = arith.divf %382, %383 : vector<8x1xf32>
    %385 = vector.broadcast %384 : vector<8x1xf32> to vector<8x32xf32>
    %386 = arith.subf %380, %385 : vector<8x32xf32>
    %387 = arith.mulf %386, %386 : vector<8x32xf32>
    %cst_271 = arith.constant dense<0.000000e+00> : vector<8xf32>
    %388 = vector.multi_reduction <add>, %387, %cst_271 [1] : vector<8x32xf32> to vector<8xf32>
    %389 = vector.shape_cast %388 : vector<8xf32> to vector<8x1xf32>
    %cst_272 = arith.constant 3.200000e+01 : f32
    %390 = vector.broadcast %cst_272 : f32 to vector<8x1xf32>
    %391 = arith.divf %389, %390 : vector<8x1xf32>
    %cst_273 = arith.constant 9.99999974E-6 : f32
    %392 = vector.broadcast %cst_273 : f32 to vector<8x1xf32>
    %393 = arith.addf %391, %392 : vector<8x1xf32>
    %394 = math.rsqrt %393 : vector<8x1xf32>
    %395 = vector.broadcast %394 : vector<8x1xf32> to vector<8x32xf32>
    %396 = arith.mulf %386, %395 : vector<8x32xf32>
    %c0_274 = arith.constant 0 : index
    %c0_275 = arith.constant 0 : index
    %397 = vector.load %arg20[%c0_274, %c0_275] : memref<1x32xf32, #tpu.memory_space<vmem>>, vector<1x32xf32>
    %398 = vector.broadcast %397 : vector<1x32xf32> to vector<8x32xf32>
    %399 = arith.mulf %396, %398 : vector<8x32xf32>
    %c0_276 = arith.constant 0 : index
    %c0_277 = arith.constant 0 : index
    %400 = vector.load %arg21[%c0_276, %c0_277] : memref<1x32xf32, #tpu.memory_space<vmem>>, vector<1x32xf32>
    %401 = vector.broadcast %400 : vector<1x32xf32> to vector<8x32xf32>
    %402 = arith.addf %399, %401 : vector<8x32xf32>
    %403 = vector.shape_cast %402 : vector<8x32xf32> to vector<1x8x32xf32>
    %c0_278 = arith.constant 0 : index
    %c0_279 = arith.constant 0 : index
    %c0_280 = arith.constant 0 : index
    %404 = vector.load %arg22[%c0_278, %c0_279, %c0_280] : memref<1x8x32xf32, #tpu.memory_space<vmem>>, vector<1x8x32xf32>
    tpu.vector_store %arg22[%c0_278, %c0_279, %c0_280], %403 {strides = array<i32>} : memref<1x8x32xf32, #tpu.memory_space<vmem>>, vector<1x8x32xf32>,
    return
  }
  func.func @transform_0(%arg0: i32) -> (i32, i32, i32) {
    %c0_i32 = arith.constant 0 : i32
    %c0_i32_0 = arith.constant 0 : i32
    %c0_i32_1 = arith.constant 0 : i32
    return %arg0, %c0_i32, %c0_i32_0 : i32, i32, i32
  }
  func.func @transform_1(%arg0: i32) -> (i32, i32, i32) {
    %c0_i32 = arith.constant 0 : i32
    %c0_i32_0 = arith.constant 0 : i32
    %c0_i32_1 = arith.constant 0 : i32
    %c0_i32_2 = arith.constant 0 : i32
    return %c0_i32, %c0_i32_0, %c0_i32_1 : i32, i32, i32
  }
  func.func @transform_2(%arg0: i32) -> (i32, i32, i32) {
    %c0_i32 = arith.constant 0 : i32
    %c0_i32_0 = arith.constant 0 : i32
    %c0_i32_1 = arith.constant 0 : i32
    return %arg0, %c0_i32, %c0_i32_0 : i32, i32, i32
  }
  func.func @transform_3(%arg0: i32) -> (i32, i32, i32) {
    %c0_i32 = arith.constant 0 : i32
    %c0_i32_0 = arith.constant 0 : i32
    %c0_i32_1 = arith.constant 0 : i32
    %c0_i32_2 = arith.constant 0 : i32
    return %c0_i32, %c0_i32_0, %c0_i32_1 : i32, i32, i32
  }
  func.func @transform_4(%arg0: i32) -> (i32, i32, i32) {
    %c0_i32 = arith.constant 0 : i32
    %c0_i32_0 = arith.constant 0 : i32
    %c0_i32_1 = arith.constant 0 : i32
    %c0_i32_2 = arith.constant 0 : i32
    return %c0_i32, %c0_i32_0, %c0_i32_1 : i32, i32, i32
  }
  func.func @transform_5(%arg0: i32) -> (i32, i32, i32) {
    %c0_i32 = arith.constant 0 : i32
    %c0_i32_0 = arith.constant 0 : i32
    %c0_i32_1 = arith.constant 0 : i32
    %c0_i32_2 = arith.constant 0 : i32
    return %c0_i32, %c0_i32_0, %c0_i32_1 : i32, i32, i32
  }
  func.func @transform_6(%arg0: i32) -> (i32, i32) {
    %c0_i32 = arith.constant 0 : i32
    %c0_i32_0 = arith.constant 0 : i32
    %c0_i32_1 = arith.constant 0 : i32
    return %c0_i32, %c0_i32_0 : i32, i32
  }
  func.func @transform_7(%arg0: i32) -> (i32, i32) {
    %c0_i32 = arith.constant 0 : i32
    %c0_i32_0 = arith.constant 0 : i32
    %c0_i32_1 = arith.constant 0 : i32
    return %c0_i32, %c0_i32_0 : i32, i32
  }
  func.func @transform_8(%arg0: i32) -> (i32, i32) {
    %c0_i32 = arith.constant 0 : i32
    %c0_i32_0 = arith.constant 0 : i32
    %c0_i32_1 = arith.constant 0 : i32
    return %c0_i32, %c0_i32_0 : i32, i32
  }
  func.func @transform_9(%arg0: i32) -> (i32, i32, i32) {
    %c0_i32 = arith.constant 0 : i32
    %c0_i32_0 = arith.constant 0 : i32
    %c0_i32_1 = arith.constant 0 : i32
    %c0_i32_2 = arith.constant 0 : i32
    return %c0_i32, %c0_i32_0, %c0_i32_1 : i32, i32, i32
  }
  func.func @transform_10(%arg0: i32) -> (i32, i32, i32) {
    %c0_i32 = arith.constant 0 : i32
    %c0_i32_0 = arith.constant 0 : i32
    %c0_i32_1 = arith.constant 0 : i32
    %c0_i32_2 = arith.constant 0 : i32
    return %c0_i32, %c0_i32_0, %c0_i32_1 : i32, i32, i32
  }
  func.func @transform_11(%arg0: i32) -> (i32, i32, i32) {
    %c0_i32 = arith.constant 0 : i32
    %c0_i32_0 = arith.constant 0 : i32
    %c0_i32_1 = arith.constant 0 : i32
    %c0_i32_2 = arith.constant 0 : i32
    return %c0_i32, %c0_i32_0, %c0_i32_1 : i32, i32, i32
  }
  func.func @transform_12(%arg0: i32) -> (i32, i32) {
    %c0_i32 = arith.constant 0 : i32
    %c0_i32_0 = arith.constant 0 : i32
    %c0_i32_1 = arith.constant 0 : i32
    return %c0_i32, %c0_i32_0 : i32, i32
  }
  func.func @transform_13(%arg0: i32) -> (i32, i32) {
    %c0_i32 = arith.constant 0 : i32
    %c0_i32_0 = arith.constant 0 : i32
    %c0_i32_1 = arith.constant 0 : i32
    return %c0_i32, %c0_i32_0 : i32, i32
  }
  func.func @transform_14(%arg0: i32) -> (i32, i32) {
    %c0_i32 = arith.constant 0 : i32
    %c0_i32_0 = arith.constant 0 : i32
    %c0_i32_1 = arith.constant 0 : i32
    return %c0_i32, %c0_i32_0 : i32, i32
  }
  func.func @transform_15(%arg0: i32) -> (i32, i32) {
    %c0_i32 = arith.constant 0 : i32
    %c0_i32_0 = arith.constant 0 : i32
    %c0_i32_1 = arith.constant 0 : i32
    return %c0_i32, %c0_i32_0 : i32, i32
  }
  func.func @transform_16(%arg0: i32) -> (i32, i32) {
    %c0_i32 = arith.constant 0 : i32
    %c0_i32_0 = arith.constant 0 : i32
    %c0_i32_1 = arith.constant 0 : i32
    return %c0_i32, %c0_i32_0 : i32, i32
  }
  func.func @transform_17(%arg0: i32) -> (i32, i32) {
    %c0_i32 = arith.constant 0 : i32
    %c0_i32_0 = arith.constant 0 : i32
    %c0_i32_1 = arith.constant 0 : i32
    return %c0_i32, %c0_i32_0 : i32, i32
  }
  func.func @transform_18(%arg0: i32) -> (i32, i32) {
    %c0_i32 = arith.constant 0 : i32
    %c0_i32_0 = arith.constant 0 : i32
    %c0_i32_1 = arith.constant 0 : i32
    return %c0_i32, %c0_i32_0 : i32, i32
  }
  func.func @transform_19(%arg0: i32) -> (i32, i32) {
    %c0_i32 = arith.constant 0 : i32
    %c0_i32_0 = arith.constant 0 : i32
    %c0_i32_1 = arith.constant 0 : i32
    return %c0_i32, %c0_i32_0 : i32, i32
  }
  func.func @transform_20(%arg0: i32) -> (i32, i32) {
    %c0_i32 = arith.constant 0 : i32
    %c0_i32_0 = arith.constant 0 : i32
    %c0_i32_1 = arith.constant 0 : i32
    return %c0_i32, %c0_i32_0 : i32, i32
  }
  func.func @transform_21(%arg0: i32) -> (i32, i32, i32) {
    %c0_i32 = arith.constant 0 : i32
    %c0_i32_0 = arith.constant 0 : i32
    %c0_i32_1 = arith.constant 0 : i32
    return %arg0, %c0_i32, %c0_i32_0 : i32, i32, i32
  }
}

</mosaic_0001>

<llo_original>
// kernel: trans_seq2seq_forward.5
$region0: #{trans_seq2seq_forward.5}
  #allocation0 [shape = 'u32[]', space=smem, size = 0x4, offset = 0x4, fixed_abs, tag = 'smem constant byte address 0x4 - core index']
  #allocation1 [shape = 'u32[144,128]{1,0:T(1,128)}', space=vmem, size = 0x12000, scoped, tag = 'internal scratch']
  %s0 = inlined_call_operand.vmem [shape: f32[2,8,32], index: 0, kind: input, shape index: {}]
  %s1 = inlined_call_operand.vmem [shape: f32[32,20], index: 1, kind: input, shape index: {}]
  %s2 = inlined_call_operand.vmem [shape: f32[1,20], index: 2, kind: input, shape index: {}]
  %s3 = inlined_call_operand.vmem [shape: f32[2,8,20], index: 3, kind: output, shape index: {}]
  %s4 = sld [smem:[#allocation0]]
  $region45: #{trans_seq2seq_forward.5} parent=0
    _
  %s6 = ssub.s32 1, %s4
  %s7 = scalar_select 0, %s6, %s4
  loop: start=0, step=1, limit=4
  $region2: #{trans_seq2seq_forward.5} parent=0 // loop_pre_header
    _
  $region3: #{trans_seq2seq_forward.5} parent=0 // loop_header
    %s9 = sphi 0, %s13
    %p10 = scmp.ge.s32.totalorder %s9, 4
    %s19 = sphi 0, %s21
    %s22 = sphi 0, %s19
    %s23 = sphi 0, %s22
    %s39 = sphi 0, %s23
    %s43 = sphi 0, %s43
    %s45 = sphi 0, %s43
    %s46 = sphi 0, %s45
    %s60 = sphi 0, %s46
    %s64 = sphi 0, %s64
    %s66 = sphi 0, %s64
    %s67 = sphi 0, %s66
    %s81 = sphi 0, %s67
    %s87 = sphi 0, %s89
    %s90 = sphi 0, %s87
    %s91 = sphi 0, %s90
    %s107 = sphi 0, %s91
  $region4: #{trans_seq2seq_forward.5} parent=0 // loop_header_branch
    %12 = sbr.rel (%p10) target = $region8
  $region5: #{trans_seq2seq_forward.5} parent=0 // loop_body
    %s14 = ssub.s32 %s9, 1
    %s15 = ssub.s32 %s9, 2
    %s16 = sadd.s32 %s9, 1
    %s17 = ssub.s32 %s9, %s16
    %p18 = scmp.eq.s32.totalorder %s17, 0
    %s20 = sadd.s32 %s19, 1
    %s21 = scalar_select %p18, %s19, %s20
    %p24 = pneg %p18
    %p25 = scmp.eq.s32.totalorder %s9, 1
    %p26 = por %p24, %p25
    %p27 = scmp.ne.s32.totalorder %s19, %s22
    %p28 = scmp.eq.s32.totalorder %s9, 0
    %p29 = por %p27, %p28
    %p30 = scmp.ne.s32.totalorder %s19, %s22
    %p31 = scmp.eq.s32.totalorder %s14, 1
    %p32 = por %p30, %p31
    %p33 = scmp.ne.s32.totalorder %s22, %s23
    %p34 = scmp.eq.s32.totalorder %s14, 0
    %p35 = por %p33, %p34
    %p36 = scmp.ne.s32.totalorder %s22, %s23
    %p37 = scmp.eq.s32.totalorder %s15, 1
    %p38 = por %p36, %p37
    %p40 = scmp.ne.s32.totalorder %s23, %s39
    %p41 = scmp.eq.s32.totalorder %s15, 0
    %p42 = por %p40, %p41
    %s44 = sadd.s32 %s43, 1
    %p47 = scmp.eq.s32.totalorder %s9, 1
    %p48 = scmp.ne.s32.totalorder %s43, %s45
    %p49 = scmp.eq.s32.totalorder %s9, 0
    %p50 = por %p48, %p49
    %p51 = scmp.ne.s32.totalorder %s43, %s45
    %p52 = scmp.eq.s32.totalorder %s14, 1
    %p53 = por %p51, %p52
    %p54 = scmp.ne.s32.totalorder %s45, %s46
    %p55 = scmp.eq.s32.totalorder %s14, 0
    %p56 = por %p54, %p55
    %p57 = scmp.ne.s32.totalorder %s45, %s46
    %p58 = scmp.eq.s32.totalorder %s15, 1
    %p59 = por %p57, %p58
    %p61 = scmp.ne.s32.totalorder %s46, %s60
    %p62 = scmp.eq.s32.totalorder %s15, 0
    %p63 = por %p61, %p62
    %s65 = sadd.s32 %s64, 1
    %p68 = scmp.eq.s32.totalorder %s9, 1
    %p69 = scmp.ne.s32.totalorder %s64, %s66
    %p70 = scmp.eq.s32.totalorder %s9, 0
    %p71 = por %p69, %p70
    %p72 = scmp.ne.s32.totalorder %s64, %s66
    %p73 = scmp.eq.s32.totalorder %s14, 1
    %p74 = por %p72, %p73
    %p75 = scmp.ne.s32.totalorder %s66, %s67
    %p76 = scmp.eq.s32.totalorder %s14, 0
    %p77 = por %p75, %p76
    %p78 = scmp.ne.s32.totalorder %s66, %s67
    %p79 = scmp.eq.s32.totalorder %s15, 1
    %p80 = por %p78, %p79
    %p82 = scmp.ne.s32.totalorder %s67, %s81
    %p83 = scmp.eq.s32.totalorder %s15, 0
    %p84 = por %p82, %p83
    %s85 = ssub.s32 %s9, %s16
    %p86 = scmp.eq.s32.totalorder %s85, 0
    %s88 = sadd.s32 %s87, 1
    %s89 = scalar_select %p86, %s87, %s88
    %p92 = pneg %p86
    %p93 = scmp.eq.s32.totalorder %s9, 1
    %p94 = por %p92, %p93
    %p95 = scmp.ne.s32.totalorder %s87, %s90
    %p96 = scmp.eq.s32.totalorder %s9, 0
    %p97 = por %p95, %p96
    %p98 = scmp.ne.s32.totalorder %s87, %s90
    %p99 = scmp.eq.s32.totalorder %s14, 1
    %p100 = por %p98, %p99
    %p101 = scmp.ne.s32.totalorder %s90, %s91
    %p102 = scmp.eq.s32.totalorder %s14, 0
    %p103 = por %p101, %p102
    %p104 = scmp.ne.s32.totalorder %s90, %s91
    %p105 = scmp.eq.s32.totalorder %s15, 1
    %p106 = por %p104, %p105
    %p108 = scmp.ne.s32.totalorder %s91, %s107
    %p109 = scmp.eq.s32.totalorder %s15, 0
    %p110 = por %p108, %p109
    %p111 = scmp.le.s32.totalorder 1, %s9
    %p112 = scmp.lt.s32.totalorder %s9, 3
    %p113 = pnand %p111, %p112
    %p114 = pneg %p113
    // Predicated region
    $region9: #{trans_seq2seq_forward.5} parent=5 // pred_check
      _
    $region10: #{trans_seq2seq_forward.5} parent=5 // pred_check_branch
      %116 = sbr.rel (%p113) target = $region12
    $region11: #{trans_seq2seq_forward.5} parent=5 // pred_region
      %s117 = ssub.s32 %s9, 1
      // Predicated region
      $region13: #{trans_seq2seq_forward.5} parent=11 // pred_check
        %p118 = pneg %p56
      $region14: #{trans_seq2seq_forward.5} parent=11 // pred_check_branch
        %120 = sbr.rel (%p118) target = $region16
      $region15: #{trans_seq2seq_forward.5} parent=11 // pred_region
        _
      $region16: #{trans_seq2seq_forward.5} parent=11 // pred_fallthru
        _
      // Predicated region
      $region17: #{trans_seq2seq_forward.5} parent=11 // pred_check
        %p121 = pneg %p77
      $region18: #{trans_seq2seq_forward.5} parent=11 // pred_check_branch
        %123 = sbr.rel (%p121) target = $region20
      $region19: #{trans_seq2seq_forward.5} parent=11 // pred_region
        _
      $region20: #{trans_seq2seq_forward.5} parent=11 // pred_fallthru
        _
    $region12: #{trans_seq2seq_forward.5} parent=5 // pred_fallthru
      _
    %p124 = scmp.lt.s32.totalorder %s9, 2
    // Predicated region
    $region21: #{trans_seq2seq_forward.5} parent=5 // pred_check
      %p125 = pneg %p124
    $region22: #{trans_seq2seq_forward.5} parent=5 // pred_check_branch
      %127 = sbr.rel (%p125) target = $region24
    $region23: #{trans_seq2seq_forward.5} parent=5 // pred_region
      // Predicated region
      $region25: #{trans_seq2seq_forward.5} parent=23 // pred_check
        %p128 = pneg %p29
      $region26: #{trans_seq2seq_forward.5} parent=23 // pred_check_branch
        %130 = sbr.rel (%p128) target = $region28
      $region27: #{trans_seq2seq_forward.5} parent=23 // pred_region
        %p131 = scmp.lt.s32.totalorder %s9, 1
        %s132 = scalar_select %p131, %s9, 1
        %s133 = smul.addr %s132, 8
        %s134 = scalar_lea.vmem %s0, %s133
      $region28: #{trans_seq2seq_forward.5} parent=23 // pred_fallthru
        _
    $region24: #{trans_seq2seq_forward.5} parent=5 // pred_fallthru
      _
    %p135 = scmp.le.s32.totalorder 1, %s9
    %p136 = scmp.lt.s32.totalorder %s9, 3
    %p137 = pnand %p135, %p136
    %p138 = pneg %p137
    // Predicated region
    $region29: #{trans_seq2seq_forward.5} parent=5 // pred_check
      _
    $region30: #{trans_seq2seq_forward.5} parent=5 // pred_check_branch
      %140 = sbr.rel (%p137) target = $region32
    $region31: #{trans_seq2seq_forward.5} parent=5 // pred_region
      %s141 = ssub.s32 %s9, 1
      %p142 = scmp.lt.s32.totalorder %s14, 1
      %s143 = scalar_select %p142, %s14, 1
      %s144 = smul.addr %s143, 8
      %s145 = scalar_lea.vmem %s0, %s144
      %p146 = pneg %p35
      %p147 = pneg %p32
      %p148 = pneg %p56
      %p149 = pneg %p53
      %p150 = pneg %p77
      %p151 = pneg %p74
      %p152 = pneg %p103
      %p153 = pneg %p100
      %p154 = scmp.lt.s32.totalorder %s14, 1
      %s155 = scalar_select %p154, %s14, 1
      %s156 = smul.addr %s155, 8
      %s157 = scalar_lea.vmem %s3, %s156
      %p158 = scmp.lt.s32.totalorder %s14, 1
      %s159 = scalar_select %p158, %s14, 1
      %s160 = smul.addr %s159, 8
      %s161 = scalar_lea.vmem %s0, %s160
      %p162 = scmp.lt.s32.totalorder %s14, 1
      %s163 = scalar_select %p162, %s14, 1
      %s164 = smul.addr %s163, 8
      %s165 = scalar_lea.vmem %s3, %s164
      %v166 = vld [vmem:[%s161] sm:$0xff]
      %v167 = vld [vmem:[%s1] sm:$0xff]
      %v168 = vld [vmem:[%s1 + $0x8] sm:$0xff]
      %v169 = vld [vmem:[%s1 + $0x10] sm:$0xff]
      %v170 = vld [vmem:[%s1 + $0x18] sm:$0xff]
      %v171 = vld [vmem:[%s2] sm:$0x1]
      %v173 = vlaneseq
      %v174 = vshrl.u32 %v173, 7
      %v175 = vsub.s32 0, %v174
      %v176 = vrot.slane %v171, %v175
      %vm178 = vcmask 261120
      %v180 = vsel %vm178, %v166, 0
      %182 = vmatprep.subr.mxu0 0.0
      %183 = vmatpush1.msra.mxu0 %v167
      %184 = vmatprep.subr.mxu0 0.0
      %185 = vmatpush1.msra.mxu0 %v168
      %186 = vmatprep.subr.mxu0 0.0
      %187 = vmatpush1.msra.mxu0 %v169
      %188 = vmatprep.subr.mxu0 0.0
      %189 = vmatpush1.msra.mxu0 %v170
      %190 = vmatprep.subr.mxu0 0.0
      %191 = vmatpush1.msra.mxu0 0.0
      %192 = vmatprep.subr.mxu0 0.0
      %193 = vmatpush1.msra.mxu0 0.0
      %194 = vmatprep.subr.mxu0 0.0
      %195 = vmatpush1.msra.mxu0 0.0
      %196 = vmatprep.subr.mxu0 0.0
      %197 = vmatpush1.msra.mxu0 0.0
      %198 = vmatprep.subr.mxu0 0.0
      %199 = vmatpush1.msra.mxu0 0.0
      %200 = vmatprep.subr.mxu0 0.0
      %201 = vmatpush1.msra.mxu0 0.0
      %202 = vmatprep.subr.mxu0 0.0
      %203 = vmatpush1.msra.mxu0 0.0
      %204 = vmatprep.subr.mxu0 0.0
      %205 = vmatpush1.msra.mxu0 0.0
      %206 = vmatprep.subr.mxu0 0.0
      %207 = vmatpush1.msra.mxu0 0.0
      %208 = vmatprep.subr.mxu0 0.0
      %209 = vmatpush1.msra.mxu0 0.0
      %210 = vmatprep.subr.mxu0 0.0
      %211 = vmatpush1.msra.mxu0 0.0
      %212 = vmatprep.subr.mxu0 0.0
      %213 = vmatpush1.msra.mxu0 0.0
      %214 = vmatprep.subr.mxu0 0.0
      %215 = vmatpush1.msra.mxu0 0.0
      %216 = vmatprep.subr.mxu0 0.0
      %217 = vmatpush1.msra.mxu0 0.0
      %218 = vmatprep.subr.mxu0 0.0
      %219 = vmatpush1.msra.mxu0 0.0
      %220 = vmatprep.subr.mxu0 0.0
      %221 = vmatpush1.msra.mxu0 0.0
      %222 = vmatprep.subr.mxu0 0.0
      %223 = vmatpush1.msra.mxu0 0.0
      %224 = vmatprep.subr.mxu0 0.0
      %225 = vmatpush1.msra.mxu0 0.0
      %226 = vmatprep.subr.mxu0 0.0
      %227 = vmatpush1.msra.mxu0 0.0
      %228 = vmatprep.subr.mxu0 0.0
      %229 = vmatpush1.msra.mxu0 0.0
      %230 = vmatprep.subr.mxu0 0.0
      %231 = vmatpush1.msra.mxu0 0.0
      %232 = vmatprep.subr.mxu0 0.0
      %233 = vmatpush1.msra.mxu0 0.0
      %234 = vmatprep.subr.mxu0 0.0
      %235 = vmatpush1.msra.mxu0 0.0
      %236 = vmatprep.subr.mxu0 0.0
      %237 = vmatpush1.msra.mxu0 0.0
      %238 = vmatprep.subr.mxu0 0.0
      %239 = vmatpush1.msra.mxu0 0.0
      %240 = vmatprep.subr.mxu0 0.0
      %241 = vmatpush1.msra.mxu0 0.0
      %242 = vmatprep.subr.mxu0 0.0
      %243 = vmatpush1.msra.mxu0 0.0
      %244 = vmatprep.subr.mxu0 0.0
      %245 = vmatpush1.msra.mxu0 0.0
      %246 = vmatprep.mubr.f32.mxu0 0.0
      %247 = vmatmul.mubr.f32.gmra.mrb[0].mxu0 %v180
      %v248 = vpop.f32.mrb[0].mxu0
      %v249 = vadd.f32 %v176, %v248
      %v250 = vpop.f32.mrb[0].mxu0
      %251 = vdwg.mxu0
      %vm252 = vcmask 162816
      %v253 = vsel %vm252, %v249, -inf
      %254 = vmax.xlane.f32.xlu0 %v253
      %v255 = vpop.xlane.xlu0 %254
      %v256 = vsub.f32 %v249, %v255
      %v257 = vmul.f32 %v256, 1.442695
      %v258 = vpow.pop %v257
      %v259 = vsel %vm252, %v258, 0.0
      %260 = vadd.xlane.f32.xlu0 %v259
      %v261 = vpop.xlane.xlu0 %260
      %v262 = vlog2.pop %v261
      %v263 = vmul.f32 %v262, 0.6931472
      %v264 = vsub.f32 %v256, %v263
      %265 = vst.msk [vmem:[%s165] sm:$0xff] %vm252, %v264
      %p266 = scmp.lt.s32.totalorder %s14, 1
      %s267 = scalar_select %p266, %s14, 1
      %s268 = smul.addr %s267, 8
      %s269 = scalar_lea.vmem %s3, %s268
      // Predicated region
      $region33: #{trans_seq2seq_forward.5} parent=31 // pred_check
        %p270 = pneg %p100
      $region34: #{trans_seq2seq_forward.5} parent=31 // pred_check_branch
        %272 = sbr.rel (%p270) target = $region36
      $region35: #{trans_seq2seq_forward.5} parent=31 // pred_region
        _
      $region36: #{trans_seq2seq_forward.5} parent=31 // pred_fallthru
        _
    $region32: #{trans_seq2seq_forward.5} parent=5 // pred_fallthru
      _
    %p273 = scmp.le.s32.totalorder 2, %s9
    // Predicated region
    $region37: #{trans_seq2seq_forward.5} parent=5 // pred_check
      %p274 = pneg %p273
    $region38: #{trans_seq2seq_forward.5} parent=5 // pred_check_branch
      %276 = sbr.rel (%p274) target = $region40
    $region39: #{trans_seq2seq_forward.5} parent=5 // pred_region
      %s277 = ssub.s32 %s9, 2
      // Predicated region
      $region41: #{trans_seq2seq_forward.5} parent=39 // pred_check
        %p278 = pneg %p106
      $region42: #{trans_seq2seq_forward.5} parent=39 // pred_check_branch
        %280 = sbr.rel (%p278) target = $region44
      $region43: #{trans_seq2seq_forward.5} parent=39 // pred_region
        %p281 = scmp.lt.s32.totalorder %s15, 1
        %s282 = scalar_select %p281, %s15, 1
        %s283 = smul.addr %s282, 8
        %s284 = scalar_lea.vmem %s3, %s283
      $region44: #{trans_seq2seq_forward.5} parent=39 // pred_fallthru
        _
    $region40: #{trans_seq2seq_forward.5} parent=5 // pred_fallthru
      _
  $region6: #{trans_seq2seq_forward.5} parent=0 // loop_footer
    %s13 = sadd.s32 1, %s9
  $region7: #{trans_seq2seq_forward.5} parent=0 // loop_footer_branch
    %8 = sbr.rel target = $region3
  $region8: #{trans_seq2seq_forward.5} parent=0 // loop_exit
    _

// kernel: trans_seq2seq_forward.3
$region0: #{trans_seq2seq_forward.3}
  #allocation0 [shape = 'u32[]', space=smem, size = 0x4, offset = 0x4, fixed_abs, tag = 'smem constant byte address 0x4 - core index']
  #allocation1 [shape = 'u32[144,128]{1,0:T(1,128)}', space=vmem, size = 0x12000, scoped, tag = 'internal scratch']
  %s0 = inlined_call_operand.vmem [shape: f32[2,10,32], index: 0, kind: input, shape index: {}]
  %s1 = inlined_call_operand.vmem [shape: f32[1,10,32], index: 1, kind: input, shape index: {}]
  %s2 = inlined_call_operand.vmem [shape: f32[12,32,8], index: 2, kind: input, shape index: {}]
  %s3 = inlined_call_operand.vmem [shape: f32[12,1,8], index: 3, kind: input, shape index: {}]
  %s4 = inlined_call_operand.vmem [shape: f32[4,8,32], index: 4, kind: input, shape index: {}]
  %s5 = inlined_call_operand.vmem [shape: f32[1,32], index: 5, kind: input, shape index: {}]
  %s6 = inlined_call_operand.vmem [shape: f32[1,32], index: 6, kind: input, shape index: {}]
  %s7 = inlined_call_operand.vmem [shape: f32[1,32], index: 7, kind: input, shape index: {}]
  %s8 = inlined_call_operand.vmem [shape: f32[32,64], index: 8, kind: input, shape index: {}]
  %s9 = inlined_call_operand.vmem [shape: f32[1,64], index: 9, kind: input, shape index: {}]
  %s10 = inlined_call_operand.vmem [shape: f32[64,32], index: 10, kind: input, shape index: {}]
  %s11 = inlined_call_operand.vmem [shape: f32[1,32], index: 11, kind: input, shape index: {}]
  %s12 = inlined_call_operand.vmem [shape: f32[1,32], index: 12, kind: input, shape index: {}]
  %s13 = inlined_call_operand.vmem [shape: f32[1,32], index: 13, kind: input, shape index: {}]
  %s14 = inlined_call_operand.vmem [shape: f32[2,10,32], index: 14, kind: output, shape index: {}]
  %s15 = sld [smem:[#allocation0]]
  $region89: #{trans_seq2seq_forward.3} parent=0
    _
  %s17 = ssub.s32 1, %s15
  %s18 = scalar_select 0, %s17, %s15
  loop: start=0, step=1, limit=4
  $region2: #{trans_seq2seq_forward.3} parent=0 // loop_pre_header
    _
  $region3: #{trans_seq2seq_forward.3} parent=0 // loop_header
    %s20 = sphi 0, %s24
    %p21 = scmp.ge.s32.totalorder %s20, 4
    %s30 = sphi 0, %s32
    %s33 = sphi 0, %s30
    %s34 = sphi 0, %s33
    %s50 = sphi 0, %s34
    %s54 = sphi 0, %s54
    %s56 = sphi 0, %s54
    %s57 = sphi 0, %s56
    %s71 = sphi 0, %s57
    %s75 = sphi 0, %s75
    %s77 = sphi 0, %s75
    %s78 = sphi 0, %s77
    %s92 = sphi 0, %s78
    %s96 = sphi 0, %s96
    %s98 = sphi 0, %s96
    %s99 = sphi 0, %s98
    %s113 = sphi 0, %s99
    %s117 = sphi 0, %s117
    %s119 = sphi 0, %s117
    %s120 = sphi 0, %s119
    %s134 = sphi 0, %s120
    %s138 = sphi 0, %s138
    %s140 = sphi 0, %s138
    %s141 = sphi 0, %s140
    %s155 = sphi 0, %s141
    %s159 = sphi 0, %s159
    %s161 = sphi 0, %s159
    %s162 = sphi 0, %s161
    %s176 = sphi 0, %s162
    %s180 = sphi 0, %s180
    %s182 = sphi 0, %s180
    %s183 = sphi 0, %s182
    %s197 = sphi 0, %s183
    %s201 = sphi 0, %s201
    %s203 = sphi 0, %s201
    %s204 = sphi 0, %s203
    %s218 = sphi 0, %s204
    %s222 = sphi 0, %s222
    %s224 = sphi 0, %s222
    %s225 = sphi 0, %s224
    %s239 = sphi 0, %s225
    %s243 = sphi 0, %s243
    %s245 = sphi 0, %s243
    %s246 = sphi 0, %s245
    %s260 = sphi 0, %s246
    %s264 = sphi 0, %s264
    %s266 = sphi 0, %s264
    %s267 = sphi 0, %s266
    %s281 = sphi 0, %s267
    %s285 = sphi 0, %s285
    %s287 = sphi 0, %s285
    %s288 = sphi 0, %s287
    %s302 = sphi 0, %s288
    %s306 = sphi 0, %s306
    %s308 = sphi 0, %s306
    %s309 = sphi 0, %s308
    %s323 = sphi 0, %s309
    %s329 = sphi 0, %s331
    %s332 = sphi 0, %s329
    %s333 = sphi 0, %s332
    %s349 = sphi 0, %s333
  $region4: #{trans_seq2seq_forward.3} parent=0 // loop_header_branch
    %23 = sbr.rel (%p21) target = $region8
  $region5: #{trans_seq2seq_forward.3} parent=0 // loop_body
    %s25 = ssub.s32 %s20, 1
    %s26 = ssub.s32 %s20, 2
    %s27 = sadd.s32 %s20, 1
    %s28 = ssub.s32 %s20, %s27
    %p29 = scmp.eq.s32.totalorder %s28, 0
    %s31 = sadd.s32 %s30, 1
    %s32 = scalar_select %p29, %s30, %s31
    %p35 = pneg %p29
    %p36 = scmp.eq.s32.totalorder %s20, 1
    %p37 = por %p35, %p36
    %p38 = scmp.ne.s32.totalorder %s30, %s33
    %p39 = scmp.eq.s32.totalorder %s20, 0
    %p40 = por %p38, %p39
    %p41 = scmp.ne.s32.totalorder %s30, %s33
    %p42 = scmp.eq.s32.totalorder %s25, 1
    %p43 = por %p41, %p42
    %p44 = scmp.ne.s32.totalorder %s33, %s34
    %p45 = scmp.eq.s32.totalorder %s25, 0
    %p46 = por %p44, %p45
    %p47 = scmp.ne.s32.totalorder %s33, %s34
    %p48 = scmp.eq.s32.totalorder %s26, 1
    %p49 = por %p47, %p48
    %p51 = scmp.ne.s32.totalorder %s34, %s50
    %p52 = scmp.eq.s32.totalorder %s26, 0
    %p53 = por %p51, %p52
    %s55 = sadd.s32 %s54, 1
    %p58 = scmp.eq.s32.totalorder %s20, 1
    %p59 = scmp.ne.s32.totalorder %s54, %s56
    %p60 = scmp.eq.s32.totalorder %s20, 0
    %p61 = por %p59, %p60
    %p62 = scmp.ne.s32.totalorder %s54, %s56
    %p63 = scmp.eq.s32.totalorder %s25, 1
    %p64 = por %p62, %p63
    %p65 = scmp.ne.s32.totalorder %s56, %s57
    %p66 = scmp.eq.s32.totalorder %s25, 0
    %p67 = por %p65, %p66
    %p68 = scmp.ne.s32.totalorder %s56, %s57
    %p69 = scmp.eq.s32.totalorder %s26, 1
    %p70 = por %p68, %p69
    %p72 = scmp.ne.s32.totalorder %s57, %s71
    %p73 = scmp.eq.s32.totalorder %s26, 0
    %p74 = por %p72, %p73
    %s76 = sadd.s32 %s75, 1
    %p79 = scmp.eq.s32.totalorder %s20, 1
    %p80 = scmp.ne.s32.totalorder %s75, %s77
    %p81 = scmp.eq.s32.totalorder %s20, 0
    %p82 = por %p80, %p81
    %p83 = scmp.ne.s32.totalorder %s75, %s77
    %p84 = scmp.eq.s32.totalorder %s25, 1
    %p85 = por %p83, %p84
    %p86 = scmp.ne.s32.totalorder %s77, %s78
    %p87 = scmp.eq.s32.totalorder %s25, 0
    %p88 = por %p86, %p87
    %p89 = scmp.ne.s32.totalorder %s77, %s78
    %p90 = scmp.eq.s32.totalorder %s26, 1
    %p91 = por %p89, %p90
    %p93 = scmp.ne.s32.totalorder %s78, %s92
    %p94 = scmp.eq.s32.totalorder %s26, 0
    %p95 = por %p93, %p94
    %s97 = sadd.s32 %s96, 1
    %p100 = scmp.eq.s32.totalorder %s20, 1
    %p101 = scmp.ne.s32.totalorder %s96, %s98
    %p102 = scmp.eq.s32.totalorder %s20, 0
    %p103 = por %p101, %p102
    %p104 = scmp.ne.s32.totalorder %s96, %s98
    %p105 = scmp.eq.s32.totalorder %s25, 1
    %p106 = por %p104, %p105
    %p107 = scmp.ne.s32.totalorder %s98, %s99
    %p108 = scmp.eq.s32.totalorder %s25, 0
    %p109 = por %p107, %p108
    %p110 = scmp.ne.s32.totalorder %s98, %s99
    %p111 = scmp.eq.s32.totalorder %s26, 1
    %p112 = por %p110, %p111
    %p114 = scmp.ne.s32.totalorder %s99, %s113
    %p115 = scmp.eq.s32.totalorder %s26, 0
    %p116 = por %p114, %p115
    %s118 = sadd.s32 %s117, 1
    %p121 = scmp.eq.s32.totalorder %s20, 1
    %p122 = scmp.ne.s32.totalorder %s117, %s119
    %p123 = scmp.eq.s32.totalorder %s20, 0
    %p124 = por %p122, %p123
    %p125 = scmp.ne.s32.totalorder %s117, %s119
    %p126 = scmp.eq.s32.totalorder %s25, 1
    %p127 = por %p125, %p126
    %p128 = scmp.ne.s32.totalorder %s119, %s120
    %p129 = scmp.eq.s32.totalorder %s25, 0
    %p130 = por %p128, %p129
    %p131 = scmp.ne.s32.totalorder %s119, %s120
    %p132 = scmp.eq.s32.totalorder %s26, 1
    %p133 = por %p131, %p132
    %p135 = scmp.ne.s32.totalorder %s120, %s134
    %p136 = scmp.eq.s32.totalorder %s26, 0
    %p137 = por %p135, %p136
    %s139 = sadd.s32 %s138, 1
    %p142 = scmp.eq.s32.totalorder %s20, 1
    %p143 = scmp.ne.s32.totalorder %s138, %s140
    %p144 = scmp.eq.s32.totalorder %s20, 0
    %p145 = por %p143, %p144
    %p146 = scmp.ne.s32.totalorder %s138, %s140
    %p147 = scmp.eq.s32.totalorder %s25, 1
    %p148 = por %p146, %p147
    %p149 = scmp.ne.s32.totalorder %s140, %s141
    %p150 = scmp.eq.s32.totalorder %s25, 0
    %p151 = por %p149, %p150
    %p152 = scmp.ne.s32.totalorder %s140, %s141
    %p153 = scmp.eq.s32.totalorder %s26, 1
    %p154 = por %p152, %p153
    %p156 = scmp.ne.s32.totalorder %s141, %s155
    %p157 = scmp.eq.s32.totalorder %s26, 0
    %p158 = por %p156, %p157
    %s160 = sadd.s32 %s159, 1
    %p163 = scmp.eq.s32.totalorder %s20, 1
    %p164 = scmp.ne.s32.totalorder %s159, %s161
    %p165 = scmp.eq.s32.totalorder %s20, 0
    %p166 = por %p164, %p165
    %p167 = scmp.ne.s32.totalorder %s159, %s161
    %p168 = scmp.eq.s32.totalorder %s25, 1
    %p169 = por %p167, %p168
    %p170 = scmp.ne.s32.totalorder %s161, %s162
    %p171 = scmp.eq.s32.totalorder %s25, 0
    %p172 = por %p170, %p171
    %p173 = scmp.ne.s32.totalorder %s161, %s162
    %p174 = scmp.eq.s32.totalorder %s26, 1
    %p175 = por %p173, %p174
    %p177 = scmp.ne.s32.totalorder %s162, %s176
    %p178 = scmp.eq.s32.totalorder %s26, 0
    %p179 = por %p177, %p178
    %s181 = sadd.s32 %s180, 1
    %p184 = scmp.eq.s32.totalorder %s20, 1
    %p185 = scmp.ne.s32.totalorder %s180, %s182
    %p186 = scmp.eq.s32.totalorder %s20, 0
    %p187 = por %p185, %p186
    %p188 = scmp.ne.s32.totalorder %s180, %s182
    %p189 = scmp.eq.s32.totalorder %s25, 1
    %p190 = por %p188, %p189
    %p191 = scmp.ne.s32.totalorder %s182, %s183
    %p192 = scmp.eq.s32.totalorder %s25, 0
    %p193 = por %p191, %p192
    %p194 = scmp.ne.s32.totalorder %s182, %s183
    %p195 = scmp.eq.s32.totalorder %s26, 1
    %p196 = por %p194, %p195
    %p198 = scmp.ne.s32.totalorder %s183, %s197
    %p199 = scmp.eq.s32.totalorder %s26, 0
    %p200 = por %p198, %p199
    %s202 = sadd.s32 %s201, 1
    %p205 = scmp.eq.s32.totalorder %s20, 1
    %p206 = scmp.ne.s32.totalorder %s201, %s203
    %p207 = scmp.eq.s32.totalorder %s20, 0
    %p208 = por %p206, %p207
    %p209 = scmp.ne.s32.totalorder %s201, %s203
    %p210 = scmp.eq.s32.totalorder %s25, 1
    %p211 = por %p209, %p210
    %p212 = scmp.ne.s32.totalorder %s203, %s204
    %p213 = scmp.eq.s32.totalorder %s25, 0
    %p214 = por %p212, %p213
    %p215 = scmp.ne.s32.totalorder %s203, %s204
    %p216 = scmp.eq.s32.totalorder %s26, 1
    %p217 = por %p215, %p216
    %p219 = scmp.ne.s32.totalorder %s204, %s218
    %p220 = scmp.eq.s32.totalorder %s26, 0
    %p221 = por %p219, %p220
    %s223 = sadd.s32 %s222, 1
    %p226 = scmp.eq.s32.totalorder %s20, 1
    %p227 = scmp.ne.s32.totalorder %s222, %s224
    %p228 = scmp.eq.s32.totalorder %s20, 0
    %p229 = por %p227, %p228
    %p230 = scmp.ne.s32.totalorder %s222, %s224
    %p231 = scmp.eq.s32.totalorder %s25, 1
    %p232 = por %p230, %p231
    %p233 = scmp.ne.s32.totalorder %s224, %s225
    %p234 = scmp.eq.s32.totalorder %s25, 0
    %p235 = por %p233, %p234
    %p236 = scmp.ne.s32.totalorder %s224, %s225
    %p237 = scmp.eq.s32.totalorder %s26, 1
    %p238 = por %p236, %p237
    %p240 = scmp.ne.s32.totalorder %s225, %s239
    %p241 = scmp.eq.s32.totalorder %s26, 0
    %p242 = por %p240, %p241
    %s244 = sadd.s32 %s243, 1
    %p247 = scmp.eq.s32.totalorder %s20, 1
    %p248 = scmp.ne.s32.totalorder %s243, %s245
    %p249 = scmp.eq.s32.totalorder %s20, 0
    %p250 = por %p248, %p249
    %p251 = scmp.ne.s32.totalorder %s243, %s245
    %p252 = scmp.eq.s32.totalorder %s25, 1
    %p253 = por %p251, %p252
    %p254 = scmp.ne.s32.totalorder %s245, %s246
    %p255 = scmp.eq.s32.totalorder %s25, 0
    %p256 = por %p254, %p255
    %p257 = scmp.ne.s32.totalorder %s245, %s246
    %p258 = scmp.eq.s32.totalorder %s26, 1
    %p259 = por %p257, %p258
    %p261 = scmp.ne.s32.totalorder %s246, %s260
    %p262 = scmp.eq.s32.totalorder %s26, 0
    %p263 = por %p261, %p262
    %s265 = sadd.s32 %s264, 1
    %p268 = scmp.eq.s32.totalorder %s20, 1
    %p269 = scmp.ne.s32.totalorder %s264, %s266
    %p270 = scmp.eq.s32.totalorder %s20, 0
    %p271 = por %p269, %p270
    %p272 = scmp.ne.s32.totalorder %s264, %s266
    %p273 = scmp.eq.s32.totalorder %s25, 1
    %p274 = por %p272, %p273
    %p275 = scmp.ne.s32.totalorder %s266, %s267
    %p276 = scmp.eq.s32.totalorder %s25, 0
    %p277 = por %p275, %p276
    %p278 = scmp.ne.s32.totalorder %s266, %s267
    %p279 = scmp.eq.s32.totalorder %s26, 1
    %p280 = por %p278, %p279
    %p282 = scmp.ne.s32.totalorder %s267, %s281
    %p283 = scmp.eq.s32.totalorder %s26, 0
    %p284 = por %p282, %p283
    %s286 = sadd.s32 %s285, 1
    %p289 = scmp.eq.s32.totalorder %s20, 1
    %p290 = scmp.ne.s32.totalorder %s285, %s287
    %p291 = scmp.eq.s32.totalorder %s20, 0
    %p292 = por %p290, %p291
    %p293 = scmp.ne.s32.totalorder %s285, %s287
    %p294 = scmp.eq.s32.totalorder %s25, 1
    %p295 = por %p293, %p294
    %p296 = scmp.ne.s32.totalorder %s287, %s288
    %p297 = scmp.eq.s32.totalorder %s25, 0
    %p298 = por %p296, %p297
    %p299 = scmp.ne.s32.totalorder %s287, %s288
    %p300 = scmp.eq.s32.totalorder %s26, 1
    %p301 = por %p299, %p300
    %p303 = scmp.ne.s32.totalorder %s288, %s302
    %p304 = scmp.eq.s32.totalorder %s26, 0
    %p305 = por %p303, %p304
    %s307 = sadd.s32 %s306, 1
    %p310 = scmp.eq.s32.totalorder %s20, 1
    %p311 = scmp.ne.s32.totalorder %s306, %s308
    %p312 = scmp.eq.s32.totalorder %s20, 0
    %p313 = por %p311, %p312
    %p314 = scmp.ne.s32.totalorder %s306, %s308
    %p315 = scmp.eq.s32.totalorder %s25, 1
    %p316 = por %p314, %p315
    %p317 = scmp.ne.s32.totalorder %s308, %s309
    %p318 = scmp.eq.s32.totalorder %s25, 0
    %p319 = por %p317, %p318
    %p320 = scmp.ne.s32.totalorder %s308, %s309
    %p321 = scmp.eq.s32.totalorder %s26, 1
    %p322 = por %p320, %p321
    %p324 = scmp.ne.s32.totalorder %s309, %s323
    %p325 = scmp.eq.s32.totalorder %s26, 0
    %p326 = por %p324, %p325
    %s327 = ssub.s32 %s20, %s27
    %p328 = scmp.eq.s32.totalorder %s327, 0
    %s330 = sadd.s32 %s329, 1
    %s331 = scalar_select %p328, %s329, %s330
    %p334 = pneg %p328
    %p335 = scmp.eq.s32.totalorder %s20, 1
    %p336 = por %p334, %p335
    %p337 = scmp.ne.s32.totalorder %s329, %s332
    %p338 = scmp.eq.s32.totalorder %s20, 0
    %p339 = por %p337, %p338
    %p340 = scmp.ne.s32.totalorder %s329, %s332
    %p341 = scmp.eq.s32.totalorder %s25, 1
    %p342 = por %p340, %p341
    %p343 = scmp.ne.s32.totalorder %s332, %s333
    %p344 = scmp.eq.s32.totalorder %s25, 0
    %p345 = por %p343, %p344
    %p346 = scmp.ne.s32.totalorder %s332, %s333
    %p347 = scmp.eq.s32.totalorder %s26, 1
    %p348 = por %p346, %p347
    %p350 = scmp.ne.s32.totalorder %s333, %s349
    %p351 = scmp.eq.s32.totalorder %s26, 0
    %p352 = por %p350, %p351
    %p353 = scmp.le.s32.totalorder 1, %s20
    %p354 = scmp.lt.s32.totalorder %s20, 3
    %p355 = pnand %p353, %p354
    %p356 = pneg %p355
    // Predicated region
    $region9: #{trans_seq2seq_forward.3} parent=5 // pred_check
      _
    $region10: #{trans_seq2seq_forward.3} parent=5 // pred_check_branch
      %358 = sbr.rel (%p355) target = $region12
    $region11: #{trans_seq2seq_forward.3} parent=5 // pred_region
      %s359 = ssub.s32 %s20, 1
      // Predicated region
      $region13: #{trans_seq2seq_forward.3} parent=11 // pred_check
        %p360 = pneg %p67
      $region14: #{trans_seq2seq_forward.3} parent=11 // pred_check_branch
        %362 = sbr.rel (%p360) target = $region16
      $region15: #{trans_seq2seq_forward.3} parent=11 // pred_region
        _
      $region16: #{trans_seq2seq_forward.3} parent=11 // pred_fallthru
        _
      // Predicated region
      $region17: #{trans_seq2seq_forward.3} parent=11 // pred_check
        %p363 = pneg %p88
      $region18: #{trans_seq2seq_forward.3} parent=11 // pred_check_branch
        %365 = sbr.rel (%p363) target = $region20
      $region19: #{trans_seq2seq_forward.3} parent=11 // pred_region
        _
      $region20: #{trans_seq2seq_forward.3} parent=11 // pred_fallthru
        _
      // Predicated region
      $region21: #{trans_seq2seq_forward.3} parent=11 // pred_check
        %p366 = pneg %p109
      $region22: #{trans_seq2seq_forward.3} parent=11 // pred_check_branch
        %368 = sbr.rel (%p366) target = $region24
      $region23: #{trans_seq2seq_forward.3} parent=11 // pred_region
        _
      $region24: #{trans_seq2seq_forward.3} parent=11 // pred_fallthru
        _
      // Predicated region
      $region25: #{trans_seq2seq_forward.3} parent=11 // pred_check
        %p369 = pneg %p130
      $region26: #{trans_seq2seq_forward.3} parent=11 // pred_check_branch
        %371 = sbr.rel (%p369) target = $region28
      $region27: #{trans_seq2seq_forward.3} parent=11 // pred_region
        _
      $region28: #{trans_seq2seq_forward.3} parent=11 // pred_fallthru
        _
      // Predicated region
      $region29: #{trans_seq2seq_forward.3} parent=11 // pred_check
        %p372 = pneg %p151
      $region30: #{trans_seq2seq_forward.3} parent=11 // pred_check_branch
        %374 = sbr.rel (%p372) target = $region32
      $region31: #{trans_seq2seq_forward.3} parent=11 // pred_region
        _
      $region32: #{trans_seq2seq_forward.3} parent=11 // pred_fallthru
        _
      // Predicated region
      $region33: #{trans_seq2seq_forward.3} parent=11 // pred_check
        %p375 = pneg %p172
      $region34: #{trans_seq2seq_forward.3} parent=11 // pred_check_branch
        %377 = sbr.rel (%p375) target = $region36
      $region35: #{trans_seq2seq_forward.3} parent=11 // pred_region
        _
      $region36: #{trans_seq2seq_forward.3} parent=11 // pred_fallthru
        _
      // Predicated region
      $region37: #{trans_seq2seq_forward.3} parent=11 // pred_check
        %p378 = pneg %p193
      $region38: #{trans_seq2seq_forward.3} parent=11 // pred_check_branch
        %380 = sbr.rel (%p378) target = $region40
      $region39: #{trans_seq2seq_forward.3} parent=11 // pred_region
        _
      $region40: #{trans_seq2seq_forward.3} parent=11 // pred_fallthru
        _
      // Predicated region
      $region41: #{trans_seq2seq_forward.3} parent=11 // pred_check
        %p381 = pneg %p214
      $region42: #{trans_seq2seq_forward.3} parent=11 // pred_check_branch
        %383 = sbr.rel (%p381) target = $region44
      $region43: #{trans_seq2seq_forward.3} parent=11 // pred_region
        _
      $region44: #{trans_seq2seq_forward.3} parent=11 // pred_fallthru
        _
      // Predicated region
      $region45: #{trans_seq2seq_forward.3} parent=11 // pred_check
        %p384 = pneg %p235
      $region46: #{trans_seq2seq_forward.3} parent=11 // pred_check_branch
        %386 = sbr.rel (%p384) target = $region48
      $region47: #{trans_seq2seq_forward.3} parent=11 // pred_region
        _
      $region48: #{trans_seq2seq_forward.3} parent=11 // pred_fallthru
        _
      // Predicated region
      $region49: #{trans_seq2seq_forward.3} parent=11 // pred_check
        %p387 = pneg %p256
      $region50: #{trans_seq2seq_forward.3} parent=11 // pred_check_branch
        %389 = sbr.rel (%p387) target = $region52
      $region51: #{trans_seq2seq_forward.3} parent=11 // pred_region
        _
      $region52: #{trans_seq2seq_forward.3} parent=11 // pred_fallthru
        _
      // Predicated region
      $region53: #{trans_seq2seq_forward.3} parent=11 // pred_check
        %p390 = pneg %p277
      $region54: #{trans_seq2seq_forward.3} parent=11 // pred_check_branch
        %392 = sbr.rel (%p390) target = $region56
      $region55: #{trans_seq2seq_forward.3} parent=11 // pred_region
        _
      $region56: #{trans_seq2seq_forward.3} parent=11 // pred_fallthru
        _
      // Predicated region
      $region57: #{trans_seq2seq_forward.3} parent=11 // pred_check
        %p393 = pneg %p298
      $region58: #{trans_seq2seq_forward.3} parent=11 // pred_check_branch
        %395 = sbr.rel (%p393) target = $region60
      $region59: #{trans_seq2seq_forward.3} parent=11 // pred_region
        _
      $region60: #{trans_seq2seq_forward.3} parent=11 // pred_fallthru
        _
      // Predicated region
      $region61: #{trans_seq2seq_forward.3} parent=11 // pred_check
        %p396 = pneg %p319
      $region62: #{trans_seq2seq_forward.3} parent=11 // pred_check_branch
        %398 = sbr.rel (%p396) target = $region64
      $region63: #{trans_seq2seq_forward.3} parent=11 // pred_region
        _
      $region64: #{trans_seq2seq_forward.3} parent=11 // pred_fallthru
        _
    $region12: #{trans_seq2seq_forward.3} parent=5 // pred_fallthru
      _
    %p399 = scmp.lt.s32.totalorder %s20, 2
    // Predicated region
    $region65: #{trans_seq2seq_forward.3} parent=5 // pred_check
      %p400 = pneg %p399
    $region66: #{trans_seq2seq_forward.3} parent=5 // pred_check_branch
      %402 = sbr.rel (%p400) target = $region68
    $region67: #{trans_seq2seq_forward.3} parent=5 // pred_region
      // Predicated region
      $region69: #{trans_seq2seq_forward.3} parent=67 // pred_check
        %p403 = pneg %p40
      $region70: #{trans_seq2seq_forward.3} parent=67 // pred_check_branch
        %405 = sbr.rel (%p403) target = $region72
      $region71: #{trans_seq2seq_forward.3} parent=67 // pred_region
        %p406 = scmp.lt.s32.totalorder %s20, 1
        %s407 = scalar_select %p406, %s20, 1
        %s408 = smul.addr %s407, 2
        %s409 = smul.addr %s408, 8
        %s410 = scalar_lea.vmem %s0, %s409
      $region72: #{trans_seq2seq_forward.3} parent=67 // pred_fallthru
        _
    $region68: #{trans_seq2seq_forward.3} parent=5 // pred_fallthru
      _
    %p411 = scmp.le.s32.totalorder 1, %s20
    %p412 = scmp.lt.s32.totalorder %s20, 3
    %p413 = pnand %p411, %p412
    %p414 = pneg %p413
    // Predicated region
    $region73: #{trans_seq2seq_forward.3} parent=5 // pred_check
      _
    $region74: #{trans_seq2seq_forward.3} parent=5 // pred_check_branch
      %416 = sbr.rel (%p413) target = $region76
    $region75: #{trans_seq2seq_forward.3} parent=5 // pred_region
      %s417 = ssub.s32 %s20, 1
      %p418 = scmp.lt.s32.totalorder %s25, 1
      %s419 = scalar_select %p418, %s25, 1
      %s420 = smul.addr %s419, 2
      %s421 = smul.addr %s420, 8
      %s422 = scalar_lea.vmem %s0, %s421
      %p423 = pneg %p46
      %p424 = pneg %p43
      %p425 = pneg %p67
      %p426 = pneg %p64
      %p427 = pneg %p88
      %p428 = pneg %p85
      %p429 = pneg %p109
      %p430 = pneg %p106
      %p431 = pneg %p130
      %p432 = pneg %p127
      %p433 = pneg %p151
      %p434 = pneg %p148
      %p435 = pneg %p172
      %p436 = pneg %p169
      %p437 = pneg %p193
      %p438 = pneg %p190
      %p439 = pneg %p214
      %p440 = pneg %p211
      %p441 = pneg %p235
      %p442 = pneg %p232
      %p443 = pneg %p256
      %p444 = pneg %p253
      %p445 = pneg %p277
      %p446 = pneg %p274
      %p447 = pneg %p298
      %p448 = pneg %p295
      %p449 = pneg %p319
      %p450 = pneg %p316
      %p451 = pneg %p345
      %p452 = pneg %p342
      %p453 = scmp.lt.s32.totalorder %s25, 1
      %s454 = scalar_select %p453, %s25, 1
      %s455 = smul.addr %s454, 2
      %s456 = smul.addr %s455, 8
      %s457 = scalar_lea.vmem %s14, %s456
      %p458 = scmp.lt.s32.totalorder %s25, 1
      %s459 = scalar_select %p458, %s25, 1
      %s460 = smul.addr %s459, 2
      %s461 = smul.addr %s460, 8
      %s462 = scalar_lea.vmem %s0, %s461
      %p463 = scmp.lt.s32.totalorder %s25, 1
      %s464 = scalar_select %p463, %s25, 1
      %s465 = smul.addr %s464, 2
      %s466 = smul.addr %s465, 8
      %s467 = scalar_lea.vmem %s14, %s466
      %v468 = vld [vmem:[%s462] sm:$0xff]
      %v469 = vld [vmem:[%s462 + $0x8] sm:$0x3]
      %v470 = vld [vmem:[%s1] sm:$0xff]
      %v471 = vld [vmem:[%s1 + $0x8] sm:$0x3]
      %v472 = vadd.f32 %v468, %v470
      %v473 = vadd.f32 %v469, %v471
      %v474 = vld [vmem:[%s2] sm:$0xff]
      %v475 = vld [vmem:[%s2 + $0x8] sm:$0xff]
      %v476 = vld [vmem:[%s2 + $0x10] sm:$0xff]
      %v477 = vld [vmem:[%s2 + $0x18] sm:$0xff]
      %v478 = vld [vmem:[%s3] sm:$0x1]
      %v480 = vlaneseq
      %v481 = vshrl.u32 %v480, 7
      %v482 = vsub.s32 0, %v481
      %v483 = vrot.slane %v478, %v482
      %vm485 = vcmask 261120
      %v487 = vsel %vm485, %v472, 0
      %v490 = vsel %vm485, %v473, 0
      %492 = vmatprep.subr.mxu0 0.0
      %493 = vmatpush1.msra.mxu0 %v474
      %494 = vmatprep.subr.mxu0 0.0
      %495 = vmatpush1.msra.mxu0 %v475
      %496 = vmatprep.subr.mxu0 0.0
      %497 = vmatpush1.msra.mxu0 %v476
      %498 = vmatprep.subr.mxu0 0.0
      %499 = vmatpush1.msra.mxu0 %v477
      %500 = vmatprep.subr.mxu0 0.0
      %501 = vmatpush1.msra.mxu0 0.0
      %502 = vmatprep.subr.mxu0 0.0
      %503 = vmatpush1.msra.mxu0 0.0
      %504 = vmatprep.subr.mxu0 0.0
      %505 = vmatpush1.msra.mxu0 0.0
      %506 = vmatprep.subr.mxu0 0.0
      %507 = vmatpush1.msra.mxu0 0.0
      %508 = vmatprep.subr.mxu0 0.0
      %509 = vmatpush1.msra.mxu0 0.0
      %510 = vmatprep.subr.mxu0 0.0
      %511 = vmatpush1.msra.mxu0 0.0
      %512 = vmatprep.subr.mxu0 0.0
      %513 = vmatpush1.msra.mxu0 0.0
      %514 = vmatprep.subr.mxu0 0.0
      %515 = vmatpush1.msra.mxu0 0.0
      %516 = vmatprep.subr.mxu0 0.0
      %517 = vmatpush1.msra.mxu0 0.0
      %518 = vmatprep.subr.mxu0 0.0
      %519 = vmatpush1.msra.mxu0 0.0
      %520 = vmatprep.subr.mxu0 0.0
      %521 = vmatpush1.msra.mxu0 0.0
      %522 = vmatprep.subr.mxu0 0.0
      %523 = vmatpush1.msra.mxu0 0.0
      %524 = vmatprep.subr.mxu0 0.0
      %525 = vmatpush1.msra.mxu0 0.0
      %526 = vmatprep.subr.mxu0 0.0
      %527 = vmatpush1.msra.mxu0 0.0
      %528 = vmatprep.subr.mxu0 0.0
      %529 = vmatpush1.msra.mxu0 0.0
      %530 = vmatprep.subr.mxu0 0.0
      %531 = vmatpush1.msra.mxu0 0.0
      %532 = vmatprep.subr.mxu0 0.0
      %533 = vmatpush1.msra.mxu0 0.0
      %534 = vmatprep.subr.mxu0 0.0
      %535 = vmatpush1.msra.mxu0 0.0
      %536 = vmatprep.subr.mxu0 0.0
      %537 = vmatpush1.msra.mxu0 0.0
      %538 = vmatprep.subr.mxu0 0.0
      %539 = vmatpush1.msra.mxu0 0.0
      %540 = vmatprep.subr.mxu0 0.0
      %541 = vmatpush1.msra.mxu0 0.0
      %542 = vmatprep.subr.mxu0 0.0
      %543 = vmatpush1.msra.mxu0 0.0
      %544 = vmatprep.subr.mxu0 0.0
      %545 = vmatpush1.msra.mxu0 0.0
      %546 = vmatprep.subr.mxu0 0.0
      %547 = vmatpush1.msra.mxu0 0.0
      %548 = vmatprep.subr.mxu0 0.0
      %549 = vmatpush1.msra.mxu0 0.0
      %550 = vmatprep.subr.mxu0 0.0
      %551 = vmatpush1.msra.mxu0 0.0
      %552 = vmatprep.subr.mxu0 0.0
      %553 = vmatpush1.msra.mxu0 0.0
      %554 = vmatprep.subr.mxu0 0.0
      %555 = vmatpush1.msra.mxu0 0.0
      %556 = vmatprep.mubr.f32.mxu0 0.0
      %557 = vmatmul.mubr.f32.gmra.mrb[0].mxu0 %v487
      %v558 = vpop.f32.mrb[0].mxu0
      %v559 = vadd.f32 %v483, %v558
      %v560 = vpop.f32.mrb[0].mxu0
      %561 = vmatprep.mubr.f32.mxu0 0.0
      %562 = vmatmul.mubr.f32.gmra.mrb[0].mxu0 %v490
      %v563 = vpop.f32.mrb[0].mxu0
      %v564 = vadd.f32 %v483, %v563
      %v565 = vpop.f32.mrb[0].mxu0
      %566 = vdwg.mxu0
      %s567 = scalar_lea.vmem %s2, 128
      %v568 = vld [vmem:[%s567] sm:$0xff]
      %v569 = vld [vmem:[%s567 + $0x8] sm:$0xff]
      %v570 = vld [vmem:[%s567 + $0x10] sm:$0xff]
      %v571 = vld [vmem:[%s567 + $0x18] sm:$0xff]
      %s572 = scalar_lea.vmem %s3, 4
      %v573 = vld [vmem:[%s572] sm:$0x1]
      %v575 = vlaneseq
      %v576 = vshrl.u32 %v575, 7
      %v577 = vsub.s32 0, %v576
      %v578 = vrot.slane %v573, %v577
      %580 = vmatprep.subr.mxu0 0.0
      %581 = vmatpush1.msra.mxu0 %v568
      %582 = vmatprep.subr.mxu0 0.0
      %583 = vmatpush1.msra.mxu0 %v569
      %584 = vmatprep.subr.mxu0 0.0
      %585 = vmatpush1.msra.mxu0 %v570
      %586 = vmatprep.subr.mxu0 0.0
      %587 = vmatpush1.msra.mxu0 %v571
      %588 = vmatprep.subr.mxu0 0.0
      %589 = vmatpush1.msra.mxu0 0.0
      %590 = vmatprep.subr.mxu0 0.0
      %591 = vmatpush1.msra.mxu0 0.0
      %592 = vmatprep.subr.mxu0 0.0
      %593 = vmatpush1.msra.mxu0 0.0
      %594 = vmatprep.subr.mxu0 0.0
      %595 = vmatpush1.msra.mxu0 0.0
      %596 = vmatprep.subr.mxu0 0.0
      %597 = vmatpush1.msra.mxu0 0.0
      %598 = vmatprep.subr.mxu0 0.0
      %599 = vmatpush1.msra.mxu0 0.0
      %600 = vmatprep.subr.mxu0 0.0
      %601 = vmatpush1.msra.mxu0 0.0
      %602 = vmatprep.subr.mxu0 0.0
      %603 = vmatpush1.msra.mxu0 0.0
      %604 = vmatprep.subr.mxu0 0.0
      %605 = vmatpush1.msra.mxu0 0.0
      %606 = vmatprep.subr.mxu0 0.0
      %607 = vmatpush1.msra.mxu0 0.0
      %608 = vmatprep.subr.mxu0 0.0
      %609 = vmatpush1.msra.mxu0 0.0
      %610 = vmatprep.subr.mxu0 0.0
      %611 = vmatpush1.msra.mxu0 0.0
      %612 = vmatprep.subr.mxu0 0.0
      %613 = vmatpush1.msra.mxu0 0.0
      %614 = vmatprep.subr.mxu0 0.0
      %615 = vmatpush1.msra.mxu0 0.0
      %616 = vmatprep.subr.mxu0 0.0
      %617 = vmatpush1.msra.mxu0 0.0
      %618 = vmatprep.subr.mxu0 0.0
      %619 = vmatpush1.msra.mxu0 0.0
      %620 = vmatprep.subr.mxu0 0.0
      %621 = vmatpush1.msra.mxu0 0.0
      %622 = vmatprep.subr.mxu0 0.0
      %623 = vmatpush1.msra.mxu0 0.0
      %624 = vmatprep.subr.mxu0 0.0
      %625 = vmatpush1.msra.mxu0 0.0
      %626 = vmatprep.subr.mxu0 0.0
      %627 = vmatpush1.msra.mxu0 0.0
      %628 = vmatprep.subr.mxu0 0.0
      %629 = vmatpush1.msra.mxu0 0.0
      %630 = vmatprep.subr.mxu0 0.0
      %631 = vmatpush1.msra.mxu0 0.0
      %632 = vmatprep.subr.mxu0 0.0
      %633 = vmatpush1.msra.mxu0 0.0
      %634 = vmatprep.subr.mxu0 0.0
      %635 = vmatpush1.msra.mxu0 0.0
      %636 = vmatprep.subr.mxu0 0.0
      %637 = vmatpush1.msra.mxu0 0.0
      %638 = vmatprep.subr.mxu0 0.0
      %639 = vmatpush1.msra.mxu0 0.0
      %640 = vmatprep.subr.mxu0 0.0
      %641 = vmatpush1.msra.mxu0 0.0
      %642 = vmatprep.subr.mxu0 0.0
      %643 = vmatpush1.msra.mxu0 0.0
      %644 = vmatprep.mubr.f32.mxu0 0.0
      %645 = vmatmul.mubr.f32.gmra.mrb[0].mxu0 %v487
      %v646 = vpop.f32.mrb[0].mxu0
      %v647 = vadd.f32 %v578, %v646
      %v648 = vpop.f32.mrb[0].mxu0
      %649 = vmatprep.mubr.f32.mxu0 0.0
      %650 = vmatmul.mubr.f32.gmra.mrb[0].mxu0 %v490
      %v651 = vpop.f32.mrb[0].mxu0
      %v652 = vadd.f32 %v578, %v651
      %v653 = vpop.f32.mrb[0].mxu0
      %654 = vdwg.mxu0
      %s655 = scalar_lea.vmem %s2, 256
      %v656 = vld [vmem:[%s655] sm:$0xff]
      %v657 = vld [vmem:[%s655 + $0x8] sm:$0xff]
      %v658 = vld [vmem:[%s655 + $0x10] sm:$0xff]
      %v659 = vld [vmem:[%s655 + $0x18] sm:$0xff]
      %s660 = scalar_lea.vmem %s3, 8
      %v661 = vld [vmem:[%s660] sm:$0x1]
      %v663 = vlaneseq
      %v664 = vshrl.u32 %v663, 7
      %v665 = vsub.s32 0, %v664
      %v666 = vrot.slane %v661, %v665
      %668 = vmatprep.subr.mxu0 0.0
      %669 = vmatpush1.msra.mxu0 %v656
      %670 = vmatprep.subr.mxu0 0.0
      %671 = vmatpush1.msra.mxu0 %v657
      %672 = vmatprep.subr.mxu0 0.0
      %673 = vmatpush1.msra.mxu0 %v658
      %674 = vmatprep.subr.mxu0 0.0
      %675 = vmatpush1.msra.mxu0 %v659
      %676 = vmatprep.subr.mxu0 0.0
      %677 = vmatpush1.msra.mxu0 0.0
      %678 = vmatprep.subr.mxu0 0.0
      %679 = vmatpush1.msra.mxu0 0.0
      %680 = vmatprep.subr.mxu0 0.0
      %681 = vmatpush1.msra.mxu0 0.0
      %682 = vmatprep.subr.mxu0 0.0
      %683 = vmatpush1.msra.mxu0 0.0
      %684 = vmatprep.subr.mxu0 0.0
      %685 = vmatpush1.msra.mxu0 0.0
      %686 = vmatprep.subr.mxu0 0.0
      %687 = vmatpush1.msra.mxu0 0.0
      %688 = vmatprep.subr.mxu0 0.0
      %689 = vmatpush1.msra.mxu0 0.0
      %690 = vmatprep.subr.mxu0 0.0
      %691 = vmatpush1.msra.mxu0 0.0
      %692 = vmatprep.subr.mxu0 0.0
      %693 = vmatpush1.msra.mxu0 0.0
      %694 = vmatprep.subr.mxu0 0.0
      %695 = vmatpush1.msra.mxu0 0.0
      %696 = vmatprep.subr.mxu0 0.0
      %697 = vmatpush1.msra.mxu0 0.0
      %698 = vmatprep.subr.mxu0 0.0
      %699 = vmatpush1.msra.mxu0 0.0
      %700 = vmatprep.subr.mxu0 0.0
      %701 = vmatpush1.msra.mxu0 0.0
      %702 = vmatprep.subr.mxu0 0.0
      %703 = vmatpush1.msra.mxu0 0.0
      %704 = vmatprep.subr.mxu0 0.0
      %705 = vmatpush1.msra.mxu0 0.0
      %706 = vmatprep.subr.mxu0 0.0
      %707 = vmatpush1.msra.mxu0 0.0
      %708 = vmatprep.subr.mxu0 0.0
      %709 = vmatpush1.msra.mxu0 0.0
      %710 = vmatprep.subr.mxu0 0.0
      %711 = vmatpush1.msra.mxu0 0.0
      %712 = vmatprep.subr.mxu0 0.0
      %713 = vmatpush1.msra.mxu0 0.0
      %714 = vmatprep.subr.mxu0 0.0
      %715 = vmatpush1.msra.mxu0 0.0
      %716 = vmatprep.subr.mxu0 0.0
      %717 = vmatpush1.msra.mxu0 0.0
      %718 = vmatprep.subr.mxu0 0.0
      %719 = vmatpush1.msra.mxu0 0.0
      %720 = vmatprep.subr.mxu0 0.0
      %721 = vmatpush1.msra.mxu0 0.0
      %722 = vmatprep.subr.mxu0 0.0
      %723 = vmatpush1.msra.mxu0 0.0
      %724 = vmatprep.subr.mxu0 0.0
      %725 = vmatpush1.msra.mxu0 0.0
      %726 = vmatprep.subr.mxu0 0.0
      %727 = vmatpush1.msra.mxu0 0.0
      %728 = vmatprep.subr.mxu0 0.0
      %729 = vmatpush1.msra.mxu0 0.0
      %730 = vmatprep.subr.mxu0 0.0
      %731 = vmatpush1.msra.mxu0 0.0
      %732 = vmatprep.mubr.f32.mxu0 0.0
      %733 = vmatmul.mubr.f32.gmra.mrb[0].mxu0 %v487
      %v734 = vpop.f32.mrb[0].mxu0
      %v735 = vadd.f32 %v666, %v734
      %v736 = vpop.f32.mrb[0].mxu0
      %737 = vmatprep.mubr.f32.mxu0 0.0
      %738 = vmatmul.mubr.f32.gmra.mrb[0].mxu0 %v490
      %v739 = vpop.f32.mrb[0].mxu0
      %v740 = vadd.f32 %v666, %v739
      %v741 = vpop.f32.mrb[0].mxu0
      %742 = vdwg.mxu0
      %vm743 = vcmask 64512
      %v745 = vsel %vm743, %v559, 0
      %v748 = vsel %vm743, %v564, 0
      %v751 = vsel %vm743, %v647, 0
      %v754 = vsel %vm743, %v652, 0
      %756 = vmatprep.subr.mxu0 0.0
      %757 = vmatpush1.xpose.msra.mxu0 %v751
      %758 = vmatprep.subr.mxu0 0.0
      %759 = vmatpush1.xpose.msra.mxu0 %v754
      %760 = vmatprep.subr.mxu0 0.0
      %761 = vmatpush1.xpose.msra.mxu0 0.0
      %762 = vmatprep.subr.mxu0 0.0
      %763 = vmatpush1.xpose.msra.mxu0 0.0
      %764 = vmatprep.subr.mxu0 0.0
      %765 = vmatpush1.xpose.msra.mxu0 0.0
      %766 = vmatprep.subr.mxu0 0.0
      %767 = vmatpush1.xpose.msra.mxu0 0.0
      %768 = vmatprep.subr.mxu0 0.0
      %769 = vmatpush1.xpose.msra.mxu0 0.0
      %770 = vmatprep.subr.mxu0 0.0
      %771 = vmatpush1.xpose.msra.mxu0 0.0
      %772 = vmatprep.subr.mxu0 0.0
      %773 = vmatpush1.xpose.msra.mxu0 0.0
      %774 = vmatprep.subr.mxu0 0.0
      %775 = vmatpush1.xpose.msra.mxu0 0.0
      %776 = vmatprep.subr.mxu0 0.0
      %777 = vmatpush1.xpose.msra.mxu0 0.0
      %778 = vmatprep.subr.mxu0 0.0
      %779 = vmatpush1.xpose.msra.mxu0 0.0
      %780 = vmatprep.subr.mxu0 0.0
      %781 = vmatpush1.xpose.msra.mxu0 0.0
      %782 = vmatprep.subr.mxu0 0.0
      %783 = vmatpush1.xpose.msra.mxu0 0.0
      %784 = vmatprep.subr.mxu0 0.0
      %785 = vmatpush1.xpose.msra.mxu0 0.0
      %786 = vmatprep.subr.mxu0 0.0
      %787 = vmatpush1.xpose.msra.mxu0 0.0
      %788 = vmatprep.subr.mxu0 0.0
      %789 = vmatpush1.xpose.msra.mxu0 0.0
      %790 = vmatprep.subr.mxu0 0.0
      %791 = vmatpush1.xpose.msra.mxu0 0.0
      %792 = vmatprep.subr.mxu0 0.0
      %793 = vmatpush1.xpose.msra.mxu0 0.0
      %794 = vmatprep.subr.mxu0 0.0
      %795 = vmatpush1.xpose.msra.mxu0 0.0
      %796 = vmatprep.subr.mxu0 0.0
      %797 = vmatpush1.xpose.msra.mxu0 0.0
      %798 = vmatprep.subr.mxu0 0.0
      %799 = vmatpush1.xpose.msra.mxu0 0.0
      %800 = vmatprep.subr.mxu0 0.0
      %801 = vmatpush1.xpose.msra.mxu0 0.0
      %802 = vmatprep.subr.mxu0 0.0
      %803 = vmatpush1.xpose.msra.mxu0 0.0
      %804 = vmatprep.subr.mxu0 0.0
      %805 = vmatpush1.xpose.msra.mxu0 0.0
      %806 = vmatprep.subr.mxu0 0.0
      %807 = vmatpush1.xpose.msra.mxu0 0.0
      %808 = vmatprep.subr.mxu0 0.0
      %809 = vmatpush1.xpose.msra.mxu0 0.0
      %810 = vmatprep.subr.mxu0 0.0
      %811 = vmatpush1.xpose.msra.mxu0 0.0
      %812 = vmatprep.subr.mxu0 0.0
      %813 = vmatpush1.xpose.msra.mxu0 0.0
      %814 = vmatprep.subr.mxu0 0.0
      %815 = vmatpush1.xpose.msra.mxu0 0.0
      %816 = vmatprep.subr.mxu0 0.0
      %817 = vmatpush1.xpose.msra.mxu0 0.0
      %818 = vmatprep.subr.mxu0 0.0
      %819 = vmatpush1.xpose.msra.mxu0 0.0
      %820 = vmatprep.mubr.f32.mxu0 0.0
      %821 = vmatmul.mubr.f32.gmra.mrb[0].mxu0 %v745
      %v822 = vpop.f32.mrb[0].mxu0
      %v823 = vadd.f32 0.0, %v822
      %v824 = vpop.f32.mrb[0].mxu0
      %825 = vmatprep.mubr.f32.mxu0 0.0
      %826 = vmatmul.mubr.f32.gmra.mrb[0].mxu0 %v748
      %v827 = vpop.f32.mrb[0].mxu0
      %v828 = vadd.f32 0.0, %v827
      %v829 = vpop.f32.mrb[0].mxu0
      %830 = vdwg.mxu0
      %v831 = vmul.f32 %v823, 0.35355338
      %v832 = vmul.f32 %v828, 0.35355338
      %vm833 = vcmask 80896
      %v834 = vsel %vm833, %v831, -inf
      %835 = vmax.xlane.f32.xlu0 %v834
      %v836 = vpop.xlane.xlu0 %835
      %vm837 = vcmask 74752
      %v838 = vsel %vm837, %v832, -inf
      %839 = vmax.xlane.f32.xlu0 %v838
      %v840 = vpop.xlane.xlu0 %839
      %v841 = vsub.f32 %v831, %v836
      %v842 = vsub.f32 %v832, %v840
      %v843 = vmul.f32 %v841, 1.442695
      %v844 = vpow.pop %v843
      %v845 = vmul.f32 %v842, 1.442695
      %v846 = vpow.pop %v845
      %v847 = vsel %vm833, %v844, 0.0
      %848 = vadd.xlane.f32.xlu0 %v847
      %v849 = vpop.xlane.xlu0 %848
      %v850 = vsel %vm837, %v846, 0.0
      %851 = vadd.xlane.f32.xlu0 %v850
      %v852 = vpop.xlane.xlu0 %851
      %v853 = vrcp.pop %v849
      %v854 = vrcp.pop %v852
      %v855 = vmul.f32 %v844, %v853
      %v856 = vmul.f32 %v846, %v854
      %v858 = vsel %vm833, %v855, 0
      %v861 = vsel %vm833, %v856, 0
      %vm863 = vcmask 1041408
      %v865 = vsel %vm863, %v740, 0
      %867 = vmatprep.subr.mxu0 0.0
      %868 = vmatpush1.msra.mxu0 %v735
      %869 = vmatprep.subr.mxu0 0.0
      %870 = vmatpush1.msra.mxu0 %v865
      %871 = vmatprep.subr.mxu0 0.0
      %872 = vmatpush1.msra.mxu0 0.0
      %873 = vmatprep.subr.mxu0 0.0
      %874 = vmatpush1.msra.mxu0 0.0
      %875 = vmatprep.subr.mxu0 0.0
      %876 = vmatpush1.msra.mxu0 0.0
      %877 = vmatprep.subr.mxu0 0.0
      %878 = vmatpush1.msra.mxu0 0.0
      %879 = vmatprep.subr.mxu0 0.0
      %880 = vmatpush1.msra.mxu0 0.0
      %881 = vmatprep.subr.mxu0 0.0
      %882 = vmatpush1.msra.mxu0 0.0
      %883 = vmatprep.subr.mxu0 0.0
      %884 = vmatpush1.msra.mxu0 0.0
      %885 = vmatprep.subr.mxu0 0.0
      %886 = vmatpush1.msra.mxu0 0.0
      %887 = vmatprep.subr.mxu0 0.0
      %888 = vmatpush1.msra.mxu0 0.0
      %889 = vmatprep.subr.mxu0 0.0
      %890 = vmatpush1.msra.mxu0 0.0
      %891 = vmatprep.subr.mxu0 0.0
      %892 = vmatpush1.msra.mxu0 0.0
      %893 = vmatprep.subr.mxu0 0.0
      %894 = vmatpush1.msra.mxu0 0.0
      %895 = vmatprep.subr.mxu0 0.0
      %896 = vmatpush1.msra.mxu0 0.0
      %897 = vmatprep.subr.mxu0 0.0
      %898 = vmatpush1.msra.mxu0 0.0
      %899 = vmatprep.subr.mxu0 0.0
      %900 = vmatpush1.msra.mxu0 0.0
      %901 = vmatprep.subr.mxu0 0.0
      %902 = vmatpush1.msra.mxu0 0.0
      %903 = vmatprep.subr.mxu0 0.0
      %904 = vmatpush1.msra.mxu0 0.0
      %905 = vmatprep.subr.mxu0 0.0
      %906 = vmatpush1.msra.mxu0 0.0
      %907 = vmatprep.subr.mxu0 0.0
      %908 = vmatpush1.msra.mxu0 0.0
      %909 = vmatprep.subr.mxu0 0.0
      %910 = vmatpush1.msra.mxu0 0.0
      %911 = vmatprep.subr.mxu0 0.0
      %912 = vmatpush1.msra.mxu0 0.0
      %913 = vmatprep.subr.mxu0 0.0
      %914 = vmatpush1.msra.mxu0 0.0
      %915 = vmatprep.subr.mxu0 0.0
      %916 = vmatpush1.msra.mxu0 0.0
      %917 = vmatprep.subr.mxu0 0.0
      %918 = vmatpush1.msra.mxu0 0.0
      %919 = vmatprep.subr.mxu0 0.0
      %920 = vmatpush1.msra.mxu0 0.0
      %921 = vmatprep.subr.mxu0 0.0
      %922 = vmatpush1.msra.mxu0 0.0
      %923 = vmatprep.subr.mxu0 0.0
      %924 = vmatpush1.msra.mxu0 0.0
      %925 = vmatprep.subr.mxu0 0.0
      %926 = vmatpush1.msra.mxu0 0.0
      %927 = vmatprep.subr.mxu0 0.0
      %928 = vmatpush1.msra.mxu0 0.0
      %929 = vmatprep.subr.mxu0 0.0
      %930 = vmatpush1.msra.mxu0 0.0
      %931 = vmatprep.mubr.f32.mxu0 0.0
      %932 = vmatmul.mubr.f32.gmra.mrb[0].mxu0 %v858
      %v933 = vpop.f32.mrb[0].mxu0
      %v934 = vadd.f32 0.0, %v933
      %v935 = vpop.f32.mrb[0].mxu0
      %936 = vmatprep.mubr.f32.mxu0 0.0
      %937 = vmatmul.mubr.f32.gmra.mrb[0].mxu0 %v861
      %v938 = vpop.f32.mrb[0].mxu0
      %v939 = vadd.f32 0.0, %v938
      %v940 = vpop.f32.mrb[0].mxu0
      %941 = vdwg.mxu0
      %v942 = vld [vmem:[%s4] sm:$0xff]
      %s943 = scalar_lea.vmem %s2, 32
      %v944 = vld [vmem:[%s943] sm:$0xff]
      %v945 = vld [vmem:[%s943 + $0x8] sm:$0xff]
      %v946 = vld [vmem:[%s943 + $0x10] sm:$0xff]
      %v947 = vld [vmem:[%s943 + $0x18] sm:$0xff]
      %s948 = scalar_lea.vmem %s3, 1
      %v949 = vld [vmem:[%s948] sm:$0x1]
      %v951 = vlaneseq
      %v952 = vshrl.u32 %v951, 7
      %v953 = vsub.s32 0, %v952
      %v954 = vrot.slane %v949, %v953
      %956 = vmatprep.subr.mxu0 0.0
      %957 = vmatpush1.msra.mxu0 %v944
      %958 = vmatprep.subr.mxu0 0.0
      %959 = vmatpush1.msra.mxu0 %v945
      %960 = vmatprep.subr.mxu0 0.0
      %961 = vmatpush1.msra.mxu0 %v946
      %962 = vmatprep.subr.mxu0 0.0
      %963 = vmatpush1.msra.mxu0 %v947
      %964 = vmatprep.subr.mxu0 0.0
      %965 = vmatpush1.msra.mxu0 0.0
      %966 = vmatprep.subr.mxu0 0.0
      %967 = vmatpush1.msra.mxu0 0.0
      %968 = vmatprep.subr.mxu0 0.0
      %969 = vmatpush1.msra.mxu0 0.0
      %970 = vmatprep.subr.mxu0 0.0
      %971 = vmatpush1.msra.mxu0 0.0
      %972 = vmatprep.subr.mxu0 0.0
      %973 = vmatpush1.msra.mxu0 0.0
      %974 = vmatprep.subr.mxu0 0.0
      %975 = vmatpush1.msra.mxu0 0.0
      %976 = vmatprep.subr.mxu0 0.0
      %977 = vmatpush1.msra.mxu0 0.0
      %978 = vmatprep.subr.mxu0 0.0
      %979 = vmatpush1.msra.mxu0 0.0
      %980 = vmatprep.subr.mxu0 0.0
      %981 = vmatpush1.msra.mxu0 0.0
      %982 = vmatprep.subr.mxu0 0.0
      %983 = vmatpush1.msra.mxu0 0.0
      %984 = vmatprep.subr.mxu0 0.0
      %985 = vmatpush1.msra.mxu0 0.0
      %986 = vmatprep.subr.mxu0 0.0
      %987 = vmatpush1.msra.mxu0 0.0
      %988 = vmatprep.subr.mxu0 0.0
      %989 = vmatpush1.msra.mxu0 0.0
      %990 = vmatprep.subr.mxu0 0.0
      %991 = vmatpush1.msra.mxu0 0.0
      %992 = vmatprep.subr.mxu0 0.0
      %993 = vmatpush1.msra.mxu0 0.0
      %994 = vmatprep.subr.mxu0 0.0
      %995 = vmatpush1.msra.mxu0 0.0
      %996 = vmatprep.subr.mxu0 0.0
      %997 = vmatpush1.msra.mxu0 0.0
      %998 = vmatprep.subr.mxu0 0.0
      %999 = vmatpush1.msra.mxu0 0.0
      %1000 = vmatprep.subr.mxu0 0.0
      %1001 = vmatpush1.msra.mxu0 0.0
      %1002 = vmatprep.subr.mxu0 0.0
      %1003 = vmatpush1.msra.mxu0 0.0
      %1004 = vmatprep.subr.mxu0 0.0
      %1005 = vmatpush1.msra.mxu0 0.0
      %1006 = vmatprep.subr.mxu0 0.0
      %1007 = vmatpush1.msra.mxu0 0.0
      %1008 = vmatprep.subr.mxu0 0.0
      %1009 = vmatpush1.msra.mxu0 0.0
      %1010 = vmatprep.subr.mxu0 0.0
      %1011 = vmatpush1.msra.mxu0 0.0
      %1012 = vmatprep.subr.mxu0 0.0
      %1013 = vmatpush1.msra.mxu0 0.0
      %1014 = vmatprep.subr.mxu0 0.0
      %1015 = vmatpush1.msra.mxu0 0.0
      %1016 = vmatprep.subr.mxu0 0.0
      %1017 = vmatpush1.msra.mxu0 0.0
      %1018 = vmatprep.subr.mxu0 0.0
      %1019 = vmatpush1.msra.mxu0 0.0
      %1020 = vmatprep.mubr.f32.mxu0 0.0
      %1021 = vmatmul.mubr.f32.gmra.mrb[0].mxu0 %v487
      %v1022 = vpop.f32.mrb[0].mxu0
      %v1023 = vadd.f32 %v954, %v1022
      %v1024 = vpop.f32.mrb[0].mxu0
      %1025 = vmatprep.mubr.f32.mxu0 0.0
      %1026 = vmatmul.mubr.f32.gmra.mrb[0].mxu0 %v490
      %v1027 = vpop.f32.mrb[0].mxu0
      %v1028 = vadd.f32 %v954, %v1027
      %v1029 = vpop.f32.mrb[0].mxu0
      %1030 = vdwg.mxu0
      %s1031 = scalar_lea.vmem %s2, 160
      %v1032 = vld [vmem:[%s1031] sm:$0xff]
      %v1033 = vld [vmem:[%s1031 + $0x8] sm:$0xff]
      %v1034 = vld [vmem:[%s1031 + $0x10] sm:$0xff]
      %v1035 = vld [vmem:[%s1031 + $0x18] sm:$0xff]
      %s1036 = scalar_lea.vmem %s3, 5
      %v1037 = vld [vmem:[%s1036] sm:$0x1]
      %v1039 = vlaneseq
      %v1040 = vshrl.u32 %v1039, 7
      %v1041 = vsub.s32 0, %v1040
      %v1042 = vrot.slane %v1037, %v1041
      %1044 = vmatprep.subr.mxu0 0.0
      %1045 = vmatpush1.msra.mxu0 %v1032
      %1046 = vmatprep.subr.mxu0 0.0
      %1047 = vmatpush1.msra.mxu0 %v1033
      %1048 = vmatprep.subr.mxu0 0.0
      %1049 = vmatpush1.msra.mxu0 %v1034
      %1050 = vmatprep.subr.mxu0 0.0
      %1051 = vmatpush1.msra.mxu0 %v1035
      %1052 = vmatprep.subr.mxu0 0.0
      %1053 = vmatpush1.msra.mxu0 0.0
      %1054 = vmatprep.subr.mxu0 0.0
      %1055 = vmatpush1.msra.mxu0 0.0
      %1056 = vmatprep.subr.mxu0 0.0
      %1057 = vmatpush1.msra.mxu0 0.0
      %1058 = vmatprep.subr.mxu0 0.0
      %1059 = vmatpush1.msra.mxu0 0.0
      %1060 = vmatprep.subr.mxu0 0.0
      %1061 = vmatpush1.msra.mxu0 0.0
      %1062 = vmatprep.subr.mxu0 0.0
      %1063 = vmatpush1.msra.mxu0 0.0
      %1064 = vmatprep.subr.mxu0 0.0
      %1065 = vmatpush1.msra.mxu0 0.0
      %1066 = vmatprep.subr.mxu0 0.0
      %1067 = vmatpush1.msra.mxu0 0.0
      %1068 = vmatprep.subr.mxu0 0.0
      %1069 = vmatpush1.msra.mxu0 0.0
      %1070 = vmatprep.subr.mxu0 0.0
      %1071 = vmatpush1.msra.mxu0 0.0
      %1072 = vmatprep.subr.mxu0 0.0
      %1073 = vmatpush1.msra.mxu0 0.0
      %1074 = vmatprep.subr.mxu0 0.0
      %1075 = vmatpush1.msra.mxu0 0.0
      %1076 = vmatprep.subr.mxu0 0.0
      %1077 = vmatpush1.msra.mxu0 0.0
      %1078 = vmatprep.subr.mxu0 0.0
      %1079 = vmatpush1.msra.mxu0 0.0
      %1080 = vmatprep.subr.mxu0 0.0
      %1081 = vmatpush1.msra.mxu0 0.0
      %1082 = vmatprep.subr.mxu0 0.0
      %1083 = vmatpush1.msra.mxu0 0.0
      %1084 = vmatprep.subr.mxu0 0.0
      %1085 = vmatpush1.msra.mxu0 0.0
      %1086 = vmatprep.subr.mxu0 0.0
      %1087 = vmatpush1.msra.mxu0 0.0
      %1088 = vmatprep.subr.mxu0 0.0
      %1089 = vmatpush1.msra.mxu0 0.0
      %1090 = vmatprep.subr.mxu0 0.0
      %1091 = vmatpush1.msra.mxu0 0.0
      %1092 = vmatprep.subr.mxu0 0.0
      %1093 = vmatpush1.msra.mxu0 0.0
      %1094 = vmatprep.subr.mxu0 0.0
      %1095 = vmatpush1.msra.mxu0 0.0
      %1096 = vmatprep.subr.mxu0 0.0
      %1097 = vmatpush1.msra.mxu0 0.0
      %1098 = vmatprep.subr.mxu0 0.0
      %1099 = vmatpush1.msra.mxu0 0.0
      %1100 = vmatprep.subr.mxu0 0.0
      %1101 = vmatpush1.msra.mxu0 0.0
      %1102 = vmatprep.subr.mxu0 0.0
      %1103 = vmatpush1.msra.mxu0 0.0
      %1104 = vmatprep.subr.mxu0 0.0
      %1105 = vmatpush1.msra.mxu0 0.0
      %1106 = vmatprep.subr.mxu0 0.0
      %1107 = vmatpush1.msra.mxu0 0.0
      %1108 = vmatprep.mubr.f32.mxu0 0.0
      %1109 = vmatmul.mubr.f32.gmra.mrb[0].mxu0 %v487
      %v1110 = vpop.f32.mrb[0].mxu0
      %v1111 = vadd.f32 %v1042, %v1110
      %v1112 = vpop.f32.mrb[0].mxu0
      %1113 = vmatprep.mubr.f32.mxu0 0.0
      %1114 = vmatmul.mubr.f32.gmra.mrb[0].mxu0 %v490
      %v1115 = vpop.f32.mrb[0].mxu0
      %v1116 = vadd.f32 %v1042, %v1115
      %v1117 = vpop.f32.mrb[0].mxu0
      %1118 = vdwg.mxu0
      %s1119 = scalar_lea.vmem %s2, 288
      %v1120 = vld [vmem:[%s1119] sm:$0xff]
      %v1121 = vld [vmem:[%s1119 + $0x8] sm:$0xff]
      %v1122 = vld [vmem:[%s1119 + $0x10] sm:$0xff]
      %v1123 = vld [vmem:[%s1119 + $0x18] sm:$0xff]
      %s1124 = scalar_lea.vmem %s3, 9
      %v1125 = vld [vmem:[%s1124] sm:$0x1]
      %v1127 = vlaneseq
      %v1128 = vshrl.u32 %v1127, 7
      %v1129 = vsub.s32 0, %v1128
      %v1130 = vrot.slane %v1125, %v1129
      %1132 = vmatprep.subr.mxu0 0.0
      %1133 = vmatpush1.msra.mxu0 %v1120
      %1134 = vmatprep.subr.mxu0 0.0
      %1135 = vmatpush1.msra.mxu0 %v1121
      %1136 = vmatprep.subr.mxu0 0.0
      %1137 = vmatpush1.msra.mxu0 %v1122
      %1138 = vmatprep.subr.mxu0 0.0
      %1139 = vmatpush1.msra.mxu0 %v1123
      %1140 = vmatprep.subr.mxu0 0.0
      %1141 = vmatpush1.msra.mxu0 0.0
      %1142 = vmatprep.subr.mxu0 0.0
      %1143 = vmatpush1.msra.mxu0 0.0
      %1144 = vmatprep.subr.mxu0 0.0
      %1145 = vmatpush1.msra.mxu0 0.0
      %1146 = vmatprep.subr.mxu0 0.0
      %1147 = vmatpush1.msra.mxu0 0.0
      %1148 = vmatprep.subr.mxu0 0.0
      %1149 = vmatpush1.msra.mxu0 0.0
      %1150 = vmatprep.subr.mxu0 0.0
      %1151 = vmatpush1.msra.mxu0 0.0
      %1152 = vmatprep.subr.mxu0 0.0
      %1153 = vmatpush1.msra.mxu0 0.0
      %1154 = vmatprep.subr.mxu0 0.0
      %1155 = vmatpush1.msra.mxu0 0.0
      %1156 = vmatprep.subr.mxu0 0.0
      %1157 = vmatpush1.msra.mxu0 0.0
      %1158 = vmatprep.subr.mxu0 0.0
      %1159 = vmatpush1.msra.mxu0 0.0
      %1160 = vmatprep.subr.mxu0 0.0
      %1161 = vmatpush1.msra.mxu0 0.0
      %1162 = vmatprep.subr.mxu0 0.0
      %1163 = vmatpush1.msra.mxu0 0.0
      %1164 = vmatprep.subr.mxu0 0.0
      %1165 = vmatpush1.msra.mxu0 0.0
      %1166 = vmatprep.subr.mxu0 0.0
      %1167 = vmatpush1.msra.mxu0 0.0
      %1168 = vmatprep.subr.mxu0 0.0
      %1169 = vmatpush1.msra.mxu0 0.0
      %1170 = vmatprep.subr.mxu0 0.0
      %1171 = vmatpush1.msra.mxu0 0.0
      %1172 = vmatprep.subr.mxu0 0.0
      %1173 = vmatpush1.msra.mxu0 0.0
      %1174 = vmatprep.subr.mxu0 0.0
      %1175 = vmatpush1.msra.mxu0 0.0
      %1176 = vmatprep.subr.mxu0 0.0
      %1177 = vmatpush1.msra.mxu0 0.0
      %1178 = vmatprep.subr.mxu0 0.0
      %1179 = vmatpush1.msra.mxu0 0.0
      %1180 = vmatprep.subr.mxu0 0.0
      %1181 = vmatpush1.msra.mxu0 0.0
      %1182 = vmatprep.subr.mxu0 0.0
      %1183 = vmatpush1.msra.mxu0 0.0
      %1184 = vmatprep.subr.mxu0 0.0
      %1185 = vmatpush1.msra.mxu0 0.0
      %1186 = vmatprep.subr.mxu0 0.0
      %1187 = vmatpush1.msra.mxu0 0.0
      %1188 = vmatprep.subr.mxu0 0.0
      %1189 = vmatpush1.msra.mxu0 0.0
      %1190 = vmatprep.subr.mxu0 0.0
      %1191 = vmatpush1.msra.mxu0 0.0
      %1192 = vmatprep.subr.mxu0 0.0
      %1193 = vmatpush1.msra.mxu0 0.0
      %1194 = vmatprep.subr.mxu0 0.0
      %1195 = vmatpush1.msra.mxu0 0.0
      %1196 = vmatprep.mubr.f32.mxu0 0.0
      %1197 = vmatmul.mubr.f32.gmra.mrb[0].mxu0 %v487
      %v1198 = vpop.f32.mrb[0].mxu0
      %v1199 = vadd.f32 %v1130, %v1198
      %v1200 = vpop.f32.mrb[0].mxu0
      %1201 = vmatprep.mubr.f32.mxu0 0.0
      %1202 = vmatmul.mubr.f32.gmra.mrb[0].mxu0 %v490
      %v1203 = vpop.f32.mrb[0].mxu0
      %v1204 = vadd.f32 %v1130, %v1203
      %v1205 = vpop.f32.mrb[0].mxu0
      %1206 = vdwg.mxu0
      %v1208 = vsel %vm743, %v1023, 0
      %v1211 = vsel %vm743, %v1028, 0
      %v1214 = vsel %vm743, %v1111, 0
      %v1217 = vsel %vm743, %v1116, 0
      %1219 = vmatprep.subr.mxu0 0.0
      %1220 = vmatpush1.xpose.msra.mxu0 %v1214
      %1221 = vmatprep.subr.mxu0 0.0
      %1222 = vmatpush1.xpose.msra.mxu0 %v1217
      %1223 = vmatprep.subr.mxu0 0.0
      %1224 = vmatpush1.xpose.msra.mxu0 0.0
      %1225 = vmatprep.subr.mxu0 0.0
      %1226 = vmatpush1.xpose.msra.mxu0 0.0
      %1227 = vmatprep.subr.mxu0 0.0
      %1228 = vmatpush1.xpose.msra.mxu0 0.0
      %1229 = vmatprep.subr.mxu0 0.0
      %1230 = vmatpush1.xpose.msra.mxu0 0.0
      %1231 = vmatprep.subr.mxu0 0.0
      %1232 = vmatpush1.xpose.msra.mxu0 0.0
      %1233 = vmatprep.subr.mxu0 0.0
      %1234 = vmatpush1.xpose.msra.mxu0 0.0
      %1235 = vmatprep.subr.mxu0 0.0
      %1236 = vmatpush1.xpose.msra.mxu0 0.0
      %1237 = vmatprep.subr.mxu0 0.0
      %1238 = vmatpush1.xpose.msra.mxu0 0.0
      %1239 = vmatprep.subr.mxu0 0.0
      %1240 = vmatpush1.xpose.msra.mxu0 0.0
      %1241 = vmatprep.subr.mxu0 0.0
      %1242 = vmatpush1.xpose.msra.mxu0 0.0
      %1243 = vmatprep.subr.mxu0 0.0
      %1244 = vmatpush1.xpose.msra.mxu0 0.0
      %1245 = vmatprep.subr.mxu0 0.0
      %1246 = vmatpush1.xpose.msra.mxu0 0.0
      %1247 = vmatprep.subr.mxu0 0.0
      %1248 = vmatpush1.xpose.msra.mxu0 0.0
      %1249 = vmatprep.subr.mxu0 0.0
      %1250 = vmatpush1.xpose.msra.mxu0 0.0
      %1251 = vmatprep.subr.mxu0 0.0
      %1252 = vmatpush1.xpose.msra.mxu0 0.0
      %1253 = vmatprep.subr.mxu0 0.0
      %1254 = vmatpush1.xpose.msra.mxu0 0.0
      %1255 = vmatprep.subr.mxu0 0.0
      %1256 = vmatpush1.xpose.msra.mxu0 0.0
      %1257 = vmatprep.subr.mxu0 0.0
      %1258 = vmatpush1.xpose.msra.mxu0 0.0
      %1259 = vmatprep.subr.mxu0 0.0
      %1260 = vmatpush1.xpose.msra.mxu0 0.0
      %1261 = vmatprep.subr.mxu0 0.0
      %1262 = vmatpush1.xpose.msra.mxu0 0.0
      %1263 = vmatprep.subr.mxu0 0.0
      %1264 = vmatpush1.xpose.msra.mxu0 0.0
      %1265 = vmatprep.subr.mxu0 0.0
      %1266 = vmatpush1.xpose.msra.mxu0 0.0
      %1267 = vmatprep.subr.mxu0 0.0
      %1268 = vmatpush1.xpose.msra.mxu0 0.0
      %1269 = vmatprep.subr.mxu0 0.0
      %1270 = vmatpush1.xpose.msra.mxu0 0.0
      %1271 = vmatprep.subr.mxu0 0.0
      %1272 = vmatpush1.xpose.msra.mxu0 0.0
      %1273 = vmatprep.subr.mxu0 0.0
      %1274 = vmatpush1.xpose.msra.mxu0 0.0
      %1275 = vmatprep.subr.mxu0 0.0
      %1276 = vmatpush1.xpose.msra.mxu0 0.0
      %1277 = vmatprep.subr.mxu0 0.0
      %1278 = vmatpush1.xpose.msra.mxu0 0.0
      %1279 = vmatprep.subr.mxu0 0.0
      %1280 = vmatpush1.xpose.msra.mxu0 0.0
      %1281 = vmatprep.subr.mxu0 0.0
      %1282 = vmatpush1.xpose.msra.mxu0 0.0
      %1283 = vmatprep.mubr.f32.mxu0 0.0
      %1284 = vmatmul.mubr.f32.gmra.mrb[0].mxu0 %v1208
      %v1285 = vpop.f32.mrb[0].mxu0
      %v1286 = vadd.f32 0.0, %v1285
      %v1287 = vpop.f32.mrb[0].mxu0
      %1288 = vmatprep.mubr.f32.mxu0 0.0
      %1289 = vmatmul.mubr.f32.gmra.mrb[0].mxu0 %v1211
      %v1290 = vpop.f32.mrb[0].mxu0
      %v1291 = vadd.f32 0.0, %v1290
      %v1292 = vpop.f32.mrb[0].mxu0
      %1293 = vdwg.mxu0
      %v1294 = vmul.f32 %v1286, 0.35355338
      %v1295 = vmul.f32 %v1291, 0.35355338
      %v1296 = vsel %vm833, %v1294, -inf
      %1297 = vmax.xlane.f32.xlu0 %v1296
      %v1298 = vpop.xlane.xlu0 %1297
      %v1299 = vsel %vm837, %v1295, -inf
      %1300 = vmax.xlane.f32.xlu0 %v1299
      %v1301 = vpop.xlane.xlu0 %1300
      %v1302 = vsub.f32 %v1294, %v1298
      %v1303 = vsub.f32 %v1295, %v1301
      %v1304 = vmul.f32 %v1302, 1.442695
      %v1305 = vpow.pop %v1304
      %v1306 = vmul.f32 %v1303, 1.442695
      %v1307 = vpow.pop %v1306
      %v1308 = vsel %vm833, %v1305, 0.0
      %1309 = vadd.xlane.f32.xlu0 %v1308
      %v1310 = vpop.xlane.xlu0 %1309
      %v1311 = vsel %vm837, %v1307, 0.0
      %1312 = vadd.xlane.f32.xlu0 %v1311
      %v1313 = vpop.xlane.xlu0 %1312
      %v1314 = vrcp.pop %v1310
      %v1315 = vrcp.pop %v1313
      %v1316 = vmul.f32 %v1305, %v1314
      %v1317 = vmul.f32 %v1307, %v1315
      %v1319 = vsel %vm833, %v1316, 0
      %v1322 = vsel %vm833, %v1317, 0
      %v1325 = vsel %vm863, %v1204, 0
      %1327 = vmatprep.subr.mxu0 0.0
      %1328 = vmatpush1.msra.mxu0 %v1199
      %1329 = vmatprep.subr.mxu0 0.0
      %1330 = vmatpush1.msra.mxu0 %v1325
      %1331 = vmatprep.subr.mxu0 0.0
      %1332 = vmatpush1.msra.mxu0 0.0
      %1333 = vmatprep.subr.mxu0 0.0
      %1334 = vmatpush1.msra.mxu0 0.0
      %1335 = vmatprep.subr.mxu0 0.0
      %1336 = vmatpush1.msra.mxu0 0.0
      %1337 = vmatprep.subr.mxu0 0.0
      %1338 = vmatpush1.msra.mxu0 0.0
      %1339 = vmatprep.subr.mxu0 0.0
      %1340 = vmatpush1.msra.mxu0 0.0
      %1341 = vmatprep.subr.mxu0 0.0
      %1342 = vmatpush1.msra.mxu0 0.0
      %1343 = vmatprep.subr.mxu0 0.0
      %1344 = vmatpush1.msra.mxu0 0.0
      %1345 = vmatprep.subr.mxu0 0.0
      %1346 = vmatpush1.msra.mxu0 0.0
      %1347 = vmatprep.subr.mxu0 0.0
      %1348 = vmatpush1.msra.mxu0 0.0
      %1349 = vmatprep.subr.mxu0 0.0
      %1350 = vmatpush1.msra.mxu0 0.0
      %1351 = vmatprep.subr.mxu0 0.0
      %1352 = vmatpush1.msra.mxu0 0.0
      %1353 = vmatprep.subr.mxu0 0.0
      %1354 = vmatpush1.msra.mxu0 0.0
      %1355 = vmatprep.subr.mxu0 0.0
      %1356 = vmatpush1.msra.mxu0 0.0
      %1357 = vmatprep.subr.mxu0 0.0
      %1358 = vmatpush1.msra.mxu0 0.0
      %1359 = vmatprep.subr.mxu0 0.0
      %1360 = vmatpush1.msra.mxu0 0.0
      %1361 = vmatprep.subr.mxu0 0.0
      %1362 = vmatpush1.msra.mxu0 0.0
      %1363 = vmatprep.subr.mxu0 0.0
      %1364 = vmatpush1.msra.mxu0 0.0
      %1365 = vmatprep.subr.mxu0 0.0
      %1366 = vmatpush1.msra.mxu0 0.0
      %1367 = vmatprep.subr.mxu0 0.0
      %1368 = vmatpush1.msra.mxu0 0.0
      %1369 = vmatprep.subr.mxu0 0.0
      %1370 = vmatpush1.msra.mxu0 0.0
      %1371 = vmatprep.subr.mxu0 0.0
      %1372 = vmatpush1.msra.mxu0 0.0
      %1373 = vmatprep.subr.mxu0 0.0
      %1374 = vmatpush1.msra.mxu0 0.0
      %1375 = vmatprep.subr.mxu0 0.0
      %1376 = vmatpush1.msra.mxu0 0.0
      %1377 = vmatprep.subr.mxu0 0.0
      %1378 = vmatpush1.msra.mxu0 0.0
      %1379 = vmatprep.subr.mxu0 0.0
      %1380 = vmatpush1.msra.mxu0 0.0
      %1381 = vmatprep.subr.mxu0 0.0
      %1382 = vmatpush1.msra.mxu0 0.0
      %1383 = vmatprep.subr.mxu0 0.0
      %1384 = vmatpush1.msra.mxu0 0.0
      %1385 = vmatprep.subr.mxu0 0.0
      %1386 = vmatpush1.msra.mxu0 0.0
      %1387 = vmatprep.subr.mxu0 0.0
      %1388 = vmatpush1.msra.mxu0 0.0
      %1389 = vmatprep.subr.mxu0 0.0
      %1390 = vmatpush1.msra.mxu0 0.0
      %1391 = vmatprep.mubr.f32.mxu0 0.0
      %1392 = vmatmul.mubr.f32.gmra.mrb[0].mxu0 %v1319
      %v1393 = vpop.f32.mrb[0].mxu0
      %v1394 = vadd.f32 0.0, %v1393
      %v1395 = vpop.f32.mrb[0].mxu0
      %1396 = vmatprep.mubr.f32.mxu0 0.0
      %1397 = vmatmul.mubr.f32.gmra.mrb[0].mxu0 %v1322
      %v1398 = vpop.f32.mrb[0].mxu0
      %v1399 = vadd.f32 0.0, %v1398
      %v1400 = vpop.f32.mrb[0].mxu0
      %1401 = vdwg.mxu0
      %s1402 = scalar_lea.vmem %s4, 8
      %v1403 = vld [vmem:[%s1402] sm:$0xff]
      %v1405 = vsel %vm743, %v1394, 0
      %v1408 = vsel %vm743, %v1399, 0
      %1410 = vmatprep.subr.mxu0 0.0
      %1411 = vmatpush1.msra.mxu0 %v1403
      %1412 = vmatprep.subr.mxu0 0.0
      %1413 = vmatpush1.msra.mxu0 0.0
      %1414 = vmatprep.subr.mxu0 0.0
      %1415 = vmatpush1.msra.mxu0 0.0
      %1416 = vmatprep.subr.mxu0 0.0
      %1417 = vmatpush1.msra.mxu0 0.0
      %1418 = vmatprep.subr.mxu0 0.0
      %1419 = vmatpush1.msra.mxu0 0.0
      %1420 = vmatprep.subr.mxu0 0.0
      %1421 = vmatpush1.msra.mxu0 0.0
      %1422 = vmatprep.subr.mxu0 0.0
      %1423 = vmatpush1.msra.mxu0 0.0
      %1424 = vmatprep.subr.mxu0 0.0
      %1425 = vmatpush1.msra.mxu0 0.0
      %1426 = vmatprep.subr.mxu0 0.0
      %1427 = vmatpush1.msra.mxu0 0.0
      %1428 = vmatprep.subr.mxu0 0.0
      %1429 = vmatpush1.msra.mxu0 0.0
      %1430 = vmatprep.subr.mxu0 0.0
      %1431 = vmatpush1.msra.mxu0 0.0
      %1432 = vmatprep.subr.mxu0 0.0
      %1433 = vmatpush1.msra.mxu0 0.0
      %1434 = vmatprep.subr.mxu0 0.0
      %1435 = vmatpush1.msra.mxu0 0.0
      %1436 = vmatprep.subr.mxu0 0.0
      %1437 = vmatpush1.msra.mxu0 0.0
      %1438 = vmatprep.subr.mxu0 0.0
      %1439 = vmatpush1.msra.mxu0 0.0
      %1440 = vmatprep.subr.mxu0 0.0
      %1441 = vmatpush1.msra.mxu0 0.0
      %1442 = vmatprep.subr.mxu0 0.0
      %1443 = vmatpush1.msra.mxu0 0.0
      %1444 = vmatprep.subr.mxu0 0.0
      %1445 = vmatpush1.msra.mxu0 0.0
      %1446 = vmatprep.subr.mxu0 0.0
      %1447 = vmatpush1.msra.mxu0 0.0
      %1448 = vmatprep.subr.mxu0 0.0
      %1449 = vmatpush1.msra.mxu0 0.0
      %1450 = vmatprep.subr.mxu0 0.0
      %1451 = vmatpush1.msra.mxu0 0.0
      %1452 = vmatprep.subr.mxu0 0.0
      %1453 = vmatpush1.msra.mxu0 0.0
      %1454 = vmatprep.subr.mxu0 0.0
      %1455 = vmatpush1.msra.mxu0 0.0
      %1456 = vmatprep.subr.mxu0 0.0
      %1457 = vmatpush1.msra.mxu0 0.0
      %1458 = vmatprep.subr.mxu0 0.0
      %1459 = vmatpush1.msra.mxu0 0.0
      %1460 = vmatprep.subr.mxu0 0.0
      %1461 = vmatpush1.msra.mxu0 0.0
      %1462 = vmatprep.subr.mxu0 0.0
      %1463 = vmatpush1.msra.mxu0 0.0
      %1464 = vmatprep.subr.mxu0 0.0
      %1465 = vmatpush1.msra.mxu0 0.0
      %1466 = vmatprep.subr.mxu0 0.0
      %1467 = vmatpush1.msra.mxu0 0.0
      %1468 = vmatprep.subr.mxu0 0.0
      %1469 = vmatpush1.msra.mxu0 0.0
      %1470 = vmatprep.subr.mxu0 0.0
      %1471 = vmatpush1.msra.mxu0 0.0
      %1472 = vmatprep.subr.mxu0 0.0
      %1473 = vmatpush1.msra.mxu0 0.0
      %1474 = vmatprep.mubr.f32.mxu0 0.0
      %1475 = vmatmul.mubr.f32.gmra.mrb[0].mxu0 %v1405
      %v1476 = vpop.f32.mrb[0].mxu0
      %v1477 = vadd.f32 0.0, %v1476
      %v1478 = vpop.f32.mrb[0].mxu0
      %1479 = vmatprep.mubr.f32.mxu0 0.0
      %1480 = vmatmul.mubr.f32.gmra.mrb[0].mxu0 %v1408
      %v1481 = vpop.f32.mrb[0].mxu0
      %v1482 = vadd.f32 0.0, %v1481
      %v1483 = vpop.f32.mrb[0].mxu0
      %1484 = vdwg.mxu0
      %v1486 = vsel %vm743, %v934, 0
      %v1489 = vsel %vm743, %v939, 0
      %1491 = vmatprep.subr.mxu0 0.0
      %1492 = vmatpush1.msra.mxu0 %v942
      %1493 = vmatprep.subr.mxu0 0.0
      %1494 = vmatpush1.msra.mxu0 0.0
      %1495 = vmatprep.subr.mxu0 0.0
      %1496 = vmatpush1.msra.mxu0 0.0
      %1497 = vmatprep.subr.mxu0 0.0
      %1498 = vmatpush1.msra.mxu0 0.0
      %1499 = vmatprep.subr.mxu0 0.0
      %1500 = vmatpush1.msra.mxu0 0.0
      %1501 = vmatprep.subr.mxu0 0.0
      %1502 = vmatpush1.msra.mxu0 0.0
      %1503 = vmatprep.subr.mxu0 0.0
      %1504 = vmatpush1.msra.mxu0 0.0
      %1505 = vmatprep.subr.mxu0 0.0
      %1506 = vmatpush1.msra.mxu0 0.0
      %1507 = vmatprep.subr.mxu0 0.0
      %1508 = vmatpush1.msra.mxu0 0.0
      %1509 = vmatprep.subr.mxu0 0.0
      %1510 = vmatpush1.msra.mxu0 0.0
      %1511 = vmatprep.subr.mxu0 0.0
      %1512 = vmatpush1.msra.mxu0 0.0
      %1513 = vmatprep.subr.mxu0 0.0
      %1514 = vmatpush1.msra.mxu0 0.0
      %1515 = vmatprep.subr.mxu0 0.0
      %1516 = vmatpush1.msra.mxu0 0.0
      %1517 = vmatprep.subr.mxu0 0.0
      %1518 = vmatpush1.msra.mxu0 0.0
      %1519 = vmatprep.subr.mxu0 0.0
      %1520 = vmatpush1.msra.mxu0 0.0
      %1521 = vmatprep.subr.mxu0 0.0
      %1522 = vmatpush1.msra.mxu0 0.0
      %1523 = vmatprep.subr.mxu0 0.0
      %1524 = vmatpush1.msra.mxu0 0.0
      %1525 = vmatprep.subr.mxu0 0.0
      %1526 = vmatpush1.msra.mxu0 0.0
      %1527 = vmatprep.subr.mxu0 0.0
      %1528 = vmatpush1.msra.mxu0 0.0
      %1529 = vmatprep.subr.mxu0 0.0
      %1530 = vmatpush1.msra.mxu0 0.0
      %1531 = vmatprep.subr.mxu0 0.0
      %1532 = vmatpush1.msra.mxu0 0.0
      %1533 = vmatprep.subr.mxu0 0.0
      %1534 = vmatpush1.msra.mxu0 0.0
      %1535 = vmatprep.subr.mxu0 0.0
      %1536 = vmatpush1.msra.mxu0 0.0
      %1537 = vmatprep.subr.mxu0 0.0
      %1538 = vmatpush1.msra.mxu0 0.0
      %1539 = vmatprep.subr.mxu0 0.0
      %1540 = vmatpush1.msra.mxu0 0.0
      %1541 = vmatprep.subr.mxu0 0.0
      %1542 = vmatpush1.msra.mxu0 0.0
      %1543 = vmatprep.subr.mxu0 0.0
      %1544 = vmatpush1.msra.mxu0 0.0
      %1545 = vmatprep.subr.mxu0 0.0
      %1546 = vmatpush1.msra.mxu0 0.0
      %1547 = vmatprep.subr.mxu0 0.0
      %1548 = vmatpush1.msra.mxu0 0.0
      %1549 = vmatprep.subr.mxu0 0.0
      %1550 = vmatpush1.msra.mxu0 0.0
      %1551 = vmatprep.subr.mxu0 0.0
      %1552 = vmatpush1.msra.mxu0 0.0
      %1553 = vmatprep.subr.mxu0 0.0
      %1554 = vmatpush1.msra.mxu0 0.0
      %1555 = vmatprep.mubr.f32.mxu0 0.0
      %1556 = vmatmul.mubr.f32.gmra.mrb[0].mxu0 %v1486
      %v1557 = vpop.f32.mrb[0].mxu0
      %v1558 = vadd.f32 %v1477, %v1557
      %v1559 = vpop.f32.mrb[0].mxu0
      %1560 = vmatprep.mubr.f32.mxu0 0.0
      %1561 = vmatmul.mubr.f32.gmra.mrb[0].mxu0 %v1489
      %v1562 = vpop.f32.mrb[0].mxu0
      %v1563 = vadd.f32 %v1482, %v1562
      %v1564 = vpop.f32.mrb[0].mxu0
      %1565 = vdwg.mxu0
      %s1566 = scalar_lea.vmem %s2, 64
      %v1567 = vld [vmem:[%s1566] sm:$0xff]
      %v1568 = vld [vmem:[%s1566 + $0x8] sm:$0xff]
      %v1569 = vld [vmem:[%s1566 + $0x10] sm:$0xff]
      %v1570 = vld [vmem:[%s1566 + $0x18] sm:$0xff]
      %s1571 = scalar_lea.vmem %s3, 2
      %v1572 = vld [vmem:[%s1571] sm:$0x1]
      %v1574 = vlaneseq
      %v1575 = vshrl.u32 %v1574, 7
      %v1576 = vsub.s32 0, %v1575
      %v1577 = vrot.slane %v1572, %v1576
      %1579 = vmatprep.subr.mxu0 0.0
      %1580 = vmatpush1.msra.mxu0 %v1567
      %1581 = vmatprep.subr.mxu0 0.0
      %1582 = vmatpush1.msra.mxu0 %v1568
      %1583 = vmatprep.subr.mxu0 0.0
      %1584 = vmatpush1.msra.mxu0 %v1569
      %1585 = vmatprep.subr.mxu0 0.0
      %1586 = vmatpush1.msra.mxu0 %v1570
      %1587 = vmatprep.subr.mxu0 0.0
      %1588 = vmatpush1.msra.mxu0 0.0
      %1589 = vmatprep.subr.mxu0 0.0
      %1590 = vmatpush1.msra.mxu0 0.0
      %1591 = vmatprep.subr.mxu0 0.0
      %1592 = vmatpush1.msra.mxu0 0.0
      %1593 = vmatprep.subr.mxu0 0.0
      %1594 = vmatpush1.msra.mxu0 0.0
      %1595 = vmatprep.subr.mxu0 0.0
      %1596 = vmatpush1.msra.mxu0 0.0
      %1597 = vmatprep.subr.mxu0 0.0
      %1598 = vmatpush1.msra.mxu0 0.0
      %1599 = vmatprep.subr.mxu0 0.0
      %1600 = vmatpush1.msra.mxu0 0.0
      %1601 = vmatprep.subr.mxu0 0.0
      %1602 = vmatpush1.msra.mxu0 0.0
      %1603 = vmatprep.subr.mxu0 0.0
      %1604 = vmatpush1.msra.mxu0 0.0
      %1605 = vmatprep.subr.mxu0 0.0
      %1606 = vmatpush1.msra.mxu0 0.0
      %1607 = vmatprep.subr.mxu0 0.0
      %1608 = vmatpush1.msra.mxu0 0.0
      %1609 = vmatprep.subr.mxu0 0.0
      %1610 = vmatpush1.msra.mxu0 0.0
      %1611 = vmatprep.subr.mxu0 0.0
      %1612 = vmatpush1.msra.mxu0 0.0
      %1613 = vmatprep.subr.mxu0 0.0
      %1614 = vmatpush1.msra.mxu0 0.0
      %1615 = vmatprep.subr.mxu0 0.0
      %1616 = vmatpush1.msra.mxu0 0.0
      %1617 = vmatprep.subr.mxu0 0.0
      %1618 = vmatpush1.msra.mxu0 0.0
      %1619 = vmatprep.subr.mxu0 0.0
      %1620 = vmatpush1.msra.mxu0 0.0
      %1621 = vmatprep.subr.mxu0 0.0
      %1622 = vmatpush1.msra.mxu0 0.0
      %1623 = vmatprep.subr.mxu0 0.0
      %1624 = vmatpush1.msra.mxu0 0.0
      %1625 = vmatprep.subr.mxu0 0.0
      %1626 = vmatpush1.msra.mxu0 0.0
      %1627 = vmatprep.subr.mxu0 0.0
      %1628 = vmatpush1.msra.mxu0 0.0
      %1629 = vmatprep.subr.mxu0 0.0
      %1630 = vmatpush1.msra.mxu0 0.0
      %1631 = vmatprep.subr.mxu0 0.0
      %1632 = vmatpush1.msra.mxu0 0.0
      %1633 = vmatprep.subr.mxu0 0.0
      %1634 = vmatpush1.msra.mxu0 0.0
      %1635 = vmatprep.subr.mxu0 0.0
      %1636 = vmatpush1.msra.mxu0 0.0
      %1637 = vmatprep.subr.mxu0 0.0
      %1638 = vmatpush1.msra.mxu0 0.0
      %1639 = vmatprep.subr.mxu0 0.0
      %1640 = vmatpush1.msra.mxu0 0.0
      %1641 = vmatprep.subr.mxu0 0.0
      %1642 = vmatpush1.msra.mxu0 0.0
      %1643 = vmatprep.mubr.f32.mxu0 0.0
      %1644 = vmatmul.mubr.f32.gmra.mrb[0].mxu0 %v487
      %v1645 = vpop.f32.mrb[0].mxu0
      %v1646 = vadd.f32 %v1577, %v1645
      %v1647 = vpop.f32.mrb[0].mxu0
      %1648 = vmatprep.mubr.f32.mxu0 0.0
      %1649 = vmatmul.mubr.f32.gmra.mrb[0].mxu0 %v490
      %v1650 = vpop.f32.mrb[0].mxu0
      %v1651 = vadd.f32 %v1577, %v1650
      %v1652 = vpop.f32.mrb[0].mxu0
      %1653 = vdwg.mxu0
      %s1654 = scalar_lea.vmem %s2, 192
      %v1655 = vld [vmem:[%s1654] sm:$0xff]
      %v1656 = vld [vmem:[%s1654 + $0x8] sm:$0xff]
      %v1657 = vld [vmem:[%s1654 + $0x10] sm:$0xff]
      %v1658 = vld [vmem:[%s1654 + $0x18] sm:$0xff]
      %s1659 = scalar_lea.vmem %s3, 6
      %v1660 = vld [vmem:[%s1659] sm:$0x1]
      %v1662 = vlaneseq
      %v1663 = vshrl.u32 %v1662, 7
      %v1664 = vsub.s32 0, %v1663
      %v1665 = vrot.slane %v1660, %v1664
      %1667 = vmatprep.subr.mxu0 0.0
      %1668 = vmatpush1.msra.mxu0 %v1655
      %1669 = vmatprep.subr.mxu0 0.0
      %1670 = vmatpush1.msra.mxu0 %v1656
      %1671 = vmatprep.subr.mxu0 0.0
      %1672 = vmatpush1.msra.mxu0 %v1657
      %1673 = vmatprep.subr.mxu0 0.0
      %1674 = vmatpush1.msra.mxu0 %v1658
      %1675 = vmatprep.subr.mxu0 0.0
      %1676 = vmatpush1.msra.mxu0 0.0
      %1677 = vmatprep.subr.mxu0 0.0
      %1678 = vmatpush1.msra.mxu0 0.0
      %1679 = vmatprep.subr.mxu0 0.0
      %1680 = vmatpush1.msra.mxu0 0.0
      %1681 = vmatprep.subr.mxu0 0.0
      %1682 = vmatpush1.msra.mxu0 0.0
      %1683 = vmatprep.subr.mxu0 0.0
      %1684 = vmatpush1.msra.mxu0 0.0
      %1685 = vmatprep.subr.mxu0 0.0
      %1686 = vmatpush1.msra.mxu0 0.0
      %1687 = vmatprep.subr.mxu0 0.0
      %1688 = vmatpush1.msra.mxu0 0.0
      %1689 = vmatprep.subr.mxu0 0.0
      %1690 = vmatpush1.msra.mxu0 0.0
      %1691 = vmatprep.subr.mxu0 0.0
      %1692 = vmatpush1.msra.mxu0 0.0
      %1693 = vmatprep.subr.mxu0 0.0
      %1694 = vmatpush1.msra.mxu0 0.0
      %1695 = vmatprep.subr.mxu0 0.0
      %1696 = vmatpush1.msra.mxu0 0.0
      %1697 = vmatprep.subr.mxu0 0.0
      %1698 = vmatpush1.msra.mxu0 0.0
      %1699 = vmatprep.subr.mxu0 0.0
      %1700 = vmatpush1.msra.mxu0 0.0
      %1701 = vmatprep.subr.mxu0 0.0
      %1702 = vmatpush1.msra.mxu0 0.0
      %1703 = vmatprep.subr.mxu0 0.0
      %1704 = vmatpush1.msra.mxu0 0.0
      %1705 = vmatprep.subr.mxu0 0.0
      %1706 = vmatpush1.msra.mxu0 0.0
      %1707 = vmatprep.subr.mxu0 0.0
      %1708 = vmatpush1.msra.mxu0 0.0
      %1709 = vmatprep.subr.mxu0 0.0
      %1710 = vmatpush1.msra.mxu0 0.0
      %1711 = vmatprep.subr.mxu0 0.0
      %1712 = vmatpush1.msra.mxu0 0.0
      %1713 = vmatprep.subr.mxu0 0.0
      %1714 = vmatpush1.msra.mxu0 0.0
      %1715 = vmatprep.subr.mxu0 0.0
      %1716 = vmatpush1.msra.mxu0 0.0
      %1717 = vmatprep.subr.mxu0 0.0
      %1718 = vmatpush1.msra.mxu0 0.0
      %1719 = vmatprep.subr.mxu0 0.0
      %1720 = vmatpush1.msra.mxu0 0.0
      %1721 = vmatprep.subr.mxu0 0.0
      %1722 = vmatpush1.msra.mxu0 0.0
      %1723 = vmatprep.subr.mxu0 0.0
      %1724 = vmatpush1.msra.mxu0 0.0
      %1725 = vmatprep.subr.mxu0 0.0
      %1726 = vmatpush1.msra.mxu0 0.0
      %1727 = vmatprep.subr.mxu0 0.0
      %1728 = vmatpush1.msra.mxu0 0.0
      %1729 = vmatprep.subr.mxu0 0.0
      %1730 = vmatpush1.msra.mxu0 0.0
      %1731 = vmatprep.mubr.f32.mxu0 0.0
      %1732 = vmatmul.mubr.f32.gmra.mrb[0].mxu0 %v487
      %v1733 = vpop.f32.mrb[0].mxu0
      %v1734 = vadd.f32 %v1665, %v1733
      %v1735 = vpop.f32.mrb[0].mxu0
      %1736 = vmatprep.mubr.f32.mxu0 0.0
      %1737 = vmatmul.mubr.f32.gmra.mrb[0].mxu0 %v490
      %v1738 = vpop.f32.mrb[0].mxu0
      %v1739 = vadd.f32 %v1665, %v1738
      %v1740 = vpop.f32.mrb[0].mxu0
      %1741 = vdwg.mxu0
      %s1742 = scalar_lea.vmem %s2, 320
      %v1743 = vld [vmem:[%s1742] sm:$0xff]
      %v1744 = vld [vmem:[%s1742 + $0x8] sm:$0xff]
      %v1745 = vld [vmem:[%s1742 + $0x10] sm:$0xff]
      %v1746 = vld [vmem:[%s1742 + $0x18] sm:$0xff]
      %s1747 = scalar_lea.vmem %s3, 10
      %v1748 = vld [vmem:[%s1747] sm:$0x1]
      %v1750 = vlaneseq
      %v1751 = vshrl.u32 %v1750, 7
      %v1752 = vsub.s32 0, %v1751
      %v1753 = vrot.slane %v1748, %v1752
      %1755 = vmatprep.subr.mxu0 0.0
      %1756 = vmatpush1.msra.mxu0 %v1743
      %1757 = vmatprep.subr.mxu0 0.0
      %1758 = vmatpush1.msra.mxu0 %v1744
      %1759 = vmatprep.subr.mxu0 0.0
      %1760 = vmatpush1.msra.mxu0 %v1745
      %1761 = vmatprep.subr.mxu0 0.0
      %1762 = vmatpush1.msra.mxu0 %v1746
      %1763 = vmatprep.subr.mxu0 0.0
      %1764 = vmatpush1.msra.mxu0 0.0
      %1765 = vmatprep.subr.mxu0 0.0
      %1766 = vmatpush1.msra.mxu0 0.0
      %1767 = vmatprep.subr.mxu0 0.0
      %1768 = vmatpush1.msra.mxu0 0.0
      %1769 = vmatprep.subr.mxu0 0.0
      %1770 = vmatpush1.msra.mxu0 0.0
      %1771 = vmatprep.subr.mxu0 0.0
      %1772 = vmatpush1.msra.mxu0 0.0
      %1773 = vmatprep.subr.mxu0 0.0
      %1774 = vmatpush1.msra.mxu0 0.0
      %1775 = vmatprep.subr.mxu0 0.0
      %1776 = vmatpush1.msra.mxu0 0.0
      %1777 = vmatprep.subr.mxu0 0.0
      %1778 = vmatpush1.msra.mxu0 0.0
      %1779 = vmatprep.subr.mxu0 0.0
      %1780 = vmatpush1.msra.mxu0 0.0
      %1781 = vmatprep.subr.mxu0 0.0
      %1782 = vmatpush1.msra.mxu0 0.0
      %1783 = vmatprep.subr.mxu0 0.0
      %1784 = vmatpush1.msra.mxu0 0.0
      %1785 = vmatprep.subr.mxu0 0.0
      %1786 = vmatpush1.msra.mxu0 0.0
      %1787 = vmatprep.subr.mxu0 0.0
      %1788 = vmatpush1.msra.mxu0 0.0
      %1789 = vmatprep.subr.mxu0 0.0
      %1790 = vmatpush1.msra.mxu0 0.0
      %1791 = vmatprep.subr.mxu0 0.0
      %1792 = vmatpush1.msra.mxu0 0.0
      %1793 = vmatprep.subr.mxu0 0.0
      %1794 = vmatpush1.msra.mxu0 0.0
      %1795 = vmatprep.subr.mxu0 0.0
      %1796 = vmatpush1.msra.mxu0 0.0
      %1797 = vmatprep.subr.mxu0 0.0
      %1798 = vmatpush1.msra.mxu0 0.0
      %1799 = vmatprep.subr.mxu0 0.0
      %1800 = vmatpush1.msra.mxu0 0.0
      %1801 = vmatprep.subr.mxu0 0.0
      %1802 = vmatpush1.msra.mxu0 0.0
      %1803 = vmatprep.subr.mxu0 0.0
      %1804 = vmatpush1.msra.mxu0 0.0
      %1805 = vmatprep.subr.mxu0 0.0
      %1806 = vmatpush1.msra.mxu0 0.0
      %1807 = vmatprep.subr.mxu0 0.0
      %1808 = vmatpush1.msra.mxu0 0.0
      %1809 = vmatprep.subr.mxu0 0.0
      %1810 = vmatpush1.msra.mxu0 0.0
      %1811 = vmatprep.subr.mxu0 0.0
      %1812 = vmatpush1.msra.mxu0 0.0
      %1813 = vmatprep.subr.mxu0 0.0
      %1814 = vmatpush1.msra.mxu0 0.0
      %1815 = vmatprep.subr.mxu0 0.0
      %1816 = vmatpush1.msra.mxu0 0.0
      %1817 = vmatprep.subr.mxu0 0.0
      %1818 = vmatpush1.msra.mxu0 0.0
      %1819 = vmatprep.mubr.f32.mxu0 0.0
      %1820 = vmatmul.mubr.f32.gmra.mrb[0].mxu0 %v487
      %v1821 = vpop.f32.mrb[0].mxu0
      %v1822 = vadd.f32 %v1753, %v1821
      %v1823 = vpop.f32.mrb[0].mxu0
      %1824 = vmatprep.mubr.f32.mxu0 0.0
      %1825 = vmatmul.mubr.f32.gmra.mrb[0].mxu0 %v490
      %v1826 = vpop.f32.mrb[0].mxu0
      %v1827 = vadd.f32 %v1753, %v1826
      %v1828 = vpop.f32.mrb[0].mxu0
      %1829 = vdwg.mxu0
      %v1831 = vsel %vm743, %v1646, 0
      %v1834 = vsel %vm743, %v1651, 0
      %v1837 = vsel %vm743, %v1734, 0
      %v1840 = vsel %vm743, %v1739, 0
      %1842 = vmatprep.subr.mxu0 0.0
      %1843 = vmatpush1.xpose.msra.mxu0 %v1837
      %1844 = vmatprep.subr.mxu0 0.0
      %1845 = vmatpush1.xpose.msra.mxu0 %v1840
      %1846 = vmatprep.subr.mxu0 0.0
      %1847 = vmatpush1.xpose.msra.mxu0 0.0
      %1848 = vmatprep.subr.mxu0 0.0
      %1849 = vmatpush1.xpose.msra.mxu0 0.0
      %1850 = vmatprep.subr.mxu0 0.0
      %1851 = vmatpush1.xpose.msra.mxu0 0.0
      %1852 = vmatprep.subr.mxu0 0.0
      %1853 = vmatpush1.xpose.msra.mxu0 0.0
      %1854 = vmatprep.subr.mxu0 0.0
      %1855 = vmatpush1.xpose.msra.mxu0 0.0
      %1856 = vmatprep.subr.mxu0 0.0
      %1857 = vmatpush1.xpose.msra.mxu0 0.0
      %1858 = vmatprep.subr.mxu0 0.0
      %1859 = vmatpush1.xpose.msra.mxu0 0.0
      %1860 = vmatprep.subr.mxu0 0.0
      %1861 = vmatpush1.xpose.msra.mxu0 0.0
      %1862 = vmatprep.subr.mxu0 0.0
      %1863 = vmatpush1.xpose.msra.mxu0 0.0
      %1864 = vmatprep.subr.mxu0 0.0
      %1865 = vmatpush1.xpose.msra.mxu0 0.0
      %1866 = vmatprep.subr.mxu0 0.0
      %1867 = vmatpush1.xpose.msra.mxu0 0.0
      %1868 = vmatprep.subr.mxu0 0.0
      %1869 = vmatpush1.xpose.msra.mxu0 0.0
      %1870 = vmatprep.subr.mxu0 0.0
      %1871 = vmatpush1.xpose.msra.mxu0 0.0
      %1872 = vmatprep.subr.mxu0 0.0
      %1873 = vmatpush1.xpose.msra.mxu0 0.0
      %1874 = vmatprep.subr.mxu0 0.0
      %1875 = vmatpush1.xpose.msra.mxu0 0.0
      %1876 = vmatprep.subr.mxu0 0.0
      %1877 = vmatpush1.xpose.msra.mxu0 0.0
      %1878 = vmatprep.subr.mxu0 0.0
      %1879 = vmatpush1.xpose.msra.mxu0 0.0
      %1880 = vmatprep.subr.mxu0 0.0
      %1881 = vmatpush1.xpose.msra.mxu0 0.0
      %1882 = vmatprep.subr.mxu0 0.0
      %1883 = vmatpush1.xpose.msra.mxu0 0.0
      %1884 = vmatprep.subr.mxu0 0.0
      %1885 = vmatpush1.xpose.msra.mxu0 0.0
      %1886 = vmatprep.subr.mxu0 0.0
      %1887 = vmatpush1.xpose.msra.mxu0 0.0
      %1888 = vmatprep.subr.mxu0 0.0
      %1889 = vmatpush1.xpose.msra.mxu0 0.0
      %1890 = vmatprep.subr.mxu0 0.0
      %1891 = vmatpush1.xpose.msra.mxu0 0.0
      %1892 = vmatprep.subr.mxu0 0.0
      %1893 = vmatpush1.xpose.msra.mxu0 0.0
      %1894 = vmatprep.subr.mxu0 0.0
      %1895 = vmatpush1.xpose.msra.mxu0 0.0
      %1896 = vmatprep.subr.mxu0 0.0
      %1897 = vmatpush1.xpose.msra.mxu0 0.0
      %1898 = vmatprep.subr.mxu0 0.0
      %1899 = vmatpush1.xpose.msra.mxu0 0.0
      %1900 = vmatprep.subr.mxu0 0.0
      %1901 = vmatpush1.xpose.msra.mxu0 0.0
      %1902 = vmatprep.subr.mxu0 0.0
      %1903 = vmatpush1.xpose.msra.mxu0 0.0
      %1904 = vmatprep.subr.mxu0 0.0
      %1905 = vmatpush1.xpose.msra.mxu0 0.0
      %1906 = vmatprep.mubr.f32.mxu0 0.0
      %1907 = vmatmul.mubr.f32.gmra.mrb[0].mxu0 %v1831
      %v1908 = vpop.f32.mrb[0].mxu0
      %v1909 = vadd.f32 0.0, %v1908
      %v1910 = vpop.f32.mrb[0].mxu0
      %1911 = vmatprep.mubr.f32.mxu0 0.0
      %1912 = vmatmul.mubr.f32.gmra.mrb[0].mxu0 %v1834
      %v1913 = vpop.f32.mrb[0].mxu0
      %v1914 = vadd.f32 0.0, %v1913
      %v1915 = vpop.f32.mrb[0].mxu0
      %1916 = vdwg.mxu0
      %v1917 = vmul.f32 %v1909, 0.35355338
      %v1918 = vmul.f32 %v1914, 0.35355338
      %v1919 = vsel %vm833, %v1917, -inf
      %1920 = vmax.xlane.f32.xlu0 %v1919
      %v1921 = vpop.xlane.xlu0 %1920
      %v1922 = vsel %vm837, %v1918, -inf
      %1923 = vmax.xlane.f32.xlu0 %v1922
      %v1924 = vpop.xlane.xlu0 %1923
      %v1925 = vsub.f32 %v1917, %v1921
      %v1926 = vsub.f32 %v1918, %v1924
      %v1927 = vmul.f32 %v1925, 1.442695
      %v1928 = vpow.pop %v1927
      %v1929 = vmul.f32 %v1926, 1.442695
      %v1930 = vpow.pop %v1929
      %v1931 = vsel %vm833, %v1928, 0.0
      %1932 = vadd.xlane.f32.xlu0 %v1931
      %v1933 = vpop.xlane.xlu0 %1932
      %v1934 = vsel %vm837, %v1930, 0.0
      %1935 = vadd.xlane.f32.xlu0 %v1934
      %v1936 = vpop.xlane.xlu0 %1935
      %v1937 = vrcp.pop %v1933
      %v1938 = vrcp.pop %v1936
      %v1939 = vmul.f32 %v1928, %v1937
      %v1940 = vmul.f32 %v1930, %v1938
      %v1942 = vsel %vm833, %v1939, 0
      %v1945 = vsel %vm833, %v1940, 0
      %v1948 = vsel %vm863, %v1827, 0
      %1950 = vmatprep.subr.mxu0 0.0
      %1951 = vmatpush1.msra.mxu0 %v1822
      %1952 = vmatprep.subr.mxu0 0.0
      %1953 = vmatpush1.msra.mxu0 %v1948
      %1954 = vmatprep.subr.mxu0 0.0
      %1955 = vmatpush1.msra.mxu0 0.0
      %1956 = vmatprep.subr.mxu0 0.0
      %1957 = vmatpush1.msra.mxu0 0.0
      %1958 = vmatprep.subr.mxu0 0.0
      %1959 = vmatpush1.msra.mxu0 0.0
      %1960 = vmatprep.subr.mxu0 0.0
      %1961 = vmatpush1.msra.mxu0 0.0
      %1962 = vmatprep.subr.mxu0 0.0
      %1963 = vmatpush1.msra.mxu0 0.0
      %1964 = vmatprep.subr.mxu0 0.0
      %1965 = vmatpush1.msra.mxu0 0.0
      %1966 = vmatprep.subr.mxu0 0.0
      %1967 = vmatpush1.msra.mxu0 0.0
      %1968 = vmatprep.subr.mxu0 0.0
      %1969 = vmatpush1.msra.mxu0 0.0
      %1970 = vmatprep.subr.mxu0 0.0
      %1971 = vmatpush1.msra.mxu0 0.0
      %1972 = vmatprep.subr.mxu0 0.0
      %1973 = vmatpush1.msra.mxu0 0.0
      %1974 = vmatprep.subr.mxu0 0.0
      %1975 = vmatpush1.msra.mxu0 0.0
      %1976 = vmatprep.subr.mxu0 0.0
      %1977 = vmatpush1.msra.mxu0 0.0
      %1978 = vmatprep.subr.mxu0 0.0
      %1979 = vmatpush1.msra.mxu0 0.0
      %1980 = vmatprep.subr.mxu0 0.0
      %1981 = vmatpush1.msra.mxu0 0.0
      %1982 = vmatprep.subr.mxu0 0.0
      %1983 = vmatpush1.msra.mxu0 0.0
      %1984 = vmatprep.subr.mxu0 0.0
      %1985 = vmatpush1.msra.mxu0 0.0
      %1986 = vmatprep.subr.mxu0 0.0
      %1987 = vmatpush1.msra.mxu0 0.0
      %1988 = vmatprep.subr.mxu0 0.0
      %1989 = vmatpush1.msra.mxu0 0.0
      %1990 = vmatprep.subr.mxu0 0.0
      %1991 = vmatpush1.msra.mxu0 0.0
      %1992 = vmatprep.subr.mxu0 0.0
      %1993 = vmatpush1.msra.mxu0 0.0
      %1994 = vmatprep.subr.mxu0 0.0
      %1995 = vmatpush1.msra.mxu0 0.0
      %1996 = vmatprep.subr.mxu0 0.0
      %1997 = vmatpush1.msra.mxu0 0.0
      %1998 = vmatprep.subr.mxu0 0.0
      %1999 = vmatpush1.msra.mxu0 0.0
      %2000 = vmatprep.subr.mxu0 0.0
      %2001 = vmatpush1.msra.mxu0 0.0
      %2002 = vmatprep.subr.mxu0 0.0
      %2003 = vmatpush1.msra.mxu0 0.0
      %2004 = vmatprep.subr.mxu0 0.0
      %2005 = vmatpush1.msra.mxu0 0.0
      %2006 = vmatprep.subr.mxu0 0.0
      %2007 = vmatpush1.msra.mxu0 0.0
      %2008 = vmatprep.subr.mxu0 0.0
      %2009 = vmatpush1.msra.mxu0 0.0
      %2010 = vmatprep.subr.mxu0 0.0
      %2011 = vmatpush1.msra.mxu0 0.0
      %2012 = vmatprep.subr.mxu0 0.0
      %2013 = vmatpush1.msra.mxu0 0.0
      %2014 = vmatprep.mubr.f32.mxu0 0.0
      %2015 = vmatmul.mubr.f32.gmra.mrb[0].mxu0 %v1942
      %v2016 = vpop.f32.mrb[0].mxu0
      %v2017 = vadd.f32 0.0, %v2016
      %v2018 = vpop.f32.mrb[0].mxu0
      %2019 = vmatprep.mubr.f32.mxu0 0.0
      %2020 = vmatmul.mubr.f32.gmra.mrb[0].mxu0 %v1945
      %v2021 = vpop.f32.mrb[0].mxu0
      %v2022 = vadd.f32 0.0, %v2021
      %v2023 = vpop.f32.mrb[0].mxu0
      %2024 = vdwg.mxu0
      %s2025 = scalar_lea.vmem %s4, 16
      %v2026 = vld [vmem:[%s2025] sm:$0xff]
      %v2028 = vsel %vm743, %v2017, 0
      %v2031 = vsel %vm743, %v2022, 0
      %2033 = vmatprep.subr.mxu0 0.0
      %2034 = vmatpush1.msra.mxu0 %v2026
      %2035 = vmatprep.subr.mxu0 0.0
      %2036 = vmatpush1.msra.mxu0 0.0
      %2037 = vmatprep.subr.mxu0 0.0
      %2038 = vmatpush1.msra.mxu0 0.0
      %2039 = vmatprep.subr.mxu0 0.0
      %2040 = vmatpush1.msra.mxu0 0.0
      %2041 = vmatprep.subr.mxu0 0.0
      %2042 = vmatpush1.msra.mxu0 0.0
      %2043 = vmatprep.subr.mxu0 0.0
      %2044 = vmatpush1.msra.mxu0 0.0
      %2045 = vmatprep.subr.mxu0 0.0
      %2046 = vmatpush1.msra.mxu0 0.0
      %2047 = vmatprep.subr.mxu0 0.0
      %2048 = vmatpush1.msra.mxu0 0.0
      %2049 = vmatprep.subr.mxu0 0.0
      %2050 = vmatpush1.msra.mxu0 0.0
      %2051 = vmatprep.subr.mxu0 0.0
      %2052 = vmatpush1.msra.mxu0 0.0
      %2053 = vmatprep.subr.mxu0 0.0
      %2054 = vmatpush1.msra.mxu0 0.0
      %2055 = vmatprep.subr.mxu0 0.0
      %2056 = vmatpush1.msra.mxu0 0.0
      %2057 = vmatprep.subr.mxu0 0.0
      %2058 = vmatpush1.msra.mxu0 0.0
      %2059 = vmatprep.subr.mxu0 0.0
      %2060 = vmatpush1.msra.mxu0 0.0
      %2061 = vmatprep.subr.mxu0 0.0
      %2062 = vmatpush1.msra.mxu0 0.0
      %2063 = vmatprep.subr.mxu0 0.0
      %2064 = vmatpush1.msra.mxu0 0.0
      %2065 = vmatprep.subr.mxu0 0.0
      %2066 = vmatpush1.msra.mxu0 0.0
      %2067 = vmatprep.subr.mxu0 0.0
      %2068 = vmatpush1.msra.mxu0 0.0
      %2069 = vmatprep.subr.mxu0 0.0
      %2070 = vmatpush1.msra.mxu0 0.0
      %2071 = vmatprep.subr.mxu0 0.0
      %2072 = vmatpush1.msra.mxu0 0.0
      %2073 = vmatprep.subr.mxu0 0.0
      %2074 = vmatpush1.msra.mxu0 0.0
      %2075 = vmatprep.subr.mxu0 0.0
      %2076 = vmatpush1.msra.mxu0 0.0
      %2077 = vmatprep.subr.mxu0 0.0
      %2078 = vmatpush1.msra.mxu0 0.0
      %2079 = vmatprep.subr.mxu0 0.0
      %2080 = vmatpush1.msra.mxu0 0.0
      %2081 = vmatprep.subr.mxu0 0.0
      %2082 = vmatpush1.msra.mxu0 0.0
      %2083 = vmatprep.subr.mxu0 0.0
      %2084 = vmatpush1.msra.mxu0 0.0
      %2085 = vmatprep.subr.mxu0 0.0
      %2086 = vmatpush1.msra.mxu0 0.0
      %2087 = vmatprep.subr.mxu0 0.0
      %2088 = vmatpush1.msra.mxu0 0.0
      %2089 = vmatprep.subr.mxu0 0.0
      %2090 = vmatpush1.msra.mxu0 0.0
      %2091 = vmatprep.subr.mxu0 0.0
      %2092 = vmatpush1.msra.mxu0 0.0
      %2093 = vmatprep.subr.mxu0 0.0
      %2094 = vmatpush1.msra.mxu0 0.0
      %2095 = vmatprep.subr.mxu0 0.0
      %2096 = vmatpush1.msra.mxu0 0.0
      %2097 = vmatprep.mubr.f32.mxu0 0.0
      %2098 = vmatmul.mubr.f32.gmra.mrb[0].mxu0 %v2028
      %v2099 = vpop.f32.mrb[0].mxu0
      %v2100 = vadd.f32 0.0, %v2099
      %v2101 = vpop.f32.mrb[0].mxu0
      %2102 = vmatprep.mubr.f32.mxu0 0.0
      %2103 = vmatmul.mubr.f32.gmra.mrb[0].mxu0 %v2031
      %v2104 = vpop.f32.mrb[0].mxu0
      %v2105 = vadd.f32 0.0, %v2104
      %v2106 = vpop.f32.mrb[0].mxu0
      %2107 = vdwg.mxu0
      %v2108 = vadd.f32 %v1558, %v2100
      %v2109 = vadd.f32 %v1563, %v2105
      %s2110 = scalar_lea.vmem %s2, 96
      %v2111 = vld [vmem:[%s2110] sm:$0xff]
      %v2112 = vld [vmem:[%s2110 + $0x8] sm:$0xff]
      %v2113 = vld [vmem:[%s2110 + $0x10] sm:$0xff]
      %v2114 = vld [vmem:[%s2110 + $0x18] sm:$0xff]
      %s2115 = scalar_lea.vmem %s3, 3
      %v2116 = vld [vmem:[%s2115] sm:$0x1]
      %v2118 = vlaneseq
      %v2119 = vshrl.u32 %v2118, 7
      %v2120 = vsub.s32 0, %v2119
      %v2121 = vrot.slane %v2116, %v2120
      %2123 = vmatprep.subr.mxu0 0.0
      %2124 = vmatpush1.msra.mxu0 %v2111
      %2125 = vmatprep.subr.mxu0 0.0
      %2126 = vmatpush1.msra.mxu0 %v2112
      %2127 = vmatprep.subr.mxu0 0.0
      %2128 = vmatpush1.msra.mxu0 %v2113
      %2129 = vmatprep.subr.mxu0 0.0
      %2130 = vmatpush1.msra.mxu0 %v2114
      %2131 = vmatprep.subr.mxu0 0.0
      %2132 = vmatpush1.msra.mxu0 0.0
      %2133 = vmatprep.subr.mxu0 0.0
      %2134 = vmatpush1.msra.mxu0 0.0
      %2135 = vmatprep.subr.mxu0 0.0
      %2136 = vmatpush1.msra.mxu0 0.0
      %2137 = vmatprep.subr.mxu0 0.0
      %2138 = vmatpush1.msra.mxu0 0.0
      %2139 = vmatprep.subr.mxu0 0.0
      %2140 = vmatpush1.msra.mxu0 0.0
      %2141 = vmatprep.subr.mxu0 0.0
      %2142 = vmatpush1.msra.mxu0 0.0
      %2143 = vmatprep.subr.mxu0 0.0
      %2144 = vmatpush1.msra.mxu0 0.0
      %2145 = vmatprep.subr.mxu0 0.0
      %2146 = vmatpush1.msra.mxu0 0.0
      %2147 = vmatprep.subr.mxu0 0.0
      %2148 = vmatpush1.msra.mxu0 0.0
      %2149 = vmatprep.subr.mxu0 0.0
      %2150 = vmatpush1.msra.mxu0 0.0
      %2151 = vmatprep.subr.mxu0 0.0
      %2152 = vmatpush1.msra.mxu0 0.0
      %2153 = vmatprep.subr.mxu0 0.0
      %2154 = vmatpush1.msra.mxu0 0.0
      %2155 = vmatprep.subr.mxu0 0.0
      %2156 = vmatpush1.msra.mxu0 0.0
      %2157 = vmatprep.subr.mxu0 0.0
      %2158 = vmatpush1.msra.mxu0 0.0
      %2159 = vmatprep.subr.mxu0 0.0
      %2160 = vmatpush1.msra.mxu0 0.0
      %2161 = vmatprep.subr.mxu0 0.0
      %2162 = vmatpush1.msra.mxu0 0.0
      %2163 = vmatprep.subr.mxu0 0.0
      %2164 = vmatpush1.msra.mxu0 0.0
      %2165 = vmatprep.subr.mxu0 0.0
      %2166 = vmatpush1.msra.mxu0 0.0
      %2167 = vmatprep.subr.mxu0 0.0
      %2168 = vmatpush1.msra.mxu0 0.0
      %2169 = vmatprep.subr.mxu0 0.0
      %2170 = vmatpush1.msra.mxu0 0.0
      %2171 = vmatprep.subr.mxu0 0.0
      %2172 = vmatpush1.msra.mxu0 0.0
      %2173 = vmatprep.subr.mxu0 0.0
      %2174 = vmatpush1.msra.mxu0 0.0
      %2175 = vmatprep.subr.mxu0 0.0
      %2176 = vmatpush1.msra.mxu0 0.0
      %2177 = vmatprep.subr.mxu0 0.0
      %2178 = vmatpush1.msra.mxu0 0.0
      %2179 = vmatprep.subr.mxu0 0.0
      %2180 = vmatpush1.msra.mxu0 0.0
      %2181 = vmatprep.subr.mxu0 0.0
      %2182 = vmatpush1.msra.mxu0 0.0
      %2183 = vmatprep.subr.mxu0 0.0
      %2184 = vmatpush1.msra.mxu0 0.0
      %2185 = vmatprep.subr.mxu0 0.0
      %2186 = vmatpush1.msra.mxu0 0.0
      %2187 = vmatprep.mubr.f32.mxu0 0.0
      %2188 = vmatmul.mubr.f32.gmra.mrb[0].mxu0 %v487
      %v2189 = vpop.f32.mrb[0].mxu0
      %v2190 = vadd.f32 %v2121, %v2189
      %v2191 = vpop.f32.mrb[0].mxu0
      %2192 = vmatprep.mubr.f32.mxu0 0.0
      %2193 = vmatmul.mubr.f32.gmra.mrb[0].mxu0 %v490
      %v2194 = vpop.f32.mrb[0].mxu0
      %v2195 = vadd.f32 %v2121, %v2194
      %v2196 = vpop.f32.mrb[0].mxu0
      %2197 = vdwg.mxu0
      %s2198 = scalar_lea.vmem %s2, 224
      %v2199 = vld [vmem:[%s2198] sm:$0xff]
      %v2200 = vld [vmem:[%s2198 + $0x8] sm:$0xff]
      %v2201 = vld [vmem:[%s2198 + $0x10] sm:$0xff]
      %v2202 = vld [vmem:[%s2198 + $0x18] sm:$0xff]
      %s2203 = scalar_lea.vmem %s3, 7
      %v2204 = vld [vmem:[%s2203] sm:$0x1]
      %v2206 = vlaneseq
      %v2207 = vshrl.u32 %v2206, 7
      %v2208 = vsub.s32 0, %v2207
      %v2209 = vrot.slane %v2204, %v2208
      %2211 = vmatprep.subr.mxu0 0.0
      %2212 = vmatpush1.msra.mxu0 %v2199
      %2213 = vmatprep.subr.mxu0 0.0
      %2214 = vmatpush1.msra.mxu0 %v2200
      %2215 = vmatprep.subr.mxu0 0.0
      %2216 = vmatpush1.msra.mxu0 %v2201
      %2217 = vmatprep.subr.mxu0 0.0
      %2218 = vmatpush1.msra.mxu0 %v2202
      %2219 = vmatprep.subr.mxu0 0.0
      %2220 = vmatpush1.msra.mxu0 0.0
      %2221 = vmatprep.subr.mxu0 0.0
      %2222 = vmatpush1.msra.mxu0 0.0
      %2223 = vmatprep.subr.mxu0 0.0
      %2224 = vmatpush1.msra.mxu0 0.0
      %2225 = vmatprep.subr.mxu0 0.0
      %2226 = vmatpush1.msra.mxu0 0.0
      %2227 = vmatprep.subr.mxu0 0.0
      %2228 = vmatpush1.msra.mxu0 0.0
      %2229 = vmatprep.subr.mxu0 0.0
      %2230 = vmatpush1.msra.mxu0 0.0
      %2231 = vmatprep.subr.mxu0 0.0
      %2232 = vmatpush1.msra.mxu0 0.0
      %2233 = vmatprep.subr.mxu0 0.0
      %2234 = vmatpush1.msra.mxu0 0.0
      %2235 = vmatprep.subr.mxu0 0.0
      %2236 = vmatpush1.msra.mxu0 0.0
      %2237 = vmatprep.subr.mxu0 0.0
      %2238 = vmatpush1.msra.mxu0 0.0
      %2239 = vmatprep.subr.mxu0 0.0
      %2240 = vmatpush1.msra.mxu0 0.0
      %2241 = vmatprep.subr.mxu0 0.0
      %2242 = vmatpush1.msra.mxu0 0.0
      %2243 = vmatprep.subr.mxu0 0.0
      %2244 = vmatpush1.msra.mxu0 0.0
      %2245 = vmatprep.subr.mxu0 0.0
      %2246 = vmatpush1.msra.mxu0 0.0
      %2247 = vmatprep.subr.mxu0 0.0
      %2248 = vmatpush1.msra.mxu0 0.0
      %2249 = vmatprep.subr.mxu0 0.0
      %2250 = vmatpush1.msra.mxu0 0.0
      %2251 = vmatprep.subr.mxu0 0.0
      %2252 = vmatpush1.msra.mxu0 0.0
      %2253 = vmatprep.subr.mxu0 0.0
      %2254 = vmatpush1.msra.mxu0 0.0
      %2255 = vmatprep.subr.mxu0 0.0
      %2256 = vmatpush1.msra.mxu0 0.0
      %2257 = vmatprep.subr.mxu0 0.0
      %2258 = vmatpush1.msra.mxu0 0.0
      %2259 = vmatprep.subr.mxu0 0.0
      %2260 = vmatpush1.msra.mxu0 0.0
      %2261 = vmatprep.subr.mxu0 0.0
      %2262 = vmatpush1.msra.mxu0 0.0
      %2263 = vmatprep.subr.mxu0 0.0
      %2264 = vmatpush1.msra.mxu0 0.0
      %2265 = vmatprep.subr.mxu0 0.0
      %2266 = vmatpush1.msra.mxu0 0.0
      %2267 = vmatprep.subr.mxu0 0.0
      %2268 = vmatpush1.msra.mxu0 0.0
      %2269 = vmatprep.subr.mxu0 0.0
      %2270 = vmatpush1.msra.mxu0 0.0
      %2271 = vmatprep.subr.mxu0 0.0
      %2272 = vmatpush1.msra.mxu0 0.0
      %2273 = vmatprep.subr.mxu0 0.0
      %2274 = vmatpush1.msra.mxu0 0.0
      %2275 = vmatprep.mubr.f32.mxu0 0.0
      %2276 = vmatmul.mubr.f32.gmra.mrb[0].mxu0 %v487
      %v2277 = vpop.f32.mrb[0].mxu0
      %v2278 = vadd.f32 %v2209, %v2277
      %v2279 = vpop.f32.mrb[0].mxu0
      %2280 = vmatprep.mubr.f32.mxu0 0.0
      %2281 = vmatmul.mubr.f32.gmra.mrb[0].mxu0 %v490
      %v2282 = vpop.f32.mrb[0].mxu0
      %v2283 = vadd.f32 %v2209, %v2282
      %v2284 = vpop.f32.mrb[0].mxu0
      %2285 = vdwg.mxu0
      %s2286 = scalar_lea.vmem %s2, 352
      %v2287 = vld [vmem:[%s2286] sm:$0xff]
      %v2288 = vld [vmem:[%s2286 + $0x8] sm:$0xff]
      %v2289 = vld [vmem:[%s2286 + $0x10] sm:$0xff]
      %v2290 = vld [vmem:[%s2286 + $0x18] sm:$0xff]
      %s2291 = scalar_lea.vmem %s3, 11
      %v2292 = vld [vmem:[%s2291] sm:$0x1]
      %v2294 = vlaneseq
      %v2295 = vshrl.u32 %v2294, 7
      %v2296 = vsub.s32 0, %v2295
      %v2297 = vrot.slane %v2292, %v2296
      %2299 = vmatprep.subr.mxu0 0.0
      %2300 = vmatpush1.msra.mxu0 %v2287
      %2301 = vmatprep.subr.mxu0 0.0
      %2302 = vmatpush1.msra.mxu0 %v2288
      %2303 = vmatprep.subr.mxu0 0.0
      %2304 = vmatpush1.msra.mxu0 %v2289
      %2305 = vmatprep.subr.mxu0 0.0
      %2306 = vmatpush1.msra.mxu0 %v2290
      %2307 = vmatprep.subr.mxu0 0.0
      %2308 = vmatpush1.msra.mxu0 0.0
      %2309 = vmatprep.subr.mxu0 0.0
      %2310 = vmatpush1.msra.mxu0 0.0
      %2311 = vmatprep.subr.mxu0 0.0
      %2312 = vmatpush1.msra.mxu0 0.0
      %2313 = vmatprep.subr.mxu0 0.0
      %2314 = vmatpush1.msra.mxu0 0.0
      %2315 = vmatprep.subr.mxu0 0.0
      %2316 = vmatpush1.msra.mxu0 0.0
      %2317 = vmatprep.subr.mxu0 0.0
      %2318 = vmatpush1.msra.mxu0 0.0
      %2319 = vmatprep.subr.mxu0 0.0
      %2320 = vmatpush1.msra.mxu0 0.0
      %2321 = vmatprep.subr.mxu0 0.0
      %2322 = vmatpush1.msra.mxu0 0.0
      %2323 = vmatprep.subr.mxu0 0.0
      %2324 = vmatpush1.msra.mxu0 0.0
      %2325 = vmatprep.subr.mxu0 0.0
      %2326 = vmatpush1.msra.mxu0 0.0
      %2327 = vmatprep.subr.mxu0 0.0
      %2328 = vmatpush1.msra.mxu0 0.0
      %2329 = vmatprep.subr.mxu0 0.0
      %2330 = vmatpush1.msra.mxu0 0.0
      %2331 = vmatprep.subr.mxu0 0.0
      %2332 = vmatpush1.msra.mxu0 0.0
      %2333 = vmatprep.subr.mxu0 0.0
      %2334 = vmatpush1.msra.mxu0 0.0
      %2335 = vmatprep.subr.mxu0 0.0
      %2336 = vmatpush1.msra.mxu0 0.0
      %2337 = vmatprep.subr.mxu0 0.0
      %2338 = vmatpush1.msra.mxu0 0.0
      %2339 = vmatprep.subr.mxu0 0.0
      %2340 = vmatpush1.msra.mxu0 0.0
      %2341 = vmatprep.subr.mxu0 0.0
      %2342 = vmatpush1.msra.mxu0 0.0
      %2343 = vmatprep.subr.mxu0 0.0
      %2344 = vmatpush1.msra.mxu0 0.0
      %2345 = vmatprep.subr.mxu0 0.0
      %2346 = vmatpush1.msra.mxu0 0.0
      %2347 = vmatprep.subr.mxu0 0.0
      %2348 = vmatpush1.msra.mxu0 0.0
      %2349 = vmatprep.subr.mxu0 0.0
      %2350 = vmatpush1.msra.mxu0 0.0
      %2351 = vmatprep.subr.mxu0 0.0
      %2352 = vmatpush1.msra.mxu0 0.0
      %2353 = vmatprep.subr.mxu0 0.0
      %2354 = vmatpush1.msra.mxu0 0.0
      %2355 = vmatprep.subr.mxu0 0.0
      %2356 = vmatpush1.msra.mxu0 0.0
      %2357 = vmatprep.subr.mxu0 0.0
      %2358 = vmatpush1.msra.mxu0 0.0
      %2359 = vmatprep.subr.mxu0 0.0
      %2360 = vmatpush1.msra.mxu0 0.0
      %2361 = vmatprep.subr.mxu0 0.0
      %2362 = vmatpush1.msra.mxu0 0.0
      %2363 = vmatprep.mubr.f32.mxu0 0.0
      %2364 = vmatmul.mubr.f32.gmra.mrb[0].mxu0 %v487
      %v2365 = vpop.f32.mrb[0].mxu0
      %v2366 = vadd.f32 %v2297, %v2365
      %v2367 = vpop.f32.mrb[0].mxu0
      %2368 = vmatprep.mubr.f32.mxu0 0.0
      %2369 = vmatmul.mubr.f32.gmra.mrb[0].mxu0 %v490
      %v2370 = vpop.f32.mrb[0].mxu0
      %v2371 = vadd.f32 %v2297, %v2370
      %v2372 = vpop.f32.mrb[0].mxu0
      %2373 = vdwg.mxu0
      %v2375 = vsel %vm743, %v2190, 0
      %v2378 = vsel %vm743, %v2195, 0
      %v2381 = vsel %vm743, %v2278, 0
      %v2384 = vsel %vm743, %v2283, 0
      %2386 = vmatprep.subr.mxu0 0.0
      %2387 = vmatpush1.xpose.msra.mxu0 %v2381
      %2388 = vmatprep.subr.mxu0 0.0
      %2389 = vmatpush1.xpose.msra.mxu0 %v2384
      %2390 = vmatprep.subr.mxu0 0.0
      %2391 = vmatpush1.xpose.msra.mxu0 0.0
      %2392 = vmatprep.subr.mxu0 0.0
      %2393 = vmatpush1.xpose.msra.mxu0 0.0
      %2394 = vmatprep.subr.mxu0 0.0
      %2395 = vmatpush1.xpose.msra.mxu0 0.0
      %2396 = vmatprep.subr.mxu0 0.0
      %2397 = vmatpush1.xpose.msra.mxu0 0.0
      %2398 = vmatprep.subr.mxu0 0.0
      %2399 = vmatpush1.xpose.msra.mxu0 0.0
      %2400 = vmatprep.subr.mxu0 0.0
      %2401 = vmatpush1.xpose.msra.mxu0 0.0
      %2402 = vmatprep.subr.mxu0 0.0
      %2403 = vmatpush1.xpose.msra.mxu0 0.0
      %2404 = vmatprep.subr.mxu0 0.0
      %2405 = vmatpush1.xpose.msra.mxu0 0.0
      %2406 = vmatprep.subr.mxu0 0.0
      %2407 = vmatpush1.xpose.msra.mxu0 0.0
      %2408 = vmatprep.subr.mxu0 0.0
      %2409 = vmatpush1.xpose.msra.mxu0 0.0
      %2410 = vmatprep.subr.mxu0 0.0
      %2411 = vmatpush1.xpose.msra.mxu0 0.0
      %2412 = vmatprep.subr.mxu0 0.0
      %2413 = vmatpush1.xpose.msra.mxu0 0.0
      %2414 = vmatprep.subr.mxu0 0.0
      %2415 = vmatpush1.xpose.msra.mxu0 0.0
      %2416 = vmatprep.subr.mxu0 0.0
      %2417 = vmatpush1.xpose.msra.mxu0 0.0
      %2418 = vmatprep.subr.mxu0 0.0
      %2419 = vmatpush1.xpose.msra.mxu0 0.0
      %2420 = vmatprep.subr.mxu0 0.0
      %2421 = vmatpush1.xpose.msra.mxu0 0.0
      %2422 = vmatprep.subr.mxu0 0.0
      %2423 = vmatpush1.xpose.msra.mxu0 0.0
      %2424 = vmatprep.subr.mxu0 0.0
      %2425 = vmatpush1.xpose.msra.mxu0 0.0
      %2426 = vmatprep.subr.mxu0 0.0
      %2427 = vmatpush1.xpose.msra.mxu0 0.0
      %2428 = vmatprep.subr.mxu0 0.0
      %2429 = vmatpush1.xpose.msra.mxu0 0.0
      %2430 = vmatprep.subr.mxu0 0.0
      %2431 = vmatpush1.xpose.msra.mxu0 0.0
      %2432 = vmatprep.subr.mxu0 0.0
      %2433 = vmatpush1.xpose.msra.mxu0 0.0
      %2434 = vmatprep.subr.mxu0 0.0
      %2435 = vmatpush1.xpose.msra.mxu0 0.0
      %2436 = vmatprep.subr.mxu0 0.0
      %2437 = vmatpush1.xpose.msra.mxu0 0.0
      %2438 = vmatprep.subr.mxu0 0.0
      %2439 = vmatpush1.xpose.msra.mxu0 0.0
      %2440 = vmatprep.subr.mxu0 0.0
      %2441 = vmatpush1.xpose.msra.mxu0 0.0
      %2442 = vmatprep.subr.mxu0 0.0
      %2443 = vmatpush1.xpose.msra.mxu0 0.0
      %2444 = vmatprep.subr.mxu0 0.0
      %2445 = vmatpush1.xpose.msra.mxu0 0.0
      %2446 = vmatprep.subr.mxu0 0.0
      %2447 = vmatpush1.xpose.msra.mxu0 0.0
      %2448 = vmatprep.subr.mxu0 0.0
      %2449 = vmatpush1.xpose.msra.mxu0 0.0
      %2450 = vmatprep.mubr.f32.mxu0 0.0
      %2451 = vmatmul.mubr.f32.gmra.mrb[0].mxu0 %v2375
      %v2452 = vpop.f32.mrb[0].mxu0
      %v2453 = vadd.f32 0.0, %v2452
      %v2454 = vpop.f32.mrb[0].mxu0
      %2455 = vmatprep.mubr.f32.mxu0 0.0
      %2456 = vmatmul.mubr.f32.gmra.mrb[0].mxu0 %v2378
      %v2457 = vpop.f32.mrb[0].mxu0
      %v2458 = vadd.f32 0.0, %v2457
      %v2459 = vpop.f32.mrb[0].mxu0
      %2460 = vdwg.mxu0
      %v2461 = vmul.f32 %v2453, 0.35355338
      %v2462 = vmul.f32 %v2458, 0.35355338
      %v2463 = vsel %vm833, %v2461, -inf
      %2464 = vmax.xlane.f32.xlu0 %v2463
      %v2465 = vpop.xlane.xlu0 %2464
      %v2466 = vsel %vm837, %v2462, -inf
      %2467 = vmax.xlane.f32.xlu0 %v2466
      %v2468 = vpop.xlane.xlu0 %2467
      %v2469 = vsub.f32 %v2461, %v2465
      %v2470 = vsub.f32 %v2462, %v2468
      %v2471 = vmul.f32 %v2469, 1.442695
      %v2472 = vpow.pop %v2471
      %v2473 = vmul.f32 %v2470, 1.442695
      %v2474 = vpow.pop %v2473
      %v2475 = vsel %vm833, %v2472, 0.0
      %2476 = vadd.xlane.f32.xlu0 %v2475
      %v2477 = vpop.xlane.xlu0 %2476
      %v2478 = vsel %vm837, %v2474, 0.0
      %2479 = vadd.xlane.f32.xlu0 %v2478
      %v2480 = vpop.xlane.xlu0 %2479
      %v2481 = vrcp.pop %v2477
      %v2482 = vrcp.pop %v2480
      %v2483 = vmul.f32 %v2472, %v2481
      %v2484 = vmul.f32 %v2474, %v2482
      %v2486 = vsel %vm833, %v2483, 0
      %v2489 = vsel %vm833, %v2484, 0
      %v2492 = vsel %vm863, %v2371, 0
      %2494 = vmatprep.subr.mxu0 0.0
      %2495 = vmatpush1.msra.mxu0 %v2366
      %2496 = vmatprep.subr.mxu0 0.0
      %2497 = vmatpush1.msra.mxu0 %v2492
      %2498 = vmatprep.subr.mxu0 0.0
      %2499 = vmatpush1.msra.mxu0 0.0
      %2500 = vmatprep.subr.mxu0 0.0
      %2501 = vmatpush1.msra.mxu0 0.0
      %2502 = vmatprep.subr.mxu0 0.0
      %2503 = vmatpush1.msra.mxu0 0.0
      %2504 = vmatprep.subr.mxu0 0.0
      %2505 = vmatpush1.msra.mxu0 0.0
      %2506 = vmatprep.subr.mxu0 0.0
      %2507 = vmatpush1.msra.mxu0 0.0
      %2508 = vmatprep.subr.mxu0 0.0
      %2509 = vmatpush1.msra.mxu0 0.0
      %2510 = vmatprep.subr.mxu0 0.0
      %2511 = vmatpush1.msra.mxu0 0.0
      %2512 = vmatprep.subr.mxu0 0.0
      %2513 = vmatpush1.msra.mxu0 0.0
      %2514 = vmatprep.subr.mxu0 0.0
      %2515 = vmatpush1.msra.mxu0 0.0
      %2516 = vmatprep.subr.mxu0 0.0
      %2517 = vmatpush1.msra.mxu0 0.0
      %2518 = vmatprep.subr.mxu0 0.0
      %2519 = vmatpush1.msra.mxu0 0.0
      %2520 = vmatprep.subr.mxu0 0.0
      %2521 = vmatpush1.msra.mxu0 0.0
      %2522 = vmatprep.subr.mxu0 0.0
      %2523 = vmatpush1.msra.mxu0 0.0
      %2524 = vmatprep.subr.mxu0 0.0
      %2525 = vmatpush1.msra.mxu0 0.0
      %2526 = vmatprep.subr.mxu0 0.0
      %2527 = vmatpush1.msra.mxu0 0.0
      %2528 = vmatprep.subr.mxu0 0.0
      %2529 = vmatpush1.msra.mxu0 0.0
      %2530 = vmatprep.subr.mxu0 0.0
      %2531 = vmatpush1.msra.mxu0 0.0
      %2532 = vmatprep.subr.mxu0 0.0
      %2533 = vmatpush1.msra.mxu0 0.0
      %2534 = vmatprep.subr.mxu0 0.0
      %2535 = vmatpush1.msra.mxu0 0.0
      %2536 = vmatprep.subr.mxu0 0.0
      %2537 = vmatpush1.msra.mxu0 0.0
      %2538 = vmatprep.subr.mxu0 0.0
      %2539 = vmatpush1.msra.mxu0 0.0
      %2540 = vmatprep.subr.mxu0 0.0
      %2541 = vmatpush1.msra.mxu0 0.0
      %2542 = vmatprep.subr.mxu0 0.0
      %2543 = vmatpush1.msra.mxu0 0.0
      %2544 = vmatprep.subr.mxu0 0.0
      %2545 = vmatpush1.msra.mxu0 0.0
      %2546 = vmatprep.subr.mxu0 0.0
      %2547 = vmatpush1.msra.mxu0 0.0
      %2548 = vmatprep.subr.mxu0 0.0
      %2549 = vmatpush1.msra.mxu0 0.0
      %2550 = vmatprep.subr.mxu0 0.0
      %2551 = vmatpush1.msra.mxu0 0.0
      %2552 = vmatprep.subr.mxu0 0.0
      %2553 = vmatpush1.msra.mxu0 0.0
      %2554 = vmatprep.subr.mxu0 0.0
      %2555 = vmatpush1.msra.mxu0 0.0
      %2556 = vmatprep.subr.mxu0 0.0
      %2557 = vmatpush1.msra.mxu0 0.0
      %2558 = vmatprep.mubr.f32.mxu0 0.0
      %2559 = vmatmul.mubr.f32.gmra.mrb[0].mxu0 %v2486
      %v2560 = vpop.f32.mrb[0].mxu0
      %v2561 = vadd.f32 0.0, %v2560
      %v2562 = vpop.f32.mrb[0].mxu0
      %2563 = vmatprep.mubr.f32.mxu0 0.0
      %2564 = vmatmul.mubr.f32.gmra.mrb[0].mxu0 %v2489
      %v2565 = vpop.f32.mrb[0].mxu0
      %v2566 = vadd.f32 0.0, %v2565
      %v2567 = vpop.f32.mrb[0].mxu0
      %2568 = vdwg.mxu0
      %s2569 = scalar_lea.vmem %s4, 24
      %v2570 = vld [vmem:[%s2569] sm:$0xff]
      %v2572 = vsel %vm743, %v2561, 0
      %v2575 = vsel %vm743, %v2566, 0
      %2577 = vmatprep.subr.mxu0 0.0
      %2578 = vmatpush1.msra.mxu0 %v2570
      %2579 = vmatprep.subr.mxu0 0.0
      %2580 = vmatpush1.msra.mxu0 0.0
      %2581 = vmatprep.subr.mxu0 0.0
      %2582 = vmatpush1.msra.mxu0 0.0
      %2583 = vmatprep.subr.mxu0 0.0
      %2584 = vmatpush1.msra.mxu0 0.0
      %2585 = vmatprep.subr.mxu0 0.0
      %2586 = vmatpush1.msra.mxu0 0.0
      %2587 = vmatprep.subr.mxu0 0.0
      %2588 = vmatpush1.msra.mxu0 0.0
      %2589 = vmatprep.subr.mxu0 0.0
      %2590 = vmatpush1.msra.mxu0 0.0
      %2591 = vmatprep.subr.mxu0 0.0
      %2592 = vmatpush1.msra.mxu0 0.0
      %2593 = vmatprep.subr.mxu0 0.0
      %2594 = vmatpush1.msra.mxu0 0.0
      %2595 = vmatprep.subr.mxu0 0.0
      %2596 = vmatpush1.msra.mxu0 0.0
      %2597 = vmatprep.subr.mxu0 0.0
      %2598 = vmatpush1.msra.mxu0 0.0
      %2599 = vmatprep.subr.mxu0 0.0
      %2600 = vmatpush1.msra.mxu0 0.0
      %2601 = vmatprep.subr.mxu0 0.0
      %2602 = vmatpush1.msra.mxu0 0.0
      %2603 = vmatprep.subr.mxu0 0.0
      %2604 = vmatpush1.msra.mxu0 0.0
      %2605 = vmatprep.subr.mxu0 0.0
      %2606 = vmatpush1.msra.mxu0 0.0
      %2607 = vmatprep.subr.mxu0 0.0
      %2608 = vmatpush1.msra.mxu0 0.0
      %2609 = vmatprep.subr.mxu0 0.0
      %2610 = vmatpush1.msra.mxu0 0.0
      %2611 = vmatprep.subr.mxu0 0.0
      %2612 = vmatpush1.msra.mxu0 0.0
      %2613 = vmatprep.subr.mxu0 0.0
      %2614 = vmatpush1.msra.mxu0 0.0
      %2615 = vmatprep.subr.mxu0 0.0
      %2616 = vmatpush1.msra.mxu0 0.0
      %2617 = vmatprep.subr.mxu0 0.0
      %2618 = vmatpush1.msra.mxu0 0.0
      %2619 = vmatprep.subr.mxu0 0.0
      %2620 = vmatpush1.msra.mxu0 0.0
      %2621 = vmatprep.subr.mxu0 0.0
      %2622 = vmatpush1.msra.mxu0 0.0
      %2623 = vmatprep.subr.mxu0 0.0
      %2624 = vmatpush1.msra.mxu0 0.0
      %2625 = vmatprep.subr.mxu0 0.0
      %2626 = vmatpush1.msra.mxu0 0.0
      %2627 = vmatprep.subr.mxu0 0.0
      %2628 = vmatpush1.msra.mxu0 0.0
      %2629 = vmatprep.subr.mxu0 0.0
      %2630 = vmatpush1.msra.mxu0 0.0
      %2631 = vmatprep.subr.mxu0 0.0
      %2632 = vmatpush1.msra.mxu0 0.0
      %2633 = vmatprep.subr.mxu0 0.0
      %2634 = vmatpush1.msra.mxu0 0.0
      %2635 = vmatprep.subr.mxu0 0.0
      %2636 = vmatpush1.msra.mxu0 0.0
      %2637 = vmatprep.subr.mxu0 0.0
      %2638 = vmatpush1.msra.mxu0 0.0
      %2639 = vmatprep.subr.mxu0 0.0
      %2640 = vmatpush1.msra.mxu0 0.0
      %2641 = vmatprep.mubr.f32.mxu0 0.0
      %2642 = vmatmul.mubr.f32.gmra.mrb[0].mxu0 %v2572
      %v2643 = vpop.f32.mrb[0].mxu0
      %v2644 = vadd.f32 0.0, %v2643
      %v2645 = vpop.f32.mrb[0].mxu0
      %2646 = vmatprep.mubr.f32.mxu0 0.0
      %2647 = vmatmul.mubr.f32.gmra.mrb[0].mxu0 %v2575
      %v2648 = vpop.f32.mrb[0].mxu0
      %v2649 = vadd.f32 0.0, %v2648
      %v2650 = vpop.f32.mrb[0].mxu0
      %2651 = vdwg.mxu0
      %v2652 = vadd.f32 %v2108, %v2644
      %v2653 = vadd.f32 %v2109, %v2649
      %v2654 = vld [vmem:[%s5] sm:$0x1]
      %v2656 = vlaneseq
      %v2657 = vshrl.u32 %v2656, 7
      %v2658 = vsub.s32 0, %v2657
      %v2659 = vrot.slane %v2654, %v2658
      %v2661 = vadd.f32 %v2652, %v2659
      %v2662 = vadd.f32 %v2653, %v2659
      %v2663 = vadd.f32 %v472, %v2661
      %v2664 = vadd.f32 %v473, %v2662
      %v2665 = vsel %vm485, %v2663, 0.0
      %2666 = vadd.xlane.f32.xlu0 %v2665
      %v2667 = vpop.xlane.xlu0 %2666
      %vm2668 = vcmask 254976
      %v2669 = vsel %vm2668, %v2664, 0.0
      %2670 = vadd.xlane.f32.xlu0 %v2669
      %v2671 = vpop.xlane.xlu0 %2670
      %v2672 = vrcp.pop 32.0
      %v2673 = vmul.f32 %v2667, %v2672
      %v2674 = vmul.f32 %v2671, %v2672
      %v2675 = vsub.f32 %v2663, %v2673
      %v2676 = vsub.f32 %v2664, %v2674
      %v2677 = vmul.f32 %v2675, %v2675
      %v2678 = vmul.f32 %v2676, %v2676
      %v2679 = vsel %vm485, %v2677, 0.0
      %2680 = vadd.xlane.f32.xlu0 %v2679
      %v2681 = vpop.xlane.xlu0 %2680
      %v2682 = vsel %vm2668, %v2678, 0.0
      %2683 = vadd.xlane.f32.xlu0 %v2682
      %v2684 = vpop.xlane.xlu0 %2683
      %v2685 = vmul.f32 %v2681, %v2672
      %v2686 = vmul.f32 %v2684, %v2672
      %v2687 = vadd.f32 %v2685, 1e-05
      %v2688 = vadd.f32 %v2686, 1e-05
      %v2689 = vrsqrt.pop %v2687
      %v2690 = vrsqrt.pop %v2688
      %v2691 = vmul.f32 %v2675, %v2689
      %v2692 = vmul.f32 %v2676, %v2690
      %v2693 = vld [vmem:[%s6] sm:$0x1]
      %v2695 = vlaneseq
      %v2696 = vshrl.u32 %v2695, 7
      %v2697 = vsub.s32 0, %v2696
      %v2698 = vrot.slane %v2693, %v2697
      %v2700 = vmul.f32 %v2691, %v2698
      %v2701 = vmul.f32 %v2692, %v2698
      %v2702 = vld [vmem:[%s7] sm:$0x1]
      %v2704 = vlaneseq
      %v2705 = vshrl.u32 %v2704, 7
      %v2706 = vsub.s32 0, %v2705
      %v2707 = vrot.slane %v2702, %v2706
      %v2709 = vadd.f32 %v2700, %v2707
      %v2710 = vadd.f32 %v2701, %v2707
      %v2711 = vld [vmem:[%s8] sm:$0xff]
      %v2712 = vld [vmem:[%s8 + $0x8] sm:$0xff]
      %v2713 = vld [vmem:[%s8 + $0x10] sm:$0xff]
      %v2714 = vld [vmem:[%s8 + $0x18] sm:$0xff]
      %v2715 = vld [vmem:[%s9] sm:$0x1]
      %v2717 = vlaneseq
      %v2718 = vshrl.u32 %v2717, 7
      %v2719 = vsub.s32 0, %v2718
      %v2720 = vrot.slane %v2715, %v2719
      %v2723 = vsel %vm485, %v2709, 0
      %v2726 = vsel %vm485, %v2710, 0
      %2728 = vmatprep.subr.mxu0 0.0
      %2729 = vmatpush1.msra.mxu0 %v2711
      %2730 = vmatprep.subr.mxu0 0.0
      %2731 = vmatpush1.msra.mxu0 %v2712
      %2732 = vmatprep.subr.mxu0 0.0
      %2733 = vmatpush1.msra.mxu0 %v2713
      %2734 = vmatprep.subr.mxu0 0.0
      %2735 = vmatpush1.msra.mxu0 %v2714
      %2736 = vmatprep.subr.mxu0 0.0
      %2737 = vmatpush1.msra.mxu0 0.0
      %2738 = vmatprep.subr.mxu0 0.0
      %2739 = vmatpush1.msra.mxu0 0.0
      %2740 = vmatprep.subr.mxu0 0.0
      %2741 = vmatpush1.msra.mxu0 0.0
      %2742 = vmatprep.subr.mxu0 0.0
      %2743 = vmatpush1.msra.mxu0 0.0
      %2744 = vmatprep.subr.mxu0 0.0
      %2745 = vmatpush1.msra.mxu0 0.0
      %2746 = vmatprep.subr.mxu0 0.0
      %2747 = vmatpush1.msra.mxu0 0.0
      %2748 = vmatprep.subr.mxu0 0.0
      %2749 = vmatpush1.msra.mxu0 0.0
      %2750 = vmatprep.subr.mxu0 0.0
      %2751 = vmatpush1.msra.mxu0 0.0
      %2752 = vmatprep.subr.mxu0 0.0
      %2753 = vmatpush1.msra.mxu0 0.0
      %2754 = vmatprep.subr.mxu0 0.0
      %2755 = vmatpush1.msra.mxu0 0.0
      %2756 = vmatprep.subr.mxu0 0.0
      %2757 = vmatpush1.msra.mxu0 0.0
      %2758 = vmatprep.subr.mxu0 0.0
      %2759 = vmatpush1.msra.mxu0 0.0
      %2760 = vmatprep.subr.mxu0 0.0
      %2761 = vmatpush1.msra.mxu0 0.0
      %2762 = vmatprep.subr.mxu0 0.0
      %2763 = vmatpush1.msra.mxu0 0.0
      %2764 = vmatprep.subr.mxu0 0.0
      %2765 = vmatpush1.msra.mxu0 0.0
      %2766 = vmatprep.subr.mxu0 0.0
      %2767 = vmatpush1.msra.mxu0 0.0
      %2768 = vmatprep.subr.mxu0 0.0
      %2769 = vmatpush1.msra.mxu0 0.0
      %2770 = vmatprep.subr.mxu0 0.0
      %2771 = vmatpush1.msra.mxu0 0.0
      %2772 = vmatprep.subr.mxu0 0.0
      %2773 = vmatpush1.msra.mxu0 0.0
      %2774 = vmatprep.subr.mxu0 0.0
      %2775 = vmatpush1.msra.mxu0 0.0
      %2776 = vmatprep.subr.mxu0 0.0
      %2777 = vmatpush1.msra.mxu0 0.0
      %2778 = vmatprep.subr.mxu0 0.0
      %2779 = vmatpush1.msra.mxu0 0.0
      %2780 = vmatprep.subr.mxu0 0.0
      %2781 = vmatpush1.msra.mxu0 0.0
      %2782 = vmatprep.subr.mxu0 0.0
      %2783 = vmatpush1.msra.mxu0 0.0
      %2784 = vmatprep.subr.mxu0 0.0
      %2785 = vmatpush1.msra.mxu0 0.0
      %2786 = vmatprep.subr.mxu0 0.0
      %2787 = vmatpush1.msra.mxu0 0.0
      %2788 = vmatprep.subr.mxu0 0.0
      %2789 = vmatpush1.msra.mxu0 0.0
      %2790 = vmatprep.subr.mxu0 0.0
      %2791 = vmatpush1.msra.mxu0 0.0
      %2792 = vmatprep.mubr.f32.mxu0 0.0
      %2793 = vmatmul.mubr.f32.gmra.mrb[0].mxu0 %v2723
      %v2794 = vpop.f32.mrb[0].mxu0
      %v2795 = vadd.f32 %v2720, %v2794
      %v2796 = vpop.f32.mrb[0].mxu0
      %2797 = vmatprep.mubr.f32.mxu0 0.0
      %2798 = vmatmul.mubr.f32.gmra.mrb[0].mxu0 %v2726
      %v2799 = vpop.f32.mrb[0].mxu0
      %v2800 = vadd.f32 %v2720, %v2799
      %v2801 = vpop.f32.mrb[0].mxu0
      %2802 = vdwg.mxu0
      %v2803 = vmax.f32 %v2795, 0.0
      %v2804 = vmax.f32 %v2800, 0.0
      %v2805 = vld [vmem:[%s10] sm:$0xff]
      %v2806 = vld [vmem:[%s10 + $0x8] sm:$0xff]
      %v2807 = vld [vmem:[%s10 + $0x10] sm:$0xff]
      %v2808 = vld [vmem:[%s10 + $0x18] sm:$0xff]
      %v2809 = vld [vmem:[%s10 + $0x20] sm:$0xff]
      %v2810 = vld [vmem:[%s10 + $0x28] sm:$0xff]
      %v2811 = vld [vmem:[%s10 + $0x30] sm:$0xff]
      %v2812 = vld [vmem:[%s10 + $0x38] sm:$0xff]
      %v2813 = vld [vmem:[%s11] sm:$0x1]
      %v2815 = vlaneseq
      %v2816 = vshrl.u32 %v2815, 7
      %v2817 = vsub.s32 0, %v2816
      %v2818 = vrot.slane %v2813, %v2817
      %vm2820 = vcmask 523264
      %v2822 = vsel %vm2820, %v2803, 0
      %v2825 = vsel %vm2820, %v2804, 0
      %2827 = vmatprep.subr.mxu0 0.0
      %2828 = vmatpush1.msra.mxu0 %v2805
      %2829 = vmatprep.subr.mxu0 0.0
      %2830 = vmatpush1.msra.mxu0 %v2806
      %2831 = vmatprep.subr.mxu0 0.0
      %2832 = vmatpush1.msra.mxu0 %v2807
      %2833 = vmatprep.subr.mxu0 0.0
      %2834 = vmatpush1.msra.mxu0 %v2808
      %2835 = vmatprep.subr.mxu0 0.0
      %2836 = vmatpush1.msra.mxu0 %v2809
      %2837 = vmatprep.subr.mxu0 0.0
      %2838 = vmatpush1.msra.mxu0 %v2810
      %2839 = vmatprep.subr.mxu0 0.0
      %2840 = vmatpush1.msra.mxu0 %v2811
      %2841 = vmatprep.subr.mxu0 0.0
      %2842 = vmatpush1.msra.mxu0 %v2812
      %2843 = vmatprep.subr.mxu0 0.0
      %2844 = vmatpush1.msra.mxu0 0.0
      %2845 = vmatprep.subr.mxu0 0.0
      %2846 = vmatpush1.msra.mxu0 0.0
      %2847 = vmatprep.subr.mxu0 0.0
      %2848 = vmatpush1.msra.mxu0 0.0
      %2849 = vmatprep.subr.mxu0 0.0
      %2850 = vmatpush1.msra.mxu0 0.0
      %2851 = vmatprep.subr.mxu0 0.0
      %2852 = vmatpush1.msra.mxu0 0.0
      %2853 = vmatprep.subr.mxu0 0.0
      %2854 = vmatpush1.msra.mxu0 0.0
      %2855 = vmatprep.subr.mxu0 0.0
      %2856 = vmatpush1.msra.mxu0 0.0
      %2857 = vmatprep.subr.mxu0 0.0
      %2858 = vmatpush1.msra.mxu0 0.0
      %2859 = vmatprep.subr.mxu0 0.0
      %2860 = vmatpush1.msra.mxu0 0.0
      %2861 = vmatprep.subr.mxu0 0.0
      %2862 = vmatpush1.msra.mxu0 0.0
      %2863 = vmatprep.subr.mxu0 0.0
      %2864 = vmatpush1.msra.mxu0 0.0
      %2865 = vmatprep.subr.mxu0 0.0
      %2866 = vmatpush1.msra.mxu0 0.0
      %2867 = vmatprep.subr.mxu0 0.0
      %2868 = vmatpush1.msra.mxu0 0.0
      %2869 = vmatprep.subr.mxu0 0.0
      %2870 = vmatpush1.msra.mxu0 0.0
      %2871 = vmatprep.subr.mxu0 0.0
      %2872 = vmatpush1.msra.mxu0 0.0
      %2873 = vmatprep.subr.mxu0 0.0
      %2874 = vmatpush1.msra.mxu0 0.0
      %2875 = vmatprep.subr.mxu0 0.0
      %2876 = vmatpush1.msra.mxu0 0.0
      %2877 = vmatprep.subr.mxu0 0.0
      %2878 = vmatpush1.msra.mxu0 0.0
      %2879 = vmatprep.subr.mxu0 0.0
      %2880 = vmatpush1.msra.mxu0 0.0
      %2881 = vmatprep.subr.mxu0 0.0
      %2882 = vmatpush1.msra.mxu0 0.0
      %2883 = vmatprep.subr.mxu0 0.0
      %2884 = vmatpush1.msra.mxu0 0.0
      %2885 = vmatprep.subr.mxu0 0.0
      %2886 = vmatpush1.msra.mxu0 0.0
      %2887 = vmatprep.subr.mxu0 0.0
      %2888 = vmatpush1.msra.mxu0 0.0
      %2889 = vmatprep.subr.mxu0 0.0
      %2890 = vmatpush1.msra.mxu0 0.0
      %2891 = vmatprep.mubr.f32.mxu0 0.0
      %2892 = vmatmul.mubr.f32.gmra.mrb[0].mxu0 %v2822
      %v2893 = vpop.f32.mrb[0].mxu0
      %v2894 = vadd.f32 %v2818, %v2893
      %v2895 = vpop.f32.mrb[0].mxu0
      %2896 = vmatprep.mubr.f32.mxu0 0.0
      %2897 = vmatmul.mubr.f32.gmra.mrb[0].mxu0 %v2825
      %v2898 = vpop.f32.mrb[0].mxu0
      %v2899 = vadd.f32 %v2818, %v2898
      %v2900 = vpop.f32.mrb[0].mxu0
      %2901 = vdwg.mxu0
      %v2902 = vadd.f32 %v2709, %v2894
      %v2903 = vadd.f32 %v2710, %v2899
      %v2904 = vsel %vm485, %v2902, 0.0
      %2905 = vadd.xlane.f32.xlu0 %v2904
      %v2906 = vpop.xlane.xlu0 %2905
      %v2907 = vsel %vm2668, %v2903, 0.0
      %2908 = vadd.xlane.f32.xlu0 %v2907
      %v2909 = vpop.xlane.xlu0 %2908
      %v2910 = vmul.f32 %v2906, %v2672
      %v2911 = vmul.f32 %v2909, %v2672
      %v2912 = vsub.f32 %v2902, %v2910
      %v2913 = vsub.f32 %v2903, %v2911
      %v2914 = vmul.f32 %v2912, %v2912
      %v2915 = vmul.f32 %v2913, %v2913
      %v2916 = vsel %vm485, %v2914, 0.0
      %2917 = vadd.xlane.f32.xlu0 %v2916
      %v2918 = vpop.xlane.xlu0 %2917
      %v2919 = vsel %vm2668, %v2915, 0.0
      %2920 = vadd.xlane.f32.xlu0 %v2919
      %v2921 = vpop.xlane.xlu0 %2920
      %v2922 = vmul.f32 %v2918, %v2672
      %v2923 = vmul.f32 %v2921, %v2672
      %v2924 = vadd.f32 %v2922, 1e-05
      %v2925 = vadd.f32 %v2923, 1e-05
      %v2926 = vrsqrt.pop %v2924
      %v2927 = vrsqrt.pop %v2925
      %v2928 = vmul.f32 %v2912, %v2926
      %v2929 = vmul.f32 %v2913, %v2927
      %v2930 = vld [vmem:[%s12] sm:$0x1]
      %v2932 = vlaneseq
      %v2933 = vshrl.u32 %v2932, 7
      %v2934 = vsub.s32 0, %v2933
      %v2935 = vrot.slane %v2930, %v2934
      %v2937 = vmul.f32 %v2928, %v2935
      %v2938 = vmul.f32 %v2929, %v2935
      %v2939 = vld [vmem:[%s13] sm:$0x1]
      %v2941 = vlaneseq
      %v2942 = vshrl.u32 %v2941, 7
      %v2943 = vsub.s32 0, %v2942
      %v2944 = vrot.slane %v2939, %v2943
      %v2946 = vadd.f32 %v2937, %v2944
      %v2947 = vadd.f32 %v2938, %v2944
      %2948 = vst.msk [vmem:[%s467] sm:$0xff] %vm485, %v2946
      %2949 = vst.msk [vmem:[%s467 + $0x8] sm:$0x3] %vm2668, %v2947
      %p2950 = scmp.lt.s32.totalorder %s25, 1
      %s2951 = scalar_select %p2950, %s25, 1
      %s2952 = smul.addr %s2951, 2
      %s2953 = smul.addr %s2952, 8
      %s2954 = scalar_lea.vmem %s14, %s2953
      // Predicated region
      $region77: #{trans_seq2seq_forward.3} parent=75 // pred_check
        %p2955 = pneg %p342
      $region78: #{trans_seq2seq_forward.3} parent=75 // pred_check_branch
        %2957 = sbr.rel (%p2955) target = $region80
      $region79: #{trans_seq2seq_forward.3} parent=75 // pred_region
        _
      $region80: #{trans_seq2seq_forward.3} parent=75 // pred_fallthru
        _
    $region76: #{trans_seq2seq_forward.3} parent=5 // pred_fallthru
      _
    %p2958 = scmp.le.s32.totalorder 2, %s20
    // Predicated region
    $region81: #{trans_seq2seq_forward.3} parent=5 // pred_check
      %p2959 = pneg %p2958
    $region82: #{trans_seq2seq_forward.3} parent=5 // pred_check_branch
      %2961 = sbr.rel (%p2959) target = $region84
    $region83: #{trans_seq2seq_forward.3} parent=5 // pred_region
      %s2962 = ssub.s32 %s20, 2
      // Predicated region
      $region85: #{trans_seq2seq_forward.3} parent=83 // pred_check
        %p2963 = pneg %p348
      $region86: #{trans_seq2seq_forward.3} parent=83 // pred_check_branch
        %2965 = sbr.rel (%p2963) target = $region88
      $region87: #{trans_seq2seq_forward.3} parent=83 // pred_region
        %p2966 = scmp.lt.s32.totalorder %s26, 1
        %s2967 = scalar_select %p2966, %s26, 1
        %s2968 = smul.addr %s2967, 2
        %s2969 = smul.addr %s2968, 8
        %s2970 = scalar_lea.vmem %s14, %s2969
      $region88: #{trans_seq2seq_forward.3} parent=83 // pred_fallthru
        _
    $region84: #{trans_seq2seq_forward.3} parent=5 // pred_fallthru
      _
  $region6: #{trans_seq2seq_forward.3} parent=0 // loop_footer
    %s24 = sadd.s32 1, %s20
  $region7: #{trans_seq2seq_forward.3} parent=0 // loop_footer_branch
    %19 = sbr.rel target = $region3
  $region8: #{trans_seq2seq_forward.3} parent=0 // loop_exit
    _

// kernel: trans_seq2seq_forward.4
$region0: #{trans_seq2seq_forward.4}
  #allocation0 [shape = 'u32[]', space=smem, size = 0x4, offset = 0x4, fixed_abs, tag = 'smem constant byte address 0x4 - core index']
  #allocation1 [shape = 'u32[144,128]{1,0:T(1,128)}', space=vmem, size = 0x12000, scoped, tag = 'internal scratch']
  %s0 = inlined_call_operand.vmem [shape: f32[2,8,32], index: 0, kind: input, shape index: {}]
  %s1 = inlined_call_operand.vmem [shape: f32[1,8,32], index: 1, kind: input, shape index: {}]
  %s2 = inlined_call_operand.vmem [shape: f32[2,10,32], index: 2, kind: input, shape index: {}]
  %s3 = inlined_call_operand.vmem [shape: f32[12,32,8], index: 3, kind: input, shape index: {}]
  %s4 = inlined_call_operand.vmem [shape: f32[12,1,8], index: 4, kind: input, shape index: {}]
  %s5 = inlined_call_operand.vmem [shape: f32[4,8,32], index: 5, kind: input, shape index: {}]
  %s6 = inlined_call_operand.vmem [shape: f32[1,32], index: 6, kind: input, shape index: {}]
  %s7 = inlined_call_operand.vmem [shape: f32[1,32], index: 7, kind: input, shape index: {}]
  %s8 = inlined_call_operand.vmem [shape: f32[1,32], index: 8, kind: input, shape index: {}]
  %s9 = inlined_call_operand.vmem [shape: f32[12,32,8], index: 9, kind: input, shape index: {}]
  %s10 = inlined_call_operand.vmem [shape: f32[12,1,8], index: 10, kind: input, shape index: {}]
  %s11 = inlined_call_operand.vmem [shape: f32[4,8,32], index: 11, kind: input, shape index: {}]
  %s12 = inlined_call_operand.vmem [shape: f32[1,32], index: 12, kind: input, shape index: {}]
  %s13 = inlined_call_operand.vmem [shape: f32[1,32], index: 13, kind: input, shape index: {}]
  %s14 = inlined_call_operand.vmem [shape: f32[1,32], index: 14, kind: input, shape index: {}]
  %s15 = inlined_call_operand.vmem [shape: f32[32,64], index: 15, kind: input, shape index: {}]
  %s16 = inlined_call_operand.vmem [shape: f32[1,64], index: 16, kind: input, shape index: {}]
  %s17 = inlined_call_operand.vmem [shape: f32[64,32], index: 17, kind: input, shape index: {}]
  %s18 = inlined_call_operand.vmem [shape: f32[1,32], index: 18, kind: input, shape index: {}]
  %s19 = inlined_call_operand.vmem [shape: f32[1,32], index: 19, kind: input, shape index: {}]
  %s20 = inlined_call_operand.vmem [shape: f32[1,32], index: 20, kind: input, shape index: {}]
  %s21 = inlined_call_operand.vmem [shape: f32[2,8,32], index: 21, kind: output, shape index: {}]
  %s22 = sld [smem:[#allocation0]]
  $region117: #{trans_seq2seq_forward.4} parent=0
    _
  %s24 = ssub.s32 1, %s22
  %s25 = scalar_select 0, %s24, %s22
  loop: start=0, step=1, limit=4
  $region2: #{trans_seq2seq_forward.4} parent=0 // loop_pre_header
    _
  $region3: #{trans_seq2seq_forward.4} parent=0 // loop_header
    %s27 = sphi 0, %s31
    %p28 = scmp.ge.s32.totalorder %s27, 4
    %s37 = sphi 0, %s39
    %s40 = sphi 0, %s37
    %s41 = sphi 0, %s40
    %s57 = sphi 0, %s41
    %s61 = sphi 0, %s61
    %s63 = sphi 0, %s61
    %s64 = sphi 0, %s63
    %s78 = sphi 0, %s64
    %s84 = sphi 0, %s86
    %s87 = sphi 0, %s84
    %s88 = sphi 0, %s87
    %s104 = sphi 0, %s88
    %s108 = sphi 0, %s108
    %s110 = sphi 0, %s108
    %s111 = sphi 0, %s110
    %s125 = sphi 0, %s111
    %s129 = sphi 0, %s129
    %s131 = sphi 0, %s129
    %s132 = sphi 0, %s131
    %s146 = sphi 0, %s132
    %s150 = sphi 0, %s150
    %s152 = sphi 0, %s150
    %s153 = sphi 0, %s152
    %s167 = sphi 0, %s153
    %s171 = sphi 0, %s171
    %s173 = sphi 0, %s171
    %s174 = sphi 0, %s173
    %s188 = sphi 0, %s174
    %s192 = sphi 0, %s192
    %s194 = sphi 0, %s192
    %s195 = sphi 0, %s194
    %s209 = sphi 0, %s195
    %s213 = sphi 0, %s213
    %s215 = sphi 0, %s213
    %s216 = sphi 0, %s215
    %s230 = sphi 0, %s216
    %s234 = sphi 0, %s234
    %s236 = sphi 0, %s234
    %s237 = sphi 0, %s236
    %s251 = sphi 0, %s237
    %s255 = sphi 0, %s255
    %s257 = sphi 0, %s255
    %s258 = sphi 0, %s257
    %s272 = sphi 0, %s258
    %s276 = sphi 0, %s276
    %s278 = sphi 0, %s276
    %s279 = sphi 0, %s278
    %s293 = sphi 0, %s279
    %s297 = sphi 0, %s297
    %s299 = sphi 0, %s297
    %s300 = sphi 0, %s299
    %s314 = sphi 0, %s300
    %s318 = sphi 0, %s318
    %s320 = sphi 0, %s318
    %s321 = sphi 0, %s320
    %s335 = sphi 0, %s321
    %s339 = sphi 0, %s339
    %s341 = sphi 0, %s339
    %s342 = sphi 0, %s341
    %s356 = sphi 0, %s342
    %s360 = sphi 0, %s360
    %s362 = sphi 0, %s360
    %s363 = sphi 0, %s362
    %s377 = sphi 0, %s363
    %s381 = sphi 0, %s381
    %s383 = sphi 0, %s381
    %s384 = sphi 0, %s383
    %s398 = sphi 0, %s384
    %s402 = sphi 0, %s402
    %s404 = sphi 0, %s402
    %s405 = sphi 0, %s404
    %s419 = sphi 0, %s405
    %s423 = sphi 0, %s423
    %s425 = sphi 0, %s423
    %s426 = sphi 0, %s425
    %s440 = sphi 0, %s426
    %s444 = sphi 0, %s444
    %s446 = sphi 0, %s444
    %s447 = sphi 0, %s446
    %s461 = sphi 0, %s447
    %s465 = sphi 0, %s465
    %s467 = sphi 0, %s465
    %s468 = sphi 0, %s467
    %s482 = sphi 0, %s468
    %s488 = sphi 0, %s490
    %s491 = sphi 0, %s488
    %s492 = sphi 0, %s491
    %s508 = sphi 0, %s492
  $region4: #{trans_seq2seq_forward.4} parent=0 // loop_header_branch
    %30 = sbr.rel (%p28) target = $region8
  $region5: #{trans_seq2seq_forward.4} parent=0 // loop_body
    %s32 = ssub.s32 %s27, 1
    %s33 = ssub.s32 %s27, 2
    %s34 = sadd.s32 %s27, 1
    %s35 = ssub.s32 %s27, %s34
    %p36 = scmp.eq.s32.totalorder %s35, 0
    %s38 = sadd.s32 %s37, 1
    %s39 = scalar_select %p36, %s37, %s38
    %p42 = pneg %p36
    %p43 = scmp.eq.s32.totalorder %s27, 1
    %p44 = por %p42, %p43
    %p45 = scmp.ne.s32.totalorder %s37, %s40
    %p46 = scmp.eq.s32.totalorder %s27, 0
    %p47 = por %p45, %p46
    %p48 = scmp.ne.s32.totalorder %s37, %s40
    %p49 = scmp.eq.s32.totalorder %s32, 1
    %p50 = por %p48, %p49
    %p51 = scmp.ne.s32.totalorder %s40, %s41
    %p52 = scmp.eq.s32.totalorder %s32, 0
    %p53 = por %p51, %p52
    %p54 = scmp.ne.s32.totalorder %s40, %s41
    %p55 = scmp.eq.s32.totalorder %s33, 1
    %p56 = por %p54, %p55
    %p58 = scmp.ne.s32.totalorder %s41, %s57
    %p59 = scmp.eq.s32.totalorder %s33, 0
    %p60 = por %p58, %p59
    %s62 = sadd.s32 %s61, 1
    %p65 = scmp.eq.s32.totalorder %s27, 1
    %p66 = scmp.ne.s32.totalorder %s61, %s63
    %p67 = scmp.eq.s32.totalorder %s27, 0
    %p68 = por %p66, %p67
    %p69 = scmp.ne.s32.totalorder %s61, %s63
    %p70 = scmp.eq.s32.totalorder %s32, 1
    %p71 = por %p69, %p70
    %p72 = scmp.ne.s32.totalorder %s63, %s64
    %p73 = scmp.eq.s32.totalorder %s32, 0
    %p74 = por %p72, %p73
    %p75 = scmp.ne.s32.totalorder %s63, %s64
    %p76 = scmp.eq.s32.totalorder %s33, 1
    %p77 = por %p75, %p76
    %p79 = scmp.ne.s32.totalorder %s64, %s78
    %p80 = scmp.eq.s32.totalorder %s33, 0
    %p81 = por %p79, %p80
    %s82 = ssub.s32 %s27, %s34
    %p83 = scmp.eq.s32.totalorder %s82, 0
    %s85 = sadd.s32 %s84, 1
    %s86 = scalar_select %p83, %s84, %s85
    %p89 = pneg %p83
    %p90 = scmp.eq.s32.totalorder %s27, 1
    %p91 = por %p89, %p90
    %p92 = scmp.ne.s32.totalorder %s84, %s87
    %p93 = scmp.eq.s32.totalorder %s27, 0
    %p94 = por %p92, %p93
    %p95 = scmp.ne.s32.totalorder %s84, %s87
    %p96 = scmp.eq.s32.totalorder %s32, 1
    %p97 = por %p95, %p96
    %p98 = scmp.ne.s32.totalorder %s87, %s88
    %p99 = scmp.eq.s32.totalorder %s32, 0
    %p100 = por %p98, %p99
    %p101 = scmp.ne.s32.totalorder %s87, %s88
    %p102 = scmp.eq.s32.totalorder %s33, 1
    %p103 = por %p101, %p102
    %p105 = scmp.ne.s32.totalorder %s88, %s104
    %p106 = scmp.eq.s32.totalorder %s33, 0
    %p107 = por %p105, %p106
    %s109 = sadd.s32 %s108, 1
    %p112 = scmp.eq.s32.totalorder %s27, 1
    %p113 = scmp.ne.s32.totalorder %s108, %s110
    %p114 = scmp.eq.s32.totalorder %s27, 0
    %p115 = por %p113, %p114
    %p116 = scmp.ne.s32.totalorder %s108, %s110
    %p117 = scmp.eq.s32.totalorder %s32, 1
    %p118 = por %p116, %p117
    %p119 = scmp.ne.s32.totalorder %s110, %s111
    %p120 = scmp.eq.s32.totalorder %s32, 0
    %p121 = por %p119, %p120
    %p122 = scmp.ne.s32.totalorder %s110, %s111
    %p123 = scmp.eq.s32.totalorder %s33, 1
    %p124 = por %p122, %p123
    %p126 = scmp.ne.s32.totalorder %s111, %s125
    %p127 = scmp.eq.s32.totalorder %s33, 0
    %p128 = por %p126, %p127
    %s130 = sadd.s32 %s129, 1
    %p133 = scmp.eq.s32.totalorder %s27, 1
    %p134 = scmp.ne.s32.totalorder %s129, %s131
    %p135 = scmp.eq.s32.totalorder %s27, 0
    %p136 = por %p134, %p135
    %p137 = scmp.ne.s32.totalorder %s129, %s131
    %p138 = scmp.eq.s32.totalorder %s32, 1
    %p139 = por %p137, %p138
    %p140 = scmp.ne.s32.totalorder %s131, %s132
    %p141 = scmp.eq.s32.totalorder %s32, 0
    %p142 = por %p140, %p141
    %p143 = scmp.ne.s32.totalorder %s131, %s132
    %p144 = scmp.eq.s32.totalorder %s33, 1
    %p145 = por %p143, %p144
    %p147 = scmp.ne.s32.totalorder %s132, %s146
    %p148 = scmp.eq.s32.totalorder %s33, 0
    %p149 = por %p147, %p148
    %s151 = sadd.s32 %s150, 1
    %p154 = scmp.eq.s32.totalorder %s27, 1
    %p155 = scmp.ne.s32.totalorder %s150, %s152
    %p156 = scmp.eq.s32.totalorder %s27, 0
    %p157 = por %p155, %p156
    %p158 = scmp.ne.s32.totalorder %s150, %s152
    %p159 = scmp.eq.s32.totalorder %s32, 1
    %p160 = por %p158, %p159
    %p161 = scmp.ne.s32.totalorder %s152, %s153
    %p162 = scmp.eq.s32.totalorder %s32, 0
    %p163 = por %p161, %p162
    %p164 = scmp.ne.s32.totalorder %s152, %s153
    %p165 = scmp.eq.s32.totalorder %s33, 1
    %p166 = por %p164, %p165
    %p168 = scmp.ne.s32.totalorder %s153, %s167
    %p169 = scmp.eq.s32.totalorder %s33, 0
    %p170 = por %p168, %p169
    %s172 = sadd.s32 %s171, 1
    %p175 = scmp.eq.s32.totalorder %s27, 1
    %p176 = scmp.ne.s32.totalorder %s171, %s173
    %p177 = scmp.eq.s32.totalorder %s27, 0
    %p178 = por %p176, %p177
    %p179 = scmp.ne.s32.totalorder %s171, %s173
    %p180 = scmp.eq.s32.totalorder %s32, 1
    %p181 = por %p179, %p180
    %p182 = scmp.ne.s32.totalorder %s173, %s174
    %p183 = scmp.eq.s32.totalorder %s32, 0
    %p184 = por %p182, %p183
    %p185 = scmp.ne.s32.totalorder %s173, %s174
    %p186 = scmp.eq.s32.totalorder %s33, 1
    %p187 = por %p185, %p186
    %p189 = scmp.ne.s32.totalorder %s174, %s188
    %p190 = scmp.eq.s32.totalorder %s33, 0
    %p191 = por %p189, %p190
    %s193 = sadd.s32 %s192, 1
    %p196 = scmp.eq.s32.totalorder %s27, 1
    %p197 = scmp.ne.s32.totalorder %s192, %s194
    %p198 = scmp.eq.s32.totalorder %s27, 0
    %p199 = por %p197, %p198
    %p200 = scmp.ne.s32.totalorder %s192, %s194
    %p201 = scmp.eq.s32.totalorder %s32, 1
    %p202 = por %p200, %p201
    %p203 = scmp.ne.s32.totalorder %s194, %s195
    %p204 = scmp.eq.s32.totalorder %s32, 0
    %p205 = por %p203, %p204
    %p206 = scmp.ne.s32.totalorder %s194, %s195
    %p207 = scmp.eq.s32.totalorder %s33, 1
    %p208 = por %p206, %p207
    %p210 = scmp.ne.s32.totalorder %s195, %s209
    %p211 = scmp.eq.s32.totalorder %s33, 0
    %p212 = por %p210, %p211
    %s214 = sadd.s32 %s213, 1
    %p217 = scmp.eq.s32.totalorder %s27, 1
    %p218 = scmp.ne.s32.totalorder %s213, %s215
    %p219 = scmp.eq.s32.totalorder %s27, 0
    %p220 = por %p218, %p219
    %p221 = scmp.ne.s32.totalorder %s213, %s215
    %p222 = scmp.eq.s32.totalorder %s32, 1
    %p223 = por %p221, %p222
    %p224 = scmp.ne.s32.totalorder %s215, %s216
    %p225 = scmp.eq.s32.totalorder %s32, 0
    %p226 = por %p224, %p225
    %p227 = scmp.ne.s32.totalorder %s215, %s216
    %p228 = scmp.eq.s32.totalorder %s33, 1
    %p229 = por %p227, %p228
    %p231 = scmp.ne.s32.totalorder %s216, %s230
    %p232 = scmp.eq.s32.totalorder %s33, 0
    %p233 = por %p231, %p232
    %s235 = sadd.s32 %s234, 1
    %p238 = scmp.eq.s32.totalorder %s27, 1
    %p239 = scmp.ne.s32.totalorder %s234, %s236
    %p240 = scmp.eq.s32.totalorder %s27, 0
    %p241 = por %p239, %p240
    %p242 = scmp.ne.s32.totalorder %s234, %s236
    %p243 = scmp.eq.s32.totalorder %s32, 1
    %p244 = por %p242, %p243
    %p245 = scmp.ne.s32.totalorder %s236, %s237
    %p246 = scmp.eq.s32.totalorder %s32, 0
    %p247 = por %p245, %p246
    %p248 = scmp.ne.s32.totalorder %s236, %s237
    %p249 = scmp.eq.s32.totalorder %s33, 1
    %p250 = por %p248, %p249
    %p252 = scmp.ne.s32.totalorder %s237, %s251
    %p253 = scmp.eq.s32.totalorder %s33, 0
    %p254 = por %p252, %p253
    %s256 = sadd.s32 %s255, 1
    %p259 = scmp.eq.s32.totalorder %s27, 1
    %p260 = scmp.ne.s32.totalorder %s255, %s257
    %p261 = scmp.eq.s32.totalorder %s27, 0
    %p262 = por %p260, %p261
    %p263 = scmp.ne.s32.totalorder %s255, %s257
    %p264 = scmp.eq.s32.totalorder %s32, 1
    %p265 = por %p263, %p264
    %p266 = scmp.ne.s32.totalorder %s257, %s258
    %p267 = scmp.eq.s32.totalorder %s32, 0
    %p268 = por %p266, %p267
    %p269 = scmp.ne.s32.totalorder %s257, %s258
    %p270 = scmp.eq.s32.totalorder %s33, 1
    %p271 = por %p269, %p270
    %p273 = scmp.ne.s32.totalorder %s258, %s272
    %p274 = scmp.eq.s32.totalorder %s33, 0
    %p275 = por %p273, %p274
    %s277 = sadd.s32 %s276, 1
    %p280 = scmp.eq.s32.totalorder %s27, 1
    %p281 = scmp.ne.s32.totalorder %s276, %s278
    %p282 = scmp.eq.s32.totalorder %s27, 0
    %p283 = por %p281, %p282
    %p284 = scmp.ne.s32.totalorder %s276, %s278
    %p285 = scmp.eq.s32.totalorder %s32, 1
    %p286 = por %p284, %p285
    %p287 = scmp.ne.s32.totalorder %s278, %s279
    %p288 = scmp.eq.s32.totalorder %s32, 0
    %p289 = por %p287, %p288
    %p290 = scmp.ne.s32.totalorder %s278, %s279
    %p291 = scmp.eq.s32.totalorder %s33, 1
    %p292 = por %p290, %p291
    %p294 = scmp.ne.s32.totalorder %s279, %s293
    %p295 = scmp.eq.s32.totalorder %s33, 0
    %p296 = por %p294, %p295
    %s298 = sadd.s32 %s297, 1
    %p301 = scmp.eq.s32.totalorder %s27, 1
    %p302 = scmp.ne.s32.totalorder %s297, %s299
    %p303 = scmp.eq.s32.totalorder %s27, 0
    %p304 = por %p302, %p303
    %p305 = scmp.ne.s32.totalorder %s297, %s299
    %p306 = scmp.eq.s32.totalorder %s32, 1
    %p307 = por %p305, %p306
    %p308 = scmp.ne.s32.totalorder %s299, %s300
    %p309 = scmp.eq.s32.totalorder %s32, 0
    %p310 = por %p308, %p309
    %p311 = scmp.ne.s32.totalorder %s299, %s300
    %p312 = scmp.eq.s32.totalorder %s33, 1
    %p313 = por %p311, %p312
    %p315 = scmp.ne.s32.totalorder %s300, %s314
    %p316 = scmp.eq.s32.totalorder %s33, 0
    %p317 = por %p315, %p316
    %s319 = sadd.s32 %s318, 1
    %p322 = scmp.eq.s32.totalorder %s27, 1
    %p323 = scmp.ne.s32.totalorder %s318, %s320
    %p324 = scmp.eq.s32.totalorder %s27, 0
    %p325 = por %p323, %p324
    %p326 = scmp.ne.s32.totalorder %s318, %s320
    %p327 = scmp.eq.s32.totalorder %s32, 1
    %p328 = por %p326, %p327
    %p329 = scmp.ne.s32.totalorder %s320, %s321
    %p330 = scmp.eq.s32.totalorder %s32, 0
    %p331 = por %p329, %p330
    %p332 = scmp.ne.s32.totalorder %s320, %s321
    %p333 = scmp.eq.s32.totalorder %s33, 1
    %p334 = por %p332, %p333
    %p336 = scmp.ne.s32.totalorder %s321, %s335
    %p337 = scmp.eq.s32.totalorder %s33, 0
    %p338 = por %p336, %p337
    %s340 = sadd.s32 %s339, 1
    %p343 = scmp.eq.s32.totalorder %s27, 1
    %p344 = scmp.ne.s32.totalorder %s339, %s341
    %p345 = scmp.eq.s32.totalorder %s27, 0
    %p346 = por %p344, %p345
    %p347 = scmp.ne.s32.totalorder %s339, %s341
    %p348 = scmp.eq.s32.totalorder %s32, 1
    %p349 = por %p347, %p348
    %p350 = scmp.ne.s32.totalorder %s341, %s342
    %p351 = scmp.eq.s32.totalorder %s32, 0
    %p352 = por %p350, %p351
    %p353 = scmp.ne.s32.totalorder %s341, %s342
    %p354 = scmp.eq.s32.totalorder %s33, 1
    %p355 = por %p353, %p354
    %p357 = scmp.ne.s32.totalorder %s342, %s356
    %p358 = scmp.eq.s32.totalorder %s33, 0
    %p359 = por %p357, %p358
    %s361 = sadd.s32 %s360, 1
    %p364 = scmp.eq.s32.totalorder %s27, 1
    %p365 = scmp.ne.s32.totalorder %s360, %s362
    %p366 = scmp.eq.s32.totalorder %s27, 0
    %p367 = por %p365, %p366
    %p368 = scmp.ne.s32.totalorder %s360, %s362
    %p369 = scmp.eq.s32.totalorder %s32, 1
    %p370 = por %p368, %p369
    %p371 = scmp.ne.s32.totalorder %s362, %s363
    %p372 = scmp.eq.s32.totalorder %s32, 0
    %p373 = por %p371, %p372
    %p374 = scmp.ne.s32.totalorder %s362, %s363
    %p375 = scmp.eq.s32.totalorder %s33, 1
    %p376 = por %p374, %p375
    %p378 = scmp.ne.s32.totalorder %s363, %s377
    %p379 = scmp.eq.s32.totalorder %s33, 0
    %p380 = por %p378, %p379
    %s382 = sadd.s32 %s381, 1
    %p385 = scmp.eq.s32.totalorder %s27, 1
    %p386 = scmp.ne.s32.totalorder %s381, %s383
    %p387 = scmp.eq.s32.totalorder %s27, 0
    %p388 = por %p386, %p387
    %p389 = scmp.ne.s32.totalorder %s381, %s383
    %p390 = scmp.eq.s32.totalorder %s32, 1
    %p391 = por %p389, %p390
    %p392 = scmp.ne.s32.totalorder %s383, %s384
    %p393 = scmp.eq.s32.totalorder %s32, 0
    %p394 = por %p392, %p393
    %p395 = scmp.ne.s32.totalorder %s383, %s384
    %p396 = scmp.eq.s32.totalorder %s33, 1
    %p397 = por %p395, %p396
    %p399 = scmp.ne.s32.totalorder %s384, %s398
    %p400 = scmp.eq.s32.totalorder %s33, 0
    %p401 = por %p399, %p400
    %s403 = sadd.s32 %s402, 1
    %p406 = scmp.eq.s32.totalorder %s27, 1
    %p407 = scmp.ne.s32.totalorder %s402, %s404
    %p408 = scmp.eq.s32.totalorder %s27, 0
    %p409 = por %p407, %p408
    %p410 = scmp.ne.s32.totalorder %s402, %s404
    %p411 = scmp.eq.s32.totalorder %s32, 1
    %p412 = por %p410, %p411
    %p413 = scmp.ne.s32.totalorder %s404, %s405
    %p414 = scmp.eq.s32.totalorder %s32, 0
    %p415 = por %p413, %p414
    %p416 = scmp.ne.s32.totalorder %s404, %s405
    %p417 = scmp.eq.s32.totalorder %s33, 1
    %p418 = por %p416, %p417
    %p420 = scmp.ne.s32.totalorder %s405, %s419
    %p421 = scmp.eq.s32.totalorder %s33, 0
    %p422 = por %p420, %p421
    %s424 = sadd.s32 %s423, 1
    %p427 = scmp.eq.s32.totalorder %s27, 1
    %p428 = scmp.ne.s32.totalorder %s423, %s425
    %p429 = scmp.eq.s32.totalorder %s27, 0
    %p430 = por %p428, %p429
    %p431 = scmp.ne.s32.totalorder %s423, %s425
    %p432 = scmp.eq.s32.totalorder %s32, 1
    %p433 = por %p431, %p432
    %p434 = scmp.ne.s32.totalorder %s425, %s426
    %p435 = scmp.eq.s32.totalorder %s32, 0
    %p436 = por %p434, %p435
    %p437 = scmp.ne.s32.totalorder %s425, %s426
    %p438 = scmp.eq.s32.totalorder %s33, 1
    %p439 = por %p437, %p438
    %p441 = scmp.ne.s32.totalorder %s426, %s440
    %p442 = scmp.eq.s32.totalorder %s33, 0
    %p443 = por %p441, %p442
    %s445 = sadd.s32 %s444, 1
    %p448 = scmp.eq.s32.totalorder %s27, 1
    %p449 = scmp.ne.s32.totalorder %s444, %s446
    %p450 = scmp.eq.s32.totalorder %s27, 0
    %p451 = por %p449, %p450
    %p452 = scmp.ne.s32.totalorder %s444, %s446
    %p453 = scmp.eq.s32.totalorder %s32, 1
    %p454 = por %p452, %p453
    %p455 = scmp.ne.s32.totalorder %s446, %s447
    %p456 = scmp.eq.s32.totalorder %s32, 0
    %p457 = por %p455, %p456
    %p458 = scmp.ne.s32.totalorder %s446, %s447
    %p459 = scmp.eq.s32.totalorder %s33, 1
    %p460 = por %p458, %p459
    %p462 = scmp.ne.s32.totalorder %s447, %s461
    %p463 = scmp.eq.s32.totalorder %s33, 0
    %p464 = por %p462, %p463
    %s466 = sadd.s32 %s465, 1
    %p469 = scmp.eq.s32.totalorder %s27, 1
    %p470 = scmp.ne.s32.totalorder %s465, %s467
    %p471 = scmp.eq.s32.totalorder %s27, 0
    %p472 = por %p470, %p471
    %p473 = scmp.ne.s32.totalorder %s465, %s467
    %p474 = scmp.eq.s32.totalorder %s32, 1
    %p475 = por %p473, %p474
    %p476 = scmp.ne.s32.totalorder %s467, %s468
    %p477 = scmp.eq.s32.totalorder %s32, 0
    %p478 = por %p476, %p477
    %p479 = scmp.ne.s32.totalorder %s467, %s468
    %p480 = scmp.eq.s32.totalorder %s33, 1
    %p481 = por %p479, %p480
    %p483 = scmp.ne.s32.totalorder %s468, %s482
    %p484 = scmp.eq.s32.totalorder %s33, 0
    %p485 = por %p483, %p484
    %s486 = ssub.s32 %s27, %s34
    %p487 = scmp.eq.s32.totalorder %s486, 0
    %s489 = sadd.s32 %s488, 1
    %s490 = scalar_select %p487, %s488, %s489
    %p493 = pneg %p487
    %p494 = scmp.eq.s32.totalorder %s27, 1
    %p495 = por %p493, %p494
    %p496 = scmp.ne.s32.totalorder %s488, %s491
    %p497 = scmp.eq.s32.totalorder %s27, 0
    %p498 = por %p496, %p497
    %p499 = scmp.ne.s32.totalorder %s488, %s491
    %p500 = scmp.eq.s32.totalorder %s32, 1
    %p501 = por %p499, %p500
    %p502 = scmp.ne.s32.totalorder %s491, %s492
    %p503 = scmp.eq.s32.totalorder %s32, 0
    %p504 = por %p502, %p503
    %p505 = scmp.ne.s32.totalorder %s491, %s492
    %p506 = scmp.eq.s32.totalorder %s33, 1
    %p507 = por %p505, %p506
    %p509 = scmp.ne.s32.totalorder %s492, %s508
    %p510 = scmp.eq.s32.totalorder %s33, 0
    %p511 = por %p509, %p510
    %p512 = scmp.le.s32.totalorder 1, %s27
    %p513 = scmp.lt.s32.totalorder %s27, 3
    %p514 = pnand %p512, %p513
    %p515 = pneg %p514
    // Predicated region
    $region9: #{trans_seq2seq_forward.4} parent=5 // pred_check
      _
    $region10: #{trans_seq2seq_forward.4} parent=5 // pred_check_branch
      %517 = sbr.rel (%p514) target = $region12
    $region11: #{trans_seq2seq_forward.4} parent=5 // pred_region
      %s518 = ssub.s32 %s27, 1
      // Predicated region
      $region13: #{trans_seq2seq_forward.4} parent=11 // pred_check
        %p519 = pneg %p74
      $region14: #{trans_seq2seq_forward.4} parent=11 // pred_check_branch
        %521 = sbr.rel (%p519) target = $region16
      $region15: #{trans_seq2seq_forward.4} parent=11 // pred_region
        _
      $region16: #{trans_seq2seq_forward.4} parent=11 // pred_fallthru
        _
      // Predicated region
      $region17: #{trans_seq2seq_forward.4} parent=11 // pred_check
        %p522 = pneg %p121
      $region18: #{trans_seq2seq_forward.4} parent=11 // pred_check_branch
        %524 = sbr.rel (%p522) target = $region20
      $region19: #{trans_seq2seq_forward.4} parent=11 // pred_region
        _
      $region20: #{trans_seq2seq_forward.4} parent=11 // pred_fallthru
        _
      // Predicated region
      $region21: #{trans_seq2seq_forward.4} parent=11 // pred_check
        %p525 = pneg %p142
      $region22: #{trans_seq2seq_forward.4} parent=11 // pred_check_branch
        %527 = sbr.rel (%p525) target = $region24
      $region23: #{trans_seq2seq_forward.4} parent=11 // pred_region
        _
      $region24: #{trans_seq2seq_forward.4} parent=11 // pred_fallthru
        _
      // Predicated region
      $region25: #{trans_seq2seq_forward.4} parent=11 // pred_check
        %p528 = pneg %p163
      $region26: #{trans_seq2seq_forward.4} parent=11 // pred_check_branch
        %530 = sbr.rel (%p528) target = $region28
      $region27: #{trans_seq2seq_forward.4} parent=11 // pred_region
        _
      $region28: #{trans_seq2seq_forward.4} parent=11 // pred_fallthru
        _
      // Predicated region
      $region29: #{trans_seq2seq_forward.4} parent=11 // pred_check
        %p531 = pneg %p184
      $region30: #{trans_seq2seq_forward.4} parent=11 // pred_check_branch
        %533 = sbr.rel (%p531) target = $region32
      $region31: #{trans_seq2seq_forward.4} parent=11 // pred_region
        _
      $region32: #{trans_seq2seq_forward.4} parent=11 // pred_fallthru
        _
      // Predicated region
      $region33: #{trans_seq2seq_forward.4} parent=11 // pred_check
        %p534 = pneg %p205
      $region34: #{trans_seq2seq_forward.4} parent=11 // pred_check_branch
        %536 = sbr.rel (%p534) target = $region36
      $region35: #{trans_seq2seq_forward.4} parent=11 // pred_region
        _
      $region36: #{trans_seq2seq_forward.4} parent=11 // pred_fallthru
        _
      // Predicated region
      $region37: #{trans_seq2seq_forward.4} parent=11 // pred_check
        %p537 = pneg %p226
      $region38: #{trans_seq2seq_forward.4} parent=11 // pred_check_branch
        %539 = sbr.rel (%p537) target = $region40
      $region39: #{trans_seq2seq_forward.4} parent=11 // pred_region
        _
      $region40: #{trans_seq2seq_forward.4} parent=11 // pred_fallthru
        _
      // Predicated region
      $region41: #{trans_seq2seq_forward.4} parent=11 // pred_check
        %p540 = pneg %p247
      $region42: #{trans_seq2seq_forward.4} parent=11 // pred_check_branch
        %542 = sbr.rel (%p540) target = $region44
      $region43: #{trans_seq2seq_forward.4} parent=11 // pred_region
        _
      $region44: #{trans_seq2seq_forward.4} parent=11 // pred_fallthru
        _
      // Predicated region
      $region45: #{trans_seq2seq_forward.4} parent=11 // pred_check
        %p543 = pneg %p268
      $region46: #{trans_seq2seq_forward.4} parent=11 // pred_check_branch
        %545 = sbr.rel (%p543) target = $region48
      $region47: #{trans_seq2seq_forward.4} parent=11 // pred_region
        _
      $region48: #{trans_seq2seq_forward.4} parent=11 // pred_fallthru
        _
      // Predicated region
      $region49: #{trans_seq2seq_forward.4} parent=11 // pred_check
        %p546 = pneg %p289
      $region50: #{trans_seq2seq_forward.4} parent=11 // pred_check_branch
        %548 = sbr.rel (%p546) target = $region52
      $region51: #{trans_seq2seq_forward.4} parent=11 // pred_region
        _
      $region52: #{trans_seq2seq_forward.4} parent=11 // pred_fallthru
        _
      // Predicated region
      $region53: #{trans_seq2seq_forward.4} parent=11 // pred_check
        %p549 = pneg %p310
      $region54: #{trans_seq2seq_forward.4} parent=11 // pred_check_branch
        %551 = sbr.rel (%p549) target = $region56
      $region55: #{trans_seq2seq_forward.4} parent=11 // pred_region
        _
      $region56: #{trans_seq2seq_forward.4} parent=11 // pred_fallthru
        _
      // Predicated region
      $region57: #{trans_seq2seq_forward.4} parent=11 // pred_check
        %p552 = pneg %p331
      $region58: #{trans_seq2seq_forward.4} parent=11 // pred_check_branch
        %554 = sbr.rel (%p552) target = $region60
      $region59: #{trans_seq2seq_forward.4} parent=11 // pred_region
        _
      $region60: #{trans_seq2seq_forward.4} parent=11 // pred_fallthru
        _
      // Predicated region
      $region61: #{trans_seq2seq_forward.4} parent=11 // pred_check
        %p555 = pneg %p352
      $region62: #{trans_seq2seq_forward.4} parent=11 // pred_check_branch
        %557 = sbr.rel (%p555) target = $region64
      $region63: #{trans_seq2seq_forward.4} parent=11 // pred_region
        _
      $region64: #{trans_seq2seq_forward.4} parent=11 // pred_fallthru
        _
      // Predicated region
      $region65: #{trans_seq2seq_forward.4} parent=11 // pred_check
        %p558 = pneg %p373
      $region66: #{trans_seq2seq_forward.4} parent=11 // pred_check_branch
        %560 = sbr.rel (%p558) target = $region68
      $region67: #{trans_seq2seq_forward.4} parent=11 // pred_region
        _
      $region68: #{trans_seq2seq_forward.4} parent=11 // pred_fallthru
        _
      // Predicated region
      $region69: #{trans_seq2seq_forward.4} parent=11 // pred_check
        %p561 = pneg %p394
      $region70: #{trans_seq2seq_forward.4} parent=11 // pred_check_branch
        %563 = sbr.rel (%p561) target = $region72
      $region71: #{trans_seq2seq_forward.4} parent=11 // pred_region
        _
      $region72: #{trans_seq2seq_forward.4} parent=11 // pred_fallthru
        _
      // Predicated region
      $region73: #{trans_seq2seq_forward.4} parent=11 // pred_check
        %p564 = pneg %p415
      $region74: #{trans_seq2seq_forward.4} parent=11 // pred_check_branch
        %566 = sbr.rel (%p564) target = $region76
      $region75: #{trans_seq2seq_forward.4} parent=11 // pred_region
        _
      $region76: #{trans_seq2seq_forward.4} parent=11 // pred_fallthru
        _
      // Predicated region
      $region77: #{trans_seq2seq_forward.4} parent=11 // pred_check
        %p567 = pneg %p436
      $region78: #{trans_seq2seq_forward.4} parent=11 // pred_check_branch
        %569 = sbr.rel (%p567) target = $region80
      $region79: #{trans_seq2seq_forward.4} parent=11 // pred_region
        _
      $region80: #{trans_seq2seq_forward.4} parent=11 // pred_fallthru
        _
      // Predicated region
      $region81: #{trans_seq2seq_forward.4} parent=11 // pred_check
        %p570 = pneg %p457
      $region82: #{trans_seq2seq_forward.4} parent=11 // pred_check_branch
        %572 = sbr.rel (%p570) target = $region84
      $region83: #{trans_seq2seq_forward.4} parent=11 // pred_region
        _
      $region84: #{trans_seq2seq_forward.4} parent=11 // pred_fallthru
        _
      // Predicated region
      $region85: #{trans_seq2seq_forward.4} parent=11 // pred_check
        %p573 = pneg %p478
      $region86: #{trans_seq2seq_forward.4} parent=11 // pred_check_branch
        %575 = sbr.rel (%p573) target = $region88
      $region87: #{trans_seq2seq_forward.4} parent=11 // pred_region
        _
      $region88: #{trans_seq2seq_forward.4} parent=11 // pred_fallthru
        _
    $region12: #{trans_seq2seq_forward.4} parent=5 // pred_fallthru
      _
    %p576 = scmp.lt.s32.totalorder %s27, 2
    // Predicated region
    $region89: #{trans_seq2seq_forward.4} parent=5 // pred_check
      %p577 = pneg %p576
    $region90: #{trans_seq2seq_forward.4} parent=5 // pred_check_branch
      %579 = sbr.rel (%p577) target = $region92
    $region91: #{trans_seq2seq_forward.4} parent=5 // pred_region
      // Predicated region
      $region93: #{trans_seq2seq_forward.4} parent=91 // pred_check
        %p580 = pneg %p47
      $region94: #{trans_seq2seq_forward.4} parent=91 // pred_check_branch
        %582 = sbr.rel (%p580) target = $region96
      $region95: #{trans_seq2seq_forward.4} parent=91 // pred_region
        %p583 = scmp.lt.s32.totalorder %s27, 1
        %s584 = scalar_select %p583, %s27, 1
        %s585 = smul.addr %s584, 8
        %s586 = scalar_lea.vmem %s0, %s585
      $region96: #{trans_seq2seq_forward.4} parent=91 // pred_fallthru
        _
      // Predicated region
      $region97: #{trans_seq2seq_forward.4} parent=91 // pred_check
        %p587 = pneg %p94
      $region98: #{trans_seq2seq_forward.4} parent=91 // pred_check_branch
        %589 = sbr.rel (%p587) target = $region100
      $region99: #{trans_seq2seq_forward.4} parent=91 // pred_region
        %p590 = scmp.lt.s32.totalorder %s27, 1
        %s591 = scalar_select %p590, %s27, 1
        %s592 = smul.addr %s591, 2
        %s593 = smul.addr %s592, 8
        %s594 = scalar_lea.vmem %s2, %s593
      $region100: #{trans_seq2seq_forward.4} parent=91 // pred_fallthru
        _
    $region92: #{trans_seq2seq_forward.4} parent=5 // pred_fallthru
      _
    %p595 = scmp.le.s32.totalorder 1, %s27
    %p596 = scmp.lt.s32.totalorder %s27, 3
    %p597 = pnand %p595, %p596
    %p598 = pneg %p597
    // Predicated region
    $region101: #{trans_seq2seq_forward.4} parent=5 // pred_check
      _
    $region102: #{trans_seq2seq_forward.4} parent=5 // pred_check_branch
      %600 = sbr.rel (%p597) target = $region104
    $region103: #{trans_seq2seq_forward.4} parent=5 // pred_region
      %s601 = ssub.s32 %s27, 1
      %p602 = scmp.lt.s32.totalorder %s32, 1
      %s603 = scalar_select %p602, %s32, 1
      %s604 = smul.addr %s603, 8
      %s605 = scalar_lea.vmem %s0, %s604
      %p606 = pneg %p53
      %p607 = pneg %p50
      %p608 = pneg %p74
      %p609 = pneg %p71
      %p610 = scmp.lt.s32.totalorder %s32, 1
      %s611 = scalar_select %p610, %s32, 1
      %s612 = smul.addr %s611, 2
      %s613 = smul.addr %s612, 8
      %s614 = scalar_lea.vmem %s2, %s613
      %p615 = pneg %p100
      %p616 = pneg %p97
      %p617 = pneg %p121
      %p618 = pneg %p118
      %p619 = pneg %p142
      %p620 = pneg %p139
      %p621 = pneg %p163
      %p622 = pneg %p160
      %p623 = pneg %p184
      %p624 = pneg %p181
      %p625 = pneg %p205
      %p626 = pneg %p202
      %p627 = pneg %p226
      %p628 = pneg %p223
      %p629 = pneg %p247
      %p630 = pneg %p244
      %p631 = pneg %p268
      %p632 = pneg %p265
      %p633 = pneg %p289
      %p634 = pneg %p286
      %p635 = pneg %p310
      %p636 = pneg %p307
      %p637 = pneg %p331
      %p638 = pneg %p328
      %p639 = pneg %p352
      %p640 = pneg %p349
      %p641 = pneg %p373
      %p642 = pneg %p370
      %p643 = pneg %p394
      %p644 = pneg %p391
      %p645 = pneg %p415
      %p646 = pneg %p412
      %p647 = pneg %p436
      %p648 = pneg %p433
      %p649 = pneg %p457
      %p650 = pneg %p454
      %p651 = pneg %p478
      %p652 = pneg %p475
      %p653 = pneg %p504
      %p654 = pneg %p501
      %p655 = scmp.lt.s32.totalorder %s32, 1
      %s656 = scalar_select %p655, %s32, 1
      %s657 = smul.addr %s656, 8
      %s658 = scalar_lea.vmem %s21, %s657
      %p659 = scmp.lt.s32.totalorder %s32, 1
      %s660 = scalar_select %p659, %s32, 1
      %s661 = smul.addr %s660, 8
      %s662 = scalar_lea.vmem %s0, %s661
      %p663 = scmp.lt.s32.totalorder %s32, 1
      %s664 = scalar_select %p663, %s32, 1
      %s665 = smul.addr %s664, 2
      %s666 = smul.addr %s665, 8
      %s667 = scalar_lea.vmem %s2, %s666
      %p668 = scmp.lt.s32.totalorder %s32, 1
      %s669 = scalar_select %p668, %s32, 1
      %s670 = smul.addr %s669, 8
      %s671 = scalar_lea.vmem %s21, %s670
      %v672 = vld [vmem:[%s662] sm:$0xff]
      %v673 = vld [vmem:[%s1] sm:$0xff]
      %v674 = vadd.f32 %v672, %v673
      %v675 = vld [vmem:[%s667] sm:$0xff]
      %v676 = vld [vmem:[%s667 + $0x8] sm:$0x3]
      %v677 = vld [vmem:[%s3] sm:$0xff]
      %v678 = vld [vmem:[%s3 + $0x8] sm:$0xff]
      %v679 = vld [vmem:[%s3 + $0x10] sm:$0xff]
      %v680 = vld [vmem:[%s3 + $0x18] sm:$0xff]
      %v681 = vld [vmem:[%s4] sm:$0x1]
      %v683 = vlaneseq
      %v684 = vshrl.u32 %v683, 7
      %v685 = vsub.s32 0, %v684
      %v686 = vrot.slane %v681, %v685
      %vm688 = vcmask 261120
      %v690 = vsel %vm688, %v674, 0
      %692 = vmatprep.subr.mxu0 0.0
      %693 = vmatpush1.msra.mxu0 %v677
      %694 = vmatprep.subr.mxu0 0.0
      %695 = vmatpush1.msra.mxu0 %v678
      %696 = vmatprep.subr.mxu0 0.0
      %697 = vmatpush1.msra.mxu0 %v679
      %698 = vmatprep.subr.mxu0 0.0
      %699 = vmatpush1.msra.mxu0 %v680
      %700 = vmatprep.subr.mxu0 0.0
      %701 = vmatpush1.msra.mxu0 0.0
      %702 = vmatprep.subr.mxu0 0.0
      %703 = vmatpush1.msra.mxu0 0.0
      %704 = vmatprep.subr.mxu0 0.0
      %705 = vmatpush1.msra.mxu0 0.0
      %706 = vmatprep.subr.mxu0 0.0
      %707 = vmatpush1.msra.mxu0 0.0
      %708 = vmatprep.subr.mxu0 0.0
      %709 = vmatpush1.msra.mxu0 0.0
      %710 = vmatprep.subr.mxu0 0.0
      %711 = vmatpush1.msra.mxu0 0.0
      %712 = vmatprep.subr.mxu0 0.0
      %713 = vmatpush1.msra.mxu0 0.0
      %714 = vmatprep.subr.mxu0 0.0
      %715 = vmatpush1.msra.mxu0 0.0
      %716 = vmatprep.subr.mxu0 0.0
      %717 = vmatpush1.msra.mxu0 0.0
      %718 = vmatprep.subr.mxu0 0.0
      %719 = vmatpush1.msra.mxu0 0.0
      %720 = vmatprep.subr.mxu0 0.0
      %721 = vmatpush1.msra.mxu0 0.0
      %722 = vmatprep.subr.mxu0 0.0
      %723 = vmatpush1.msra.mxu0 0.0
      %724 = vmatprep.subr.mxu0 0.0
      %725 = vmatpush1.msra.mxu0 0.0
      %726 = vmatprep.subr.mxu0 0.0
      %727 = vmatpush1.msra.mxu0 0.0
      %728 = vmatprep.subr.mxu0 0.0
      %729 = vmatpush1.msra.mxu0 0.0
      %730 = vmatprep.subr.mxu0 0.0
      %731 = vmatpush1.msra.mxu0 0.0
      %732 = vmatprep.subr.mxu0 0.0
      %733 = vmatpush1.msra.mxu0 0.0
      %734 = vmatprep.subr.mxu0 0.0
      %735 = vmatpush1.msra.mxu0 0.0
      %736 = vmatprep.subr.mxu0 0.0
      %737 = vmatpush1.msra.mxu0 0.0
      %738 = vmatprep.subr.mxu0 0.0
      %739 = vmatpush1.msra.mxu0 0.0
      %740 = vmatprep.subr.mxu0 0.0
      %741 = vmatpush1.msra.mxu0 0.0
      %742 = vmatprep.subr.mxu0 0.0
      %743 = vmatpush1.msra.mxu0 0.0
      %744 = vmatprep.subr.mxu0 0.0
      %745 = vmatpush1.msra.mxu0 0.0
      %746 = vmatprep.subr.mxu0 0.0
      %747 = vmatpush1.msra.mxu0 0.0
      %748 = vmatprep.subr.mxu0 0.0
      %749 = vmatpush1.msra.mxu0 0.0
      %750 = vmatprep.subr.mxu0 0.0
      %751 = vmatpush1.msra.mxu0 0.0
      %752 = vmatprep.subr.mxu0 0.0
      %753 = vmatpush1.msra.mxu0 0.0
      %754 = vmatprep.subr.mxu0 0.0
      %755 = vmatpush1.msra.mxu0 0.0
      %756 = vmatprep.mubr.f32.mxu0 0.0
      %757 = vmatmul.mubr.f32.gmra.mrb[0].mxu0 %v690
      %v758 = vpop.f32.mrb[0].mxu0
      %v759 = vadd.f32 %v686, %v758
      %v760 = vpop.f32.mrb[0].mxu0
      %761 = vdwg.mxu0
      %s762 = scalar_lea.vmem %s3, 128
      %v763 = vld [vmem:[%s762] sm:$0xff]
      %v764 = vld [vmem:[%s762 + $0x8] sm:$0xff]
      %v765 = vld [vmem:[%s762 + $0x10] sm:$0xff]
      %v766 = vld [vmem:[%s762 + $0x18] sm:$0xff]
      %s767 = scalar_lea.vmem %s4, 4
      %v768 = vld [vmem:[%s767] sm:$0x1]
      %v770 = vlaneseq
      %v771 = vshrl.u32 %v770, 7
      %v772 = vsub.s32 0, %v771
      %v773 = vrot.slane %v768, %v772
      %775 = vmatprep.subr.mxu0 0.0
      %776 = vmatpush1.msra.mxu0 %v763
      %777 = vmatprep.subr.mxu0 0.0
      %778 = vmatpush1.msra.mxu0 %v764
      %779 = vmatprep.subr.mxu0 0.0
      %780 = vmatpush1.msra.mxu0 %v765
      %781 = vmatprep.subr.mxu0 0.0
      %782 = vmatpush1.msra.mxu0 %v766
      %783 = vmatprep.subr.mxu0 0.0
      %784 = vmatpush1.msra.mxu0 0.0
      %785 = vmatprep.subr.mxu0 0.0
      %786 = vmatpush1.msra.mxu0 0.0
      %787 = vmatprep.subr.mxu0 0.0
      %788 = vmatpush1.msra.mxu0 0.0
      %789 = vmatprep.subr.mxu0 0.0
      %790 = vmatpush1.msra.mxu0 0.0
      %791 = vmatprep.subr.mxu0 0.0
      %792 = vmatpush1.msra.mxu0 0.0
      %793 = vmatprep.subr.mxu0 0.0
      %794 = vmatpush1.msra.mxu0 0.0
      %795 = vmatprep.subr.mxu0 0.0
      %796 = vmatpush1.msra.mxu0 0.0
      %797 = vmatprep.subr.mxu0 0.0
      %798 = vmatpush1.msra.mxu0 0.0
      %799 = vmatprep.subr.mxu0 0.0
      %800 = vmatpush1.msra.mxu0 0.0
      %801 = vmatprep.subr.mxu0 0.0
      %802 = vmatpush1.msra.mxu0 0.0
      %803 = vmatprep.subr.mxu0 0.0
      %804 = vmatpush1.msra.mxu0 0.0
      %805 = vmatprep.subr.mxu0 0.0
      %806 = vmatpush1.msra.mxu0 0.0
      %807 = vmatprep.subr.mxu0 0.0
      %808 = vmatpush1.msra.mxu0 0.0
      %809 = vmatprep.subr.mxu0 0.0
      %810 = vmatpush1.msra.mxu0 0.0
      %811 = vmatprep.subr.mxu0 0.0
      %812 = vmatpush1.msra.mxu0 0.0
      %813 = vmatprep.subr.mxu0 0.0
      %814 = vmatpush1.msra.mxu0 0.0
      %815 = vmatprep.subr.mxu0 0.0
      %816 = vmatpush1.msra.mxu0 0.0
      %817 = vmatprep.subr.mxu0 0.0
      %818 = vmatpush1.msra.mxu0 0.0
      %819 = vmatprep.subr.mxu0 0.0
      %820 = vmatpush1.msra.mxu0 0.0
      %821 = vmatprep.subr.mxu0 0.0
      %822 = vmatpush1.msra.mxu0 0.0
      %823 = vmatprep.subr.mxu0 0.0
      %824 = vmatpush1.msra.mxu0 0.0
      %825 = vmatprep.subr.mxu0 0.0
      %826 = vmatpush1.msra.mxu0 0.0
      %827 = vmatprep.subr.mxu0 0.0
      %828 = vmatpush1.msra.mxu0 0.0
      %829 = vmatprep.subr.mxu0 0.0
      %830 = vmatpush1.msra.mxu0 0.0
      %831 = vmatprep.subr.mxu0 0.0
      %832 = vmatpush1.msra.mxu0 0.0
      %833 = vmatprep.subr.mxu0 0.0
      %834 = vmatpush1.msra.mxu0 0.0
      %835 = vmatprep.subr.mxu0 0.0
      %836 = vmatpush1.msra.mxu0 0.0
      %837 = vmatprep.subr.mxu0 0.0
      %838 = vmatpush1.msra.mxu0 0.0
      %839 = vmatprep.mubr.f32.mxu0 0.0
      %840 = vmatmul.mubr.f32.gmra.mrb[0].mxu0 %v690
      %v841 = vpop.f32.mrb[0].mxu0
      %v842 = vadd.f32 %v773, %v841
      %v843 = vpop.f32.mrb[0].mxu0
      %844 = vdwg.mxu0
      %s845 = scalar_lea.vmem %s3, 256
      %v846 = vld [vmem:[%s845] sm:$0xff]
      %v847 = vld [vmem:[%s845 + $0x8] sm:$0xff]
      %v848 = vld [vmem:[%s845 + $0x10] sm:$0xff]
      %v849 = vld [vmem:[%s845 + $0x18] sm:$0xff]
      %s850 = scalar_lea.vmem %s4, 8
      %v851 = vld [vmem:[%s850] sm:$0x1]
      %v853 = vlaneseq
      %v854 = vshrl.u32 %v853, 7
      %v855 = vsub.s32 0, %v854
      %v856 = vrot.slane %v851, %v855
      %858 = vmatprep.subr.mxu0 0.0
      %859 = vmatpush1.msra.mxu0 %v846
      %860 = vmatprep.subr.mxu0 0.0
      %861 = vmatpush1.msra.mxu0 %v847
      %862 = vmatprep.subr.mxu0 0.0
      %863 = vmatpush1.msra.mxu0 %v848
      %864 = vmatprep.subr.mxu0 0.0
      %865 = vmatpush1.msra.mxu0 %v849
      %866 = vmatprep.subr.mxu0 0.0
      %867 = vmatpush1.msra.mxu0 0.0
      %868 = vmatprep.subr.mxu0 0.0
      %869 = vmatpush1.msra.mxu0 0.0
      %870 = vmatprep.subr.mxu0 0.0
      %871 = vmatpush1.msra.mxu0 0.0
      %872 = vmatprep.subr.mxu0 0.0
      %873 = vmatpush1.msra.mxu0 0.0
      %874 = vmatprep.subr.mxu0 0.0
      %875 = vmatpush1.msra.mxu0 0.0
      %876 = vmatprep.subr.mxu0 0.0
      %877 = vmatpush1.msra.mxu0 0.0
      %878 = vmatprep.subr.mxu0 0.0
      %879 = vmatpush1.msra.mxu0 0.0
      %880 = vmatprep.subr.mxu0 0.0
      %881 = vmatpush1.msra.mxu0 0.0
      %882 = vmatprep.subr.mxu0 0.0
      %883 = vmatpush1.msra.mxu0 0.0
      %884 = vmatprep.subr.mxu0 0.0
      %885 = vmatpush1.msra.mxu0 0.0
      %886 = vmatprep.subr.mxu0 0.0
      %887 = vmatpush1.msra.mxu0 0.0
      %888 = vmatprep.subr.mxu0 0.0
      %889 = vmatpush1.msra.mxu0 0.0
      %890 = vmatprep.subr.mxu0 0.0
      %891 = vmatpush1.msra.mxu0 0.0
      %892 = vmatprep.subr.mxu0 0.0
      %893 = vmatpush1.msra.mxu0 0.0
      %894 = vmatprep.subr.mxu0 0.0
      %895 = vmatpush1.msra.mxu0 0.0
      %896 = vmatprep.subr.mxu0 0.0
      %897 = vmatpush1.msra.mxu0 0.0
      %898 = vmatprep.subr.mxu0 0.0
      %899 = vmatpush1.msra.mxu0 0.0
      %900 = vmatprep.subr.mxu0 0.0
      %901 = vmatpush1.msra.mxu0 0.0
      %902 = vmatprep.subr.mxu0 0.0
      %903 = vmatpush1.msra.mxu0 0.0
      %904 = vmatprep.subr.mxu0 0.0
      %905 = vmatpush1.msra.mxu0 0.0
      %906 = vmatprep.subr.mxu0 0.0
      %907 = vmatpush1.msra.mxu0 0.0
      %908 = vmatprep.subr.mxu0 0.0
      %909 = vmatpush1.msra.mxu0 0.0
      %910 = vmatprep.subr.mxu0 0.0
      %911 = vmatpush1.msra.mxu0 0.0
      %912 = vmatprep.subr.mxu0 0.0
      %913 = vmatpush1.msra.mxu0 0.0
      %914 = vmatprep.subr.mxu0 0.0
      %915 = vmatpush1.msra.mxu0 0.0
      %916 = vmatprep.subr.mxu0 0.0
      %917 = vmatpush1.msra.mxu0 0.0
      %918 = vmatprep.subr.mxu0 0.0
      %919 = vmatpush1.msra.mxu0 0.0
      %920 = vmatprep.subr.mxu0 0.0
      %921 = vmatpush1.msra.mxu0 0.0
      %922 = vmatprep.mubr.f32.mxu0 0.0
      %923 = vmatmul.mubr.f32.gmra.mrb[0].mxu0 %v690
      %v924 = vpop.f32.mrb[0].mxu0
      %v925 = vadd.f32 %v856, %v924
      %v926 = vpop.f32.mrb[0].mxu0
      %927 = vdwg.mxu0
      %vm928 = vcmask 64512
      %v930 = vsel %vm928, %v759, 0
      %v933 = vsel %vm928, %v842, 0
      %935 = vmatprep.subr.mxu0 0.0
      %936 = vmatpush1.xpose.msra.mxu0 %v933
      %937 = vmatprep.subr.mxu0 0.0
      %938 = vmatpush1.xpose.msra.mxu0 0.0
      %939 = vmatprep.subr.mxu0 0.0
      %940 = vmatpush1.xpose.msra.mxu0 0.0
      %941 = vmatprep.subr.mxu0 0.0
      %942 = vmatpush1.xpose.msra.mxu0 0.0
      %943 = vmatprep.subr.mxu0 0.0
      %944 = vmatpush1.xpose.msra.mxu0 0.0
      %945 = vmatprep.subr.mxu0 0.0
      %946 = vmatpush1.xpose.msra.mxu0 0.0
      %947 = vmatprep.subr.mxu0 0.0
      %948 = vmatpush1.xpose.msra.mxu0 0.0
      %949 = vmatprep.subr.mxu0 0.0
      %950 = vmatpush1.xpose.msra.mxu0 0.0
      %951 = vmatprep.subr.mxu0 0.0
      %952 = vmatpush1.xpose.msra.mxu0 0.0
      %953 = vmatprep.subr.mxu0 0.0
      %954 = vmatpush1.xpose.msra.mxu0 0.0
      %955 = vmatprep.subr.mxu0 0.0
      %956 = vmatpush1.xpose.msra.mxu0 0.0
      %957 = vmatprep.subr.mxu0 0.0
      %958 = vmatpush1.xpose.msra.mxu0 0.0
      %959 = vmatprep.subr.mxu0 0.0
      %960 = vmatpush1.xpose.msra.mxu0 0.0
      %961 = vmatprep.subr.mxu0 0.0
      %962 = vmatpush1.xpose.msra.mxu0 0.0
      %963 = vmatprep.subr.mxu0 0.0
      %964 = vmatpush1.xpose.msra.mxu0 0.0
      %965 = vmatprep.subr.mxu0 0.0
      %966 = vmatpush1.xpose.msra.mxu0 0.0
      %967 = vmatprep.subr.mxu0 0.0
      %968 = vmatpush1.xpose.msra.mxu0 0.0
      %969 = vmatprep.subr.mxu0 0.0
      %970 = vmatpush1.xpose.msra.mxu0 0.0
      %971 = vmatprep.subr.mxu0 0.0
      %972 = vmatpush1.xpose.msra.mxu0 0.0
      %973 = vmatprep.subr.mxu0 0.0
      %974 = vmatpush1.xpose.msra.mxu0 0.0
      %975 = vmatprep.subr.mxu0 0.0
      %976 = vmatpush1.xpose.msra.mxu0 0.0
      %977 = vmatprep.subr.mxu0 0.0
      %978 = vmatpush1.xpose.msra.mxu0 0.0
      %979 = vmatprep.subr.mxu0 0.0
      %980 = vmatpush1.xpose.msra.mxu0 0.0
      %981 = vmatprep.subr.mxu0 0.0
      %982 = vmatpush1.xpose.msra.mxu0 0.0
      %983 = vmatprep.subr.mxu0 0.0
      %984 = vmatpush1.xpose.msra.mxu0 0.0
      %985 = vmatprep.subr.mxu0 0.0
      %986 = vmatpush1.xpose.msra.mxu0 0.0
      %987 = vmatprep.subr.mxu0 0.0
      %988 = vmatpush1.xpose.msra.mxu0 0.0
      %989 = vmatprep.subr.mxu0 0.0
      %990 = vmatpush1.xpose.msra.mxu0 0.0
      %991 = vmatprep.subr.mxu0 0.0
      %992 = vmatpush1.xpose.msra.mxu0 0.0
      %993 = vmatprep.subr.mxu0 0.0
      %994 = vmatpush1.xpose.msra.mxu0 0.0
      %995 = vmatprep.subr.mxu0 0.0
      %996 = vmatpush1.xpose.msra.mxu0 0.0
      %997 = vmatprep.subr.mxu0 0.0
      %998 = vmatpush1.xpose.msra.mxu0 0.0
      %999 = vmatprep.mubr.f32.mxu0 0.0
      %1000 = vmatmul.mubr.f32.gmra.mrb[0].mxu0 %v930
      %v1001 = vpop.f32.mrb[0].mxu0
      %v1002 = vadd.f32 0.0, %v1001
      %v1003 = vpop.f32.mrb[0].mxu0
      %1004 = vdwg.mxu0
      %v1005 = vmul.f32 %v1002, 0.35355338
      %v1006 = vsel %vm928, %v1005, -inf
      %1007 = vmax.xlane.f32.xlu0 %v1006
      %v1008 = vpop.xlane.xlu0 %1007
      %v1009 = vsub.f32 %v1005, %v1008
      %v1010 = vmul.f32 %v1009, 1.442695
      %v1011 = vpow.pop %v1010
      %v1012 = vsel %vm928, %v1011, 0.0
      %1013 = vadd.xlane.f32.xlu0 %v1012
      %v1014 = vpop.xlane.xlu0 %1013
      %v1015 = vrcp.pop %v1014
      %v1016 = vmul.f32 %v1011, %v1015
      %v1018 = vsel %vm928, %v1016, 0
      %1020 = vmatprep.subr.mxu0 0.0
      %1021 = vmatpush1.msra.mxu0 %v925
      %1022 = vmatprep.subr.mxu0 0.0
      %1023 = vmatpush1.msra.mxu0 0.0
      %1024 = vmatprep.subr.mxu0 0.0
      %1025 = vmatpush1.msra.mxu0 0.0
      %1026 = vmatprep.subr.mxu0 0.0
      %1027 = vmatpush1.msra.mxu0 0.0
      %1028 = vmatprep.subr.mxu0 0.0
      %1029 = vmatpush1.msra.mxu0 0.0
      %1030 = vmatprep.subr.mxu0 0.0
      %1031 = vmatpush1.msra.mxu0 0.0
      %1032 = vmatprep.subr.mxu0 0.0
      %1033 = vmatpush1.msra.mxu0 0.0
      %1034 = vmatprep.subr.mxu0 0.0
      %1035 = vmatpush1.msra.mxu0 0.0
      %1036 = vmatprep.subr.mxu0 0.0
      %1037 = vmatpush1.msra.mxu0 0.0
      %1038 = vmatprep.subr.mxu0 0.0
      %1039 = vmatpush1.msra.mxu0 0.0
      %1040 = vmatprep.subr.mxu0 0.0
      %1041 = vmatpush1.msra.mxu0 0.0
      %1042 = vmatprep.subr.mxu0 0.0
      %1043 = vmatpush1.msra.mxu0 0.0
      %1044 = vmatprep.subr.mxu0 0.0
      %1045 = vmatpush1.msra.mxu0 0.0
      %1046 = vmatprep.subr.mxu0 0.0
      %1047 = vmatpush1.msra.mxu0 0.0
      %1048 = vmatprep.subr.mxu0 0.0
      %1049 = vmatpush1.msra.mxu0 0.0
      %1050 = vmatprep.subr.mxu0 0.0
      %1051 = vmatpush1.msra.mxu0 0.0
      %1052 = vmatprep.subr.mxu0 0.0
      %1053 = vmatpush1.msra.mxu0 0.0
      %1054 = vmatprep.subr.mxu0 0.0
      %1055 = vmatpush1.msra.mxu0 0.0
      %1056 = vmatprep.subr.mxu0 0.0
      %1057 = vmatpush1.msra.mxu0 0.0
      %1058 = vmatprep.subr.mxu0 0.0
      %1059 = vmatpush1.msra.mxu0 0.0
      %1060 = vmatprep.subr.mxu0 0.0
      %1061 = vmatpush1.msra.mxu0 0.0
      %1062 = vmatprep.subr.mxu0 0.0
      %1063 = vmatpush1.msra.mxu0 0.0
      %1064 = vmatprep.subr.mxu0 0.0
      %1065 = vmatpush1.msra.mxu0 0.0
      %1066 = vmatprep.subr.mxu0 0.0
      %1067 = vmatpush1.msra.mxu0 0.0
      %1068 = vmatprep.subr.mxu0 0.0
      %1069 = vmatpush1.msra.mxu0 0.0
      %1070 = vmatprep.subr.mxu0 0.0
      %1071 = vmatpush1.msra.mxu0 0.0
      %1072 = vmatprep.subr.mxu0 0.0
      %1073 = vmatpush1.msra.mxu0 0.0
      %1074 = vmatprep.subr.mxu0 0.0
      %1075 = vmatpush1.msra.mxu0 0.0
      %1076 = vmatprep.subr.mxu0 0.0
      %1077 = vmatpush1.msra.mxu0 0.0
      %1078 = vmatprep.subr.mxu0 0.0
      %1079 = vmatpush1.msra.mxu0 0.0
      %1080 = vmatprep.subr.mxu0 0.0
      %1081 = vmatpush1.msra.mxu0 0.0
      %1082 = vmatprep.subr.mxu0 0.0
      %1083 = vmatpush1.msra.mxu0 0.0
      %1084 = vmatprep.mubr.f32.mxu0 0.0
      %1085 = vmatmul.mubr.f32.gmra.mrb[0].mxu0 %v1018
      %v1086 = vpop.f32.mrb[0].mxu0
      %v1087 = vadd.f32 0.0, %v1086
      %v1088 = vpop.f32.mrb[0].mxu0
      %1089 = vdwg.mxu0
      %v1090 = vld [vmem:[%s5] sm:$0xff]
      %s1091 = scalar_lea.vmem %s3, 32
      %v1092 = vld [vmem:[%s1091] sm:$0xff]
      %v1093 = vld [vmem:[%s1091 + $0x8] sm:$0xff]
      %v1094 = vld [vmem:[%s1091 + $0x10] sm:$0xff]
      %v1095 = vld [vmem:[%s1091 + $0x18] sm:$0xff]
      %s1096 = scalar_lea.vmem %s4, 1
      %v1097 = vld [vmem:[%s1096] sm:$0x1]
      %v1099 = vlaneseq
      %v1100 = vshrl.u32 %v1099, 7
      %v1101 = vsub.s32 0, %v1100
      %v1102 = vrot.slane %v1097, %v1101
      %1104 = vmatprep.subr.mxu0 0.0
      %1105 = vmatpush1.msra.mxu0 %v1092
      %1106 = vmatprep.subr.mxu0 0.0
      %1107 = vmatpush1.msra.mxu0 %v1093
      %1108 = vmatprep.subr.mxu0 0.0
      %1109 = vmatpush1.msra.mxu0 %v1094
      %1110 = vmatprep.subr.mxu0 0.0
      %1111 = vmatpush1.msra.mxu0 %v1095
      %1112 = vmatprep.subr.mxu0 0.0
      %1113 = vmatpush1.msra.mxu0 0.0
      %1114 = vmatprep.subr.mxu0 0.0
      %1115 = vmatpush1.msra.mxu0 0.0
      %1116 = vmatprep.subr.mxu0 0.0
      %1117 = vmatpush1.msra.mxu0 0.0
      %1118 = vmatprep.subr.mxu0 0.0
      %1119 = vmatpush1.msra.mxu0 0.0
      %1120 = vmatprep.subr.mxu0 0.0
      %1121 = vmatpush1.msra.mxu0 0.0
      %1122 = vmatprep.subr.mxu0 0.0
      %1123 = vmatpush1.msra.mxu0 0.0
      %1124 = vmatprep.subr.mxu0 0.0
      %1125 = vmatpush1.msra.mxu0 0.0
      %1126 = vmatprep.subr.mxu0 0.0
      %1127 = vmatpush1.msra.mxu0 0.0
      %1128 = vmatprep.subr.mxu0 0.0
      %1129 = vmatpush1.msra.mxu0 0.0
      %1130 = vmatprep.subr.mxu0 0.0
      %1131 = vmatpush1.msra.mxu0 0.0
      %1132 = vmatprep.subr.mxu0 0.0
      %1133 = vmatpush1.msra.mxu0 0.0
      %1134 = vmatprep.subr.mxu0 0.0
      %1135 = vmatpush1.msra.mxu0 0.0
      %1136 = vmatprep.subr.mxu0 0.0
      %1137 = vmatpush1.msra.mxu0 0.0
      %1138 = vmatprep.subr.mxu0 0.0
      %1139 = vmatpush1.msra.mxu0 0.0
      %1140 = vmatprep.subr.mxu0 0.0
      %1141 = vmatpush1.msra.mxu0 0.0
      %1142 = vmatprep.subr.mxu0 0.0
      %1143 = vmatpush1.msra.mxu0 0.0
      %1144 = vmatprep.subr.mxu0 0.0
      %1145 = vmatpush1.msra.mxu0 0.0
      %1146 = vmatprep.subr.mxu0 0.0
      %1147 = vmatpush1.msra.mxu0 0.0
      %1148 = vmatprep.subr.mxu0 0.0
      %1149 = vmatpush1.msra.mxu0 0.0
      %1150 = vmatprep.subr.mxu0 0.0
      %1151 = vmatpush1.msra.mxu0 0.0
      %1152 = vmatprep.subr.mxu0 0.0
      %1153 = vmatpush1.msra.mxu0 0.0
      %1154 = vmatprep.subr.mxu0 0.0
      %1155 = vmatpush1.msra.mxu0 0.0
      %1156 = vmatprep.subr.mxu0 0.0
      %1157 = vmatpush1.msra.mxu0 0.0
      %1158 = vmatprep.subr.mxu0 0.0
      %1159 = vmatpush1.msra.mxu0 0.0
      %1160 = vmatprep.subr.mxu0 0.0
      %1161 = vmatpush1.msra.mxu0 0.0
      %1162 = vmatprep.subr.mxu0 0.0
      %1163 = vmatpush1.msra.mxu0 0.0
      %1164 = vmatprep.subr.mxu0 0.0
      %1165 = vmatpush1.msra.mxu0 0.0
      %1166 = vmatprep.subr.mxu0 0.0
      %1167 = vmatpush1.msra.mxu0 0.0
      %1168 = vmatprep.mubr.f32.mxu0 0.0
      %1169 = vmatmul.mubr.f32.gmra.mrb[0].mxu0 %v690
      %v1170 = vpop.f32.mrb[0].mxu0
      %v1171 = vadd.f32 %v1102, %v1170
      %v1172 = vpop.f32.mrb[0].mxu0
      %1173 = vdwg.mxu0
      %s1174 = scalar_lea.vmem %s3, 160
      %v1175 = vld [vmem:[%s1174] sm:$0xff]
      %v1176 = vld [vmem:[%s1174 + $0x8] sm:$0xff]
      %v1177 = vld [vmem:[%s1174 + $0x10] sm:$0xff]
      %v1178 = vld [vmem:[%s1174 + $0x18] sm:$0xff]
      %s1179 = scalar_lea.vmem %s4, 5
      %v1180 = vld [vmem:[%s1179] sm:$0x1]
      %v1182 = vlaneseq
      %v1183 = vshrl.u32 %v1182, 7
      %v1184 = vsub.s32 0, %v1183
      %v1185 = vrot.slane %v1180, %v1184
      %1187 = vmatprep.subr.mxu0 0.0
      %1188 = vmatpush1.msra.mxu0 %v1175
      %1189 = vmatprep.subr.mxu0 0.0
      %1190 = vmatpush1.msra.mxu0 %v1176
      %1191 = vmatprep.subr.mxu0 0.0
      %1192 = vmatpush1.msra.mxu0 %v1177
      %1193 = vmatprep.subr.mxu0 0.0
      %1194 = vmatpush1.msra.mxu0 %v1178
      %1195 = vmatprep.subr.mxu0 0.0
      %1196 = vmatpush1.msra.mxu0 0.0
      %1197 = vmatprep.subr.mxu0 0.0
      %1198 = vmatpush1.msra.mxu0 0.0
      %1199 = vmatprep.subr.mxu0 0.0
      %1200 = vmatpush1.msra.mxu0 0.0
      %1201 = vmatprep.subr.mxu0 0.0
      %1202 = vmatpush1.msra.mxu0 0.0
      %1203 = vmatprep.subr.mxu0 0.0
      %1204 = vmatpush1.msra.mxu0 0.0
      %1205 = vmatprep.subr.mxu0 0.0
      %1206 = vmatpush1.msra.mxu0 0.0
      %1207 = vmatprep.subr.mxu0 0.0
      %1208 = vmatpush1.msra.mxu0 0.0
      %1209 = vmatprep.subr.mxu0 0.0
      %1210 = vmatpush1.msra.mxu0 0.0
      %1211 = vmatprep.subr.mxu0 0.0
      %1212 = vmatpush1.msra.mxu0 0.0
      %1213 = vmatprep.subr.mxu0 0.0
      %1214 = vmatpush1.msra.mxu0 0.0
      %1215 = vmatprep.subr.mxu0 0.0
      %1216 = vmatpush1.msra.mxu0 0.0
      %1217 = vmatprep.subr.mxu0 0.0
      %1218 = vmatpush1.msra.mxu0 0.0
      %1219 = vmatprep.subr.mxu0 0.0
      %1220 = vmatpush1.msra.mxu0 0.0
      %1221 = vmatprep.subr.mxu0 0.0
      %1222 = vmatpush1.msra.mxu0 0.0
      %1223 = vmatprep.subr.mxu0 0.0
      %1224 = vmatpush1.msra.mxu0 0.0
      %1225 = vmatprep.subr.mxu0 0.0
      %1226 = vmatpush1.msra.mxu0 0.0
      %1227 = vmatprep.subr.mxu0 0.0
      %1228 = vmatpush1.msra.mxu0 0.0
      %1229 = vmatprep.subr.mxu0 0.0
      %1230 = vmatpush1.msra.mxu0 0.0
      %1231 = vmatprep.subr.mxu0 0.0
      %1232 = vmatpush1.msra.mxu0 0.0
      %1233 = vmatprep.subr.mxu0 0.0
      %1234 = vmatpush1.msra.mxu0 0.0
      %1235 = vmatprep.subr.mxu0 0.0
      %1236 = vmatpush1.msra.mxu0 0.0
      %1237 = vmatprep.subr.mxu0 0.0
      %1238 = vmatpush1.msra.mxu0 0.0
      %1239 = vmatprep.subr.mxu0 0.0
      %1240 = vmatpush1.msra.mxu0 0.0
      %1241 = vmatprep.subr.mxu0 0.0
      %1242 = vmatpush1.msra.mxu0 0.0
      %1243 = vmatprep.subr.mxu0 0.0
      %1244 = vmatpush1.msra.mxu0 0.0
      %1245 = vmatprep.subr.mxu0 0.0
      %1246 = vmatpush1.msra.mxu0 0.0
      %1247 = vmatprep.subr.mxu0 0.0
      %1248 = vmatpush1.msra.mxu0 0.0
      %1249 = vmatprep.subr.mxu0 0.0
      %1250 = vmatpush1.msra.mxu0 0.0
      %1251 = vmatprep.mubr.f32.mxu0 0.0
      %1252 = vmatmul.mubr.f32.gmra.mrb[0].mxu0 %v690
      %v1253 = vpop.f32.mrb[0].mxu0
      %v1254 = vadd.f32 %v1185, %v1253
      %v1255 = vpop.f32.mrb[0].mxu0
      %1256 = vdwg.mxu0
      %s1257 = scalar_lea.vmem %s3, 288
      %v1258 = vld [vmem:[%s1257] sm:$0xff]
      %v1259 = vld [vmem:[%s1257 + $0x8] sm:$0xff]
      %v1260 = vld [vmem:[%s1257 + $0x10] sm:$0xff]
      %v1261 = vld [vmem:[%s1257 + $0x18] sm:$0xff]
      %s1262 = scalar_lea.vmem %s4, 9
      %v1263 = vld [vmem:[%s1262] sm:$0x1]
      %v1265 = vlaneseq
      %v1266 = vshrl.u32 %v1265, 7
      %v1267 = vsub.s32 0, %v1266
      %v1268 = vrot.slane %v1263, %v1267
      %1270 = vmatprep.subr.mxu0 0.0
      %1271 = vmatpush1.msra.mxu0 %v1258
      %1272 = vmatprep.subr.mxu0 0.0
      %1273 = vmatpush1.msra.mxu0 %v1259
      %1274 = vmatprep.subr.mxu0 0.0
      %1275 = vmatpush1.msra.mxu0 %v1260
      %1276 = vmatprep.subr.mxu0 0.0
      %1277 = vmatpush1.msra.mxu0 %v1261
      %1278 = vmatprep.subr.mxu0 0.0
      %1279 = vmatpush1.msra.mxu0 0.0
      %1280 = vmatprep.subr.mxu0 0.0
      %1281 = vmatpush1.msra.mxu0 0.0
      %1282 = vmatprep.subr.mxu0 0.0
      %1283 = vmatpush1.msra.mxu0 0.0
      %1284 = vmatprep.subr.mxu0 0.0
      %1285 = vmatpush1.msra.mxu0 0.0
      %1286 = vmatprep.subr.mxu0 0.0
      %1287 = vmatpush1.msra.mxu0 0.0
      %1288 = vmatprep.subr.mxu0 0.0
      %1289 = vmatpush1.msra.mxu0 0.0
      %1290 = vmatprep.subr.mxu0 0.0
      %1291 = vmatpush1.msra.mxu0 0.0
      %1292 = vmatprep.subr.mxu0 0.0
      %1293 = vmatpush1.msra.mxu0 0.0
      %1294 = vmatprep.subr.mxu0 0.0
      %1295 = vmatpush1.msra.mxu0 0.0
      %1296 = vmatprep.subr.mxu0 0.0
      %1297 = vmatpush1.msra.mxu0 0.0
      %1298 = vmatprep.subr.mxu0 0.0
      %1299 = vmatpush1.msra.mxu0 0.0
      %1300 = vmatprep.subr.mxu0 0.0
      %1301 = vmatpush1.msra.mxu0 0.0
      %1302 = vmatprep.subr.mxu0 0.0
      %1303 = vmatpush1.msra.mxu0 0.0
      %1304 = vmatprep.subr.mxu0 0.0
      %1305 = vmatpush1.msra.mxu0 0.0
      %1306 = vmatprep.subr.mxu0 0.0
      %1307 = vmatpush1.msra.mxu0 0.0
      %1308 = vmatprep.subr.mxu0 0.0
      %1309 = vmatpush1.msra.mxu0 0.0
      %1310 = vmatprep.subr.mxu0 0.0
      %1311 = vmatpush1.msra.mxu0 0.0
      %1312 = vmatprep.subr.mxu0 0.0
      %1313 = vmatpush1.msra.mxu0 0.0
      %1314 = vmatprep.subr.mxu0 0.0
      %1315 = vmatpush1.msra.mxu0 0.0
      %1316 = vmatprep.subr.mxu0 0.0
      %1317 = vmatpush1.msra.mxu0 0.0
      %1318 = vmatprep.subr.mxu0 0.0
      %1319 = vmatpush1.msra.mxu0 0.0
      %1320 = vmatprep.subr.mxu0 0.0
      %1321 = vmatpush1.msra.mxu0 0.0
      %1322 = vmatprep.subr.mxu0 0.0
      %1323 = vmatpush1.msra.mxu0 0.0
      %1324 = vmatprep.subr.mxu0 0.0
      %1325 = vmatpush1.msra.mxu0 0.0
      %1326 = vmatprep.subr.mxu0 0.0
      %1327 = vmatpush1.msra.mxu0 0.0
      %1328 = vmatprep.subr.mxu0 0.0
      %1329 = vmatpush1.msra.mxu0 0.0
      %1330 = vmatprep.subr.mxu0 0.0
      %1331 = vmatpush1.msra.mxu0 0.0
      %1332 = vmatprep.subr.mxu0 0.0
      %1333 = vmatpush1.msra.mxu0 0.0
      %1334 = vmatprep.mubr.f32.mxu0 0.0
      %1335 = vmatmul.mubr.f32.gmra.mrb[0].mxu0 %v690
      %v1336 = vpop.f32.mrb[0].mxu0
      %v1337 = vadd.f32 %v1268, %v1336
      %v1338 = vpop.f32.mrb[0].mxu0
      %1339 = vdwg.mxu0
      %v1341 = vsel %vm928, %v1171, 0
      %v1344 = vsel %vm928, %v1254, 0
      %1346 = vmatprep.subr.mxu0 0.0
      %1347 = vmatpush1.xpose.msra.mxu0 %v1344
      %1348 = vmatprep.subr.mxu0 0.0
      %1349 = vmatpush1.xpose.msra.mxu0 0.0
      %1350 = vmatprep.subr.mxu0 0.0
      %1351 = vmatpush1.xpose.msra.mxu0 0.0
      %1352 = vmatprep.subr.mxu0 0.0
      %1353 = vmatpush1.xpose.msra.mxu0 0.0
      %1354 = vmatprep.subr.mxu0 0.0
      %1355 = vmatpush1.xpose.msra.mxu0 0.0
      %1356 = vmatprep.subr.mxu0 0.0
      %1357 = vmatpush1.xpose.msra.mxu0 0.0
      %1358 = vmatprep.subr.mxu0 0.0
      %1359 = vmatpush1.xpose.msra.mxu0 0.0
      %1360 = vmatprep.subr.mxu0 0.0
      %1361 = vmatpush1.xpose.msra.mxu0 0.0
      %1362 = vmatprep.subr.mxu0 0.0
      %1363 = vmatpush1.xpose.msra.mxu0 0.0
      %1364 = vmatprep.subr.mxu0 0.0
      %1365 = vmatpush1.xpose.msra.mxu0 0.0
      %1366 = vmatprep.subr.mxu0 0.0
      %1367 = vmatpush1.xpose.msra.mxu0 0.0
      %1368 = vmatprep.subr.mxu0 0.0
      %1369 = vmatpush1.xpose.msra.mxu0 0.0
      %1370 = vmatprep.subr.mxu0 0.0
      %1371 = vmatpush1.xpose.msra.mxu0 0.0
      %1372 = vmatprep.subr.mxu0 0.0
      %1373 = vmatpush1.xpose.msra.mxu0 0.0
      %1374 = vmatprep.subr.mxu0 0.0
      %1375 = vmatpush1.xpose.msra.mxu0 0.0
      %1376 = vmatprep.subr.mxu0 0.0
      %1377 = vmatpush1.xpose.msra.mxu0 0.0
      %1378 = vmatprep.subr.mxu0 0.0
      %1379 = vmatpush1.xpose.msra.mxu0 0.0
      %1380 = vmatprep.subr.mxu0 0.0
      %1381 = vmatpush1.xpose.msra.mxu0 0.0
      %1382 = vmatprep.subr.mxu0 0.0
      %1383 = vmatpush1.xpose.msra.mxu0 0.0
      %1384 = vmatprep.subr.mxu0 0.0
      %1385 = vmatpush1.xpose.msra.mxu0 0.0
      %1386 = vmatprep.subr.mxu0 0.0
      %1387 = vmatpush1.xpose.msra.mxu0 0.0
      %1388 = vmatprep.subr.mxu0 0.0
      %1389 = vmatpush1.xpose.msra.mxu0 0.0
      %1390 = vmatprep.subr.mxu0 0.0
      %1391 = vmatpush1.xpose.msra.mxu0 0.0
      %1392 = vmatprep.subr.mxu0 0.0
      %1393 = vmatpush1.xpose.msra.mxu0 0.0
      %1394 = vmatprep.subr.mxu0 0.0
      %1395 = vmatpush1.xpose.msra.mxu0 0.0
      %1396 = vmatprep.subr.mxu0 0.0
      %1397 = vmatpush1.xpose.msra.mxu0 0.0
      %1398 = vmatprep.subr.mxu0 0.0
      %1399 = vmatpush1.xpose.msra.mxu0 0.0
      %1400 = vmatprep.subr.mxu0 0.0
      %1401 = vmatpush1.xpose.msra.mxu0 0.0
      %1402 = vmatprep.subr.mxu0 0.0
      %1403 = vmatpush1.xpose.msra.mxu0 0.0
      %1404 = vmatprep.subr.mxu0 0.0
      %1405 = vmatpush1.xpose.msra.mxu0 0.0
      %1406 = vmatprep.subr.mxu0 0.0
      %1407 = vmatpush1.xpose.msra.mxu0 0.0
      %1408 = vmatprep.subr.mxu0 0.0
      %1409 = vmatpush1.xpose.msra.mxu0 0.0
      %1410 = vmatprep.mubr.f32.mxu0 0.0
      %1411 = vmatmul.mubr.f32.gmra.mrb[0].mxu0 %v1341
      %v1412 = vpop.f32.mrb[0].mxu0
      %v1413 = vadd.f32 0.0, %v1412
      %v1414 = vpop.f32.mrb[0].mxu0
      %1415 = vdwg.mxu0
      %v1416 = vmul.f32 %v1413, 0.35355338
      %v1417 = vsel %vm928, %v1416, -inf
      %1418 = vmax.xlane.f32.xlu0 %v1417
      %v1419 = vpop.xlane.xlu0 %1418
      %v1420 = vsub.f32 %v1416, %v1419
      %v1421 = vmul.f32 %v1420, 1.442695
      %v1422 = vpow.pop %v1421
      %v1423 = vsel %vm928, %v1422, 0.0
      %1424 = vadd.xlane.f32.xlu0 %v1423
      %v1425 = vpop.xlane.xlu0 %1424
      %v1426 = vrcp.pop %v1425
      %v1427 = vmul.f32 %v1422, %v1426
      %v1429 = vsel %vm928, %v1427, 0
      %1431 = vmatprep.subr.mxu0 0.0
      %1432 = vmatpush1.msra.mxu0 %v1337
      %1433 = vmatprep.subr.mxu0 0.0
      %1434 = vmatpush1.msra.mxu0 0.0
      %1435 = vmatprep.subr.mxu0 0.0
      %1436 = vmatpush1.msra.mxu0 0.0
      %1437 = vmatprep.subr.mxu0 0.0
      %1438 = vmatpush1.msra.mxu0 0.0
      %1439 = vmatprep.subr.mxu0 0.0
      %1440 = vmatpush1.msra.mxu0 0.0
      %1441 = vmatprep.subr.mxu0 0.0
      %1442 = vmatpush1.msra.mxu0 0.0
      %1443 = vmatprep.subr.mxu0 0.0
      %1444 = vmatpush1.msra.mxu0 0.0
      %1445 = vmatprep.subr.mxu0 0.0
      %1446 = vmatpush1.msra.mxu0 0.0
      %1447 = vmatprep.subr.mxu0 0.0
      %1448 = vmatpush1.msra.mxu0 0.0
      %1449 = vmatprep.subr.mxu0 0.0
      %1450 = vmatpush1.msra.mxu0 0.0
      %1451 = vmatprep.subr.mxu0 0.0
      %1452 = vmatpush1.msra.mxu0 0.0
      %1453 = vmatprep.subr.mxu0 0.0
      %1454 = vmatpush1.msra.mxu0 0.0
      %1455 = vmatprep.subr.mxu0 0.0
      %1456 = vmatpush1.msra.mxu0 0.0
      %1457 = vmatprep.subr.mxu0 0.0
      %1458 = vmatpush1.msra.mxu0 0.0
      %1459 = vmatprep.subr.mxu0 0.0
      %1460 = vmatpush1.msra.mxu0 0.0
      %1461 = vmatprep.subr.mxu0 0.0
      %1462 = vmatpush1.msra.mxu0 0.0
      %1463 = vmatprep.subr.mxu0 0.0
      %1464 = vmatpush1.msra.mxu0 0.0
      %1465 = vmatprep.subr.mxu0 0.0
      %1466 = vmatpush1.msra.mxu0 0.0
      %1467 = vmatprep.subr.mxu0 0.0
      %1468 = vmatpush1.msra.mxu0 0.0
      %1469 = vmatprep.subr.mxu0 0.0
      %1470 = vmatpush1.msra.mxu0 0.0
      %1471 = vmatprep.subr.mxu0 0.0
      %1472 = vmatpush1.msra.mxu0 0.0
      %1473 = vmatprep.subr.mxu0 0.0
      %1474 = vmatpush1.msra.mxu0 0.0
      %1475 = vmatprep.subr.mxu0 0.0
      %1476 = vmatpush1.msra.mxu0 0.0
      %1477 = vmatprep.subr.mxu0 0.0
      %1478 = vmatpush1.msra.mxu0 0.0
      %1479 = vmatprep.subr.mxu0 0.0
      %1480 = vmatpush1.msra.mxu0 0.0
      %1481 = vmatprep.subr.mxu0 0.0
      %1482 = vmatpush1.msra.mxu0 0.0
      %1483 = vmatprep.subr.mxu0 0.0
      %1484 = vmatpush1.msra.mxu0 0.0
      %1485 = vmatprep.subr.mxu0 0.0
      %1486 = vmatpush1.msra.mxu0 0.0
      %1487 = vmatprep.subr.mxu0 0.0
      %1488 = vmatpush1.msra.mxu0 0.0
      %1489 = vmatprep.subr.mxu0 0.0
      %1490 = vmatpush1.msra.mxu0 0.0
      %1491 = vmatprep.subr.mxu0 0.0
      %1492 = vmatpush1.msra.mxu0 0.0
      %1493 = vmatprep.subr.mxu0 0.0
      %1494 = vmatpush1.msra.mxu0 0.0
      %1495 = vmatprep.mubr.f32.mxu0 0.0
      %1496 = vmatmul.mubr.f32.gmra.mrb[0].mxu0 %v1429
      %v1497 = vpop.f32.mrb[0].mxu0
      %v1498 = vadd.f32 0.0, %v1497
      %v1499 = vpop.f32.mrb[0].mxu0
      %1500 = vdwg.mxu0
      %s1501 = scalar_lea.vmem %s5, 8
      %v1502 = vld [vmem:[%s1501] sm:$0xff]
      %v1504 = vsel %vm928, %v1498, 0
      %1506 = vmatprep.subr.mxu0 0.0
      %1507 = vmatpush1.msra.mxu0 %v1502
      %1508 = vmatprep.subr.mxu0 0.0
      %1509 = vmatpush1.msra.mxu0 0.0
      %1510 = vmatprep.subr.mxu0 0.0
      %1511 = vmatpush1.msra.mxu0 0.0
      %1512 = vmatprep.subr.mxu0 0.0
      %1513 = vmatpush1.msra.mxu0 0.0
      %1514 = vmatprep.subr.mxu0 0.0
      %1515 = vmatpush1.msra.mxu0 0.0
      %1516 = vmatprep.subr.mxu0 0.0
      %1517 = vmatpush1.msra.mxu0 0.0
      %1518 = vmatprep.subr.mxu0 0.0
      %1519 = vmatpush1.msra.mxu0 0.0
      %1520 = vmatprep.subr.mxu0 0.0
      %1521 = vmatpush1.msra.mxu0 0.0
      %1522 = vmatprep.subr.mxu0 0.0
      %1523 = vmatpush1.msra.mxu0 0.0
      %1524 = vmatprep.subr.mxu0 0.0
      %1525 = vmatpush1.msra.mxu0 0.0
      %1526 = vmatprep.subr.mxu0 0.0
      %1527 = vmatpush1.msra.mxu0 0.0
      %1528 = vmatprep.subr.mxu0 0.0
      %1529 = vmatpush1.msra.mxu0 0.0
      %1530 = vmatprep.subr.mxu0 0.0
      %1531 = vmatpush1.msra.mxu0 0.0
      %1532 = vmatprep.subr.mxu0 0.0
      %1533 = vmatpush1.msra.mxu0 0.0
      %1534 = vmatprep.subr.mxu0 0.0
      %1535 = vmatpush1.msra.mxu0 0.0
      %1536 = vmatprep.subr.mxu0 0.0
      %1537 = vmatpush1.msra.mxu0 0.0
      %1538 = vmatprep.subr.mxu0 0.0
      %1539 = vmatpush1.msra.mxu0 0.0
      %1540 = vmatprep.subr.mxu0 0.0
      %1541 = vmatpush1.msra.mxu0 0.0
      %1542 = vmatprep.subr.mxu0 0.0
      %1543 = vmatpush1.msra.mxu0 0.0
      %1544 = vmatprep.subr.mxu0 0.0
      %1545 = vmatpush1.msra.mxu0 0.0
      %1546 = vmatprep.subr.mxu0 0.0
      %1547 = vmatpush1.msra.mxu0 0.0
      %1548 = vmatprep.subr.mxu0 0.0
      %1549 = vmatpush1.msra.mxu0 0.0
      %1550 = vmatprep.subr.mxu0 0.0
      %1551 = vmatpush1.msra.mxu0 0.0
      %1552 = vmatprep.subr.mxu0 0.0
      %1553 = vmatpush1.msra.mxu0 0.0
      %1554 = vmatprep.subr.mxu0 0.0
      %1555 = vmatpush1.msra.mxu0 0.0
      %1556 = vmatprep.subr.mxu0 0.0
      %1557 = vmatpush1.msra.mxu0 0.0
      %1558 = vmatprep.subr.mxu0 0.0
      %1559 = vmatpush1.msra.mxu0 0.0
      %1560 = vmatprep.subr.mxu0 0.0
      %1561 = vmatpush1.msra.mxu0 0.0
      %1562 = vmatprep.subr.mxu0 0.0
      %1563 = vmatpush1.msra.mxu0 0.0
      %1564 = vmatprep.subr.mxu0 0.0
      %1565 = vmatpush1.msra.mxu0 0.0
      %1566 = vmatprep.subr.mxu0 0.0
      %1567 = vmatpush1.msra.mxu0 0.0
      %1568 = vmatprep.subr.mxu0 0.0
      %1569 = vmatpush1.msra.mxu0 0.0
      %1570 = vmatprep.mubr.f32.mxu0 0.0
      %1571 = vmatmul.mubr.f32.gmra.mrb[0].mxu0 %v1504
      %v1572 = vpop.f32.mrb[0].mxu0
      %v1573 = vadd.f32 0.0, %v1572
      %v1574 = vpop.f32.mrb[0].mxu0
      %1575 = vdwg.mxu0
      %v1577 = vsel %vm928, %v1087, 0
      %1579 = vmatprep.subr.mxu0 0.0
      %1580 = vmatpush1.msra.mxu0 %v1090
      %1581 = vmatprep.subr.mxu0 0.0
      %1582 = vmatpush1.msra.mxu0 0.0
      %1583 = vmatprep.subr.mxu0 0.0
      %1584 = vmatpush1.msra.mxu0 0.0
      %1585 = vmatprep.subr.mxu0 0.0
      %1586 = vmatpush1.msra.mxu0 0.0
      %1587 = vmatprep.subr.mxu0 0.0
      %1588 = vmatpush1.msra.mxu0 0.0
      %1589 = vmatprep.subr.mxu0 0.0
      %1590 = vmatpush1.msra.mxu0 0.0
      %1591 = vmatprep.subr.mxu0 0.0
      %1592 = vmatpush1.msra.mxu0 0.0
      %1593 = vmatprep.subr.mxu0 0.0
      %1594 = vmatpush1.msra.mxu0 0.0
      %1595 = vmatprep.subr.mxu0 0.0
      %1596 = vmatpush1.msra.mxu0 0.0
      %1597 = vmatprep.subr.mxu0 0.0
      %1598 = vmatpush1.msra.mxu0 0.0
      %1599 = vmatprep.subr.mxu0 0.0
      %1600 = vmatpush1.msra.mxu0 0.0
      %1601 = vmatprep.subr.mxu0 0.0
      %1602 = vmatpush1.msra.mxu0 0.0
      %1603 = vmatprep.subr.mxu0 0.0
      %1604 = vmatpush1.msra.mxu0 0.0
      %1605 = vmatprep.subr.mxu0 0.0
      %1606 = vmatpush1.msra.mxu0 0.0
      %1607 = vmatprep.subr.mxu0 0.0
      %1608 = vmatpush1.msra.mxu0 0.0
      %1609 = vmatprep.subr.mxu0 0.0
      %1610 = vmatpush1.msra.mxu0 0.0
      %1611 = vmatprep.subr.mxu0 0.0
      %1612 = vmatpush1.msra.mxu0 0.0
      %1613 = vmatprep.subr.mxu0 0.0
      %1614 = vmatpush1.msra.mxu0 0.0
      %1615 = vmatprep.subr.mxu0 0.0
      %1616 = vmatpush1.msra.mxu0 0.0
      %1617 = vmatprep.subr.mxu0 0.0
      %1618 = vmatpush1.msra.mxu0 0.0
      %1619 = vmatprep.subr.mxu0 0.0
      %1620 = vmatpush1.msra.mxu0 0.0
      %1621 = vmatprep.subr.mxu0 0.0
      %1622 = vmatpush1.msra.mxu0 0.0
      %1623 = vmatprep.subr.mxu0 0.0
      %1624 = vmatpush1.msra.mxu0 0.0
      %1625 = vmatprep.subr.mxu0 0.0
      %1626 = vmatpush1.msra.mxu0 0.0
      %1627 = vmatprep.subr.mxu0 0.0
      %1628 = vmatpush1.msra.mxu0 0.0
      %1629 = vmatprep.subr.mxu0 0.0
      %1630 = vmatpush1.msra.mxu0 0.0
      %1631 = vmatprep.subr.mxu0 0.0
      %1632 = vmatpush1.msra.mxu0 0.0
      %1633 = vmatprep.subr.mxu0 0.0
      %1634 = vmatpush1.msra.mxu0 0.0
      %1635 = vmatprep.subr.mxu0 0.0
      %1636 = vmatpush1.msra.mxu0 0.0
      %1637 = vmatprep.subr.mxu0 0.0
      %1638 = vmatpush1.msra.mxu0 0.0
      %1639 = vmatprep.subr.mxu0 0.0
      %1640 = vmatpush1.msra.mxu0 0.0
      %1641 = vmatprep.subr.mxu0 0.0
      %1642 = vmatpush1.msra.mxu0 0.0
      %1643 = vmatprep.mubr.f32.mxu0 0.0
      %1644 = vmatmul.mubr.f32.gmra.mrb[0].mxu0 %v1577
      %v1645 = vpop.f32.mrb[0].mxu0
      %v1646 = vadd.f32 %v1573, %v1645
      %v1647 = vpop.f32.mrb[0].mxu0
      %1648 = vdwg.mxu0
      %s1649 = scalar_lea.vmem %s3, 64
      %v1650 = vld [vmem:[%s1649] sm:$0xff]
      %v1651 = vld [vmem:[%s1649 + $0x8] sm:$0xff]
      %v1652 = vld [vmem:[%s1649 + $0x10] sm:$0xff]
      %v1653 = vld [vmem:[%s1649 + $0x18] sm:$0xff]
      %s1654 = scalar_lea.vmem %s4, 2
      %v1655 = vld [vmem:[%s1654] sm:$0x1]
      %v1657 = vlaneseq
      %v1658 = vshrl.u32 %v1657, 7
      %v1659 = vsub.s32 0, %v1658
      %v1660 = vrot.slane %v1655, %v1659
      %1662 = vmatprep.subr.mxu0 0.0
      %1663 = vmatpush1.msra.mxu0 %v1650
      %1664 = vmatprep.subr.mxu0 0.0
      %1665 = vmatpush1.msra.mxu0 %v1651
      %1666 = vmatprep.subr.mxu0 0.0
      %1667 = vmatpush1.msra.mxu0 %v1652
      %1668 = vmatprep.subr.mxu0 0.0
      %1669 = vmatpush1.msra.mxu0 %v1653
      %1670 = vmatprep.subr.mxu0 0.0
      %1671 = vmatpush1.msra.mxu0 0.0
      %1672 = vmatprep.subr.mxu0 0.0
      %1673 = vmatpush1.msra.mxu0 0.0
      %1674 = vmatprep.subr.mxu0 0.0
      %1675 = vmatpush1.msra.mxu0 0.0
      %1676 = vmatprep.subr.mxu0 0.0
      %1677 = vmatpush1.msra.mxu0 0.0
      %1678 = vmatprep.subr.mxu0 0.0
      %1679 = vmatpush1.msra.mxu0 0.0
      %1680 = vmatprep.subr.mxu0 0.0
      %1681 = vmatpush1.msra.mxu0 0.0
      %1682 = vmatprep.subr.mxu0 0.0
      %1683 = vmatpush1.msra.mxu0 0.0
      %1684 = vmatprep.subr.mxu0 0.0
      %1685 = vmatpush1.msra.mxu0 0.0
      %1686 = vmatprep.subr.mxu0 0.0
      %1687 = vmatpush1.msra.mxu0 0.0
      %1688 = vmatprep.subr.mxu0 0.0
      %1689 = vmatpush1.msra.mxu0 0.0
      %1690 = vmatprep.subr.mxu0 0.0
      %1691 = vmatpush1.msra.mxu0 0.0
      %1692 = vmatprep.subr.mxu0 0.0
      %1693 = vmatpush1.msra.mxu0 0.0
      %1694 = vmatprep.subr.mxu0 0.0
      %1695 = vmatpush1.msra.mxu0 0.0
      %1696 = vmatprep.subr.mxu0 0.0
      %1697 = vmatpush1.msra.mxu0 0.0
      %1698 = vmatprep.subr.mxu0 0.0
      %1699 = vmatpush1.msra.mxu0 0.0
      %1700 = vmatprep.subr.mxu0 0.0
      %1701 = vmatpush1.msra.mxu0 0.0
      %1702 = vmatprep.subr.mxu0 0.0
      %1703 = vmatpush1.msra.mxu0 0.0
      %1704 = vmatprep.subr.mxu0 0.0
      %1705 = vmatpush1.msra.mxu0 0.0
      %1706 = vmatprep.subr.mxu0 0.0
      %1707 = vmatpush1.msra.mxu0 0.0
      %1708 = vmatprep.subr.mxu0 0.0
      %1709 = vmatpush1.msra.mxu0 0.0
      %1710 = vmatprep.subr.mxu0 0.0
      %1711 = vmatpush1.msra.mxu0 0.0
      %1712 = vmatprep.subr.mxu0 0.0
      %1713 = vmatpush1.msra.mxu0 0.0
      %1714 = vmatprep.subr.mxu0 0.0
      %1715 = vmatpush1.msra.mxu0 0.0
      %1716 = vmatprep.subr.mxu0 0.0
      %1717 = vmatpush1.msra.mxu0 0.0
      %1718 = vmatprep.subr.mxu0 0.0
      %1719 = vmatpush1.msra.mxu0 0.0
      %1720 = vmatprep.subr.mxu0 0.0
      %1721 = vmatpush1.msra.mxu0 0.0
      %1722 = vmatprep.subr.mxu0 0.0
      %1723 = vmatpush1.msra.mxu0 0.0
      %1724 = vmatprep.subr.mxu0 0.0
      %1725 = vmatpush1.msra.mxu0 0.0
      %1726 = vmatprep.mubr.f32.mxu0 0.0
      %1727 = vmatmul.mubr.f32.gmra.mrb[0].mxu0 %v690
      %v1728 = vpop.f32.mrb[0].mxu0
      %v1729 = vadd.f32 %v1660, %v1728
      %v1730 = vpop.f32.mrb[0].mxu0
      %1731 = vdwg.mxu0
      %s1732 = scalar_lea.vmem %s3, 192
      %v1733 = vld [vmem:[%s1732] sm:$0xff]
      %v1734 = vld [vmem:[%s1732 + $0x8] sm:$0xff]
      %v1735 = vld [vmem:[%s1732 + $0x10] sm:$0xff]
      %v1736 = vld [vmem:[%s1732 + $0x18] sm:$0xff]
      %s1737 = scalar_lea.vmem %s4, 6
      %v1738 = vld [vmem:[%s1737] sm:$0x1]
      %v1740 = vlaneseq
      %v1741 = vshrl.u32 %v1740, 7
      %v1742 = vsub.s32 0, %v1741
      %v1743 = vrot.slane %v1738, %v1742
      %1745 = vmatprep.subr.mxu0 0.0
      %1746 = vmatpush1.msra.mxu0 %v1733
      %1747 = vmatprep.subr.mxu0 0.0
      %1748 = vmatpush1.msra.mxu0 %v1734
      %1749 = vmatprep.subr.mxu0 0.0
      %1750 = vmatpush1.msra.mxu0 %v1735
      %1751 = vmatprep.subr.mxu0 0.0
      %1752 = vmatpush1.msra.mxu0 %v1736
      %1753 = vmatprep.subr.mxu0 0.0
      %1754 = vmatpush1.msra.mxu0 0.0
      %1755 = vmatprep.subr.mxu0 0.0
      %1756 = vmatpush1.msra.mxu0 0.0
      %1757 = vmatprep.subr.mxu0 0.0
      %1758 = vmatpush1.msra.mxu0 0.0
      %1759 = vmatprep.subr.mxu0 0.0
      %1760 = vmatpush1.msra.mxu0 0.0
      %1761 = vmatprep.subr.mxu0 0.0
      %1762 = vmatpush1.msra.mxu0 0.0
      %1763 = vmatprep.subr.mxu0 0.0
      %1764 = vmatpush1.msra.mxu0 0.0
      %1765 = vmatprep.subr.mxu0 0.0
      %1766 = vmatpush1.msra.mxu0 0.0
      %1767 = vmatprep.subr.mxu0 0.0
      %1768 = vmatpush1.msra.mxu0 0.0
      %1769 = vmatprep.subr.mxu0 0.0
      %1770 = vmatpush1.msra.mxu0 0.0
      %1771 = vmatprep.subr.mxu0 0.0
      %1772 = vmatpush1.msra.mxu0 0.0
      %1773 = vmatprep.subr.mxu0 0.0
      %1774 = vmatpush1.msra.mxu0 0.0
      %1775 = vmatprep.subr.mxu0 0.0
      %1776 = vmatpush1.msra.mxu0 0.0
      %1777 = vmatprep.subr.mxu0 0.0
      %1778 = vmatpush1.msra.mxu0 0.0
      %1779 = vmatprep.subr.mxu0 0.0
      %1780 = vmatpush1.msra.mxu0 0.0
      %1781 = vmatprep.subr.mxu0 0.0
      %1782 = vmatpush1.msra.mxu0 0.0
      %1783 = vmatprep.subr.mxu0 0.0
      %1784 = vmatpush1.msra.mxu0 0.0
      %1785 = vmatprep.subr.mxu0 0.0
      %1786 = vmatpush1.msra.mxu0 0.0
      %1787 = vmatprep.subr.mxu0 0.0
      %1788 = vmatpush1.msra.mxu0 0.0
      %1789 = vmatprep.subr.mxu0 0.0
      %1790 = vmatpush1.msra.mxu0 0.0
      %1791 = vmatprep.subr.mxu0 0.0
      %1792 = vmatpush1.msra.mxu0 0.0
      %1793 = vmatprep.subr.mxu0 0.0
      %1794 = vmatpush1.msra.mxu0 0.0
      %1795 = vmatprep.subr.mxu0 0.0
      %1796 = vmatpush1.msra.mxu0 0.0
      %1797 = vmatprep.subr.mxu0 0.0
      %1798 = vmatpush1.msra.mxu0 0.0
      %1799 = vmatprep.subr.mxu0 0.0
      %1800 = vmatpush1.msra.mxu0 0.0
      %1801 = vmatprep.subr.mxu0 0.0
      %1802 = vmatpush1.msra.mxu0 0.0
      %1803 = vmatprep.subr.mxu0 0.0
      %1804 = vmatpush1.msra.mxu0 0.0
      %1805 = vmatprep.subr.mxu0 0.0
      %1806 = vmatpush1.msra.mxu0 0.0
      %1807 = vmatprep.subr.mxu0 0.0
      %1808 = vmatpush1.msra.mxu0 0.0
      %1809 = vmatprep.mubr.f32.mxu0 0.0
      %1810 = vmatmul.mubr.f32.gmra.mrb[0].mxu0 %v690
      %v1811 = vpop.f32.mrb[0].mxu0
      %v1812 = vadd.f32 %v1743, %v1811
      %v1813 = vpop.f32.mrb[0].mxu0
      %1814 = vdwg.mxu0
      %s1815 = scalar_lea.vmem %s3, 320
      %v1816 = vld [vmem:[%s1815] sm:$0xff]
      %v1817 = vld [vmem:[%s1815 + $0x8] sm:$0xff]
      %v1818 = vld [vmem:[%s1815 + $0x10] sm:$0xff]
      %v1819 = vld [vmem:[%s1815 + $0x18] sm:$0xff]
      %s1820 = scalar_lea.vmem %s4, 10
      %v1821 = vld [vmem:[%s1820] sm:$0x1]
      %v1823 = vlaneseq
      %v1824 = vshrl.u32 %v1823, 7
      %v1825 = vsub.s32 0, %v1824
      %v1826 = vrot.slane %v1821, %v1825
      %1828 = vmatprep.subr.mxu0 0.0
      %1829 = vmatpush1.msra.mxu0 %v1816
      %1830 = vmatprep.subr.mxu0 0.0
      %1831 = vmatpush1.msra.mxu0 %v1817
      %1832 = vmatprep.subr.mxu0 0.0
      %1833 = vmatpush1.msra.mxu0 %v1818
      %1834 = vmatprep.subr.mxu0 0.0
      %1835 = vmatpush1.msra.mxu0 %v1819
      %1836 = vmatprep.subr.mxu0 0.0
      %1837 = vmatpush1.msra.mxu0 0.0
      %1838 = vmatprep.subr.mxu0 0.0
      %1839 = vmatpush1.msra.mxu0 0.0
      %1840 = vmatprep.subr.mxu0 0.0
      %1841 = vmatpush1.msra.mxu0 0.0
      %1842 = vmatprep.subr.mxu0 0.0
      %1843 = vmatpush1.msra.mxu0 0.0
      %1844 = vmatprep.subr.mxu0 0.0
      %1845 = vmatpush1.msra.mxu0 0.0
      %1846 = vmatprep.subr.mxu0 0.0
      %1847 = vmatpush1.msra.mxu0 0.0
      %1848 = vmatprep.subr.mxu0 0.0
      %1849 = vmatpush1.msra.mxu0 0.0
      %1850 = vmatprep.subr.mxu0 0.0
      %1851 = vmatpush1.msra.mxu0 0.0
      %1852 = vmatprep.subr.mxu0 0.0
      %1853 = vmatpush1.msra.mxu0 0.0
      %1854 = vmatprep.subr.mxu0 0.0
      %1855 = vmatpush1.msra.mxu0 0.0
      %1856 = vmatprep.subr.mxu0 0.0
      %1857 = vmatpush1.msra.mxu0 0.0
      %1858 = vmatprep.subr.mxu0 0.0
      %1859 = vmatpush1.msra.mxu0 0.0
      %1860 = vmatprep.subr.mxu0 0.0
      %1861 = vmatpush1.msra.mxu0 0.0
      %1862 = vmatprep.subr.mxu0 0.0
      %1863 = vmatpush1.msra.mxu0 0.0
      %1864 = vmatprep.subr.mxu0 0.0
      %1865 = vmatpush1.msra.mxu0 0.0
      %1866 = vmatprep.subr.mxu0 0.0
      %1867 = vmatpush1.msra.mxu0 0.0
      %1868 = vmatprep.subr.mxu0 0.0
      %1869 = vmatpush1.msra.mxu0 0.0
      %1870 = vmatprep.subr.mxu0 0.0
      %1871 = vmatpush1.msra.mxu0 0.0
      %1872 = vmatprep.subr.mxu0 0.0
      %1873 = vmatpush1.msra.mxu0 0.0
      %1874 = vmatprep.subr.mxu0 0.0
      %1875 = vmatpush1.msra.mxu0 0.0
      %1876 = vmatprep.subr.mxu0 0.0
      %1877 = vmatpush1.msra.mxu0 0.0
      %1878 = vmatprep.subr.mxu0 0.0
      %1879 = vmatpush1.msra.mxu0 0.0
      %1880 = vmatprep.subr.mxu0 0.0
      %1881 = vmatpush1.msra.mxu0 0.0
      %1882 = vmatprep.subr.mxu0 0.0
      %1883 = vmatpush1.msra.mxu0 0.0
      %1884 = vmatprep.subr.mxu0 0.0
      %1885 = vmatpush1.msra.mxu0 0.0
      %1886 = vmatprep.subr.mxu0 0.0
      %1887 = vmatpush1.msra.mxu0 0.0
      %1888 = vmatprep.subr.mxu0 0.0
      %1889 = vmatpush1.msra.mxu0 0.0
      %1890 = vmatprep.subr.mxu0 0.0
      %1891 = vmatpush1.msra.mxu0 0.0
      %1892 = vmatprep.mubr.f32.mxu0 0.0
      %1893 = vmatmul.mubr.f32.gmra.mrb[0].mxu0 %v690
      %v1894 = vpop.f32.mrb[0].mxu0
      %v1895 = vadd.f32 %v1826, %v1894
      %v1896 = vpop.f32.mrb[0].mxu0
      %1897 = vdwg.mxu0
      %v1899 = vsel %vm928, %v1729, 0
      %v1902 = vsel %vm928, %v1812, 0
      %1904 = vmatprep.subr.mxu0 0.0
      %1905 = vmatpush1.xpose.msra.mxu0 %v1902
      %1906 = vmatprep.subr.mxu0 0.0
      %1907 = vmatpush1.xpose.msra.mxu0 0.0
      %1908 = vmatprep.subr.mxu0 0.0
      %1909 = vmatpush1.xpose.msra.mxu0 0.0
      %1910 = vmatprep.subr.mxu0 0.0
      %1911 = vmatpush1.xpose.msra.mxu0 0.0
      %1912 = vmatprep.subr.mxu0 0.0
      %1913 = vmatpush1.xpose.msra.mxu0 0.0
      %1914 = vmatprep.subr.mxu0 0.0
      %1915 = vmatpush1.xpose.msra.mxu0 0.0
      %1916 = vmatprep.subr.mxu0 0.0
      %1917 = vmatpush1.xpose.msra.mxu0 0.0
      %1918 = vmatprep.subr.mxu0 0.0
      %1919 = vmatpush1.xpose.msra.mxu0 0.0
      %1920 = vmatprep.subr.mxu0 0.0
      %1921 = vmatpush1.xpose.msra.mxu0 0.0
      %1922 = vmatprep.subr.mxu0 0.0
      %1923 = vmatpush1.xpose.msra.mxu0 0.0
      %1924 = vmatprep.subr.mxu0 0.0
      %1925 = vmatpush1.xpose.msra.mxu0 0.0
      %1926 = vmatprep.subr.mxu0 0.0
      %1927 = vmatpush1.xpose.msra.mxu0 0.0
      %1928 = vmatprep.subr.mxu0 0.0
      %1929 = vmatpush1.xpose.msra.mxu0 0.0
      %1930 = vmatprep.subr.mxu0 0.0
      %1931 = vmatpush1.xpose.msra.mxu0 0.0
      %1932 = vmatprep.subr.mxu0 0.0
      %1933 = vmatpush1.xpose.msra.mxu0 0.0
      %1934 = vmatprep.subr.mxu0 0.0
      %1935 = vmatpush1.xpose.msra.mxu0 0.0
      %1936 = vmatprep.subr.mxu0 0.0
      %1937 = vmatpush1.xpose.msra.mxu0 0.0
      %1938 = vmatprep.subr.mxu0 0.0
      %1939 = vmatpush1.xpose.msra.mxu0 0.0
      %1940 = vmatprep.subr.mxu0 0.0
      %1941 = vmatpush1.xpose.msra.mxu0 0.0
      %1942 = vmatprep.subr.mxu0 0.0
      %1943 = vmatpush1.xpose.msra.mxu0 0.0
      %1944 = vmatprep.subr.mxu0 0.0
      %1945 = vmatpush1.xpose.msra.mxu0 0.0
      %1946 = vmatprep.subr.mxu0 0.0
      %1947 = vmatpush1.xpose.msra.mxu0 0.0
      %1948 = vmatprep.subr.mxu0 0.0
      %1949 = vmatpush1.xpose.msra.mxu0 0.0
      %1950 = vmatprep.subr.mxu0 0.0
      %1951 = vmatpush1.xpose.msra.mxu0 0.0
      %1952 = vmatprep.subr.mxu0 0.0
      %1953 = vmatpush1.xpose.msra.mxu0 0.0
      %1954 = vmatprep.subr.mxu0 0.0
      %1955 = vmatpush1.xpose.msra.mxu0 0.0
      %1956 = vmatprep.subr.mxu0 0.0
      %1957 = vmatpush1.xpose.msra.mxu0 0.0
      %1958 = vmatprep.subr.mxu0 0.0
      %1959 = vmatpush1.xpose.msra.mxu0 0.0
      %1960 = vmatprep.subr.mxu0 0.0
      %1961 = vmatpush1.xpose.msra.mxu0 0.0
      %1962 = vmatprep.subr.mxu0 0.0
      %1963 = vmatpush1.xpose.msra.mxu0 0.0
      %1964 = vmatprep.subr.mxu0 0.0
      %1965 = vmatpush1.xpose.msra.mxu0 0.0
      %1966 = vmatprep.subr.mxu0 0.0
      %1967 = vmatpush1.xpose.msra.mxu0 0.0
      %1968 = vmatprep.mubr.f32.mxu0 0.0
      %1969 = vmatmul.mubr.f32.gmra.mrb[0].mxu0 %v1899
      %v1970 = vpop.f32.mrb[0].mxu0
      %v1971 = vadd.f32 0.0, %v1970
      %v1972 = vpop.f32.mrb[0].mxu0
      %1973 = vdwg.mxu0
      %v1974 = vmul.f32 %v1971, 0.35355338
      %v1975 = vsel %vm928, %v1974, -inf
      %1976 = vmax.xlane.f32.xlu0 %v1975
      %v1977 = vpop.xlane.xlu0 %1976
      %v1978 = vsub.f32 %v1974, %v1977
      %v1979 = vmul.f32 %v1978, 1.442695
      %v1980 = vpow.pop %v1979
      %v1981 = vsel %vm928, %v1980, 0.0
      %1982 = vadd.xlane.f32.xlu0 %v1981
      %v1983 = vpop.xlane.xlu0 %1982
      %v1984 = vrcp.pop %v1983
      %v1985 = vmul.f32 %v1980, %v1984
      %v1987 = vsel %vm928, %v1985, 0
      %1989 = vmatprep.subr.mxu0 0.0
      %1990 = vmatpush1.msra.mxu0 %v1895
      %1991 = vmatprep.subr.mxu0 0.0
      %1992 = vmatpush1.msra.mxu0 0.0
      %1993 = vmatprep.subr.mxu0 0.0
      %1994 = vmatpush1.msra.mxu0 0.0
      %1995 = vmatprep.subr.mxu0 0.0
      %1996 = vmatpush1.msra.mxu0 0.0
      %1997 = vmatprep.subr.mxu0 0.0
      %1998 = vmatpush1.msra.mxu0 0.0
      %1999 = vmatprep.subr.mxu0 0.0
      %2000 = vmatpush1.msra.mxu0 0.0
      %2001 = vmatprep.subr.mxu0 0.0
      %2002 = vmatpush1.msra.mxu0 0.0
      %2003 = vmatprep.subr.mxu0 0.0
      %2004 = vmatpush1.msra.mxu0 0.0
      %2005 = vmatprep.subr.mxu0 0.0
      %2006 = vmatpush1.msra.mxu0 0.0
      %2007 = vmatprep.subr.mxu0 0.0
      %2008 = vmatpush1.msra.mxu0 0.0
      %2009 = vmatprep.subr.mxu0 0.0
      %2010 = vmatpush1.msra.mxu0 0.0
      %2011 = vmatprep.subr.mxu0 0.0
      %2012 = vmatpush1.msra.mxu0 0.0
      %2013 = vmatprep.subr.mxu0 0.0
      %2014 = vmatpush1.msra.mxu0 0.0
      %2015 = vmatprep.subr.mxu0 0.0
      %2016 = vmatpush1.msra.mxu0 0.0
      %2017 = vmatprep.subr.mxu0 0.0
      %2018 = vmatpush1.msra.mxu0 0.0
      %2019 = vmatprep.subr.mxu0 0.0
      %2020 = vmatpush1.msra.mxu0 0.0
      %2021 = vmatprep.subr.mxu0 0.0
      %2022 = vmatpush1.msra.mxu0 0.0
      %2023 = vmatprep.subr.mxu0 0.0
      %2024 = vmatpush1.msra.mxu0 0.0
      %2025 = vmatprep.subr.mxu0 0.0
      %2026 = vmatpush1.msra.mxu0 0.0
      %2027 = vmatprep.subr.mxu0 0.0
      %2028 = vmatpush1.msra.mxu0 0.0
      %2029 = vmatprep.subr.mxu0 0.0
      %2030 = vmatpush1.msra.mxu0 0.0
      %2031 = vmatprep.subr.mxu0 0.0
      %2032 = vmatpush1.msra.mxu0 0.0
      %2033 = vmatprep.subr.mxu0 0.0
      %2034 = vmatpush1.msra.mxu0 0.0
      %2035 = vmatprep.subr.mxu0 0.0
      %2036 = vmatpush1.msra.mxu0 0.0
      %2037 = vmatprep.subr.mxu0 0.0
      %2038 = vmatpush1.msra.mxu0 0.0
      %2039 = vmatprep.subr.mxu0 0.0
      %2040 = vmatpush1.msra.mxu0 0.0
      %2041 = vmatprep.subr.mxu0 0.0
      %2042 = vmatpush1.msra.mxu0 0.0
      %2043 = vmatprep.subr.mxu0 0.0
      %2044 = vmatpush1.msra.mxu0 0.0
      %2045 = vmatprep.subr.mxu0 0.0
      %2046 = vmatpush1.msra.mxu0 0.0
      %2047 = vmatprep.subr.mxu0 0.0
      %2048 = vmatpush1.msra.mxu0 0.0
      %2049 = vmatprep.subr.mxu0 0.0
      %2050 = vmatpush1.msra.mxu0 0.0
      %2051 = vmatprep.subr.mxu0 0.0
      %2052 = vmatpush1.msra.mxu0 0.0
      %2053 = vmatprep.mubr.f32.mxu0 0.0
      %2054 = vmatmul.mubr.f32.gmra.mrb[0].mxu0 %v1987
      %v2055 = vpop.f32.mrb[0].mxu0
      %v2056 = vadd.f32 0.0, %v2055
      %v2057 = vpop.f32.mrb[0].mxu0
      %2058 = vdwg.mxu0
      %s2059 = scalar_lea.vmem %s5, 16
      %v2060 = vld [vmem:[%s2059] sm:$0xff]
      %v2062 = vsel %vm928, %v2056, 0
      %2064 = vmatprep.subr.mxu0 0.0
      %2065 = vmatpush1.msra.mxu0 %v2060
      %2066 = vmatprep.subr.mxu0 0.0
      %2067 = vmatpush1.msra.mxu0 0.0
      %2068 = vmatprep.subr.mxu0 0.0
      %2069 = vmatpush1.msra.mxu0 0.0
      %2070 = vmatprep.subr.mxu0 0.0
      %2071 = vmatpush1.msra.mxu0 0.0
      %2072 = vmatprep.subr.mxu0 0.0
      %2073 = vmatpush1.msra.mxu0 0.0
      %2074 = vmatprep.subr.mxu0 0.0
      %2075 = vmatpush1.msra.mxu0 0.0
      %2076 = vmatprep.subr.mxu0 0.0
      %2077 = vmatpush1.msra.mxu0 0.0
      %2078 = vmatprep.subr.mxu0 0.0
      %2079 = vmatpush1.msra.mxu0 0.0
      %2080 = vmatprep.subr.mxu0 0.0
      %2081 = vmatpush1.msra.mxu0 0.0
      %2082 = vmatprep.subr.mxu0 0.0
      %2083 = vmatpush1.msra.mxu0 0.0
      %2084 = vmatprep.subr.mxu0 0.0
      %2085 = vmatpush1.msra.mxu0 0.0
      %2086 = vmatprep.subr.mxu0 0.0
      %2087 = vmatpush1.msra.mxu0 0.0
      %2088 = vmatprep.subr.mxu0 0.0
      %2089 = vmatpush1.msra.mxu0 0.0
      %2090 = vmatprep.subr.mxu0 0.0
      %2091 = vmatpush1.msra.mxu0 0.0
      %2092 = vmatprep.subr.mxu0 0.0
      %2093 = vmatpush1.msra.mxu0 0.0
      %2094 = vmatprep.subr.mxu0 0.0
      %2095 = vmatpush1.msra.mxu0 0.0
      %2096 = vmatprep.subr.mxu0 0.0
      %2097 = vmatpush1.msra.mxu0 0.0
      %2098 = vmatprep.subr.mxu0 0.0
      %2099 = vmatpush1.msra.mxu0 0.0
      %2100 = vmatprep.subr.mxu0 0.0
      %2101 = vmatpush1.msra.mxu0 0.0
      %2102 = vmatprep.subr.mxu0 0.0
      %2103 = vmatpush1.msra.mxu0 0.0
      %2104 = vmatprep.subr.mxu0 0.0
      %2105 = vmatpush1.msra.mxu0 0.0
      %2106 = vmatprep.subr.mxu0 0.0
      %2107 = vmatpush1.msra.mxu0 0.0
      %2108 = vmatprep.subr.mxu0 0.0
      %2109 = vmatpush1.msra.mxu0 0.0
      %2110 = vmatprep.subr.mxu0 0.0
      %2111 = vmatpush1.msra.mxu0 0.0
      %2112 = vmatprep.subr.mxu0 0.0
      %2113 = vmatpush1.msra.mxu0 0.0
      %2114 = vmatprep.subr.mxu0 0.0
      %2115 = vmatpush1.msra.mxu0 0.0
      %2116 = vmatprep.subr.mxu0 0.0
      %2117 = vmatpush1.msra.mxu0 0.0
      %2118 = vmatprep.subr.mxu0 0.0
      %2119 = vmatpush1.msra.mxu0 0.0
      %2120 = vmatprep.subr.mxu0 0.0
      %2121 = vmatpush1.msra.mxu0 0.0
      %2122 = vmatprep.subr.mxu0 0.0
      %2123 = vmatpush1.msra.mxu0 0.0
      %2124 = vmatprep.subr.mxu0 0.0
      %2125 = vmatpush1.msra.mxu0 0.0
      %2126 = vmatprep.subr.mxu0 0.0
      %2127 = vmatpush1.msra.mxu0 0.0
      %2128 = vmatprep.mubr.f32.mxu0 0.0
      %2129 = vmatmul.mubr.f32.gmra.mrb[0].mxu0 %v2062
      %v2130 = vpop.f32.mrb[0].mxu0
      %v2131 = vadd.f32 0.0, %v2130
      %v2132 = vpop.f32.mrb[0].mxu0
      %2133 = vdwg.mxu0
      %v2134 = vadd.f32 %v1646, %v2131
      %s2135 = scalar_lea.vmem %s3, 96
      %v2136 = vld [vmem:[%s2135] sm:$0xff]
      %v2137 = vld [vmem:[%s2135 + $0x8] sm:$0xff]
      %v2138 = vld [vmem:[%s2135 + $0x10] sm:$0xff]
      %v2139 = vld [vmem:[%s2135 + $0x18] sm:$0xff]
      %s2140 = scalar_lea.vmem %s4, 3
      %v2141 = vld [vmem:[%s2140] sm:$0x1]
      %v2143 = vlaneseq
      %v2144 = vshrl.u32 %v2143, 7
      %v2145 = vsub.s32 0, %v2144
      %v2146 = vrot.slane %v2141, %v2145
      %2148 = vmatprep.subr.mxu0 0.0
      %2149 = vmatpush1.msra.mxu0 %v2136
      %2150 = vmatprep.subr.mxu0 0.0
      %2151 = vmatpush1.msra.mxu0 %v2137
      %2152 = vmatprep.subr.mxu0 0.0
      %2153 = vmatpush1.msra.mxu0 %v2138
      %2154 = vmatprep.subr.mxu0 0.0
      %2155 = vmatpush1.msra.mxu0 %v2139
      %2156 = vmatprep.subr.mxu0 0.0
      %2157 = vmatpush1.msra.mxu0 0.0
      %2158 = vmatprep.subr.mxu0 0.0
      %2159 = vmatpush1.msra.mxu0 0.0
      %2160 = vmatprep.subr.mxu0 0.0
      %2161 = vmatpush1.msra.mxu0 0.0
      %2162 = vmatprep.subr.mxu0 0.0
      %2163 = vmatpush1.msra.mxu0 0.0
      %2164 = vmatprep.subr.mxu0 0.0
      %2165 = vmatpush1.msra.mxu0 0.0
      %2166 = vmatprep.subr.mxu0 0.0
      %2167 = vmatpush1.msra.mxu0 0.0
      %2168 = vmatprep.subr.mxu0 0.0
      %2169 = vmatpush1.msra.mxu0 0.0
      %2170 = vmatprep.subr.mxu0 0.0
      %2171 = vmatpush1.msra.mxu0 0.0
      %2172 = vmatprep.subr.mxu0 0.0
      %2173 = vmatpush1.msra.mxu0 0.0
      %2174 = vmatprep.subr.mxu0 0.0
      %2175 = vmatpush1.msra.mxu0 0.0
      %2176 = vmatprep.subr.mxu0 0.0
      %2177 = vmatpush1.msra.mxu0 0.0
      %2178 = vmatprep.subr.mxu0 0.0
      %2179 = vmatpush1.msra.mxu0 0.0
      %2180 = vmatprep.subr.mxu0 0.0
      %2181 = vmatpush1.msra.mxu0 0.0
      %2182 = vmatprep.subr.mxu0 0.0
      %2183 = vmatpush1.msra.mxu0 0.0
      %2184 = vmatprep.subr.mxu0 0.0
      %2185 = vmatpush1.msra.mxu0 0.0
      %2186 = vmatprep.subr.mxu0 0.0
      %2187 = vmatpush1.msra.mxu0 0.0
      %2188 = vmatprep.subr.mxu0 0.0
      %2189 = vmatpush1.msra.mxu0 0.0
      %2190 = vmatprep.subr.mxu0 0.0
      %2191 = vmatpush1.msra.mxu0 0.0
      %2192 = vmatprep.subr.mxu0 0.0
      %2193 = vmatpush1.msra.mxu0 0.0
      %2194 = vmatprep.subr.mxu0 0.0
      %2195 = vmatpush1.msra.mxu0 0.0
      %2196 = vmatprep.subr.mxu0 0.0
      %2197 = vmatpush1.msra.mxu0 0.0
      %2198 = vmatprep.subr.mxu0 0.0
      %2199 = vmatpush1.msra.mxu0 0.0
      %2200 = vmatprep.subr.mxu0 0.0
      %2201 = vmatpush1.msra.mxu0 0.0
      %2202 = vmatprep.subr.mxu0 0.0
      %2203 = vmatpush1.msra.mxu0 0.0
      %2204 = vmatprep.subr.mxu0 0.0
      %2205 = vmatpush1.msra.mxu0 0.0
      %2206 = vmatprep.subr.mxu0 0.0
      %2207 = vmatpush1.msra.mxu0 0.0
      %2208 = vmatprep.subr.mxu0 0.0
      %2209 = vmatpush1.msra.mxu0 0.0
      %2210 = vmatprep.subr.mxu0 0.0
      %2211 = vmatpush1.msra.mxu0 0.0
      %2212 = vmatprep.mubr.f32.mxu0 0.0
      %2213 = vmatmul.mubr.f32.gmra.mrb[0].mxu0 %v690
      %v2214 = vpop.f32.mrb[0].mxu0
      %v2215 = vadd.f32 %v2146, %v2214
      %v2216 = vpop.f32.mrb[0].mxu0
      %2217 = vdwg.mxu0
      %s2218 = scalar_lea.vmem %s3, 224
      %v2219 = vld [vmem:[%s2218] sm:$0xff]
      %v2220 = vld [vmem:[%s2218 + $0x8] sm:$0xff]
      %v2221 = vld [vmem:[%s2218 + $0x10] sm:$0xff]
      %v2222 = vld [vmem:[%s2218 + $0x18] sm:$0xff]
      %s2223 = scalar_lea.vmem %s4, 7
      %v2224 = vld [vmem:[%s2223] sm:$0x1]
      %v2226 = vlaneseq
      %v2227 = vshrl.u32 %v2226, 7
      %v2228 = vsub.s32 0, %v2227
      %v2229 = vrot.slane %v2224, %v2228
      %2231 = vmatprep.subr.mxu0 0.0
      %2232 = vmatpush1.msra.mxu0 %v2219
      %2233 = vmatprep.subr.mxu0 0.0
      %2234 = vmatpush1.msra.mxu0 %v2220
      %2235 = vmatprep.subr.mxu0 0.0
      %2236 = vmatpush1.msra.mxu0 %v2221
      %2237 = vmatprep.subr.mxu0 0.0
      %2238 = vmatpush1.msra.mxu0 %v2222
      %2239 = vmatprep.subr.mxu0 0.0
      %2240 = vmatpush1.msra.mxu0 0.0
      %2241 = vmatprep.subr.mxu0 0.0
      %2242 = vmatpush1.msra.mxu0 0.0
      %2243 = vmatprep.subr.mxu0 0.0
      %2244 = vmatpush1.msra.mxu0 0.0
      %2245 = vmatprep.subr.mxu0 0.0
      %2246 = vmatpush1.msra.mxu0 0.0
      %2247 = vmatprep.subr.mxu0 0.0
      %2248 = vmatpush1.msra.mxu0 0.0
      %2249 = vmatprep.subr.mxu0 0.0
      %2250 = vmatpush1.msra.mxu0 0.0
      %2251 = vmatprep.subr.mxu0 0.0
      %2252 = vmatpush1.msra.mxu0 0.0
      %2253 = vmatprep.subr.mxu0 0.0
      %2254 = vmatpush1.msra.mxu0 0.0
      %2255 = vmatprep.subr.mxu0 0.0
      %2256 = vmatpush1.msra.mxu0 0.0
      %2257 = vmatprep.subr.mxu0 0.0
      %2258 = vmatpush1.msra.mxu0 0.0
      %2259 = vmatprep.subr.mxu0 0.0
      %2260 = vmatpush1.msra.mxu0 0.0
      %2261 = vmatprep.subr.mxu0 0.0
      %2262 = vmatpush1.msra.mxu0 0.0
      %2263 = vmatprep.subr.mxu0 0.0
      %2264 = vmatpush1.msra.mxu0 0.0
      %2265 = vmatprep.subr.mxu0 0.0
      %2266 = vmatpush1.msra.mxu0 0.0
      %2267 = vmatprep.subr.mxu0 0.0
      %2268 = vmatpush1.msra.mxu0 0.0
      %2269 = vmatprep.subr.mxu0 0.0
      %2270 = vmatpush1.msra.mxu0 0.0
      %2271 = vmatprep.subr.mxu0 0.0
      %2272 = vmatpush1.msra.mxu0 0.0
      %2273 = vmatprep.subr.mxu0 0.0
      %2274 = vmatpush1.msra.mxu0 0.0
      %2275 = vmatprep.subr.mxu0 0.0
      %2276 = vmatpush1.msra.mxu0 0.0
      %2277 = vmatprep.subr.mxu0 0.0
      %2278 = vmatpush1.msra.mxu0 0.0
      %2279 = vmatprep.subr.mxu0 0.0
      %2280 = vmatpush1.msra.mxu0 0.0
      %2281 = vmatprep.subr.mxu0 0.0
      %2282 = vmatpush1.msra.mxu0 0.0
      %2283 = vmatprep.subr.mxu0 0.0
      %2284 = vmatpush1.msra.mxu0 0.0
      %2285 = vmatprep.subr.mxu0 0.0
      %2286 = vmatpush1.msra.mxu0 0.0
      %2287 = vmatprep.subr.mxu0 0.0
      %2288 = vmatpush1.msra.mxu0 0.0
      %2289 = vmatprep.subr.mxu0 0.0
      %2290 = vmatpush1.msra.mxu0 0.0
      %2291 = vmatprep.subr.mxu0 0.0
      %2292 = vmatpush1.msra.mxu0 0.0
      %2293 = vmatprep.subr.mxu0 0.0
      %2294 = vmatpush1.msra.mxu0 0.0
      %2295 = vmatprep.mubr.f32.mxu0 0.0
      %2296 = vmatmul.mubr.f32.gmra.mrb[0].mxu0 %v690
      %v2297 = vpop.f32.mrb[0].mxu0
      %v2298 = vadd.f32 %v2229, %v2297
      %v2299 = vpop.f32.mrb[0].mxu0
      %2300 = vdwg.mxu0
      %s2301 = scalar_lea.vmem %s3, 352
      %v2302 = vld [vmem:[%s2301] sm:$0xff]
      %v2303 = vld [vmem:[%s2301 + $0x8] sm:$0xff]
      %v2304 = vld [vmem:[%s2301 + $0x10] sm:$0xff]
      %v2305 = vld [vmem:[%s2301 + $0x18] sm:$0xff]
      %s2306 = scalar_lea.vmem %s4, 11
      %v2307 = vld [vmem:[%s2306] sm:$0x1]
      %v2309 = vlaneseq
      %v2310 = vshrl.u32 %v2309, 7
      %v2311 = vsub.s32 0, %v2310
      %v2312 = vrot.slane %v2307, %v2311
      %2314 = vmatprep.subr.mxu0 0.0
      %2315 = vmatpush1.msra.mxu0 %v2302
      %2316 = vmatprep.subr.mxu0 0.0
      %2317 = vmatpush1.msra.mxu0 %v2303
      %2318 = vmatprep.subr.mxu0 0.0
      %2319 = vmatpush1.msra.mxu0 %v2304
      %2320 = vmatprep.subr.mxu0 0.0
      %2321 = vmatpush1.msra.mxu0 %v2305
      %2322 = vmatprep.subr.mxu0 0.0
      %2323 = vmatpush1.msra.mxu0 0.0
      %2324 = vmatprep.subr.mxu0 0.0
      %2325 = vmatpush1.msra.mxu0 0.0
      %2326 = vmatprep.subr.mxu0 0.0
      %2327 = vmatpush1.msra.mxu0 0.0
      %2328 = vmatprep.subr.mxu0 0.0
      %2329 = vmatpush1.msra.mxu0 0.0
      %2330 = vmatprep.subr.mxu0 0.0
      %2331 = vmatpush1.msra.mxu0 0.0
      %2332 = vmatprep.subr.mxu0 0.0
      %2333 = vmatpush1.msra.mxu0 0.0
      %2334 = vmatprep.subr.mxu0 0.0
      %2335 = vmatpush1.msra.mxu0 0.0
      %2336 = vmatprep.subr.mxu0 0.0
      %2337 = vmatpush1.msra.mxu0 0.0
      %2338 = vmatprep.subr.mxu0 0.0
      %2339 = vmatpush1.msra.mxu0 0.0
      %2340 = vmatprep.subr.mxu0 0.0
      %2341 = vmatpush1.msra.mxu0 0.0
      %2342 = vmatprep.subr.mxu0 0.0
      %2343 = vmatpush1.msra.mxu0 0.0
      %2344 = vmatprep.subr.mxu0 0.0
      %2345 = vmatpush1.msra.mxu0 0.0
      %2346 = vmatprep.subr.mxu0 0.0
      %2347 = vmatpush1.msra.mxu0 0.0
      %2348 = vmatprep.subr.mxu0 0.0
      %2349 = vmatpush1.msra.mxu0 0.0
      %2350 = vmatprep.subr.mxu0 0.0
      %2351 = vmatpush1.msra.mxu0 0.0
      %2352 = vmatprep.subr.mxu0 0.0
      %2353 = vmatpush1.msra.mxu0 0.0
      %2354 = vmatprep.subr.mxu0 0.0
      %2355 = vmatpush1.msra.mxu0 0.0
      %2356 = vmatprep.subr.mxu0 0.0
      %2357 = vmatpush1.msra.mxu0 0.0
      %2358 = vmatprep.subr.mxu0 0.0
      %2359 = vmatpush1.msra.mxu0 0.0
      %2360 = vmatprep.subr.mxu0 0.0
      %2361 = vmatpush1.msra.mxu0 0.0
      %2362 = vmatprep.subr.mxu0 0.0
      %2363 = vmatpush1.msra.mxu0 0.0
      %2364 = vmatprep.subr.mxu0 0.0
      %2365 = vmatpush1.msra.mxu0 0.0
      %2366 = vmatprep.subr.mxu0 0.0
      %2367 = vmatpush1.msra.mxu0 0.0
      %2368 = vmatprep.subr.mxu0 0.0
      %2369 = vmatpush1.msra.mxu0 0.0
      %2370 = vmatprep.subr.mxu0 0.0
      %2371 = vmatpush1.msra.mxu0 0.0
      %2372 = vmatprep.subr.mxu0 0.0
      %2373 = vmatpush1.msra.mxu0 0.0
      %2374 = vmatprep.subr.mxu0 0.0
      %2375 = vmatpush1.msra.mxu0 0.0
      %2376 = vmatprep.subr.mxu0 0.0
      %2377 = vmatpush1.msra.mxu0 0.0
      %2378 = vmatprep.mubr.f32.mxu0 0.0
      %2379 = vmatmul.mubr.f32.gmra.mrb[0].mxu0 %v690
      %v2380 = vpop.f32.mrb[0].mxu0
      %v2381 = vadd.f32 %v2312, %v2380
      %v2382 = vpop.f32.mrb[0].mxu0
      %2383 = vdwg.mxu0
      %v2385 = vsel %vm928, %v2215, 0
      %v2388 = vsel %vm928, %v2298, 0
      %2390 = vmatprep.subr.mxu0 0.0
      %2391 = vmatpush1.xpose.msra.mxu0 %v2388
      %2392 = vmatprep.subr.mxu0 0.0
      %2393 = vmatpush1.xpose.msra.mxu0 0.0
      %2394 = vmatprep.subr.mxu0 0.0
      %2395 = vmatpush1.xpose.msra.mxu0 0.0
      %2396 = vmatprep.subr.mxu0 0.0
      %2397 = vmatpush1.xpose.msra.mxu0 0.0
      %2398 = vmatprep.subr.mxu0 0.0
      %2399 = vmatpush1.xpose.msra.mxu0 0.0
      %2400 = vmatprep.subr.mxu0 0.0
      %2401 = vmatpush1.xpose.msra.mxu0 0.0
      %2402 = vmatprep.subr.mxu0 0.0
      %2403 = vmatpush1.xpose.msra.mxu0 0.0
      %2404 = vmatprep.subr.mxu0 0.0
      %2405 = vmatpush1.xpose.msra.mxu0 0.0
      %2406 = vmatprep.subr.mxu0 0.0
      %2407 = vmatpush1.xpose.msra.mxu0 0.0
      %2408 = vmatprep.subr.mxu0 0.0
      %2409 = vmatpush1.xpose.msra.mxu0 0.0
      %2410 = vmatprep.subr.mxu0 0.0
      %2411 = vmatpush1.xpose.msra.mxu0 0.0
      %2412 = vmatprep.subr.mxu0 0.0
      %2413 = vmatpush1.xpose.msra.mxu0 0.0
      %2414 = vmatprep.subr.mxu0 0.0
      %2415 = vmatpush1.xpose.msra.mxu0 0.0
      %2416 = vmatprep.subr.mxu0 0.0
      %2417 = vmatpush1.xpose.msra.mxu0 0.0
      %2418 = vmatprep.subr.mxu0 0.0
      %2419 = vmatpush1.xpose.msra.mxu0 0.0
      %2420 = vmatprep.subr.mxu0 0.0
      %2421 = vmatpush1.xpose.msra.mxu0 0.0
      %2422 = vmatprep.subr.mxu0 0.0
      %2423 = vmatpush1.xpose.msra.mxu0 0.0
      %2424 = vmatprep.subr.mxu0 0.0
      %2425 = vmatpush1.xpose.msra.mxu0 0.0
      %2426 = vmatprep.subr.mxu0 0.0
      %2427 = vmatpush1.xpose.msra.mxu0 0.0
      %2428 = vmatprep.subr.mxu0 0.0
      %2429 = vmatpush1.xpose.msra.mxu0 0.0
      %2430 = vmatprep.subr.mxu0 0.0
      %2431 = vmatpush1.xpose.msra.mxu0 0.0
      %2432 = vmatprep.subr.mxu0 0.0
      %2433 = vmatpush1.xpose.msra.mxu0 0.0
      %2434 = vmatprep.subr.mxu0 0.0
      %2435 = vmatpush1.xpose.msra.mxu0 0.0
      %2436 = vmatprep.subr.mxu0 0.0
      %2437 = vmatpush1.xpose.msra.mxu0 0.0
      %2438 = vmatprep.subr.mxu0 0.0
      %2439 = vmatpush1.xpose.msra.mxu0 0.0
      %2440 = vmatprep.subr.mxu0 0.0
      %2441 = vmatpush1.xpose.msra.mxu0 0.0
      %2442 = vmatprep.subr.mxu0 0.0
      %2443 = vmatpush1.xpose.msra.mxu0 0.0
      %2444 = vmatprep.subr.mxu0 0.0
      %2445 = vmatpush1.xpose.msra.mxu0 0.0
      %2446 = vmatprep.subr.mxu0 0.0
      %2447 = vmatpush1.xpose.msra.mxu0 0.0
      %2448 = vmatprep.subr.mxu0 0.0
      %2449 = vmatpush1.xpose.msra.mxu0 0.0
      %2450 = vmatprep.subr.mxu0 0.0
      %2451 = vmatpush1.xpose.msra.mxu0 0.0
      %2452 = vmatprep.subr.mxu0 0.0
      %2453 = vmatpush1.xpose.msra.mxu0 0.0
      %2454 = vmatprep.mubr.f32.mxu0 0.0
      %2455 = vmatmul.mubr.f32.gmra.mrb[0].mxu0 %v2385
      %v2456 = vpop.f32.mrb[0].mxu0
      %v2457 = vadd.f32 0.0, %v2456
      %v2458 = vpop.f32.mrb[0].mxu0
      %2459 = vdwg.mxu0
      %v2460 = vmul.f32 %v2457, 0.35355338
      %v2461 = vsel %vm928, %v2460, -inf
      %2462 = vmax.xlane.f32.xlu0 %v2461
      %v2463 = vpop.xlane.xlu0 %2462
      %v2464 = vsub.f32 %v2460, %v2463
      %v2465 = vmul.f32 %v2464, 1.442695
      %v2466 = vpow.pop %v2465
      %v2467 = vsel %vm928, %v2466, 0.0
      %2468 = vadd.xlane.f32.xlu0 %v2467
      %v2469 = vpop.xlane.xlu0 %2468
      %v2470 = vrcp.pop %v2469
      %v2471 = vmul.f32 %v2466, %v2470
      %v2473 = vsel %vm928, %v2471, 0
      %2475 = vmatprep.subr.mxu0 0.0
      %2476 = vmatpush1.msra.mxu0 %v2381
      %2477 = vmatprep.subr.mxu0 0.0
      %2478 = vmatpush1.msra.mxu0 0.0
      %2479 = vmatprep.subr.mxu0 0.0
      %2480 = vmatpush1.msra.mxu0 0.0
      %2481 = vmatprep.subr.mxu0 0.0
      %2482 = vmatpush1.msra.mxu0 0.0
      %2483 = vmatprep.subr.mxu0 0.0
      %2484 = vmatpush1.msra.mxu0 0.0
      %2485 = vmatprep.subr.mxu0 0.0
      %2486 = vmatpush1.msra.mxu0 0.0
      %2487 = vmatprep.subr.mxu0 0.0
      %2488 = vmatpush1.msra.mxu0 0.0
      %2489 = vmatprep.subr.mxu0 0.0
      %2490 = vmatpush1.msra.mxu0 0.0
      %2491 = vmatprep.subr.mxu0 0.0
      %2492 = vmatpush1.msra.mxu0 0.0
      %2493 = vmatprep.subr.mxu0 0.0
      %2494 = vmatpush1.msra.mxu0 0.0
      %2495 = vmatprep.subr.mxu0 0.0
      %2496 = vmatpush1.msra.mxu0 0.0
      %2497 = vmatprep.subr.mxu0 0.0
      %2498 = vmatpush1.msra.mxu0 0.0
      %2499 = vmatprep.subr.mxu0 0.0
      %2500 = vmatpush1.msra.mxu0 0.0
      %2501 = vmatprep.subr.mxu0 0.0
      %2502 = vmatpush1.msra.mxu0 0.0
      %2503 = vmatprep.subr.mxu0 0.0
      %2504 = vmatpush1.msra.mxu0 0.0
      %2505 = vmatprep.subr.mxu0 0.0
      %2506 = vmatpush1.msra.mxu0 0.0
      %2507 = vmatprep.subr.mxu0 0.0
      %2508 = vmatpush1.msra.mxu0 0.0
      %2509 = vmatprep.subr.mxu0 0.0
      %2510 = vmatpush1.msra.mxu0 0.0
      %2511 = vmatprep.subr.mxu0 0.0
      %2512 = vmatpush1.msra.mxu0 0.0
      %2513 = vmatprep.subr.mxu0 0.0
      %2514 = vmatpush1.msra.mxu0 0.0
      %2515 = vmatprep.subr.mxu0 0.0
      %2516 = vmatpush1.msra.mxu0 0.0
      %2517 = vmatprep.subr.mxu0 0.0
      %2518 = vmatpush1.msra.mxu0 0.0
      %2519 = vmatprep.subr.mxu0 0.0
      %2520 = vmatpush1.msra.mxu0 0.0
      %2521 = vmatprep.subr.mxu0 0.0
      %2522 = vmatpush1.msra.mxu0 0.0
      %2523 = vmatprep.subr.mxu0 0.0
      %2524 = vmatpush1.msra.mxu0 0.0
      %2525 = vmatprep.subr.mxu0 0.0
      %2526 = vmatpush1.msra.mxu0 0.0
      %2527 = vmatprep.subr.mxu0 0.0
      %2528 = vmatpush1.msra.mxu0 0.0
      %2529 = vmatprep.subr.mxu0 0.0
      %2530 = vmatpush1.msra.mxu0 0.0
      %2531 = vmatprep.subr.mxu0 0.0
      %2532 = vmatpush1.msra.mxu0 0.0
      %2533 = vmatprep.subr.mxu0 0.0
      %2534 = vmatpush1.msra.mxu0 0.0
      %2535 = vmatprep.subr.mxu0 0.0
      %2536 = vmatpush1.msra.mxu0 0.0
      %2537 = vmatprep.subr.mxu0 0.0
      %2538 = vmatpush1.msra.mxu0 0.0
      %2539 = vmatprep.mubr.f32.mxu0 0.0
      %2540 = vmatmul.mubr.f32.gmra.mrb[0].mxu0 %v2473
      %v2541 = vpop.f32.mrb[0].mxu0
      %v2542 = vadd.f32 0.0, %v2541
      %v2543 = vpop.f32.mrb[0].mxu0
      %2544 = vdwg.mxu0
      %s2545 = scalar_lea.vmem %s5, 24
      %v2546 = vld [vmem:[%s2545] sm:$0xff]
      %v2548 = vsel %vm928, %v2542, 0
      %2550 = vmatprep.subr.mxu0 0.0
      %2551 = vmatpush1.msra.mxu0 %v2546
      %2552 = vmatprep.subr.mxu0 0.0
      %2553 = vmatpush1.msra.mxu0 0.0
      %2554 = vmatprep.subr.mxu0 0.0
      %2555 = vmatpush1.msra.mxu0 0.0
      %2556 = vmatprep.subr.mxu0 0.0
      %2557 = vmatpush1.msra.mxu0 0.0
      %2558 = vmatprep.subr.mxu0 0.0
      %2559 = vmatpush1.msra.mxu0 0.0
      %2560 = vmatprep.subr.mxu0 0.0
      %2561 = vmatpush1.msra.mxu0 0.0
      %2562 = vmatprep.subr.mxu0 0.0
      %2563 = vmatpush1.msra.mxu0 0.0
      %2564 = vmatprep.subr.mxu0 0.0
      %2565 = vmatpush1.msra.mxu0 0.0
      %2566 = vmatprep.subr.mxu0 0.0
      %2567 = vmatpush1.msra.mxu0 0.0
      %2568 = vmatprep.subr.mxu0 0.0
      %2569 = vmatpush1.msra.mxu0 0.0
      %2570 = vmatprep.subr.mxu0 0.0
      %2571 = vmatpush1.msra.mxu0 0.0
      %2572 = vmatprep.subr.mxu0 0.0
      %2573 = vmatpush1.msra.mxu0 0.0
      %2574 = vmatprep.subr.mxu0 0.0
      %2575 = vmatpush1.msra.mxu0 0.0
      %2576 = vmatprep.subr.mxu0 0.0
      %2577 = vmatpush1.msra.mxu0 0.0
      %2578 = vmatprep.subr.mxu0 0.0
      %2579 = vmatpush1.msra.mxu0 0.0
      %2580 = vmatprep.subr.mxu0 0.0
      %2581 = vmatpush1.msra.mxu0 0.0
      %2582 = vmatprep.subr.mxu0 0.0
      %2583 = vmatpush1.msra.mxu0 0.0
      %2584 = vmatprep.subr.mxu0 0.0
      %2585 = vmatpush1.msra.mxu0 0.0
      %2586 = vmatprep.subr.mxu0 0.0
      %2587 = vmatpush1.msra.mxu0 0.0
      %2588 = vmatprep.subr.mxu0 0.0
      %2589 = vmatpush1.msra.mxu0 0.0
      %2590 = vmatprep.subr.mxu0 0.0
      %2591 = vmatpush1.msra.mxu0 0.0
      %2592 = vmatprep.subr.mxu0 0.0
      %2593 = vmatpush1.msra.mxu0 0.0
      %2594 = vmatprep.subr.mxu0 0.0
      %2595 = vmatpush1.msra.mxu0 0.0
      %2596 = vmatprep.subr.mxu0 0.0
      %2597 = vmatpush1.msra.mxu0 0.0
      %2598 = vmatprep.subr.mxu0 0.0
      %2599 = vmatpush1.msra.mxu0 0.0
      %2600 = vmatprep.subr.mxu0 0.0
      %2601 = vmatpush1.msra.mxu0 0.0
      %2602 = vmatprep.subr.mxu0 0.0
      %2603 = vmatpush1.msra.mxu0 0.0
      %2604 = vmatprep.subr.mxu0 0.0
      %2605 = vmatpush1.msra.mxu0 0.0
      %2606 = vmatprep.subr.mxu0 0.0
      %2607 = vmatpush1.msra.mxu0 0.0
      %2608 = vmatprep.subr.mxu0 0.0
      %2609 = vmatpush1.msra.mxu0 0.0
      %2610 = vmatprep.subr.mxu0 0.0
      %2611 = vmatpush1.msra.mxu0 0.0
      %2612 = vmatprep.subr.mxu0 0.0
      %2613 = vmatpush1.msra.mxu0 0.0
      %2614 = vmatprep.mubr.f32.mxu0 0.0
      %2615 = vmatmul.mubr.f32.gmra.mrb[0].mxu0 %v2548
      %v2616 = vpop.f32.mrb[0].mxu0
      %v2617 = vadd.f32 0.0, %v2616
      %v2618 = vpop.f32.mrb[0].mxu0
      %2619 = vdwg.mxu0
      %v2620 = vadd.f32 %v2134, %v2617
      %v2621 = vld [vmem:[%s6] sm:$0x1]
      %v2623 = vlaneseq
      %v2624 = vshrl.u32 %v2623, 7
      %v2625 = vsub.s32 0, %v2624
      %v2626 = vrot.slane %v2621, %v2625
      %v2628 = vadd.f32 %v2620, %v2626
      %v2629 = vadd.f32 %v674, %v2628
      %v2630 = vsel %vm688, %v2629, 0.0
      %2631 = vadd.xlane.f32.xlu0 %v2630
      %v2632 = vpop.xlane.xlu0 %2631
      %v2633 = vrcp.pop 32.0
      %v2634 = vmul.f32 %v2632, %v2633
      %v2635 = vsub.f32 %v2629, %v2634
      %v2636 = vmul.f32 %v2635, %v2635
      %v2637 = vsel %vm688, %v2636, 0.0
      %2638 = vadd.xlane.f32.xlu0 %v2637
      %v2639 = vpop.xlane.xlu0 %2638
      %v2640 = vmul.f32 %v2639, %v2633
      %v2641 = vadd.f32 %v2640, 1e-05
      %v2642 = vrsqrt.pop %v2641
      %v2643 = vmul.f32 %v2635, %v2642
      %v2644 = vld [vmem:[%s7] sm:$0x1]
      %v2646 = vlaneseq
      %v2647 = vshrl.u32 %v2646, 7
      %v2648 = vsub.s32 0, %v2647
      %v2649 = vrot.slane %v2644, %v2648
      %v2651 = vmul.f32 %v2643, %v2649
      %v2652 = vld [vmem:[%s8] sm:$0x1]
      %v2654 = vlaneseq
      %v2655 = vshrl.u32 %v2654, 7
      %v2656 = vsub.s32 0, %v2655
      %v2657 = vrot.slane %v2652, %v2656
      %v2659 = vadd.f32 %v2651, %v2657
      %v2660 = vld [vmem:[%s9] sm:$0xff]
      %v2661 = vld [vmem:[%s9 + $0x8] sm:$0xff]
      %v2662 = vld [vmem:[%s9 + $0x10] sm:$0xff]
      %v2663 = vld [vmem:[%s9 + $0x18] sm:$0xff]
      %v2664 = vld [vmem:[%s10] sm:$0x1]
      %v2666 = vlaneseq
      %v2667 = vshrl.u32 %v2666, 7
      %v2668 = vsub.s32 0, %v2667
      %v2669 = vrot.slane %v2664, %v2668
      %v2672 = vsel %vm688, %v2659, 0
      %2674 = vmatprep.subr.mxu0 0.0
      %2675 = vmatpush1.msra.mxu0 %v2660
      %2676 = vmatprep.subr.mxu0 0.0
      %2677 = vmatpush1.msra.mxu0 %v2661
      %2678 = vmatprep.subr.mxu0 0.0
      %2679 = vmatpush1.msra.mxu0 %v2662
      %2680 = vmatprep.subr.mxu0 0.0
      %2681 = vmatpush1.msra.mxu0 %v2663
      %2682 = vmatprep.subr.mxu0 0.0
      %2683 = vmatpush1.msra.mxu0 0.0
      %2684 = vmatprep.subr.mxu0 0.0
      %2685 = vmatpush1.msra.mxu0 0.0
      %2686 = vmatprep.subr.mxu0 0.0
      %2687 = vmatpush1.msra.mxu0 0.0
      %2688 = vmatprep.subr.mxu0 0.0
      %2689 = vmatpush1.msra.mxu0 0.0
      %2690 = vmatprep.subr.mxu0 0.0
      %2691 = vmatpush1.msra.mxu0 0.0
      %2692 = vmatprep.subr.mxu0 0.0
      %2693 = vmatpush1.msra.mxu0 0.0
      %2694 = vmatprep.subr.mxu0 0.0
      %2695 = vmatpush1.msra.mxu0 0.0
      %2696 = vmatprep.subr.mxu0 0.0
      %2697 = vmatpush1.msra.mxu0 0.0
      %2698 = vmatprep.subr.mxu0 0.0
      %2699 = vmatpush1.msra.mxu0 0.0
      %2700 = vmatprep.subr.mxu0 0.0
      %2701 = vmatpush1.msra.mxu0 0.0
      %2702 = vmatprep.subr.mxu0 0.0
      %2703 = vmatpush1.msra.mxu0 0.0
      %2704 = vmatprep.subr.mxu0 0.0
      %2705 = vmatpush1.msra.mxu0 0.0
      %2706 = vmatprep.subr.mxu0 0.0
      %2707 = vmatpush1.msra.mxu0 0.0
      %2708 = vmatprep.subr.mxu0 0.0
      %2709 = vmatpush1.msra.mxu0 0.0
      %2710 = vmatprep.subr.mxu0 0.0
      %2711 = vmatpush1.msra.mxu0 0.0
      %2712 = vmatprep.subr.mxu0 0.0
      %2713 = vmatpush1.msra.mxu0 0.0
      %2714 = vmatprep.subr.mxu0 0.0
      %2715 = vmatpush1.msra.mxu0 0.0
      %2716 = vmatprep.subr.mxu0 0.0
      %2717 = vmatpush1.msra.mxu0 0.0
      %2718 = vmatprep.subr.mxu0 0.0
      %2719 = vmatpush1.msra.mxu0 0.0
      %2720 = vmatprep.subr.mxu0 0.0
      %2721 = vmatpush1.msra.mxu0 0.0
      %2722 = vmatprep.subr.mxu0 0.0
      %2723 = vmatpush1.msra.mxu0 0.0
      %2724 = vmatprep.subr.mxu0 0.0
      %2725 = vmatpush1.msra.mxu0 0.0
      %2726 = vmatprep.subr.mxu0 0.0
      %2727 = vmatpush1.msra.mxu0 0.0
      %2728 = vmatprep.subr.mxu0 0.0
      %2729 = vmatpush1.msra.mxu0 0.0
      %2730 = vmatprep.subr.mxu0 0.0
      %2731 = vmatpush1.msra.mxu0 0.0
      %2732 = vmatprep.subr.mxu0 0.0
      %2733 = vmatpush1.msra.mxu0 0.0
      %2734 = vmatprep.subr.mxu0 0.0
      %2735 = vmatpush1.msra.mxu0 0.0
      %2736 = vmatprep.subr.mxu0 0.0
      %2737 = vmatpush1.msra.mxu0 0.0
      %2738 = vmatprep.mubr.f32.mxu0 0.0
      %2739 = vmatmul.mubr.f32.gmra.mrb[0].mxu0 %v2672
      %v2740 = vpop.f32.mrb[0].mxu0
      %v2741 = vadd.f32 %v2669, %v2740
      %v2742 = vpop.f32.mrb[0].mxu0
      %2743 = vdwg.mxu0
      %s2744 = scalar_lea.vmem %s9, 128
      %v2745 = vld [vmem:[%s2744] sm:$0xff]
      %v2746 = vld [vmem:[%s2744 + $0x8] sm:$0xff]
      %v2747 = vld [vmem:[%s2744 + $0x10] sm:$0xff]
      %v2748 = vld [vmem:[%s2744 + $0x18] sm:$0xff]
      %s2749 = scalar_lea.vmem %s10, 4
      %v2750 = vld [vmem:[%s2749] sm:$0x1]
      %v2752 = vlaneseq
      %v2753 = vshrl.u32 %v2752, 7
      %v2754 = vsub.s32 0, %v2753
      %v2755 = vrot.slane %v2750, %v2754
      %v2758 = vsel %vm688, %v675, 0
      %v2761 = vsel %vm688, %v676, 0
      %2763 = vmatprep.subr.mxu0 0.0
      %2764 = vmatpush1.msra.mxu0 %v2745
      %2765 = vmatprep.subr.mxu0 0.0
      %2766 = vmatpush1.msra.mxu0 %v2746
      %2767 = vmatprep.subr.mxu0 0.0
      %2768 = vmatpush1.msra.mxu0 %v2747
      %2769 = vmatprep.subr.mxu0 0.0
      %2770 = vmatpush1.msra.mxu0 %v2748
      %2771 = vmatprep.subr.mxu0 0.0
      %2772 = vmatpush1.msra.mxu0 0.0
      %2773 = vmatprep.subr.mxu0 0.0
      %2774 = vmatpush1.msra.mxu0 0.0
      %2775 = vmatprep.subr.mxu0 0.0
      %2776 = vmatpush1.msra.mxu0 0.0
      %2777 = vmatprep.subr.mxu0 0.0
      %2778 = vmatpush1.msra.mxu0 0.0
      %2779 = vmatprep.subr.mxu0 0.0
      %2780 = vmatpush1.msra.mxu0 0.0
      %2781 = vmatprep.subr.mxu0 0.0
      %2782 = vmatpush1.msra.mxu0 0.0
      %2783 = vmatprep.subr.mxu0 0.0
      %2784 = vmatpush1.msra.mxu0 0.0
      %2785 = vmatprep.subr.mxu0 0.0
      %2786 = vmatpush1.msra.mxu0 0.0
      %2787 = vmatprep.subr.mxu0 0.0
      %2788 = vmatpush1.msra.mxu0 0.0
      %2789 = vmatprep.subr.mxu0 0.0
      %2790 = vmatpush1.msra.mxu0 0.0
      %2791 = vmatprep.subr.mxu0 0.0
      %2792 = vmatpush1.msra.mxu0 0.0
      %2793 = vmatprep.subr.mxu0 0.0
      %2794 = vmatpush1.msra.mxu0 0.0
      %2795 = vmatprep.subr.mxu0 0.0
      %2796 = vmatpush1.msra.mxu0 0.0
      %2797 = vmatprep.subr.mxu0 0.0
      %2798 = vmatpush1.msra.mxu0 0.0
      %2799 = vmatprep.subr.mxu0 0.0
      %2800 = vmatpush1.msra.mxu0 0.0
      %2801 = vmatprep.subr.mxu0 0.0
      %2802 = vmatpush1.msra.mxu0 0.0
      %2803 = vmatprep.subr.mxu0 0.0
      %2804 = vmatpush1.msra.mxu0 0.0
      %2805 = vmatprep.subr.mxu0 0.0
      %2806 = vmatpush1.msra.mxu0 0.0
      %2807 = vmatprep.subr.mxu0 0.0
      %2808 = vmatpush1.msra.mxu0 0.0
      %2809 = vmatprep.subr.mxu0 0.0
      %2810 = vmatpush1.msra.mxu0 0.0
      %2811 = vmatprep.subr.mxu0 0.0
      %2812 = vmatpush1.msra.mxu0 0.0
      %2813 = vmatprep.subr.mxu0 0.0
      %2814 = vmatpush1.msra.mxu0 0.0
      %2815 = vmatprep.subr.mxu0 0.0
      %2816 = vmatpush1.msra.mxu0 0.0
      %2817 = vmatprep.subr.mxu0 0.0
      %2818 = vmatpush1.msra.mxu0 0.0
      %2819 = vmatprep.subr.mxu0 0.0
      %2820 = vmatpush1.msra.mxu0 0.0
      %2821 = vmatprep.subr.mxu0 0.0
      %2822 = vmatpush1.msra.mxu0 0.0
      %2823 = vmatprep.subr.mxu0 0.0
      %2824 = vmatpush1.msra.mxu0 0.0
      %2825 = vmatprep.subr.mxu0 0.0
      %2826 = vmatpush1.msra.mxu0 0.0
      %2827 = vmatprep.mubr.f32.mxu0 0.0
      %2828 = vmatmul.mubr.f32.gmra.mrb[0].mxu0 %v2758
      %v2829 = vpop.f32.mrb[0].mxu0
      %v2830 = vadd.f32 %v2755, %v2829
      %v2831 = vpop.f32.mrb[0].mxu0
      %2832 = vmatprep.mubr.f32.mxu0 0.0
      %2833 = vmatmul.mubr.f32.gmra.mrb[0].mxu0 %v2761
      %v2834 = vpop.f32.mrb[0].mxu0
      %v2835 = vadd.f32 %v2755, %v2834
      %v2836 = vpop.f32.mrb[0].mxu0
      %2837 = vdwg.mxu0
      %s2838 = scalar_lea.vmem %s9, 256
      %v2839 = vld [vmem:[%s2838] sm:$0xff]
      %v2840 = vld [vmem:[%s2838 + $0x8] sm:$0xff]
      %v2841 = vld [vmem:[%s2838 + $0x10] sm:$0xff]
      %v2842 = vld [vmem:[%s2838 + $0x18] sm:$0xff]
      %s2843 = scalar_lea.vmem %s10, 8
      %v2844 = vld [vmem:[%s2843] sm:$0x1]
      %v2846 = vlaneseq
      %v2847 = vshrl.u32 %v2846, 7
      %v2848 = vsub.s32 0, %v2847
      %v2849 = vrot.slane %v2844, %v2848
      %2851 = vmatprep.subr.mxu0 0.0
      %2852 = vmatpush1.msra.mxu0 %v2839
      %2853 = vmatprep.subr.mxu0 0.0
      %2854 = vmatpush1.msra.mxu0 %v2840
      %2855 = vmatprep.subr.mxu0 0.0
      %2856 = vmatpush1.msra.mxu0 %v2841
      %2857 = vmatprep.subr.mxu0 0.0
      %2858 = vmatpush1.msra.mxu0 %v2842
      %2859 = vmatprep.subr.mxu0 0.0
      %2860 = vmatpush1.msra.mxu0 0.0
      %2861 = vmatprep.subr.mxu0 0.0
      %2862 = vmatpush1.msra.mxu0 0.0
      %2863 = vmatprep.subr.mxu0 0.0
      %2864 = vmatpush1.msra.mxu0 0.0
      %2865 = vmatprep.subr.mxu0 0.0
      %2866 = vmatpush1.msra.mxu0 0.0
      %2867 = vmatprep.subr.mxu0 0.0
      %2868 = vmatpush1.msra.mxu0 0.0
      %2869 = vmatprep.subr.mxu0 0.0
      %2870 = vmatpush1.msra.mxu0 0.0
      %2871 = vmatprep.subr.mxu0 0.0
      %2872 = vmatpush1.msra.mxu0 0.0
      %2873 = vmatprep.subr.mxu0 0.0
      %2874 = vmatpush1.msra.mxu0 0.0
      %2875 = vmatprep.subr.mxu0 0.0
      %2876 = vmatpush1.msra.mxu0 0.0
      %2877 = vmatprep.subr.mxu0 0.0
      %2878 = vmatpush1.msra.mxu0 0.0
      %2879 = vmatprep.subr.mxu0 0.0
      %2880 = vmatpush1.msra.mxu0 0.0
      %2881 = vmatprep.subr.mxu0 0.0
      %2882 = vmatpush1.msra.mxu0 0.0
      %2883 = vmatprep.subr.mxu0 0.0
      %2884 = vmatpush1.msra.mxu0 0.0
      %2885 = vmatprep.subr.mxu0 0.0
      %2886 = vmatpush1.msra.mxu0 0.0
      %2887 = vmatprep.subr.mxu0 0.0
      %2888 = vmatpush1.msra.mxu0 0.0
      %2889 = vmatprep.subr.mxu0 0.0
      %2890 = vmatpush1.msra.mxu0 0.0
      %2891 = vmatprep.subr.mxu0 0.0
      %2892 = vmatpush1.msra.mxu0 0.0
      %2893 = vmatprep.subr.mxu0 0.0
      %2894 = vmatpush1.msra.mxu0 0.0
      %2895 = vmatprep.subr.mxu0 0.0
      %2896 = vmatpush1.msra.mxu0 0.0
      %2897 = vmatprep.subr.mxu0 0.0
      %2898 = vmatpush1.msra.mxu0 0.0
      %2899 = vmatprep.subr.mxu0 0.0
      %2900 = vmatpush1.msra.mxu0 0.0
      %2901 = vmatprep.subr.mxu0 0.0
      %2902 = vmatpush1.msra.mxu0 0.0
      %2903 = vmatprep.subr.mxu0 0.0
      %2904 = vmatpush1.msra.mxu0 0.0
      %2905 = vmatprep.subr.mxu0 0.0
      %2906 = vmatpush1.msra.mxu0 0.0
      %2907 = vmatprep.subr.mxu0 0.0
      %2908 = vmatpush1.msra.mxu0 0.0
      %2909 = vmatprep.subr.mxu0 0.0
      %2910 = vmatpush1.msra.mxu0 0.0
      %2911 = vmatprep.subr.mxu0 0.0
      %2912 = vmatpush1.msra.mxu0 0.0
      %2913 = vmatprep.subr.mxu0 0.0
      %2914 = vmatpush1.msra.mxu0 0.0
      %2915 = vmatprep.mubr.f32.mxu0 0.0
      %2916 = vmatmul.mubr.f32.gmra.mrb[0].mxu0 %v2758
      %v2917 = vpop.f32.mrb[0].mxu0
      %v2918 = vadd.f32 %v2849, %v2917
      %v2919 = vpop.f32.mrb[0].mxu0
      %2920 = vmatprep.mubr.f32.mxu0 0.0
      %2921 = vmatmul.mubr.f32.gmra.mrb[0].mxu0 %v2761
      %v2922 = vpop.f32.mrb[0].mxu0
      %v2923 = vadd.f32 %v2849, %v2922
      %v2924 = vpop.f32.mrb[0].mxu0
      %2925 = vdwg.mxu0
      %v2927 = vsel %vm928, %v2741, 0
      %v2930 = vsel %vm928, %v2830, 0
      %v2933 = vsel %vm928, %v2835, 0
      %2935 = vmatprep.subr.mxu0 0.0
      %2936 = vmatpush1.xpose.msra.mxu0 %v2930
      %2937 = vmatprep.subr.mxu0 0.0
      %2938 = vmatpush1.xpose.msra.mxu0 %v2933
      %2939 = vmatprep.subr.mxu0 0.0
      %2940 = vmatpush1.xpose.msra.mxu0 0.0
      %2941 = vmatprep.subr.mxu0 0.0
      %2942 = vmatpush1.xpose.msra.mxu0 0.0
      %2943 = vmatprep.subr.mxu0 0.0
      %2944 = vmatpush1.xpose.msra.mxu0 0.0
      %2945 = vmatprep.subr.mxu0 0.0
      %2946 = vmatpush1.xpose.msra.mxu0 0.0
      %2947 = vmatprep.subr.mxu0 0.0
      %2948 = vmatpush1.xpose.msra.mxu0 0.0
      %2949 = vmatprep.subr.mxu0 0.0
      %2950 = vmatpush1.xpose.msra.mxu0 0.0
      %2951 = vmatprep.subr.mxu0 0.0
      %2952 = vmatpush1.xpose.msra.mxu0 0.0
      %2953 = vmatprep.subr.mxu0 0.0
      %2954 = vmatpush1.xpose.msra.mxu0 0.0
      %2955 = vmatprep.subr.mxu0 0.0
      %2956 = vmatpush1.xpose.msra.mxu0 0.0
      %2957 = vmatprep.subr.mxu0 0.0
      %2958 = vmatpush1.xpose.msra.mxu0 0.0
      %2959 = vmatprep.subr.mxu0 0.0
      %2960 = vmatpush1.xpose.msra.mxu0 0.0
      %2961 = vmatprep.subr.mxu0 0.0
      %2962 = vmatpush1.xpose.msra.mxu0 0.0
      %2963 = vmatprep.subr.mxu0 0.0
      %2964 = vmatpush1.xpose.msra.mxu0 0.0
      %2965 = vmatprep.subr.mxu0 0.0
      %2966 = vmatpush1.xpose.msra.mxu0 0.0
      %2967 = vmatprep.subr.mxu0 0.0
      %2968 = vmatpush1.xpose.msra.mxu0 0.0
      %2969 = vmatprep.subr.mxu0 0.0
      %2970 = vmatpush1.xpose.msra.mxu0 0.0
      %2971 = vmatprep.subr.mxu0 0.0
      %2972 = vmatpush1.xpose.msra.mxu0 0.0
      %2973 = vmatprep.subr.mxu0 0.0
      %2974 = vmatpush1.xpose.msra.mxu0 0.0
      %2975 = vmatprep.subr.mxu0 0.0
      %2976 = vmatpush1.xpose.msra.mxu0 0.0
      %2977 = vmatprep.subr.mxu0 0.0
      %2978 = vmatpush1.xpose.msra.mxu0 0.0
      %2979 = vmatprep.subr.mxu0 0.0
      %2980 = vmatpush1.xpose.msra.mxu0 0.0
      %2981 = vmatprep.subr.mxu0 0.0
      %2982 = vmatpush1.xpose.msra.mxu0 0.0
      %2983 = vmatprep.subr.mxu0 0.0
      %2984 = vmatpush1.xpose.msra.mxu0 0.0
      %2985 = vmatprep.subr.mxu0 0.0
      %2986 = vmatpush1.xpose.msra.mxu0 0.0
      %2987 = vmatprep.subr.mxu0 0.0
      %2988 = vmatpush1.xpose.msra.mxu0 0.0
      %2989 = vmatprep.subr.mxu0 0.0
      %2990 = vmatpush1.xpose.msra.mxu0 0.0
      %2991 = vmatprep.subr.mxu0 0.0
      %2992 = vmatpush1.xpose.msra.mxu0 0.0
      %2993 = vmatprep.subr.mxu0 0.0
      %2994 = vmatpush1.xpose.msra.mxu0 0.0
      %2995 = vmatprep.subr.mxu0 0.0
      %2996 = vmatpush1.xpose.msra.mxu0 0.0
      %2997 = vmatprep.subr.mxu0 0.0
      %2998 = vmatpush1.xpose.msra.mxu0 0.0
      %2999 = vmatprep.mubr.f32.mxu0 0.0
      %3000 = vmatmul.mubr.f32.gmra.mrb[0].mxu0 %v2927
      %v3001 = vpop.f32.mrb[0].mxu0
      %v3002 = vadd.f32 0.0, %v3001
      %v3003 = vpop.f32.mrb[0].mxu0
      %3004 = vdwg.mxu0
      %v3005 = vmul.f32 %v3002, 0.35355338
      %vm3006 = vcmask 80896
      %v3007 = vsel %vm3006, %v3005, -inf
      %3008 = vmax.xlane.f32.xlu0 %v3007
      %v3009 = vpop.xlane.xlu0 %3008
      %v3010 = vsub.f32 %v3005, %v3009
      %v3011 = vmul.f32 %v3010, 1.442695
      %v3012 = vpow.pop %v3011
      %v3013 = vsel %vm3006, %v3012, 0.0
      %3014 = vadd.xlane.f32.xlu0 %v3013
      %v3015 = vpop.xlane.xlu0 %3014
      %v3016 = vrcp.pop %v3015
      %v3017 = vmul.f32 %v3012, %v3016
      %v3019 = vsel %vm3006, %v3017, 0
      %vm3021 = vcmask 1041408
      %v3023 = vsel %vm3021, %v2923, 0
      %3025 = vmatprep.subr.mxu0 0.0
      %3026 = vmatpush1.msra.mxu0 %v2918
      %3027 = vmatprep.subr.mxu0 0.0
      %3028 = vmatpush1.msra.mxu0 %v3023
      %3029 = vmatprep.subr.mxu0 0.0
      %3030 = vmatpush1.msra.mxu0 0.0
      %3031 = vmatprep.subr.mxu0 0.0
      %3032 = vmatpush1.msra.mxu0 0.0
      %3033 = vmatprep.subr.mxu0 0.0
      %3034 = vmatpush1.msra.mxu0 0.0
      %3035 = vmatprep.subr.mxu0 0.0
      %3036 = vmatpush1.msra.mxu0 0.0
      %3037 = vmatprep.subr.mxu0 0.0
      %3038 = vmatpush1.msra.mxu0 0.0
      %3039 = vmatprep.subr.mxu0 0.0
      %3040 = vmatpush1.msra.mxu0 0.0
      %3041 = vmatprep.subr.mxu0 0.0
      %3042 = vmatpush1.msra.mxu0 0.0
      %3043 = vmatprep.subr.mxu0 0.0
      %3044 = vmatpush1.msra.mxu0 0.0
      %3045 = vmatprep.subr.mxu0 0.0
      %3046 = vmatpush1.msra.mxu0 0.0
      %3047 = vmatprep.subr.mxu0 0.0
      %3048 = vmatpush1.msra.mxu0 0.0
      %3049 = vmatprep.subr.mxu0 0.0
      %3050 = vmatpush1.msra.mxu0 0.0
      %3051 = vmatprep.subr.mxu0 0.0
      %3052 = vmatpush1.msra.mxu0 0.0
      %3053 = vmatprep.subr.mxu0 0.0
      %3054 = vmatpush1.msra.mxu0 0.0
      %3055 = vmatprep.subr.mxu0 0.0
      %3056 = vmatpush1.msra.mxu0 0.0
      %3057 = vmatprep.subr.mxu0 0.0
      %3058 = vmatpush1.msra.mxu0 0.0
      %3059 = vmatprep.subr.mxu0 0.0
      %3060 = vmatpush1.msra.mxu0 0.0
      %3061 = vmatprep.subr.mxu0 0.0
      %3062 = vmatpush1.msra.mxu0 0.0
      %3063 = vmatprep.subr.mxu0 0.0
      %3064 = vmatpush1.msra.mxu0 0.0
      %3065 = vmatprep.subr.mxu0 0.0
      %3066 = vmatpush1.msra.mxu0 0.0
      %3067 = vmatprep.subr.mxu0 0.0
      %3068 = vmatpush1.msra.mxu0 0.0
      %3069 = vmatprep.subr.mxu0 0.0
      %3070 = vmatpush1.msra.mxu0 0.0
      %3071 = vmatprep.subr.mxu0 0.0
      %3072 = vmatpush1.msra.mxu0 0.0
      %3073 = vmatprep.subr.mxu0 0.0
      %3074 = vmatpush1.msra.mxu0 0.0
      %3075 = vmatprep.subr.mxu0 0.0
      %3076 = vmatpush1.msra.mxu0 0.0
      %3077 = vmatprep.subr.mxu0 0.0
      %3078 = vmatpush1.msra.mxu0 0.0
      %3079 = vmatprep.subr.mxu0 0.0
      %3080 = vmatpush1.msra.mxu0 0.0
      %3081 = vmatprep.subr.mxu0 0.0
      %3082 = vmatpush1.msra.mxu0 0.0
      %3083 = vmatprep.subr.mxu0 0.0
      %3084 = vmatpush1.msra.mxu0 0.0
      %3085 = vmatprep.subr.mxu0 0.0
      %3086 = vmatpush1.msra.mxu0 0.0
      %3087 = vmatprep.subr.mxu0 0.0
      %3088 = vmatpush1.msra.mxu0 0.0
      %3089 = vmatprep.mubr.f32.mxu0 0.0
      %3090 = vmatmul.mubr.f32.gmra.mrb[0].mxu0 %v3019
      %v3091 = vpop.f32.mrb[0].mxu0
      %v3092 = vadd.f32 0.0, %v3091
      %v3093 = vpop.f32.mrb[0].mxu0
      %3094 = vdwg.mxu0
      %v3095 = vld [vmem:[%s11] sm:$0xff]
      %s3096 = scalar_lea.vmem %s9, 32
      %v3097 = vld [vmem:[%s3096] sm:$0xff]
      %v3098 = vld [vmem:[%s3096 + $0x8] sm:$0xff]
      %v3099 = vld [vmem:[%s3096 + $0x10] sm:$0xff]
      %v3100 = vld [vmem:[%s3096 + $0x18] sm:$0xff]
      %s3101 = scalar_lea.vmem %s10, 1
      %v3102 = vld [vmem:[%s3101] sm:$0x1]
      %v3104 = vlaneseq
      %v3105 = vshrl.u32 %v3104, 7
      %v3106 = vsub.s32 0, %v3105
      %v3107 = vrot.slane %v3102, %v3106
      %3109 = vmatprep.subr.mxu0 0.0
      %3110 = vmatpush1.msra.mxu0 %v3097
      %3111 = vmatprep.subr.mxu0 0.0
      %3112 = vmatpush1.msra.mxu0 %v3098
      %3113 = vmatprep.subr.mxu0 0.0
      %3114 = vmatpush1.msra.mxu0 %v3099
      %3115 = vmatprep.subr.mxu0 0.0
      %3116 = vmatpush1.msra.mxu0 %v3100
      %3117 = vmatprep.subr.mxu0 0.0
      %3118 = vmatpush1.msra.mxu0 0.0
      %3119 = vmatprep.subr.mxu0 0.0
      %3120 = vmatpush1.msra.mxu0 0.0
      %3121 = vmatprep.subr.mxu0 0.0
      %3122 = vmatpush1.msra.mxu0 0.0
      %3123 = vmatprep.subr.mxu0 0.0
      %3124 = vmatpush1.msra.mxu0 0.0
      %3125 = vmatprep.subr.mxu0 0.0
      %3126 = vmatpush1.msra.mxu0 0.0
      %3127 = vmatprep.subr.mxu0 0.0
      %3128 = vmatpush1.msra.mxu0 0.0
      %3129 = vmatprep.subr.mxu0 0.0
      %3130 = vmatpush1.msra.mxu0 0.0
      %3131 = vmatprep.subr.mxu0 0.0
      %3132 = vmatpush1.msra.mxu0 0.0
      %3133 = vmatprep.subr.mxu0 0.0
      %3134 = vmatpush1.msra.mxu0 0.0
      %3135 = vmatprep.subr.mxu0 0.0
      %3136 = vmatpush1.msra.mxu0 0.0
      %3137 = vmatprep.subr.mxu0 0.0
      %3138 = vmatpush1.msra.mxu0 0.0
      %3139 = vmatprep.subr.mxu0 0.0
      %3140 = vmatpush1.msra.mxu0 0.0
      %3141 = vmatprep.subr.mxu0 0.0
      %3142 = vmatpush1.msra.mxu0 0.0
      %3143 = vmatprep.subr.mxu0 0.0
      %3144 = vmatpush1.msra.mxu0 0.0
      %3145 = vmatprep.subr.mxu0 0.0
      %3146 = vmatpush1.msra.mxu0 0.0
      %3147 = vmatprep.subr.mxu0 0.0
      %3148 = vmatpush1.msra.mxu0 0.0
      %3149 = vmatprep.subr.mxu0 0.0
      %3150 = vmatpush1.msra.mxu0 0.0
      %3151 = vmatprep.subr.mxu0 0.0
      %3152 = vmatpush1.msra.mxu0 0.0
      %3153 = vmatprep.subr.mxu0 0.0
      %3154 = vmatpush1.msra.mxu0 0.0
      %3155 = vmatprep.subr.mxu0 0.0
      %3156 = vmatpush1.msra.mxu0 0.0
      %3157 = vmatprep.subr.mxu0 0.0
      %3158 = vmatpush1.msra.mxu0 0.0
      %3159 = vmatprep.subr.mxu0 0.0
      %3160 = vmatpush1.msra.mxu0 0.0
      %3161 = vmatprep.subr.mxu0 0.0
      %3162 = vmatpush1.msra.mxu0 0.0
      %3163 = vmatprep.subr.mxu0 0.0
      %3164 = vmatpush1.msra.mxu0 0.0
      %3165 = vmatprep.subr.mxu0 0.0
      %3166 = vmatpush1.msra.mxu0 0.0
      %3167 = vmatprep.subr.mxu0 0.0
      %3168 = vmatpush1.msra.mxu0 0.0
      %3169 = vmatprep.subr.mxu0 0.0
      %3170 = vmatpush1.msra.mxu0 0.0
      %3171 = vmatprep.subr.mxu0 0.0
      %3172 = vmatpush1.msra.mxu0 0.0
      %3173 = vmatprep.mubr.f32.mxu0 0.0
      %3174 = vmatmul.mubr.f32.gmra.mrb[0].mxu0 %v2672
      %v3175 = vpop.f32.mrb[0].mxu0
      %v3176 = vadd.f32 %v3107, %v3175
      %v3177 = vpop.f32.mrb[0].mxu0
      %3178 = vdwg.mxu0
      %s3179 = scalar_lea.vmem %s9, 160
      %v3180 = vld [vmem:[%s3179] sm:$0xff]
      %v3181 = vld [vmem:[%s3179 + $0x8] sm:$0xff]
      %v3182 = vld [vmem:[%s3179 + $0x10] sm:$0xff]
      %v3183 = vld [vmem:[%s3179 + $0x18] sm:$0xff]
      %s3184 = scalar_lea.vmem %s10, 5
      %v3185 = vld [vmem:[%s3184] sm:$0x1]
      %v3187 = vlaneseq
      %v3188 = vshrl.u32 %v3187, 7
      %v3189 = vsub.s32 0, %v3188
      %v3190 = vrot.slane %v3185, %v3189
      %3192 = vmatprep.subr.mxu0 0.0
      %3193 = vmatpush1.msra.mxu0 %v3180
      %3194 = vmatprep.subr.mxu0 0.0
      %3195 = vmatpush1.msra.mxu0 %v3181
      %3196 = vmatprep.subr.mxu0 0.0
      %3197 = vmatpush1.msra.mxu0 %v3182
      %3198 = vmatprep.subr.mxu0 0.0
      %3199 = vmatpush1.msra.mxu0 %v3183
      %3200 = vmatprep.subr.mxu0 0.0
      %3201 = vmatpush1.msra.mxu0 0.0
      %3202 = vmatprep.subr.mxu0 0.0
      %3203 = vmatpush1.msra.mxu0 0.0
      %3204 = vmatprep.subr.mxu0 0.0
      %3205 = vmatpush1.msra.mxu0 0.0
      %3206 = vmatprep.subr.mxu0 0.0
      %3207 = vmatpush1.msra.mxu0 0.0
      %3208 = vmatprep.subr.mxu0 0.0
      %3209 = vmatpush1.msra.mxu0 0.0
      %3210 = vmatprep.subr.mxu0 0.0
      %3211 = vmatpush1.msra.mxu0 0.0
      %3212 = vmatprep.subr.mxu0 0.0
      %3213 = vmatpush1.msra.mxu0 0.0
      %3214 = vmatprep.subr.mxu0 0.0
      %3215 = vmatpush1.msra.mxu0 0.0
      %3216 = vmatprep.subr.mxu0 0.0
      %3217 = vmatpush1.msra.mxu0 0.0
      %3218 = vmatprep.subr.mxu0 0.0
      %3219 = vmatpush1.msra.mxu0 0.0
      %3220 = vmatprep.subr.mxu0 0.0
      %3221 = vmatpush1.msra.mxu0 0.0
      %3222 = vmatprep.subr.mxu0 0.0
      %3223 = vmatpush1.msra.mxu0 0.0
      %3224 = vmatprep.subr.mxu0 0.0
      %3225 = vmatpush1.msra.mxu0 0.0
      %3226 = vmatprep.subr.mxu0 0.0
      %3227 = vmatpush1.msra.mxu0 0.0
      %3228 = vmatprep.subr.mxu0 0.0
      %3229 = vmatpush1.msra.mxu0 0.0
      %3230 = vmatprep.subr.mxu0 0.0
      %3231 = vmatpush1.msra.mxu0 0.0
      %3232 = vmatprep.subr.mxu0 0.0
      %3233 = vmatpush1.msra.mxu0 0.0
      %3234 = vmatprep.subr.mxu0 0.0
      %3235 = vmatpush1.msra.mxu0 0.0
      %3236 = vmatprep.subr.mxu0 0.0
      %3237 = vmatpush1.msra.mxu0 0.0
      %3238 = vmatprep.subr.mxu0 0.0
      %3239 = vmatpush1.msra.mxu0 0.0
      %3240 = vmatprep.subr.mxu0 0.0
      %3241 = vmatpush1.msra.mxu0 0.0
      %3242 = vmatprep.subr.mxu0 0.0
      %3243 = vmatpush1.msra.mxu0 0.0
      %3244 = vmatprep.subr.mxu0 0.0
      %3245 = vmatpush1.msra.mxu0 0.0
      %3246 = vmatprep.subr.mxu0 0.0
      %3247 = vmatpush1.msra.mxu0 0.0
      %3248 = vmatprep.subr.mxu0 0.0
      %3249 = vmatpush1.msra.mxu0 0.0
      %3250 = vmatprep.subr.mxu0 0.0
      %3251 = vmatpush1.msra.mxu0 0.0
      %3252 = vmatprep.subr.mxu0 0.0
      %3253 = vmatpush1.msra.mxu0 0.0
      %3254 = vmatprep.subr.mxu0 0.0
      %3255 = vmatpush1.msra.mxu0 0.0
      %3256 = vmatprep.mubr.f32.mxu0 0.0
      %3257 = vmatmul.mubr.f32.gmra.mrb[0].mxu0 %v2758
      %v3258 = vpop.f32.mrb[0].mxu0
      %v3259 = vadd.f32 %v3190, %v3258
      %v3260 = vpop.f32.mrb[0].mxu0
      %3261 = vmatprep.mubr.f32.mxu0 0.0
      %3262 = vmatmul.mubr.f32.gmra.mrb[0].mxu0 %v2761
      %v3263 = vpop.f32.mrb[0].mxu0
      %v3264 = vadd.f32 %v3190, %v3263
      %v3265 = vpop.f32.mrb[0].mxu0
      %3266 = vdwg.mxu0
      %s3267 = scalar_lea.vmem %s9, 288
      %v3268 = vld [vmem:[%s3267] sm:$0xff]
      %v3269 = vld [vmem:[%s3267 + $0x8] sm:$0xff]
      %v3270 = vld [vmem:[%s3267 + $0x10] sm:$0xff]
      %v3271 = vld [vmem:[%s3267 + $0x18] sm:$0xff]
      %s3272 = scalar_lea.vmem %s10, 9
      %v3273 = vld [vmem:[%s3272] sm:$0x1]
      %v3275 = vlaneseq
      %v3276 = vshrl.u32 %v3275, 7
      %v3277 = vsub.s32 0, %v3276
      %v3278 = vrot.slane %v3273, %v3277
      %3280 = vmatprep.subr.mxu0 0.0
      %3281 = vmatpush1.msra.mxu0 %v3268
      %3282 = vmatprep.subr.mxu0 0.0
      %3283 = vmatpush1.msra.mxu0 %v3269
      %3284 = vmatprep.subr.mxu0 0.0
      %3285 = vmatpush1.msra.mxu0 %v3270
      %3286 = vmatprep.subr.mxu0 0.0
      %3287 = vmatpush1.msra.mxu0 %v3271
      %3288 = vmatprep.subr.mxu0 0.0
      %3289 = vmatpush1.msra.mxu0 0.0
      %3290 = vmatprep.subr.mxu0 0.0
      %3291 = vmatpush1.msra.mxu0 0.0
      %3292 = vmatprep.subr.mxu0 0.0
      %3293 = vmatpush1.msra.mxu0 0.0
      %3294 = vmatprep.subr.mxu0 0.0
      %3295 = vmatpush1.msra.mxu0 0.0
      %3296 = vmatprep.subr.mxu0 0.0
      %3297 = vmatpush1.msra.mxu0 0.0
      %3298 = vmatprep.subr.mxu0 0.0
      %3299 = vmatpush1.msra.mxu0 0.0
      %3300 = vmatprep.subr.mxu0 0.0
      %3301 = vmatpush1.msra.mxu0 0.0
      %3302 = vmatprep.subr.mxu0 0.0
      %3303 = vmatpush1.msra.mxu0 0.0
      %3304 = vmatprep.subr.mxu0 0.0
      %3305 = vmatpush1.msra.mxu0 0.0
      %3306 = vmatprep.subr.mxu0 0.0
      %3307 = vmatpush1.msra.mxu0 0.0
      %3308 = vmatprep.subr.mxu0 0.0
      %3309 = vmatpush1.msra.mxu0 0.0
      %3310 = vmatprep.subr.mxu0 0.0
      %3311 = vmatpush1.msra.mxu0 0.0
      %3312 = vmatprep.subr.mxu0 0.0
      %3313 = vmatpush1.msra.mxu0 0.0
      %3314 = vmatprep.subr.mxu0 0.0
      %3315 = vmatpush1.msra.mxu0 0.0
      %3316 = vmatprep.subr.mxu0 0.0
      %3317 = vmatpush1.msra.mxu0 0.0
      %3318 = vmatprep.subr.mxu0 0.0
      %3319 = vmatpush1.msra.mxu0 0.0
      %3320 = vmatprep.subr.mxu0 0.0
      %3321 = vmatpush1.msra.mxu0 0.0
      %3322 = vmatprep.subr.mxu0 0.0
      %3323 = vmatpush1.msra.mxu0 0.0
      %3324 = vmatprep.subr.mxu0 0.0
      %3325 = vmatpush1.msra.mxu0 0.0
      %3326 = vmatprep.subr.mxu0 0.0
      %3327 = vmatpush1.msra.mxu0 0.0
      %3328 = vmatprep.subr.mxu0 0.0
      %3329 = vmatpush1.msra.mxu0 0.0
      %3330 = vmatprep.subr.mxu0 0.0
      %3331 = vmatpush1.msra.mxu0 0.0
      %3332 = vmatprep.subr.mxu0 0.0
      %3333 = vmatpush1.msra.mxu0 0.0
      %3334 = vmatprep.subr.mxu0 0.0
      %3335 = vmatpush1.msra.mxu0 0.0
      %3336 = vmatprep.subr.mxu0 0.0
      %3337 = vmatpush1.msra.mxu0 0.0
      %3338 = vmatprep.subr.mxu0 0.0
      %3339 = vmatpush1.msra.mxu0 0.0
      %3340 = vmatprep.subr.mxu0 0.0
      %3341 = vmatpush1.msra.mxu0 0.0
      %3342 = vmatprep.subr.mxu0 0.0
      %3343 = vmatpush1.msra.mxu0 0.0
      %3344 = vmatprep.mubr.f32.mxu0 0.0
      %3345 = vmatmul.mubr.f32.gmra.mrb[0].mxu0 %v2758
      %v3346 = vpop.f32.mrb[0].mxu0
      %v3347 = vadd.f32 %v3278, %v3346
      %v3348 = vpop.f32.mrb[0].mxu0
      %3349 = vmatprep.mubr.f32.mxu0 0.0
      %3350 = vmatmul.mubr.f32.gmra.mrb[0].mxu0 %v2761
      %v3351 = vpop.f32.mrb[0].mxu0
      %v3352 = vadd.f32 %v3278, %v3351
      %v3353 = vpop.f32.mrb[0].mxu0
      %3354 = vdwg.mxu0
      %v3356 = vsel %vm928, %v3176, 0
      %v3359 = vsel %vm928, %v3259, 0
      %v3362 = vsel %vm928, %v3264, 0
      %3364 = vmatprep.subr.mxu0 0.0
      %3365 = vmatpush1.xpose.msra.mxu0 %v3359
      %3366 = vmatprep.subr.mxu0 0.0
      %3367 = vmatpush1.xpose.msra.mxu0 %v3362
      %3368 = vmatprep.subr.mxu0 0.0
      %3369 = vmatpush1.xpose.msra.mxu0 0.0
      %3370 = vmatprep.subr.mxu0 0.0
      %3371 = vmatpush1.xpose.msra.mxu0 0.0
      %3372 = vmatprep.subr.mxu0 0.0
      %3373 = vmatpush1.xpose.msra.mxu0 0.0
      %3374 = vmatprep.subr.mxu0 0.0
      %3375 = vmatpush1.xpose.msra.mxu0 0.0
      %3376 = vmatprep.subr.mxu0 0.0
      %3377 = vmatpush1.xpose.msra.mxu0 0.0
      %3378 = vmatprep.subr.mxu0 0.0
      %3379 = vmatpush1.xpose.msra.mxu0 0.0
      %3380 = vmatprep.subr.mxu0 0.0
      %3381 = vmatpush1.xpose.msra.mxu0 0.0
      %3382 = vmatprep.subr.mxu0 0.0
      %3383 = vmatpush1.xpose.msra.mxu0 0.0
      %3384 = vmatprep.subr.mxu0 0.0
      %3385 = vmatpush1.xpose.msra.mxu0 0.0
      %3386 = vmatprep.subr.mxu0 0.0
      %3387 = vmatpush1.xpose.msra.mxu0 0.0
      %3388 = vmatprep.subr.mxu0 0.0
      %3389 = vmatpush1.xpose.msra.mxu0 0.0
      %3390 = vmatprep.subr.mxu0 0.0
      %3391 = vmatpush1.xpose.msra.mxu0 0.0
      %3392 = vmatprep.subr.mxu0 0.0
      %3393 = vmatpush1.xpose.msra.mxu0 0.0
      %3394 = vmatprep.subr.mxu0 0.0
      %3395 = vmatpush1.xpose.msra.mxu0 0.0
      %3396 = vmatprep.subr.mxu0 0.0
      %3397 = vmatpush1.xpose.msra.mxu0 0.0
      %3398 = vmatprep.subr.mxu0 0.0
      %3399 = vmatpush1.xpose.msra.mxu0 0.0
      %3400 = vmatprep.subr.mxu0 0.0
      %3401 = vmatpush1.xpose.msra.mxu0 0.0
      %3402 = vmatprep.subr.mxu0 0.0
      %3403 = vmatpush1.xpose.msra.mxu0 0.0
      %3404 = vmatprep.subr.mxu0 0.0
      %3405 = vmatpush1.xpose.msra.mxu0 0.0
      %3406 = vmatprep.subr.mxu0 0.0
      %3407 = vmatpush1.xpose.msra.mxu0 0.0
      %3408 = vmatprep.subr.mxu0 0.0
      %3409 = vmatpush1.xpose.msra.mxu0 0.0
      %3410 = vmatprep.subr.mxu0 0.0
      %3411 = vmatpush1.xpose.msra.mxu0 0.0
      %3412 = vmatprep.subr.mxu0 0.0
      %3413 = vmatpush1.xpose.msra.mxu0 0.0
      %3414 = vmatprep.subr.mxu0 0.0
      %3415 = vmatpush1.xpose.msra.mxu0 0.0
      %3416 = vmatprep.subr.mxu0 0.0
      %3417 = vmatpush1.xpose.msra.mxu0 0.0
      %3418 = vmatprep.subr.mxu0 0.0
      %3419 = vmatpush1.xpose.msra.mxu0 0.0
      %3420 = vmatprep.subr.mxu0 0.0
      %3421 = vmatpush1.xpose.msra.mxu0 0.0
      %3422 = vmatprep.subr.mxu0 0.0
      %3423 = vmatpush1.xpose.msra.mxu0 0.0
      %3424 = vmatprep.subr.mxu0 0.0
      %3425 = vmatpush1.xpose.msra.mxu0 0.0
      %3426 = vmatprep.subr.mxu0 0.0
      %3427 = vmatpush1.xpose.msra.mxu0 0.0
      %3428 = vmatprep.mubr.f32.mxu0 0.0
      %3429 = vmatmul.mubr.f32.gmra.mrb[0].mxu0 %v3356
      %v3430 = vpop.f32.mrb[0].mxu0
      %v3431 = vadd.f32 0.0, %v3430
      %v3432 = vpop.f32.mrb[0].mxu0
      %3433 = vdwg.mxu0
      %v3434 = vmul.f32 %v3431, 0.35355338
      %v3435 = vsel %vm3006, %v3434, -inf
      %3436 = vmax.xlane.f32.xlu0 %v3435
      %v3437 = vpop.xlane.xlu0 %3436
      %v3438 = vsub.f32 %v3434, %v3437
      %v3439 = vmul.f32 %v3438, 1.442695
      %v3440 = vpow.pop %v3439
      %v3441 = vsel %vm3006, %v3440, 0.0
      %3442 = vadd.xlane.f32.xlu0 %v3441
      %v3443 = vpop.xlane.xlu0 %3442
      %v3444 = vrcp.pop %v3443
      %v3445 = vmul.f32 %v3440, %v3444
      %v3447 = vsel %vm3006, %v3445, 0
      %v3450 = vsel %vm3021, %v3352, 0
      %3452 = vmatprep.subr.mxu0 0.0
      %3453 = vmatpush1.msra.mxu0 %v3347
      %3454 = vmatprep.subr.mxu0 0.0
      %3455 = vmatpush1.msra.mxu0 %v3450
      %3456 = vmatprep.subr.mxu0 0.0
      %3457 = vmatpush1.msra.mxu0 0.0
      %3458 = vmatprep.subr.mxu0 0.0
      %3459 = vmatpush1.msra.mxu0 0.0
      %3460 = vmatprep.subr.mxu0 0.0
      %3461 = vmatpush1.msra.mxu0 0.0
      %3462 = vmatprep.subr.mxu0 0.0
      %3463 = vmatpush1.msra.mxu0 0.0
      %3464 = vmatprep.subr.mxu0 0.0
      %3465 = vmatpush1.msra.mxu0 0.0
      %3466 = vmatprep.subr.mxu0 0.0
      %3467 = vmatpush1.msra.mxu0 0.0
      %3468 = vmatprep.subr.mxu0 0.0
      %3469 = vmatpush1.msra.mxu0 0.0
      %3470 = vmatprep.subr.mxu0 0.0
      %3471 = vmatpush1.msra.mxu0 0.0
      %3472 = vmatprep.subr.mxu0 0.0
      %3473 = vmatpush1.msra.mxu0 0.0
      %3474 = vmatprep.subr.mxu0 0.0
      %3475 = vmatpush1.msra.mxu0 0.0
      %3476 = vmatprep.subr.mxu0 0.0
      %3477 = vmatpush1.msra.mxu0 0.0
      %3478 = vmatprep.subr.mxu0 0.0
      %3479 = vmatpush1.msra.mxu0 0.0
      %3480 = vmatprep.subr.mxu0 0.0
      %3481 = vmatpush1.msra.mxu0 0.0
      %3482 = vmatprep.subr.mxu0 0.0
      %3483 = vmatpush1.msra.mxu0 0.0
      %3484 = vmatprep.subr.mxu0 0.0
      %3485 = vmatpush1.msra.mxu0 0.0
      %3486 = vmatprep.subr.mxu0 0.0
      %3487 = vmatpush1.msra.mxu0 0.0
      %3488 = vmatprep.subr.mxu0 0.0
      %3489 = vmatpush1.msra.mxu0 0.0
      %3490 = vmatprep.subr.mxu0 0.0
      %3491 = vmatpush1.msra.mxu0 0.0
      %3492 = vmatprep.subr.mxu0 0.0
      %3493 = vmatpush1.msra.mxu0 0.0
      %3494 = vmatprep.subr.mxu0 0.0
      %3495 = vmatpush1.msra.mxu0 0.0
      %3496 = vmatprep.subr.mxu0 0.0
      %3497 = vmatpush1.msra.mxu0 0.0
      %3498 = vmatprep.subr.mxu0 0.0
      %3499 = vmatpush1.msra.mxu0 0.0
      %3500 = vmatprep.subr.mxu0 0.0
      %3501 = vmatpush1.msra.mxu0 0.0
      %3502 = vmatprep.subr.mxu0 0.0
      %3503 = vmatpush1.msra.mxu0 0.0
      %3504 = vmatprep.subr.mxu0 0.0
      %3505 = vmatpush1.msra.mxu0 0.0
      %3506 = vmatprep.subr.mxu0 0.0
      %3507 = vmatpush1.msra.mxu0 0.0
      %3508 = vmatprep.subr.mxu0 0.0
      %3509 = vmatpush1.msra.mxu0 0.0
      %3510 = vmatprep.subr.mxu0 0.0
      %3511 = vmatpush1.msra.mxu0 0.0
      %3512 = vmatprep.subr.mxu0 0.0
      %3513 = vmatpush1.msra.mxu0 0.0
      %3514 = vmatprep.subr.mxu0 0.0
      %3515 = vmatpush1.msra.mxu0 0.0
      %3516 = vmatprep.mubr.f32.mxu0 0.0
      %3517 = vmatmul.mubr.f32.gmra.mrb[0].mxu0 %v3447
      %v3518 = vpop.f32.mrb[0].mxu0
      %v3519 = vadd.f32 0.0, %v3518
      %v3520 = vpop.f32.mrb[0].mxu0
      %3521 = vdwg.mxu0
      %s3522 = scalar_lea.vmem %s11, 8
      %v3523 = vld [vmem:[%s3522] sm:$0xff]
      %v3525 = vsel %vm928, %v3519, 0
      %3527 = vmatprep.subr.mxu0 0.0
      %3528 = vmatpush1.msra.mxu0 %v3523
      %3529 = vmatprep.subr.mxu0 0.0
      %3530 = vmatpush1.msra.mxu0 0.0
      %3531 = vmatprep.subr.mxu0 0.0
      %3532 = vmatpush1.msra.mxu0 0.0
      %3533 = vmatprep.subr.mxu0 0.0
      %3534 = vmatpush1.msra.mxu0 0.0
      %3535 = vmatprep.subr.mxu0 0.0
      %3536 = vmatpush1.msra.mxu0 0.0
      %3537 = vmatprep.subr.mxu0 0.0
      %3538 = vmatpush1.msra.mxu0 0.0
      %3539 = vmatprep.subr.mxu0 0.0
      %3540 = vmatpush1.msra.mxu0 0.0
      %3541 = vmatprep.subr.mxu0 0.0
      %3542 = vmatpush1.msra.mxu0 0.0
      %3543 = vmatprep.subr.mxu0 0.0
      %3544 = vmatpush1.msra.mxu0 0.0
      %3545 = vmatprep.subr.mxu0 0.0
      %3546 = vmatpush1.msra.mxu0 0.0
      %3547 = vmatprep.subr.mxu0 0.0
      %3548 = vmatpush1.msra.mxu0 0.0
      %3549 = vmatprep.subr.mxu0 0.0
      %3550 = vmatpush1.msra.mxu0 0.0
      %3551 = vmatprep.subr.mxu0 0.0
      %3552 = vmatpush1.msra.mxu0 0.0
      %3553 = vmatprep.subr.mxu0 0.0
      %3554 = vmatpush1.msra.mxu0 0.0
      %3555 = vmatprep.subr.mxu0 0.0
      %3556 = vmatpush1.msra.mxu0 0.0
      %3557 = vmatprep.subr.mxu0 0.0
      %3558 = vmatpush1.msra.mxu0 0.0
      %3559 = vmatprep.subr.mxu0 0.0
      %3560 = vmatpush1.msra.mxu0 0.0
      %3561 = vmatprep.subr.mxu0 0.0
      %3562 = vmatpush1.msra.mxu0 0.0
      %3563 = vmatprep.subr.mxu0 0.0
      %3564 = vmatpush1.msra.mxu0 0.0
      %3565 = vmatprep.subr.mxu0 0.0
      %3566 = vmatpush1.msra.mxu0 0.0
      %3567 = vmatprep.subr.mxu0 0.0
      %3568 = vmatpush1.msra.mxu0 0.0
      %3569 = vmatprep.subr.mxu0 0.0
      %3570 = vmatpush1.msra.mxu0 0.0
      %3571 = vmatprep.subr.mxu0 0.0
      %3572 = vmatpush1.msra.mxu0 0.0
      %3573 = vmatprep.subr.mxu0 0.0
      %3574 = vmatpush1.msra.mxu0 0.0
      %3575 = vmatprep.subr.mxu0 0.0
      %3576 = vmatpush1.msra.mxu0 0.0
      %3577 = vmatprep.subr.mxu0 0.0
      %3578 = vmatpush1.msra.mxu0 0.0
      %3579 = vmatprep.subr.mxu0 0.0
      %3580 = vmatpush1.msra.mxu0 0.0
      %3581 = vmatprep.subr.mxu0 0.0
      %3582 = vmatpush1.msra.mxu0 0.0
      %3583 = vmatprep.subr.mxu0 0.0
      %3584 = vmatpush1.msra.mxu0 0.0
      %3585 = vmatprep.subr.mxu0 0.0
      %3586 = vmatpush1.msra.mxu0 0.0
      %3587 = vmatprep.subr.mxu0 0.0
      %3588 = vmatpush1.msra.mxu0 0.0
      %3589 = vmatprep.subr.mxu0 0.0
      %3590 = vmatpush1.msra.mxu0 0.0
      %3591 = vmatprep.mubr.f32.mxu0 0.0
      %3592 = vmatmul.mubr.f32.gmra.mrb[0].mxu0 %v3525
      %v3593 = vpop.f32.mrb[0].mxu0
      %v3594 = vadd.f32 0.0, %v3593
      %v3595 = vpop.f32.mrb[0].mxu0
      %3596 = vdwg.mxu0
      %v3598 = vsel %vm928, %v3092, 0
      %3600 = vmatprep.subr.mxu0 0.0
      %3601 = vmatpush1.msra.mxu0 %v3095
      %3602 = vmatprep.subr.mxu0 0.0
      %3603 = vmatpush1.msra.mxu0 0.0
      %3604 = vmatprep.subr.mxu0 0.0
      %3605 = vmatpush1.msra.mxu0 0.0
      %3606 = vmatprep.subr.mxu0 0.0
      %3607 = vmatpush1.msra.mxu0 0.0
      %3608 = vmatprep.subr.mxu0 0.0
      %3609 = vmatpush1.msra.mxu0 0.0
      %3610 = vmatprep.subr.mxu0 0.0
      %3611 = vmatpush1.msra.mxu0 0.0
      %3612 = vmatprep.subr.mxu0 0.0
      %3613 = vmatpush1.msra.mxu0 0.0
      %3614 = vmatprep.subr.mxu0 0.0
      %3615 = vmatpush1.msra.mxu0 0.0
      %3616 = vmatprep.subr.mxu0 0.0
      %3617 = vmatpush1.msra.mxu0 0.0
      %3618 = vmatprep.subr.mxu0 0.0
      %3619 = vmatpush1.msra.mxu0 0.0
      %3620 = vmatprep.subr.mxu0 0.0
      %3621 = vmatpush1.msra.mxu0 0.0
      %3622 = vmatprep.subr.mxu0 0.0
      %3623 = vmatpush1.msra.mxu0 0.0
      %3624 = vmatprep.subr.mxu0 0.0
      %3625 = vmatpush1.msra.mxu0 0.0
      %3626 = vmatprep.subr.mxu0 0.0
      %3627 = vmatpush1.msra.mxu0 0.0
      %3628 = vmatprep.subr.mxu0 0.0
      %3629 = vmatpush1.msra.mxu0 0.0
      %3630 = vmatprep.subr.mxu0 0.0
      %3631 = vmatpush1.msra.mxu0 0.0
      %3632 = vmatprep.subr.mxu0 0.0
      %3633 = vmatpush1.msra.mxu0 0.0
      %3634 = vmatprep.subr.mxu0 0.0
      %3635 = vmatpush1.msra.mxu0 0.0
      %3636 = vmatprep.subr.mxu0 0.0
      %3637 = vmatpush1.msra.mxu0 0.0
      %3638 = vmatprep.subr.mxu0 0.0
      %3639 = vmatpush1.msra.mxu0 0.0
      %3640 = vmatprep.subr.mxu0 0.0
      %3641 = vmatpush1.msra.mxu0 0.0
      %3642 = vmatprep.subr.mxu0 0.0
      %3643 = vmatpush1.msra.mxu0 0.0
      %3644 = vmatprep.subr.mxu0 0.0
      %3645 = vmatpush1.msra.mxu0 0.0
      %3646 = vmatprep.subr.mxu0 0.0
      %3647 = vmatpush1.msra.mxu0 0.0
      %3648 = vmatprep.subr.mxu0 0.0
      %3649 = vmatpush1.msra.mxu0 0.0
      %3650 = vmatprep.subr.mxu0 0.0
      %3651 = vmatpush1.msra.mxu0 0.0
      %3652 = vmatprep.subr.mxu0 0.0
      %3653 = vmatpush1.msra.mxu0 0.0
      %3654 = vmatprep.subr.mxu0 0.0
      %3655 = vmatpush1.msra.mxu0 0.0
      %3656 = vmatprep.subr.mxu0 0.0
      %3657 = vmatpush1.msra.mxu0 0.0
      %3658 = vmatprep.subr.mxu0 0.0
      %3659 = vmatpush1.msra.mxu0 0.0
      %3660 = vmatprep.subr.mxu0 0.0
      %3661 = vmatpush1.msra.mxu0 0.0
      %3662 = vmatprep.subr.mxu0 0.0
      %3663 = vmatpush1.msra.mxu0 0.0
      %3664 = vmatprep.mubr.f32.mxu0 0.0
      %3665 = vmatmul.mubr.f32.gmra.mrb[0].mxu0 %v3598
      %v3666 = vpop.f32.mrb[0].mxu0
      %v3667 = vadd.f32 %v3594, %v3666
      %v3668 = vpop.f32.mrb[0].mxu0
      %3669 = vdwg.mxu0
      %s3670 = scalar_lea.vmem %s9, 64
      %v3671 = vld [vmem:[%s3670] sm:$0xff]
      %v3672 = vld [vmem:[%s3670 + $0x8] sm:$0xff]
      %v3673 = vld [vmem:[%s3670 + $0x10] sm:$0xff]
      %v3674 = vld [vmem:[%s3670 + $0x18] sm:$0xff]
      %s3675 = scalar_lea.vmem %s10, 2
      %v3676 = vld [vmem:[%s3675] sm:$0x1]
      %v3678 = vlaneseq
      %v3679 = vshrl.u32 %v3678, 7
      %v3680 = vsub.s32 0, %v3679
      %v3681 = vrot.slane %v3676, %v3680
      %3683 = vmatprep.subr.mxu0 0.0
      %3684 = vmatpush1.msra.mxu0 %v3671
      %3685 = vmatprep.subr.mxu0 0.0
      %3686 = vmatpush1.msra.mxu0 %v3672
      %3687 = vmatprep.subr.mxu0 0.0
      %3688 = vmatpush1.msra.mxu0 %v3673
      %3689 = vmatprep.subr.mxu0 0.0
      %3690 = vmatpush1.msra.mxu0 %v3674
      %3691 = vmatprep.subr.mxu0 0.0
      %3692 = vmatpush1.msra.mxu0 0.0
      %3693 = vmatprep.subr.mxu0 0.0
      %3694 = vmatpush1.msra.mxu0 0.0
      %3695 = vmatprep.subr.mxu0 0.0
      %3696 = vmatpush1.msra.mxu0 0.0
      %3697 = vmatprep.subr.mxu0 0.0
      %3698 = vmatpush1.msra.mxu0 0.0
      %3699 = vmatprep.subr.mxu0 0.0
      %3700 = vmatpush1.msra.mxu0 0.0
      %3701 = vmatprep.subr.mxu0 0.0
      %3702 = vmatpush1.msra.mxu0 0.0
      %3703 = vmatprep.subr.mxu0 0.0
      %3704 = vmatpush1.msra.mxu0 0.0
      %3705 = vmatprep.subr.mxu0 0.0
      %3706 = vmatpush1.msra.mxu0 0.0
      %3707 = vmatprep.subr.mxu0 0.0
      %3708 = vmatpush1.msra.mxu0 0.0
      %3709 = vmatprep.subr.mxu0 0.0
      %3710 = vmatpush1.msra.mxu0 0.0
      %3711 = vmatprep.subr.mxu0 0.0
      %3712 = vmatpush1.msra.mxu0 0.0
      %3713 = vmatprep.subr.mxu0 0.0
      %3714 = vmatpush1.msra.mxu0 0.0
      %3715 = vmatprep.subr.mxu0 0.0
      %3716 = vmatpush1.msra.mxu0 0.0
      %3717 = vmatprep.subr.mxu0 0.0
      %3718 = vmatpush1.msra.mxu0 0.0
      %3719 = vmatprep.subr.mxu0 0.0
      %3720 = vmatpush1.msra.mxu0 0.0
      %3721 = vmatprep.subr.mxu0 0.0
      %3722 = vmatpush1.msra.mxu0 0.0
      %3723 = vmatprep.subr.mxu0 0.0
      %3724 = vmatpush1.msra.mxu0 0.0
      %3725 = vmatprep.subr.mxu0 0.0
      %3726 = vmatpush1.msra.mxu0 0.0
      %3727 = vmatprep.subr.mxu0 0.0
      %3728 = vmatpush1.msra.mxu0 0.0
      %3729 = vmatprep.subr.mxu0 0.0
      %3730 = vmatpush1.msra.mxu0 0.0
      %3731 = vmatprep.subr.mxu0 0.0
      %3732 = vmatpush1.msra.mxu0 0.0
      %3733 = vmatprep.subr.mxu0 0.0
      %3734 = vmatpush1.msra.mxu0 0.0
      %3735 = vmatprep.subr.mxu0 0.0
      %3736 = vmatpush1.msra.mxu0 0.0
      %3737 = vmatprep.subr.mxu0 0.0
      %3738 = vmatpush1.msra.mxu0 0.0
      %3739 = vmatprep.subr.mxu0 0.0
      %3740 = vmatpush1.msra.mxu0 0.0
      %3741 = vmatprep.subr.mxu0 0.0
      %3742 = vmatpush1.msra.mxu0 0.0
      %3743 = vmatprep.subr.mxu0 0.0
      %3744 = vmatpush1.msra.mxu0 0.0
      %3745 = vmatprep.subr.mxu0 0.0
      %3746 = vmatpush1.msra.mxu0 0.0
      %3747 = vmatprep.mubr.f32.mxu0 0.0
      %3748 = vmatmul.mubr.f32.gmra.mrb[0].mxu0 %v2672
      %v3749 = vpop.f32.mrb[0].mxu0
      %v3750 = vadd.f32 %v3681, %v3749
      %v3751 = vpop.f32.mrb[0].mxu0
      %3752 = vdwg.mxu0
      %s3753 = scalar_lea.vmem %s9, 192
      %v3754 = vld [vmem:[%s3753] sm:$0xff]
      %v3755 = vld [vmem:[%s3753 + $0x8] sm:$0xff]
      %v3756 = vld [vmem:[%s3753 + $0x10] sm:$0xff]
      %v3757 = vld [vmem:[%s3753 + $0x18] sm:$0xff]
      %s3758 = scalar_lea.vmem %s10, 6
      %v3759 = vld [vmem:[%s3758] sm:$0x1]
      %v3761 = vlaneseq
      %v3762 = vshrl.u32 %v3761, 7
      %v3763 = vsub.s32 0, %v3762
      %v3764 = vrot.slane %v3759, %v3763
      %3766 = vmatprep.subr.mxu0 0.0
      %3767 = vmatpush1.msra.mxu0 %v3754
      %3768 = vmatprep.subr.mxu0 0.0
      %3769 = vmatpush1.msra.mxu0 %v3755
      %3770 = vmatprep.subr.mxu0 0.0
      %3771 = vmatpush1.msra.mxu0 %v3756
      %3772 = vmatprep.subr.mxu0 0.0
      %3773 = vmatpush1.msra.mxu0 %v3757
      %3774 = vmatprep.subr.mxu0 0.0
      %3775 = vmatpush1.msra.mxu0 0.0
      %3776 = vmatprep.subr.mxu0 0.0
      %3777 = vmatpush1.msra.mxu0 0.0
      %3778 = vmatprep.subr.mxu0 0.0
      %3779 = vmatpush1.msra.mxu0 0.0
      %3780 = vmatprep.subr.mxu0 0.0
      %3781 = vmatpush1.msra.mxu0 0.0
      %3782 = vmatprep.subr.mxu0 0.0
      %3783 = vmatpush1.msra.mxu0 0.0
      %3784 = vmatprep.subr.mxu0 0.0
      %3785 = vmatpush1.msra.mxu0 0.0
      %3786 = vmatprep.subr.mxu0 0.0
      %3787 = vmatpush1.msra.mxu0 0.0
      %3788 = vmatprep.subr.mxu0 0.0
      %3789 = vmatpush1.msra.mxu0 0.0
      %3790 = vmatprep.subr.mxu0 0.0
      %3791 = vmatpush1.msra.mxu0 0.0
      %3792 = vmatprep.subr.mxu0 0.0
      %3793 = vmatpush1.msra.mxu0 0.0
      %3794 = vmatprep.subr.mxu0 0.0
      %3795 = vmatpush1.msra.mxu0 0.0
      %3796 = vmatprep.subr.mxu0 0.0
      %3797 = vmatpush1.msra.mxu0 0.0
      %3798 = vmatprep.subr.mxu0 0.0
      %3799 = vmatpush1.msra.mxu0 0.0
      %3800 = vmatprep.subr.mxu0 0.0
      %3801 = vmatpush1.msra.mxu0 0.0
      %3802 = vmatprep.subr.mxu0 0.0
      %3803 = vmatpush1.msra.mxu0 0.0
      %3804 = vmatprep.subr.mxu0 0.0
      %3805 = vmatpush1.msra.mxu0 0.0
      %3806 = vmatprep.subr.mxu0 0.0
      %3807 = vmatpush1.msra.mxu0 0.0
      %3808 = vmatprep.subr.mxu0 0.0
      %3809 = vmatpush1.msra.mxu0 0.0
      %3810 = vmatprep.subr.mxu0 0.0
      %3811 = vmatpush1.msra.mxu0 0.0
      %3812 = vmatprep.subr.mxu0 0.0
      %3813 = vmatpush1.msra.mxu0 0.0
      %3814 = vmatprep.subr.mxu0 0.0
      %3815 = vmatpush1.msra.mxu0 0.0
      %3816 = vmatprep.subr.mxu0 0.0
      %3817 = vmatpush1.msra.mxu0 0.0
      %3818 = vmatprep.subr.mxu0 0.0
      %3819 = vmatpush1.msra.mxu0 0.0
      %3820 = vmatprep.subr.mxu0 0.0
      %3821 = vmatpush1.msra.mxu0 0.0
      %3822 = vmatprep.subr.mxu0 0.0
      %3823 = vmatpush1.msra.mxu0 0.0
      %3824 = vmatprep.subr.mxu0 0.0
      %3825 = vmatpush1.msra.mxu0 0.0
      %3826 = vmatprep.subr.mxu0 0.0
      %3827 = vmatpush1.msra.mxu0 0.0
      %3828 = vmatprep.subr.mxu0 0.0
      %3829 = vmatpush1.msra.mxu0 0.0
      %3830 = vmatprep.mubr.f32.mxu0 0.0
      %3831 = vmatmul.mubr.f32.gmra.mrb[0].mxu0 %v2758
      %v3832 = vpop.f32.mrb[0].mxu0
      %v3833 = vadd.f32 %v3764, %v3832
      %v3834 = vpop.f32.mrb[0].mxu0
      %3835 = vmatprep.mubr.f32.mxu0 0.0
      %3836 = vmatmul.mubr.f32.gmra.mrb[0].mxu0 %v2761
      %v3837 = vpop.f32.mrb[0].mxu0
      %v3838 = vadd.f32 %v3764, %v3837
      %v3839 = vpop.f32.mrb[0].mxu0
      %3840 = vdwg.mxu0
      %s3841 = scalar_lea.vmem %s9, 320
      %v3842 = vld [vmem:[%s3841] sm:$0xff]
      %v3843 = vld [vmem:[%s3841 + $0x8] sm:$0xff]
      %v3844 = vld [vmem:[%s3841 + $0x10] sm:$0xff]
      %v3845 = vld [vmem:[%s3841 + $0x18] sm:$0xff]
      %s3846 = scalar_lea.vmem %s10, 10
      %v3847 = vld [vmem:[%s3846] sm:$0x1]
      %v3849 = vlaneseq
      %v3850 = vshrl.u32 %v3849, 7
      %v3851 = vsub.s32 0, %v3850
      %v3852 = vrot.slane %v3847, %v3851
      %3854 = vmatprep.subr.mxu0 0.0
      %3855 = vmatpush1.msra.mxu0 %v3842
      %3856 = vmatprep.subr.mxu0 0.0
      %3857 = vmatpush1.msra.mxu0 %v3843
      %3858 = vmatprep.subr.mxu0 0.0
      %3859 = vmatpush1.msra.mxu0 %v3844
      %3860 = vmatprep.subr.mxu0 0.0
      %3861 = vmatpush1.msra.mxu0 %v3845
      %3862 = vmatprep.subr.mxu0 0.0
      %3863 = vmatpush1.msra.mxu0 0.0
      %3864 = vmatprep.subr.mxu0 0.0
      %3865 = vmatpush1.msra.mxu0 0.0
      %3866 = vmatprep.subr.mxu0 0.0
      %3867 = vmatpush1.msra.mxu0 0.0
      %3868 = vmatprep.subr.mxu0 0.0
      %3869 = vmatpush1.msra.mxu0 0.0
      %3870 = vmatprep.subr.mxu0 0.0
      %3871 = vmatpush1.msra.mxu0 0.0
      %3872 = vmatprep.subr.mxu0 0.0
      %3873 = vmatpush1.msra.mxu0 0.0
      %3874 = vmatprep.subr.mxu0 0.0
      %3875 = vmatpush1.msra.mxu0 0.0
      %3876 = vmatprep.subr.mxu0 0.0
      %3877 = vmatpush1.msra.mxu0 0.0
      %3878 = vmatprep.subr.mxu0 0.0
      %3879 = vmatpush1.msra.mxu0 0.0
      %3880 = vmatprep.subr.mxu0 0.0
      %3881 = vmatpush1.msra.mxu0 0.0
      %3882 = vmatprep.subr.mxu0 0.0
      %3883 = vmatpush1.msra.mxu0 0.0
      %3884 = vmatprep.subr.mxu0 0.0
      %3885 = vmatpush1.msra.mxu0 0.0
      %3886 = vmatprep.subr.mxu0 0.0
      %3887 = vmatpush1.msra.mxu0 0.0
      %3888 = vmatprep.subr.mxu0 0.0
      %3889 = vmatpush1.msra.mxu0 0.0
      %3890 = vmatprep.subr.mxu0 0.0
      %3891 = vmatpush1.msra.mxu0 0.0
      %3892 = vmatprep.subr.mxu0 0.0
      %3893 = vmatpush1.msra.mxu0 0.0
      %3894 = vmatprep.subr.mxu0 0.0
      %3895 = vmatpush1.msra.mxu0 0.0
      %3896 = vmatprep.subr.mxu0 0.0
      %3897 = vmatpush1.msra.mxu0 0.0
      %3898 = vmatprep.subr.mxu0 0.0
      %3899 = vmatpush1.msra.mxu0 0.0
      %3900 = vmatprep.subr.mxu0 0.0
      %3901 = vmatpush1.msra.mxu0 0.0
      %3902 = vmatprep.subr.mxu0 0.0
      %3903 = vmatpush1.msra.mxu0 0.0
      %3904 = vmatprep.subr.mxu0 0.0
      %3905 = vmatpush1.msra.mxu0 0.0
      %3906 = vmatprep.subr.mxu0 0.0
      %3907 = vmatpush1.msra.mxu0 0.0
      %3908 = vmatprep.subr.mxu0 0.0
      %3909 = vmatpush1.msra.mxu0 0.0
      %3910 = vmatprep.subr.mxu0 0.0
      %3911 = vmatpush1.msra.mxu0 0.0
      %3912 = vmatprep.subr.mxu0 0.0
      %3913 = vmatpush1.msra.mxu0 0.0
      %3914 = vmatprep.subr.mxu0 0.0
      %3915 = vmatpush1.msra.mxu0 0.0
      %3916 = vmatprep.subr.mxu0 0.0
      %3917 = vmatpush1.msra.mxu0 0.0
      %3918 = vmatprep.mubr.f32.mxu0 0.0
      %3919 = vmatmul.mubr.f32.gmra.mrb[0].mxu0 %v2758
      %v3920 = vpop.f32.mrb[0].mxu0
      %v3921 = vadd.f32 %v3852, %v3920
      %v3922 = vpop.f32.mrb[0].mxu0
      %3923 = vmatprep.mubr.f32.mxu0 0.0
      %3924 = vmatmul.mubr.f32.gmra.mrb[0].mxu0 %v2761
      %v3925 = vpop.f32.mrb[0].mxu0
      %v3926 = vadd.f32 %v3852, %v3925
      %v3927 = vpop.f32.mrb[0].mxu0
      %3928 = vdwg.mxu0
      %v3930 = vsel %vm928, %v3750, 0
      %v3933 = vsel %vm928, %v3833, 0
      %v3936 = vsel %vm928, %v3838, 0
      %3938 = vmatprep.subr.mxu0 0.0
      %3939 = vmatpush1.xpose.msra.mxu0 %v3933
      %3940 = vmatprep.subr.mxu0 0.0
      %3941 = vmatpush1.xpose.msra.mxu0 %v3936
      %3942 = vmatprep.subr.mxu0 0.0
      %3943 = vmatpush1.xpose.msra.mxu0 0.0
      %3944 = vmatprep.subr.mxu0 0.0
      %3945 = vmatpush1.xpose.msra.mxu0 0.0
      %3946 = vmatprep.subr.mxu0 0.0
      %3947 = vmatpush1.xpose.msra.mxu0 0.0
      %3948 = vmatprep.subr.mxu0 0.0
      %3949 = vmatpush1.xpose.msra.mxu0 0.0
      %3950 = vmatprep.subr.mxu0 0.0
      %3951 = vmatpush1.xpose.msra.mxu0 0.0
      %3952 = vmatprep.subr.mxu0 0.0
      %3953 = vmatpush1.xpose.msra.mxu0 0.0
      %3954 = vmatprep.subr.mxu0 0.0
      %3955 = vmatpush1.xpose.msra.mxu0 0.0
      %3956 = vmatprep.subr.mxu0 0.0
      %3957 = vmatpush1.xpose.msra.mxu0 0.0
      %3958 = vmatprep.subr.mxu0 0.0
      %3959 = vmatpush1.xpose.msra.mxu0 0.0
      %3960 = vmatprep.subr.mxu0 0.0
      %3961 = vmatpush1.xpose.msra.mxu0 0.0
      %3962 = vmatprep.subr.mxu0 0.0
      %3963 = vmatpush1.xpose.msra.mxu0 0.0
      %3964 = vmatprep.subr.mxu0 0.0
      %3965 = vmatpush1.xpose.msra.mxu0 0.0
      %3966 = vmatprep.subr.mxu0 0.0
      %3967 = vmatpush1.xpose.msra.mxu0 0.0
      %3968 = vmatprep.subr.mxu0 0.0
      %3969 = vmatpush1.xpose.msra.mxu0 0.0
      %3970 = vmatprep.subr.mxu0 0.0
      %3971 = vmatpush1.xpose.msra.mxu0 0.0
      %3972 = vmatprep.subr.mxu0 0.0
      %3973 = vmatpush1.xpose.msra.mxu0 0.0
      %3974 = vmatprep.subr.mxu0 0.0
      %3975 = vmatpush1.xpose.msra.mxu0 0.0
      %3976 = vmatprep.subr.mxu0 0.0
      %3977 = vmatpush1.xpose.msra.mxu0 0.0
      %3978 = vmatprep.subr.mxu0 0.0
      %3979 = vmatpush1.xpose.msra.mxu0 0.0
      %3980 = vmatprep.subr.mxu0 0.0
      %3981 = vmatpush1.xpose.msra.mxu0 0.0
      %3982 = vmatprep.subr.mxu0 0.0
      %3983 = vmatpush1.xpose.msra.mxu0 0.0
      %3984 = vmatprep.subr.mxu0 0.0
      %3985 = vmatpush1.xpose.msra.mxu0 0.0
      %3986 = vmatprep.subr.mxu0 0.0
      %3987 = vmatpush1.xpose.msra.mxu0 0.0
      %3988 = vmatprep.subr.mxu0 0.0
      %3989 = vmatpush1.xpose.msra.mxu0 0.0
      %3990 = vmatprep.subr.mxu0 0.0
      %3991 = vmatpush1.xpose.msra.mxu0 0.0
      %3992 = vmatprep.subr.mxu0 0.0
      %3993 = vmatpush1.xpose.msra.mxu0 0.0
      %3994 = vmatprep.subr.mxu0 0.0
      %3995 = vmatpush1.xpose.msra.mxu0 0.0
      %3996 = vmatprep.subr.mxu0 0.0
      %3997 = vmatpush1.xpose.msra.mxu0 0.0
      %3998 = vmatprep.subr.mxu0 0.0
      %3999 = vmatpush1.xpose.msra.mxu0 0.0
      %4000 = vmatprep.subr.mxu0 0.0
      %4001 = vmatpush1.xpose.msra.mxu0 0.0
      %4002 = vmatprep.mubr.f32.mxu0 0.0
      %4003 = vmatmul.mubr.f32.gmra.mrb[0].mxu0 %v3930
      %v4004 = vpop.f32.mrb[0].mxu0
      %v4005 = vadd.f32 0.0, %v4004
      %v4006 = vpop.f32.mrb[0].mxu0
      %4007 = vdwg.mxu0
      %v4008 = vmul.f32 %v4005, 0.35355338
      %v4009 = vsel %vm3006, %v4008, -inf
      %4010 = vmax.xlane.f32.xlu0 %v4009
      %v4011 = vpop.xlane.xlu0 %4010
      %v4012 = vsub.f32 %v4008, %v4011
      %v4013 = vmul.f32 %v4012, 1.442695
      %v4014 = vpow.pop %v4013
      %v4015 = vsel %vm3006, %v4014, 0.0
      %4016 = vadd.xlane.f32.xlu0 %v4015
      %v4017 = vpop.xlane.xlu0 %4016
      %v4018 = vrcp.pop %v4017
      %v4019 = vmul.f32 %v4014, %v4018
      %v4021 = vsel %vm3006, %v4019, 0
      %v4024 = vsel %vm3021, %v3926, 0
      %4026 = vmatprep.subr.mxu0 0.0
      %4027 = vmatpush1.msra.mxu0 %v3921
      %4028 = vmatprep.subr.mxu0 0.0
      %4029 = vmatpush1.msra.mxu0 %v4024
      %4030 = vmatprep.subr.mxu0 0.0
      %4031 = vmatpush1.msra.mxu0 0.0
      %4032 = vmatprep.subr.mxu0 0.0
      %4033 = vmatpush1.msra.mxu0 0.0
      %4034 = vmatprep.subr.mxu0 0.0
      %4035 = vmatpush1.msra.mxu0 0.0
      %4036 = vmatprep.subr.mxu0 0.0
      %4037 = vmatpush1.msra.mxu0 0.0
      %4038 = vmatprep.subr.mxu0 0.0
      %4039 = vmatpush1.msra.mxu0 0.0
      %4040 = vmatprep.subr.mxu0 0.0
      %4041 = vmatpush1.msra.mxu0 0.0
      %4042 = vmatprep.subr.mxu0 0.0
      %4043 = vmatpush1.msra.mxu0 0.0
      %4044 = vmatprep.subr.mxu0 0.0
      %4045 = vmatpush1.msra.mxu0 0.0
      %4046 = vmatprep.subr.mxu0 0.0
      %4047 = vmatpush1.msra.mxu0 0.0
      %4048 = vmatprep.subr.mxu0 0.0
      %4049 = vmatpush1.msra.mxu0 0.0
      %4050 = vmatprep.subr.mxu0 0.0
      %4051 = vmatpush1.msra.mxu0 0.0
      %4052 = vmatprep.subr.mxu0 0.0
      %4053 = vmatpush1.msra.mxu0 0.0
      %4054 = vmatprep.subr.mxu0 0.0
      %4055 = vmatpush1.msra.mxu0 0.0
      %4056 = vmatprep.subr.mxu0 0.0
      %4057 = vmatpush1.msra.mxu0 0.0
      %4058 = vmatprep.subr.mxu0 0.0
      %4059 = vmatpush1.msra.mxu0 0.0
      %4060 = vmatprep.subr.mxu0 0.0
      %4061 = vmatpush1.msra.mxu0 0.0
      %4062 = vmatprep.subr.mxu0 0.0
      %4063 = vmatpush1.msra.mxu0 0.0
      %4064 = vmatprep.subr.mxu0 0.0
      %4065 = vmatpush1.msra.mxu0 0.0
      %4066 = vmatprep.subr.mxu0 0.0
      %4067 = vmatpush1.msra.mxu0 0.0
      %4068 = vmatprep.subr.mxu0 0.0
      %4069 = vmatpush1.msra.mxu0 0.0
      %4070 = vmatprep.subr.mxu0 0.0
      %4071 = vmatpush1.msra.mxu0 0.0
      %4072 = vmatprep.subr.mxu0 0.0
      %4073 = vmatpush1.msra.mxu0 0.0
      %4074 = vmatprep.subr.mxu0 0.0
      %4075 = vmatpush1.msra.mxu0 0.0
      %4076 = vmatprep.subr.mxu0 0.0
      %4077 = vmatpush1.msra.mxu0 0.0
      %4078 = vmatprep.subr.mxu0 0.0
      %4079 = vmatpush1.msra.mxu0 0.0
      %4080 = vmatprep.subr.mxu0 0.0
      %4081 = vmatpush1.msra.mxu0 0.0
      %4082 = vmatprep.subr.mxu0 0.0
      %4083 = vmatpush1.msra.mxu0 0.0
      %4084 = vmatprep.subr.mxu0 0.0
      %4085 = vmatpush1.msra.mxu0 0.0
      %4086 = vmatprep.subr.mxu0 0.0
      %4087 = vmatpush1.msra.mxu0 0.0
      %4088 = vmatprep.subr.mxu0 0.0
      %4089 = vmatpush1.msra.mxu0 0.0
      %4090 = vmatprep.mubr.f32.mxu0 0.0
      %4091 = vmatmul.mubr.f32.gmra.mrb[0].mxu0 %v4021
      %v4092 = vpop.f32.mrb[0].mxu0
      %v4093 = vadd.f32 0.0, %v4092
      %v4094 = vpop.f32.mrb[0].mxu0
      %4095 = vdwg.mxu0
      %s4096 = scalar_lea.vmem %s11, 16
      %v4097 = vld [vmem:[%s4096] sm:$0xff]
      %v4099 = vsel %vm928, %v4093, 0
      %4101 = vmatprep.subr.mxu0 0.0
      %4102 = vmatpush1.msra.mxu0 %v4097
      %4103 = vmatprep.subr.mxu0 0.0
      %4104 = vmatpush1.msra.mxu0 0.0
      %4105 = vmatprep.subr.mxu0 0.0
      %4106 = vmatpush1.msra.mxu0 0.0
      %4107 = vmatprep.subr.mxu0 0.0
      %4108 = vmatpush1.msra.mxu0 0.0
      %4109 = vmatprep.subr.mxu0 0.0
      %4110 = vmatpush1.msra.mxu0 0.0
      %4111 = vmatprep.subr.mxu0 0.0
      %4112 = vmatpush1.msra.mxu0 0.0
      %4113 = vmatprep.subr.mxu0 0.0
      %4114 = vmatpush1.msra.mxu0 0.0
      %4115 = vmatprep.subr.mxu0 0.0
      %4116 = vmatpush1.msra.mxu0 0.0
      %4117 = vmatprep.subr.mxu0 0.0
      %4118 = vmatpush1.msra.mxu0 0.0
      %4119 = vmatprep.subr.mxu0 0.0
      %4120 = vmatpush1.msra.mxu0 0.0
      %4121 = vmatprep.subr.mxu0 0.0
      %4122 = vmatpush1.msra.mxu0 0.0
      %4123 = vmatprep.subr.mxu0 0.0
      %4124 = vmatpush1.msra.mxu0 0.0
      %4125 = vmatprep.subr.mxu0 0.0
      %4126 = vmatpush1.msra.mxu0 0.0
      %4127 = vmatprep.subr.mxu0 0.0
      %4128 = vmatpush1.msra.mxu0 0.0
      %4129 = vmatprep.subr.mxu0 0.0
      %4130 = vmatpush1.msra.mxu0 0.0
      %4131 = vmatprep.subr.mxu0 0.0
      %4132 = vmatpush1.msra.mxu0 0.0
      %4133 = vmatprep.subr.mxu0 0.0
      %4134 = vmatpush1.msra.mxu0 0.0
      %4135 = vmatprep.subr.mxu0 0.0
      %4136 = vmatpush1.msra.mxu0 0.0
      %4137 = vmatprep.subr.mxu0 0.0
      %4138 = vmatpush1.msra.mxu0 0.0
      %4139 = vmatprep.subr.mxu0 0.0
      %4140 = vmatpush1.msra.mxu0 0.0
      %4141 = vmatprep.subr.mxu0 0.0
      %4142 = vmatpush1.msra.mxu0 0.0
      %4143 = vmatprep.subr.mxu0 0.0
      %4144 = vmatpush1.msra.mxu0 0.0
      %4145 = vmatprep.subr.mxu0 0.0
      %4146 = vmatpush1.msra.mxu0 0.0
      %4147 = vmatprep.subr.mxu0 0.0
      %4148 = vmatpush1.msra.mxu0 0.0
      %4149 = vmatprep.subr.mxu0 0.0
      %4150 = vmatpush1.msra.mxu0 0.0
      %4151 = vmatprep.subr.mxu0 0.0
      %4152 = vmatpush1.msra.mxu0 0.0
      %4153 = vmatprep.subr.mxu0 0.0
      %4154 = vmatpush1.msra.mxu0 0.0
      %4155 = vmatprep.subr.mxu0 0.0
      %4156 = vmatpush1.msra.mxu0 0.0
      %4157 = vmatprep.subr.mxu0 0.0
      %4158 = vmatpush1.msra.mxu0 0.0
      %4159 = vmatprep.subr.mxu0 0.0
      %4160 = vmatpush1.msra.mxu0 0.0
      %4161 = vmatprep.subr.mxu0 0.0
      %4162 = vmatpush1.msra.mxu0 0.0
      %4163 = vmatprep.subr.mxu0 0.0
      %4164 = vmatpush1.msra.mxu0 0.0
      %4165 = vmatprep.mubr.f32.mxu0 0.0
      %4166 = vmatmul.mubr.f32.gmra.mrb[0].mxu0 %v4099
      %v4167 = vpop.f32.mrb[0].mxu0
      %v4168 = vadd.f32 0.0, %v4167
      %v4169 = vpop.f32.mrb[0].mxu0
      %4170 = vdwg.mxu0
      %v4171 = vadd.f32 %v3667, %v4168
      %s4172 = scalar_lea.vmem %s9, 96
      %v4173 = vld [vmem:[%s4172] sm:$0xff]
      %v4174 = vld [vmem:[%s4172 + $0x8] sm:$0xff]
      %v4175 = vld [vmem:[%s4172 + $0x10] sm:$0xff]
      %v4176 = vld [vmem:[%s4172 + $0x18] sm:$0xff]
      %s4177 = scalar_lea.vmem %s10, 3
      %v4178 = vld [vmem:[%s4177] sm:$0x1]
      %v4180 = vlaneseq
      %v4181 = vshrl.u32 %v4180, 7
      %v4182 = vsub.s32 0, %v4181
      %v4183 = vrot.slane %v4178, %v4182
      %4185 = vmatprep.subr.mxu0 0.0
      %4186 = vmatpush1.msra.mxu0 %v4173
      %4187 = vmatprep.subr.mxu0 0.0
      %4188 = vmatpush1.msra.mxu0 %v4174
      %4189 = vmatprep.subr.mxu0 0.0
      %4190 = vmatpush1.msra.mxu0 %v4175
      %4191 = vmatprep.subr.mxu0 0.0
      %4192 = vmatpush1.msra.mxu0 %v4176
      %4193 = vmatprep.subr.mxu0 0.0
      %4194 = vmatpush1.msra.mxu0 0.0
      %4195 = vmatprep.subr.mxu0 0.0
      %4196 = vmatpush1.msra.mxu0 0.0
      %4197 = vmatprep.subr.mxu0 0.0
      %4198 = vmatpush1.msra.mxu0 0.0
      %4199 = vmatprep.subr.mxu0 0.0
      %4200 = vmatpush1.msra.mxu0 0.0
      %4201 = vmatprep.subr.mxu0 0.0
      %4202 = vmatpush1.msra.mxu0 0.0
      %4203 = vmatprep.subr.mxu0 0.0
      %4204 = vmatpush1.msra.mxu0 0.0
      %4205 = vmatprep.subr.mxu0 0.0
      %4206 = vmatpush1.msra.mxu0 0.0
      %4207 = vmatprep.subr.mxu0 0.0
      %4208 = vmatpush1.msra.mxu0 0.0
      %4209 = vmatprep.subr.mxu0 0.0
      %4210 = vmatpush1.msra.mxu0 0.0
      %4211 = vmatprep.subr.mxu0 0.0
      %4212 = vmatpush1.msra.mxu0 0.0
      %4213 = vmatprep.subr.mxu0 0.0
      %4214 = vmatpush1.msra.mxu0 0.0
      %4215 = vmatprep.subr.mxu0 0.0
      %4216 = vmatpush1.msra.mxu0 0.0
      %4217 = vmatprep.subr.mxu0 0.0
      %4218 = vmatpush1.msra.mxu0 0.0
      %4219 = vmatprep.subr.mxu0 0.0
      %4220 = vmatpush1.msra.mxu0 0.0
      %4221 = vmatprep.subr.mxu0 0.0
      %4222 = vmatpush1.msra.mxu0 0.0
      %4223 = vmatprep.subr.mxu0 0.0
      %4224 = vmatpush1.msra.mxu0 0.0
      %4225 = vmatprep.subr.mxu0 0.0
      %4226 = vmatpush1.msra.mxu0 0.0
      %4227 = vmatprep.subr.mxu0 0.0
      %4228 = vmatpush1.msra.mxu0 0.0
      %4229 = vmatprep.subr.mxu0 0.0
      %4230 = vmatpush1.msra.mxu0 0.0
      %4231 = vmatprep.subr.mxu0 0.0
      %4232 = vmatpush1.msra.mxu0 0.0
      %4233 = vmatprep.subr.mxu0 0.0
      %4234 = vmatpush1.msra.mxu0 0.0
      %4235 = vmatprep.subr.mxu0 0.0
      %4236 = vmatpush1.msra.mxu0 0.0
      %4237 = vmatprep.subr.mxu0 0.0
      %4238 = vmatpush1.msra.mxu0 0.0
      %4239 = vmatprep.subr.mxu0 0.0
      %4240 = vmatpush1.msra.mxu0 0.0
      %4241 = vmatprep.subr.mxu0 0.0
      %4242 = vmatpush1.msra.mxu0 0.0
      %4243 = vmatprep.subr.mxu0 0.0
      %4244 = vmatpush1.msra.mxu0 0.0
      %4245 = vmatprep.subr.mxu0 0.0
      %4246 = vmatpush1.msra.mxu0 0.0
      %4247 = vmatprep.subr.mxu0 0.0
      %4248 = vmatpush1.msra.mxu0 0.0
      %4249 = vmatprep.mubr.f32.mxu0 0.0
      %4250 = vmatmul.mubr.f32.gmra.mrb[0].mxu0 %v2672
      %v4251 = vpop.f32.mrb[0].mxu0
      %v4252 = vadd.f32 %v4183, %v4251
      %v4253 = vpop.f32.mrb[0].mxu0
      %4254 = vdwg.mxu0
      %s4255 = scalar_lea.vmem %s9, 224
      %v4256 = vld [vmem:[%s4255] sm:$0xff]
      %v4257 = vld [vmem:[%s4255 + $0x8] sm:$0xff]
      %v4258 = vld [vmem:[%s4255 + $0x10] sm:$0xff]
      %v4259 = vld [vmem:[%s4255 + $0x18] sm:$0xff]
      %s4260 = scalar_lea.vmem %s10, 7
      %v4261 = vld [vmem:[%s4260] sm:$0x1]
      %v4263 = vlaneseq
      %v4264 = vshrl.u32 %v4263, 7
      %v4265 = vsub.s32 0, %v4264
      %v4266 = vrot.slane %v4261, %v4265
      %4268 = vmatprep.subr.mxu0 0.0
      %4269 = vmatpush1.msra.mxu0 %v4256
      %4270 = vmatprep.subr.mxu0 0.0
      %4271 = vmatpush1.msra.mxu0 %v4257
      %4272 = vmatprep.subr.mxu0 0.0
      %4273 = vmatpush1.msra.mxu0 %v4258
      %4274 = vmatprep.subr.mxu0 0.0
      %4275 = vmatpush1.msra.mxu0 %v4259
      %4276 = vmatprep.subr.mxu0 0.0
      %4277 = vmatpush1.msra.mxu0 0.0
      %4278 = vmatprep.subr.mxu0 0.0
      %4279 = vmatpush1.msra.mxu0 0.0
      %4280 = vmatprep.subr.mxu0 0.0
      %4281 = vmatpush1.msra.mxu0 0.0
      %4282 = vmatprep.subr.mxu0 0.0
      %4283 = vmatpush1.msra.mxu0 0.0
      %4284 = vmatprep.subr.mxu0 0.0
      %4285 = vmatpush1.msra.mxu0 0.0
      %4286 = vmatprep.subr.mxu0 0.0
      %4287 = vmatpush1.msra.mxu0 0.0
      %4288 = vmatprep.subr.mxu0 0.0
      %4289 = vmatpush1.msra.mxu0 0.0
      %4290 = vmatprep.subr.mxu0 0.0
      %4291 = vmatpush1.msra.mxu0 0.0
      %4292 = vmatprep.subr.mxu0 0.0
      %4293 = vmatpush1.msra.mxu0 0.0
      %4294 = vmatprep.subr.mxu0 0.0
      %4295 = vmatpush1.msra.mxu0 0.0
      %4296 = vmatprep.subr.mxu0 0.0
      %4297 = vmatpush1.msra.mxu0 0.0
      %4298 = vmatprep.subr.mxu0 0.0
      %4299 = vmatpush1.msra.mxu0 0.0
      %4300 = vmatprep.subr.mxu0 0.0
      %4301 = vmatpush1.msra.mxu0 0.0
      %4302 = vmatprep.subr.mxu0 0.0
      %4303 = vmatpush1.msra.mxu0 0.0
      %4304 = vmatprep.subr.mxu0 0.0
      %4305 = vmatpush1.msra.mxu0 0.0
      %4306 = vmatprep.subr.mxu0 0.0
      %4307 = vmatpush1.msra.mxu0 0.0
      %4308 = vmatprep.subr.mxu0 0.0
      %4309 = vmatpush1.msra.mxu0 0.0
      %4310 = vmatprep.subr.mxu0 0.0
      %4311 = vmatpush1.msra.mxu0 0.0
      %4312 = vmatprep.subr.mxu0 0.0
      %4313 = vmatpush1.msra.mxu0 0.0
      %4314 = vmatprep.subr.mxu0 0.0
      %4315 = vmatpush1.msra.mxu0 0.0
      %4316 = vmatprep.subr.mxu0 0.0
      %4317 = vmatpush1.msra.mxu0 0.0
      %4318 = vmatprep.subr.mxu0 0.0
      %4319 = vmatpush1.msra.mxu0 0.0
      %4320 = vmatprep.subr.mxu0 0.0
      %4321 = vmatpush1.msra.mxu0 0.0
      %4322 = vmatprep.subr.mxu0 0.0
      %4323 = vmatpush1.msra.mxu0 0.0
      %4324 = vmatprep.subr.mxu0 0.0
      %4325 = vmatpush1.msra.mxu0 0.0
      %4326 = vmatprep.subr.mxu0 0.0
      %4327 = vmatpush1.msra.mxu0 0.0
      %4328 = vmatprep.subr.mxu0 0.0
      %4329 = vmatpush1.msra.mxu0 0.0
      %4330 = vmatprep.subr.mxu0 0.0
      %4331 = vmatpush1.msra.mxu0 0.0
      %4332 = vmatprep.mubr.f32.mxu0 0.0
      %4333 = vmatmul.mubr.f32.gmra.mrb[0].mxu0 %v2758
      %v4334 = vpop.f32.mrb[0].mxu0
      %v4335 = vadd.f32 %v4266, %v4334
      %v4336 = vpop.f32.mrb[0].mxu0
      %4337 = vmatprep.mubr.f32.mxu0 0.0
      %4338 = vmatmul.mubr.f32.gmra.mrb[0].mxu0 %v2761
      %v4339 = vpop.f32.mrb[0].mxu0
      %v4340 = vadd.f32 %v4266, %v4339
      %v4341 = vpop.f32.mrb[0].mxu0
      %4342 = vdwg.mxu0
      %s4343 = scalar_lea.vmem %s9, 352
      %v4344 = vld [vmem:[%s4343] sm:$0xff]
      %v4345 = vld [vmem:[%s4343 + $0x8] sm:$0xff]
      %v4346 = vld [vmem:[%s4343 + $0x10] sm:$0xff]
      %v4347 = vld [vmem:[%s4343 + $0x18] sm:$0xff]
      %s4348 = scalar_lea.vmem %s10, 11
      %v4349 = vld [vmem:[%s4348] sm:$0x1]
      %v4351 = vlaneseq
      %v4352 = vshrl.u32 %v4351, 7
      %v4353 = vsub.s32 0, %v4352
      %v4354 = vrot.slane %v4349, %v4353
      %4356 = vmatprep.subr.mxu0 0.0
      %4357 = vmatpush1.msra.mxu0 %v4344
      %4358 = vmatprep.subr.mxu0 0.0
      %4359 = vmatpush1.msra.mxu0 %v4345
      %4360 = vmatprep.subr.mxu0 0.0
      %4361 = vmatpush1.msra.mxu0 %v4346
      %4362 = vmatprep.subr.mxu0 0.0
      %4363 = vmatpush1.msra.mxu0 %v4347
      %4364 = vmatprep.subr.mxu0 0.0
      %4365 = vmatpush1.msra.mxu0 0.0
      %4366 = vmatprep.subr.mxu0 0.0
      %4367 = vmatpush1.msra.mxu0 0.0
      %4368 = vmatprep.subr.mxu0 0.0
      %4369 = vmatpush1.msra.mxu0 0.0
      %4370 = vmatprep.subr.mxu0 0.0
      %4371 = vmatpush1.msra.mxu0 0.0
      %4372 = vmatprep.subr.mxu0 0.0
      %4373 = vmatpush1.msra.mxu0 0.0
      %4374 = vmatprep.subr.mxu0 0.0
      %4375 = vmatpush1.msra.mxu0 0.0
      %4376 = vmatprep.subr.mxu0 0.0
      %4377 = vmatpush1.msra.mxu0 0.0
      %4378 = vmatprep.subr.mxu0 0.0
      %4379 = vmatpush1.msra.mxu0 0.0
      %4380 = vmatprep.subr.mxu0 0.0
      %4381 = vmatpush1.msra.mxu0 0.0
      %4382 = vmatprep.subr.mxu0 0.0
      %4383 = vmatpush1.msra.mxu0 0.0
      %4384 = vmatprep.subr.mxu0 0.0
      %4385 = vmatpush1.msra.mxu0 0.0
      %4386 = vmatprep.subr.mxu0 0.0
      %4387 = vmatpush1.msra.mxu0 0.0
      %4388 = vmatprep.subr.mxu0 0.0
      %4389 = vmatpush1.msra.mxu0 0.0
      %4390 = vmatprep.subr.mxu0 0.0
      %4391 = vmatpush1.msra.mxu0 0.0
      %4392 = vmatprep.subr.mxu0 0.0
      %4393 = vmatpush1.msra.mxu0 0.0
      %4394 = vmatprep.subr.mxu0 0.0
      %4395 = vmatpush1.msra.mxu0 0.0
      %4396 = vmatprep.subr.mxu0 0.0
      %4397 = vmatpush1.msra.mxu0 0.0
      %4398 = vmatprep.subr.mxu0 0.0
      %4399 = vmatpush1.msra.mxu0 0.0
      %4400 = vmatprep.subr.mxu0 0.0
      %4401 = vmatpush1.msra.mxu0 0.0
      %4402 = vmatprep.subr.mxu0 0.0
      %4403 = vmatpush1.msra.mxu0 0.0
      %4404 = vmatprep.subr.mxu0 0.0
      %4405 = vmatpush1.msra.mxu0 0.0
      %4406 = vmatprep.subr.mxu0 0.0
      %4407 = vmatpush1.msra.mxu0 0.0
      %4408 = vmatprep.subr.mxu0 0.0
      %4409 = vmatpush1.msra.mxu0 0.0
      %4410 = vmatprep.subr.mxu0 0.0
      %4411 = vmatpush1.msra.mxu0 0.0
      %4412 = vmatprep.subr.mxu0 0.0
      %4413 = vmatpush1.msra.mxu0 0.0
      %4414 = vmatprep.subr.mxu0 0.0
      %4415 = vmatpush1.msra.mxu0 0.0
      %4416 = vmatprep.subr.mxu0 0.0
      %4417 = vmatpush1.msra.mxu0 0.0
      %4418 = vmatprep.subr.mxu0 0.0
      %4419 = vmatpush1.msra.mxu0 0.0
      %4420 = vmatprep.mubr.f32.mxu0 0.0
      %4421 = vmatmul.mubr.f32.gmra.mrb[0].mxu0 %v2758
      %v4422 = vpop.f32.mrb[0].mxu0
      %v4423 = vadd.f32 %v4354, %v4422
      %v4424 = vpop.f32.mrb[0].mxu0
      %4425 = vmatprep.mubr.f32.mxu0 0.0
      %4426 = vmatmul.mubr.f32.gmra.mrb[0].mxu0 %v2761
      %v4427 = vpop.f32.mrb[0].mxu0
      %v4428 = vadd.f32 %v4354, %v4427
      %v4429 = vpop.f32.mrb[0].mxu0
      %4430 = vdwg.mxu0
      %v4432 = vsel %vm928, %v4252, 0
      %v4435 = vsel %vm928, %v4335, 0
      %v4438 = vsel %vm928, %v4340, 0
      %4440 = vmatprep.subr.mxu0 0.0
      %4441 = vmatpush1.xpose.msra.mxu0 %v4435
      %4442 = vmatprep.subr.mxu0 0.0
      %4443 = vmatpush1.xpose.msra.mxu0 %v4438
      %4444 = vmatprep.subr.mxu0 0.0
      %4445 = vmatpush1.xpose.msra.mxu0 0.0
      %4446 = vmatprep.subr.mxu0 0.0
      %4447 = vmatpush1.xpose.msra.mxu0 0.0
      %4448 = vmatprep.subr.mxu0 0.0
      %4449 = vmatpush1.xpose.msra.mxu0 0.0
      %4450 = vmatprep.subr.mxu0 0.0
      %4451 = vmatpush1.xpose.msra.mxu0 0.0
      %4452 = vmatprep.subr.mxu0 0.0
      %4453 = vmatpush1.xpose.msra.mxu0 0.0
      %4454 = vmatprep.subr.mxu0 0.0
      %4455 = vmatpush1.xpose.msra.mxu0 0.0
      %4456 = vmatprep.subr.mxu0 0.0
      %4457 = vmatpush1.xpose.msra.mxu0 0.0
      %4458 = vmatprep.subr.mxu0 0.0
      %4459 = vmatpush1.xpose.msra.mxu0 0.0
      %4460 = vmatprep.subr.mxu0 0.0
      %4461 = vmatpush1.xpose.msra.mxu0 0.0
      %4462 = vmatprep.subr.mxu0 0.0
      %4463 = vmatpush1.xpose.msra.mxu0 0.0
      %4464 = vmatprep.subr.mxu0 0.0
      %4465 = vmatpush1.xpose.msra.mxu0 0.0
      %4466 = vmatprep.subr.mxu0 0.0
      %4467 = vmatpush1.xpose.msra.mxu0 0.0
      %4468 = vmatprep.subr.mxu0 0.0
      %4469 = vmatpush1.xpose.msra.mxu0 0.0
      %4470 = vmatprep.subr.mxu0 0.0
      %4471 = vmatpush1.xpose.msra.mxu0 0.0
      %4472 = vmatprep.subr.mxu0 0.0
      %4473 = vmatpush1.xpose.msra.mxu0 0.0
      %4474 = vmatprep.subr.mxu0 0.0
      %4475 = vmatpush1.xpose.msra.mxu0 0.0
      %4476 = vmatprep.subr.mxu0 0.0
      %4477 = vmatpush1.xpose.msra.mxu0 0.0
      %4478 = vmatprep.subr.mxu0 0.0
      %4479 = vmatpush1.xpose.msra.mxu0 0.0
      %4480 = vmatprep.subr.mxu0 0.0
      %4481 = vmatpush1.xpose.msra.mxu0 0.0
      %4482 = vmatprep.subr.mxu0 0.0
      %4483 = vmatpush1.xpose.msra.mxu0 0.0
      %4484 = vmatprep.subr.mxu0 0.0
      %4485 = vmatpush1.xpose.msra.mxu0 0.0
      %4486 = vmatprep.subr.mxu0 0.0
      %4487 = vmatpush1.xpose.msra.mxu0 0.0
      %4488 = vmatprep.subr.mxu0 0.0
      %4489 = vmatpush1.xpose.msra.mxu0 0.0
      %4490 = vmatprep.subr.mxu0 0.0
      %4491 = vmatpush1.xpose.msra.mxu0 0.0
      %4492 = vmatprep.subr.mxu0 0.0
      %4493 = vmatpush1.xpose.msra.mxu0 0.0
      %4494 = vmatprep.subr.mxu0 0.0
      %4495 = vmatpush1.xpose.msra.mxu0 0.0
      %4496 = vmatprep.subr.mxu0 0.0
      %4497 = vmatpush1.xpose.msra.mxu0 0.0
      %4498 = vmatprep.subr.mxu0 0.0
      %4499 = vmatpush1.xpose.msra.mxu0 0.0
      %4500 = vmatprep.subr.mxu0 0.0
      %4501 = vmatpush1.xpose.msra.mxu0 0.0
      %4502 = vmatprep.subr.mxu0 0.0
      %4503 = vmatpush1.xpose.msra.mxu0 0.0
      %4504 = vmatprep.mubr.f32.mxu0 0.0
      %4505 = vmatmul.mubr.f32.gmra.mrb[0].mxu0 %v4432
      %v4506 = vpop.f32.mrb[0].mxu0
      %v4507 = vadd.f32 0.0, %v4506
      %v4508 = vpop.f32.mrb[0].mxu0
      %4509 = vdwg.mxu0
      %v4510 = vmul.f32 %v4507, 0.35355338
      %v4511 = vsel %vm3006, %v4510, -inf
      %4512 = vmax.xlane.f32.xlu0 %v4511
      %v4513 = vpop.xlane.xlu0 %4512
      %v4514 = vsub.f32 %v4510, %v4513
      %v4515 = vmul.f32 %v4514, 1.442695
      %v4516 = vpow.pop %v4515
      %v4517 = vsel %vm3006, %v4516, 0.0
      %4518 = vadd.xlane.f32.xlu0 %v4517
      %v4519 = vpop.xlane.xlu0 %4518
      %v4520 = vrcp.pop %v4519
      %v4521 = vmul.f32 %v4516, %v4520
      %v4523 = vsel %vm3006, %v4521, 0
      %v4526 = vsel %vm3021, %v4428, 0
      %4528 = vmatprep.subr.mxu0 0.0
      %4529 = vmatpush1.msra.mxu0 %v4423
      %4530 = vmatprep.subr.mxu0 0.0
      %4531 = vmatpush1.msra.mxu0 %v4526
      %4532 = vmatprep.subr.mxu0 0.0
      %4533 = vmatpush1.msra.mxu0 0.0
      %4534 = vmatprep.subr.mxu0 0.0
      %4535 = vmatpush1.msra.mxu0 0.0
      %4536 = vmatprep.subr.mxu0 0.0
      %4537 = vmatpush1.msra.mxu0 0.0
      %4538 = vmatprep.subr.mxu0 0.0
      %4539 = vmatpush1.msra.mxu0 0.0
      %4540 = vmatprep.subr.mxu0 0.0
      %4541 = vmatpush1.msra.mxu0 0.0
      %4542 = vmatprep.subr.mxu0 0.0
      %4543 = vmatpush1.msra.mxu0 0.0
      %4544 = vmatprep.subr.mxu0 0.0
      %4545 = vmatpush1.msra.mxu0 0.0
      %4546 = vmatprep.subr.mxu0 0.0
      %4547 = vmatpush1.msra.mxu0 0.0
      %4548 = vmatprep.subr.mxu0 0.0
      %4549 = vmatpush1.msra.mxu0 0.0
      %4550 = vmatprep.subr.mxu0 0.0
      %4551 = vmatpush1.msra.mxu0 0.0
      %4552 = vmatprep.subr.mxu0 0.0
      %4553 = vmatpush1.msra.mxu0 0.0
      %4554 = vmatprep.subr.mxu0 0.0
      %4555 = vmatpush1.msra.mxu0 0.0
      %4556 = vmatprep.subr.mxu0 0.0
      %4557 = vmatpush1.msra.mxu0 0.0
      %4558 = vmatprep.subr.mxu0 0.0
      %4559 = vmatpush1.msra.mxu0 0.0
      %4560 = vmatprep.subr.mxu0 0.0
      %4561 = vmatpush1.msra.mxu0 0.0
      %4562 = vmatprep.subr.mxu0 0.0
      %4563 = vmatpush1.msra.mxu0 0.0
      %4564 = vmatprep.subr.mxu0 0.0
      %4565 = vmatpush1.msra.mxu0 0.0
      %4566 = vmatprep.subr.mxu0 0.0
      %4567 = vmatpush1.msra.mxu0 0.0
      %4568 = vmatprep.subr.mxu0 0.0
      %4569 = vmatpush1.msra.mxu0 0.0
      %4570 = vmatprep.subr.mxu0 0.0
      %4571 = vmatpush1.msra.mxu0 0.0
      %4572 = vmatprep.subr.mxu0 0.0
      %4573 = vmatpush1.msra.mxu0 0.0
      %4574 = vmatprep.subr.mxu0 0.0
      %4575 = vmatpush1.msra.mxu0 0.0
      %4576 = vmatprep.subr.mxu0 0.0
      %4577 = vmatpush1.msra.mxu0 0.0
      %4578 = vmatprep.subr.mxu0 0.0
      %4579 = vmatpush1.msra.mxu0 0.0
      %4580 = vmatprep.subr.mxu0 0.0
      %4581 = vmatpush1.msra.mxu0 0.0
      %4582 = vmatprep.subr.mxu0 0.0
      %4583 = vmatpush1.msra.mxu0 0.0
      %4584 = vmatprep.subr.mxu0 0.0
      %4585 = vmatpush1.msra.mxu0 0.0
      %4586 = vmatprep.subr.mxu0 0.0
      %4587 = vmatpush1.msra.mxu0 0.0
      %4588 = vmatprep.subr.mxu0 0.0
      %4589 = vmatpush1.msra.mxu0 0.0
      %4590 = vmatprep.subr.mxu0 0.0
      %4591 = vmatpush1.msra.mxu0 0.0
      %4592 = vmatprep.mubr.f32.mxu0 0.0
      %4593 = vmatmul.mubr.f32.gmra.mrb[0].mxu0 %v4523
      %v4594 = vpop.f32.mrb[0].mxu0
      %v4595 = vadd.f32 0.0, %v4594
      %v4596 = vpop.f32.mrb[0].mxu0
      %4597 = vdwg.mxu0
      %s4598 = scalar_lea.vmem %s11, 24
      %v4599 = vld [vmem:[%s4598] sm:$0xff]
      %v4601 = vsel %vm928, %v4595, 0
      %4603 = vmatprep.subr.mxu0 0.0
      %4604 = vmatpush1.msra.mxu0 %v4599
      %4605 = vmatprep.subr.mxu0 0.0
      %4606 = vmatpush1.msra.mxu0 0.0
      %4607 = vmatprep.subr.mxu0 0.0
      %4608 = vmatpush1.msra.mxu0 0.0
      %4609 = vmatprep.subr.mxu0 0.0
      %4610 = vmatpush1.msra.mxu0 0.0
      %4611 = vmatprep.subr.mxu0 0.0
      %4612 = vmatpush1.msra.mxu0 0.0
      %4613 = vmatprep.subr.mxu0 0.0
      %4614 = vmatpush1.msra.mxu0 0.0
      %4615 = vmatprep.subr.mxu0 0.0
      %4616 = vmatpush1.msra.mxu0 0.0
      %4617 = vmatprep.subr.mxu0 0.0
      %4618 = vmatpush1.msra.mxu0 0.0
      %4619 = vmatprep.subr.mxu0 0.0
      %4620 = vmatpush1.msra.mxu0 0.0
      %4621 = vmatprep.subr.mxu0 0.0
      %4622 = vmatpush1.msra.mxu0 0.0
      %4623 = vmatprep.subr.mxu0 0.0
      %4624 = vmatpush1.msra.mxu0 0.0
      %4625 = vmatprep.subr.mxu0 0.0
      %4626 = vmatpush1.msra.mxu0 0.0
      %4627 = vmatprep.subr.mxu0 0.0
      %4628 = vmatpush1.msra.mxu0 0.0
      %4629 = vmatprep.subr.mxu0 0.0
      %4630 = vmatpush1.msra.mxu0 0.0
      %4631 = vmatprep.subr.mxu0 0.0
      %4632 = vmatpush1.msra.mxu0 0.0
      %4633 = vmatprep.subr.mxu0 0.0
      %4634 = vmatpush1.msra.mxu0 0.0
      %4635 = vmatprep.subr.mxu0 0.0
      %4636 = vmatpush1.msra.mxu0 0.0
      %4637 = vmatprep.subr.mxu0 0.0
      %4638 = vmatpush1.msra.mxu0 0.0
      %4639 = vmatprep.subr.mxu0 0.0
      %4640 = vmatpush1.msra.mxu0 0.0
      %4641 = vmatprep.subr.mxu0 0.0
      %4642 = vmatpush1.msra.mxu0 0.0
      %4643 = vmatprep.subr.mxu0 0.0
      %4644 = vmatpush1.msra.mxu0 0.0
      %4645 = vmatprep.subr.mxu0 0.0
      %4646 = vmatpush1.msra.mxu0 0.0
      %4647 = vmatprep.subr.mxu0 0.0
      %4648 = vmatpush1.msra.mxu0 0.0
      %4649 = vmatprep.subr.mxu0 0.0
      %4650 = vmatpush1.msra.mxu0 0.0
      %4651 = vmatprep.subr.mxu0 0.0
      %4652 = vmatpush1.msra.mxu0 0.0
      %4653 = vmatprep.subr.mxu0 0.0
      %4654 = vmatpush1.msra.mxu0 0.0
      %4655 = vmatprep.subr.mxu0 0.0
      %4656 = vmatpush1.msra.mxu0 0.0
      %4657 = vmatprep.subr.mxu0 0.0
      %4658 = vmatpush1.msra.mxu0 0.0
      %4659 = vmatprep.subr.mxu0 0.0
      %4660 = vmatpush1.msra.mxu0 0.0
      %4661 = vmatprep.subr.mxu0 0.0
      %4662 = vmatpush1.msra.mxu0 0.0
      %4663 = vmatprep.subr.mxu0 0.0
      %4664 = vmatpush1.msra.mxu0 0.0
      %4665 = vmatprep.subr.mxu0 0.0
      %4666 = vmatpush1.msra.mxu0 0.0
      %4667 = vmatprep.mubr.f32.mxu0 0.0
      %4668 = vmatmul.mubr.f32.gmra.mrb[0].mxu0 %v4601
      %v4669 = vpop.f32.mrb[0].mxu0
      %v4670 = vadd.f32 0.0, %v4669
      %v4671 = vpop.f32.mrb[0].mxu0
      %4672 = vdwg.mxu0
      %v4673 = vadd.f32 %v4171, %v4670
      %v4674 = vld [vmem:[%s12] sm:$0x1]
      %v4676 = vlaneseq
      %v4677 = vshrl.u32 %v4676, 7
      %v4678 = vsub.s32 0, %v4677
      %v4679 = vrot.slane %v4674, %v4678
      %v4681 = vadd.f32 %v4673, %v4679
      %v4682 = vadd.f32 %v2659, %v4681
      %v4683 = vsel %vm688, %v4682, 0.0
      %4684 = vadd.xlane.f32.xlu0 %v4683
      %v4685 = vpop.xlane.xlu0 %4684
      %v4686 = vmul.f32 %v4685, %v2633
      %v4687 = vsub.f32 %v4682, %v4686
      %v4688 = vmul.f32 %v4687, %v4687
      %v4689 = vsel %vm688, %v4688, 0.0
      %4690 = vadd.xlane.f32.xlu0 %v4689
      %v4691 = vpop.xlane.xlu0 %4690
      %v4692 = vmul.f32 %v4691, %v2633
      %v4693 = vadd.f32 %v4692, 1e-05
      %v4694 = vrsqrt.pop %v4693
      %v4695 = vmul.f32 %v4687, %v4694
      %v4696 = vld [vmem:[%s13] sm:$0x1]
      %v4698 = vlaneseq
      %v4699 = vshrl.u32 %v4698, 7
      %v4700 = vsub.s32 0, %v4699
      %v4701 = vrot.slane %v4696, %v4700
      %v4703 = vmul.f32 %v4695, %v4701
      %v4704 = vld [vmem:[%s14] sm:$0x1]
      %v4706 = vlaneseq
      %v4707 = vshrl.u32 %v4706, 7
      %v4708 = vsub.s32 0, %v4707
      %v4709 = vrot.slane %v4704, %v4708
      %v4711 = vadd.f32 %v4703, %v4709
      %v4712 = vld [vmem:[%s15] sm:$0xff]
      %v4713 = vld [vmem:[%s15 + $0x8] sm:$0xff]
      %v4714 = vld [vmem:[%s15 + $0x10] sm:$0xff]
      %v4715 = vld [vmem:[%s15 + $0x18] sm:$0xff]
      %v4716 = vld [vmem:[%s16] sm:$0x1]
      %v4718 = vlaneseq
      %v4719 = vshrl.u32 %v4718, 7
      %v4720 = vsub.s32 0, %v4719
      %v4721 = vrot.slane %v4716, %v4720
      %v4724 = vsel %vm688, %v4711, 0
      %4726 = vmatprep.subr.mxu0 0.0
      %4727 = vmatpush1.msra.mxu0 %v4712
      %4728 = vmatprep.subr.mxu0 0.0
      %4729 = vmatpush1.msra.mxu0 %v4713
      %4730 = vmatprep.subr.mxu0 0.0
      %4731 = vmatpush1.msra.mxu0 %v4714
      %4732 = vmatprep.subr.mxu0 0.0
      %4733 = vmatpush1.msra.mxu0 %v4715
      %4734 = vmatprep.subr.mxu0 0.0
      %4735 = vmatpush1.msra.mxu0 0.0
      %4736 = vmatprep.subr.mxu0 0.0
      %4737 = vmatpush1.msra.mxu0 0.0
      %4738 = vmatprep.subr.mxu0 0.0
      %4739 = vmatpush1.msra.mxu0 0.0
      %4740 = vmatprep.subr.mxu0 0.0
      %4741 = vmatpush1.msra.mxu0 0.0
      %4742 = vmatprep.subr.mxu0 0.0
      %4743 = vmatpush1.msra.mxu0 0.0
      %4744 = vmatprep.subr.mxu0 0.0
      %4745 = vmatpush1.msra.mxu0 0.0
      %4746 = vmatprep.subr.mxu0 0.0
      %4747 = vmatpush1.msra.mxu0 0.0
      %4748 = vmatprep.subr.mxu0 0.0
      %4749 = vmatpush1.msra.mxu0 0.0
      %4750 = vmatprep.subr.mxu0 0.0
      %4751 = vmatpush1.msra.mxu0 0.0
      %4752 = vmatprep.subr.mxu0 0.0
      %4753 = vmatpush1.msra.mxu0 0.0
      %4754 = vmatprep.subr.mxu0 0.0
      %4755 = vmatpush1.msra.mxu0 0.0
      %4756 = vmatprep.subr.mxu0 0.0
      %4757 = vmatpush1.msra.mxu0 0.0
      %4758 = vmatprep.subr.mxu0 0.0
      %4759 = vmatpush1.msra.mxu0 0.0
      %4760 = vmatprep.subr.mxu0 0.0
      %4761 = vmatpush1.msra.mxu0 0.0
      %4762 = vmatprep.subr.mxu0 0.0
      %4763 = vmatpush1.msra.mxu0 0.0
      %4764 = vmatprep.subr.mxu0 0.0
      %4765 = vmatpush1.msra.mxu0 0.0
      %4766 = vmatprep.subr.mxu0 0.0
      %4767 = vmatpush1.msra.mxu0 0.0
      %4768 = vmatprep.subr.mxu0 0.0
      %4769 = vmatpush1.msra.mxu0 0.0
      %4770 = vmatprep.subr.mxu0 0.0
      %4771 = vmatpush1.msra.mxu0 0.0
      %4772 = vmatprep.subr.mxu0 0.0
      %4773 = vmatpush1.msra.mxu0 0.0
      %4774 = vmatprep.subr.mxu0 0.0
      %4775 = vmatpush1.msra.mxu0 0.0
      %4776 = vmatprep.subr.mxu0 0.0
      %4777 = vmatpush1.msra.mxu0 0.0
      %4778 = vmatprep.subr.mxu0 0.0
      %4779 = vmatpush1.msra.mxu0 0.0
      %4780 = vmatprep.subr.mxu0 0.0
      %4781 = vmatpush1.msra.mxu0 0.0
      %4782 = vmatprep.subr.mxu0 0.0
      %4783 = vmatpush1.msra.mxu0 0.0
      %4784 = vmatprep.subr.mxu0 0.0
      %4785 = vmatpush1.msra.mxu0 0.0
      %4786 = vmatprep.subr.mxu0 0.0
      %4787 = vmatpush1.msra.mxu0 0.0
      %4788 = vmatprep.subr.mxu0 0.0
      %4789 = vmatpush1.msra.mxu0 0.0
      %4790 = vmatprep.mubr.f32.mxu0 0.0
      %4791 = vmatmul.mubr.f32.gmra.mrb[0].mxu0 %v4724
      %v4792 = vpop.f32.mrb[0].mxu0
      %v4793 = vadd.f32 %v4721, %v4792
      %v4794 = vpop.f32.mrb[0].mxu0
      %4795 = vdwg.mxu0
      %v4796 = vmax.f32 %v4793, 0.0
      %v4797 = vld [vmem:[%s17] sm:$0xff]
      %v4798 = vld [vmem:[%s17 + $0x8] sm:$0xff]
      %v4799 = vld [vmem:[%s17 + $0x10] sm:$0xff]
      %v4800 = vld [vmem:[%s17 + $0x18] sm:$0xff]
      %v4801 = vld [vmem:[%s17 + $0x20] sm:$0xff]
      %v4802 = vld [vmem:[%s17 + $0x28] sm:$0xff]
      %v4803 = vld [vmem:[%s17 + $0x30] sm:$0xff]
      %v4804 = vld [vmem:[%s17 + $0x38] sm:$0xff]
      %v4805 = vld [vmem:[%s18] sm:$0x1]
      %v4807 = vlaneseq
      %v4808 = vshrl.u32 %v4807, 7
      %v4809 = vsub.s32 0, %v4808
      %v4810 = vrot.slane %v4805, %v4809
      %vm4812 = vcmask 523264
      %v4814 = vsel %vm4812, %v4796, 0
      %4816 = vmatprep.subr.mxu0 0.0
      %4817 = vmatpush1.msra.mxu0 %v4797
      %4818 = vmatprep.subr.mxu0 0.0
      %4819 = vmatpush1.msra.mxu0 %v4798
      %4820 = vmatprep.subr.mxu0 0.0
      %4821 = vmatpush1.msra.mxu0 %v4799
      %4822 = vmatprep.subr.mxu0 0.0
      %4823 = vmatpush1.msra.mxu0 %v4800
      %4824 = vmatprep.subr.mxu0 0.0
      %4825 = vmatpush1.msra.mxu0 %v4801
      %4826 = vmatprep.subr.mxu0 0.0
      %4827 = vmatpush1.msra.mxu0 %v4802
      %4828 = vmatprep.subr.mxu0 0.0
      %4829 = vmatpush1.msra.mxu0 %v4803
      %4830 = vmatprep.subr.mxu0 0.0
      %4831 = vmatpush1.msra.mxu0 %v4804
      %4832 = vmatprep.subr.mxu0 0.0
      %4833 = vmatpush1.msra.mxu0 0.0
      %4834 = vmatprep.subr.mxu0 0.0
      %4835 = vmatpush1.msra.mxu0 0.0
      %4836 = vmatprep.subr.mxu0 0.0
      %4837 = vmatpush1.msra.mxu0 0.0
      %4838 = vmatprep.subr.mxu0 0.0
      %4839 = vmatpush1.msra.mxu0 0.0
      %4840 = vmatprep.subr.mxu0 0.0
      %4841 = vmatpush1.msra.mxu0 0.0
      %4842 = vmatprep.subr.mxu0 0.0
      %4843 = vmatpush1.msra.mxu0 0.0
      %4844 = vmatprep.subr.mxu0 0.0
      %4845 = vmatpush1.msra.mxu0 0.0
      %4846 = vmatprep.subr.mxu0 0.0
      %4847 = vmatpush1.msra.mxu0 0.0
      %4848 = vmatprep.subr.mxu0 0.0
      %4849 = vmatpush1.msra.mxu0 0.0
      %4850 = vmatprep.subr.mxu0 0.0
      %4851 = vmatpush1.msra.mxu0 0.0
      %4852 = vmatprep.subr.mxu0 0.0
      %4853 = vmatpush1.msra.mxu0 0.0
      %4854 = vmatprep.subr.mxu0 0.0
      %4855 = vmatpush1.msra.mxu0 0.0
      %4856 = vmatprep.subr.mxu0 0.0
      %4857 = vmatpush1.msra.mxu0 0.0
      %4858 = vmatprep.subr.mxu0 0.0
      %4859 = vmatpush1.msra.mxu0 0.0
      %4860 = vmatprep.subr.mxu0 0.0
      %4861 = vmatpush1.msra.mxu0 0.0
      %4862 = vmatprep.subr.mxu0 0.0
      %4863 = vmatpush1.msra.mxu0 0.0
      %4864 = vmatprep.subr.mxu0 0.0
      %4865 = vmatpush1.msra.mxu0 0.0
      %4866 = vmatprep.subr.mxu0 0.0
      %4867 = vmatpush1.msra.mxu0 0.0
      %4868 = vmatprep.subr.mxu0 0.0
      %4869 = vmatpush1.msra.mxu0 0.0
      %4870 = vmatprep.subr.mxu0 0.0
      %4871 = vmatpush1.msra.mxu0 0.0
      %4872 = vmatprep.subr.mxu0 0.0
      %4873 = vmatpush1.msra.mxu0 0.0
      %4874 = vmatprep.subr.mxu0 0.0
      %4875 = vmatpush1.msra.mxu0 0.0
      %4876 = vmatprep.subr.mxu0 0.0
      %4877 = vmatpush1.msra.mxu0 0.0
      %4878 = vmatprep.subr.mxu0 0.0
      %4879 = vmatpush1.msra.mxu0 0.0
      %4880 = vmatprep.mubr.f32.mxu0 0.0
      %4881 = vmatmul.mubr.f32.gmra.mrb[0].mxu0 %v4814
      %v4882 = vpop.f32.mrb[0].mxu0
      %v4883 = vadd.f32 %v4810, %v4882
      %v4884 = vpop.f32.mrb[0].mxu0
      %4885 = vdwg.mxu0
      %v4886 = vadd.f32 %v4711, %v4883
      %v4887 = vsel %vm688, %v4886, 0.0
      %4888 = vadd.xlane.f32.xlu0 %v4887
      %v4889 = vpop.xlane.xlu0 %4888
      %v4890 = vmul.f32 %v4889, %v2633
      %v4891 = vsub.f32 %v4886, %v4890
      %v4892 = vmul.f32 %v4891, %v4891
      %v4893 = vsel %vm688, %v4892, 0.0
      %4894 = vadd.xlane.f32.xlu0 %v4893
      %v4895 = vpop.xlane.xlu0 %4894
      %v4896 = vmul.f32 %v4895, %v2633
      %v4897 = vadd.f32 %v4896, 1e-05
      %v4898 = vrsqrt.pop %v4897
      %v4899 = vmul.f32 %v4891, %v4898
      %v4900 = vld [vmem:[%s19] sm:$0x1]
      %v4902 = vlaneseq
      %v4903 = vshrl.u32 %v4902, 7
      %v4904 = vsub.s32 0, %v4903
      %v4905 = vrot.slane %v4900, %v4904
      %v4907 = vmul.f32 %v4899, %v4905
      %v4908 = vld [vmem:[%s20] sm:$0x1]
      %v4910 = vlaneseq
      %v4911 = vshrl.u32 %v4910, 7
      %v4912 = vsub.s32 0, %v4911
      %v4913 = vrot.slane %v4908, %v4912
      %v4915 = vadd.f32 %v4907, %v4913
      %4916 = vst.msk [vmem:[%s671] sm:$0xff] %vm688, %v4915
      %p4917 = scmp.lt.s32.totalorder %s32, 1
      %s4918 = scalar_select %p4917, %s32, 1
      %s4919 = smul.addr %s4918, 8
      %s4920 = scalar_lea.vmem %s21, %s4919
      // Predicated region
      $region105: #{trans_seq2seq_forward.4} parent=103 // pred_check
        %p4921 = pneg %p501
      $region106: #{trans_seq2seq_forward.4} parent=103 // pred_check_branch
        %4923 = sbr.rel (%p4921) target = $region108
      $region107: #{trans_seq2seq_forward.4} parent=103 // pred_region
        _
      $region108: #{trans_seq2seq_forward.4} parent=103 // pred_fallthru
        _
    $region104: #{trans_seq2seq_forward.4} parent=5 // pred_fallthru
      _
    %p4924 = scmp.le.s32.totalorder 2, %s27
    // Predicated region
    $region109: #{trans_seq2seq_forward.4} parent=5 // pred_check
      %p4925 = pneg %p4924
    $region110: #{trans_seq2seq_forward.4} parent=5 // pred_check_branch
      %4927 = sbr.rel (%p4925) target = $region112
    $region111: #{trans_seq2seq_forward.4} parent=5 // pred_region
      %s4928 = ssub.s32 %s27, 2
      // Predicated region
      $region113: #{trans_seq2seq_forward.4} parent=111 // pred_check
        %p4929 = pneg %p507
      $region114: #{trans_seq2seq_forward.4} parent=111 // pred_check_branch
        %4931 = sbr.rel (%p4929) target = $region116
      $region115: #{trans_seq2seq_forward.4} parent=111 // pred_region
        %p4932 = scmp.lt.s32.totalorder %s33, 1
        %s4933 = scalar_select %p4932, %s33, 1
        %s4934 = smul.addr %s4933, 8
        %s4935 = scalar_lea.vmem %s21, %s4934
      $region116: #{trans_seq2seq_forward.4} parent=111 // pred_fallthru
        _
    $region112: #{trans_seq2seq_forward.4} parent=5 // pred_fallthru
      _
  $region6: #{trans_seq2seq_forward.4} parent=0 // loop_footer
    %s31 = sadd.s32 1, %s27
  $region7: #{trans_seq2seq_forward.4} parent=0 // loop_footer_branch
    %26 = sbr.rel target = $region3
  $region8: #{trans_seq2seq_forward.4} parent=0 // loop_exit
    _

</llo_original>
